<compile_context>
chip_gen: v7x
topology: tpu7x:2x2x1
jax: 0.10.0
libtpu: 0.0.40
codegen_flags: <defaults>
</compile_context>

<pallas_src>
import math

import jax
import jax.numpy as jnp
from jax.experimental import pallas as pl
from jax.experimental.pallas import tpu as pltpu
from jax.scipy.special import erf as _jax_erf  # reference check only (outside the kernel)

_SQRT_2_OVER_PI = 0.7978845608028654


def _gelu(x):
    # tanh-form GELU (== torch.nn.GELU(approximate="tanh"); |err| vs exact erf GELU
    # < 1e-3, well below the bf16 matmul noise floor). tanh lands on the EUP slot.
    return 0.5 * x * (1.0 + jnp.tanh(_SQRT_2_OVER_PI * (x + 0.044715 * x * x * x)))


# --------------------------------------------------------------------------------------
# Pass 1: attention + du accumulation over neighbor (m) tiles,
#         VecLayerNorm + dihedral_proj at the last m tile.
# --------------------------------------------------------------------------------------
def _attn_du_kernel(
    q_ref, k_ref, v_ref, ea_ref, scale_ref, keep_ref, vec_ref,
    dkw_ref, dkb_ref, duw_ref, dub_ref, bd_ref, dihws_ref, dihwt_ref,
    attn_ref, ws_ref, wt_ref,
    du_acc,
):
    f32 = jnp.float32
    bf16 = jnp.bfloat16
    j = pl.program_id(2)
    nj = pl.num_programs(2)

    TN = q_ref.shape[1]
    TM = k_ref.shape[1]
    F = q_ref.shape[2]

    @pl.when(j == 0)
    def _():
        attn_ref[...] = jnp.zeros_like(attn_ref)
        du_acc[...] = jnp.zeros_like(du_acc)

    q = q_ref[0]                 # (TN, F) f32
    k = k_ref[0]                 # (TM, F) f32
    v = v_ref[0]                 # (TM, F) f32

    # dk = gelu(dk_proj(edge_attr)); edge_attr tile is DMA'd in its HBM dtype and cast
    # to bf16 here (no wrapper-level precast round trip).
    ea2 = ea_ref[0].reshape(TN * TM, F).astype(bf16)
    dk = _gelu(jnp.dot(ea2, dkw_ref[...], preferred_element_type=f32) + dkb_ref[...])

    # prod[(n,m), f] = q[n,f] * k[m,f] * dk[n,m,f]
    prod = (q[:, None, :] * k[None, :, :]).reshape(TN * TM, F) * dk

    # Per-head sum broadcast back over that head's D lanes as ONE dense (F,F)
    # block-diagonal matmul -> full MXU lane utilization.
    head_sums = jnp.dot(prod.astype(bf16), bd_ref[...], preferred_element_type=f32)

    # scale = CosineCutoff(dist) * (1 - mask); masked_fill(..., 0) then gelu(0)=0 is
    # exactly multiplying the probs by the keep mask.
    scale = scale_ref[0][:, :, None]          # (TN, TM, 1)
    keep = keep_ref[0][:, :, None]            # (TN, TM, 1)

    probs = _gelu(head_sums).reshape(TN, TM, F) * scale
    apn = probs * v[None, :, :]               # attn_per_nodes, (TN, TM, F)

    # attn accumulation (output block resident across the m axis)
    attn_ref[0] += jnp.sum(apn, axis=1)

    # du_update_proj + second masking, contracted with vec over m, accumulated in scratch.
    du_in = (jnp.dot(apn.reshape(TN * TM, F).astype(bf16), duw_ref[...],
                     preferred_element_type=f32) + dub_ref[...]).reshape(TN, TM, F)
    du_in = du_in * keep

    du_acc[0] += jnp.sum(vec_ref[0, 0][:, :, None] * du_in, axis=1)
    du_acc[1] += jnp.sum(vec_ref[0, 1][:, :, None] * du_in, axis=1)
    du_acc[2] += jnp.sum(vec_ref[0, 2][:, :, None] * du_in, axis=1)

    # ---- finalize: VecLayerNorm (max_min, weight == ones) + dihedral_proj --------------
    @pl.when(j == nj - 1)
    def _():
        du0, du1, du2 = du_acc[0], du_acc[1], du_acc[2]       # (TN, F) each
        norm = jnp.sqrt(du0 * du0 + du1 * du1 + du2 * du2)
        norm = jnp.maximum(norm, 1e-12)
        max_val = jnp.max(norm, axis=-1, keepdims=True)
        min_val = jnp.min(norm, axis=-1, keepdims=True)
        delta = max_val - min_val
        delta = jnp.where(delta == 0.0, 1.0, delta)
        s = jnp.maximum((norm - min_val) * pl.reciprocal(delta, approx=True), 0.0)
        s = s * pl.reciprocal(norm, approx=True)
        for c, du_c in ((0, du0), (1, du1), (2, du2)):
            dun = (du_c * s).astype(jnp.bfloat16)
            ws_ref[0, c] = jnp.dot(dun, dihws_ref[...], preferred_element_type=f32)
            wt_ref[0, c] = jnp.dot(dun, dihwt_ref[...], preferred_element_type=f32)


# --------------------------------------------------------------------------------------
# Pass 2: ipe = gelu(edge_attr_update(edge_attr)) * sum_c ws[n, c] * wt[m, c]
# --------------------------------------------------------------------------------------
def _ipe_kernel(ea_ref, ws_ref, wt_ref, eaw_ref, eab_ref, ipe_ref):
    f32 = jnp.float32
    bf16 = jnp.bfloat16
    TN = ea_ref.shape[1]
    TM = ea_ref.shape[2]
    F = ea_ref.shape[3]

    ea2 = ea_ref[0].reshape(TN * TM, F).astype(bf16)
    ea_up = _gelu(jnp.dot(ea2, eaw_ref[...], preferred_element_type=f32)
                  + eab_ref[...]).reshape(TN, TM, F)

    ws = ws_ref[0]                                            # (3, TN, F)
    wt = wt_ref[0]                                            # (3, TM, F)
    ipe = (ws[0][:, None, :] * wt[0][None, :, :]
           + ws[1][:, None, :] * wt[1][None, :, :]
           + ws[2][:, None, :] * wt[2][None, :, :])           # (TN, TM, F)
    ipe_ref[0] = (ea_up * ipe).astype(ipe_ref.dtype)


# --------------------------------------------------------------------------------------
# Parameter init (matches torch reset_parameters: xavier_uniform weights, zero biases)
# --------------------------------------------------------------------------------------
def init_params(key, F):
    def xavier(k, shape):
        fan_out, fan_in = shape
        bound = math.sqrt(6.0 / (fan_in + fan_out))
        return jax.random.uniform(k, shape, jnp.float32, -bound, bound)

    keys = jax.random.split(key, 7)
    zeros = jnp.zeros((F,), jnp.float32)
    return {
        "q_w": xavier(keys[0], (F, F)), "q_b": zeros,
        "k_w": xavier(keys[1], (F, F)), "k_b": zeros,
        "v_w": xavier(keys[2], (F, F)), "v_b": zeros,
        "dk_w": xavier(keys[3], (F, F)), "dk_b": zeros,
        "du_w": xavier(keys[4], (F, F)), "du_b": zeros,
        "dih_w": xavier(keys[5], (2 * F, F)),
        "ea_w": xavier(keys[6], (F, F)), "ea_b": zeros,
    }


# --------------------------------------------------------------------------------------
# VMEM-/F-aware tile selection
# --------------------------------------------------------------------------------------
def _tile_candidates(n, step, cap):
    """Divisors of n that are multiples of `step` (capped), plus n itself, descending."""
    out = {n}
    t = min(cap, n)
    t -= t % step
    while t >= step:
        if n % t == 0:
            out.add(t)
        t -= step
    return sorted(out, reverse=True)


def _vmem_limit_bytes():
    try:
        cap = int(pltpu.get_tpu_info().vmem_capacity_bytes)
    except Exception:
        cap = 0
    if cap <= 0:
        cap = 64 * 1024 * 1024        # conservative: fits every generation (v7x = 64 MiB)
    return max(cap - 8 * 1024 * 1024, 32 * 1024 * 1024)


def _pass1_vmem_estimate(tn, tm, F, weight_bufs):
    b4 = 4
    tile = tn * tm * F * b4
    est = 2 * tile                                     # edge_attr f32, double-buffered
    est += 6 * tile                                    # live f32 temps (dk/prod/probs/apn/du_in/slack)
    est += 2 * (tn + 2 * tm) * F * b4                  # q / k / v tiles
    est += 2 * 5 * tn * tm * b4                        # scale + keep + vec tiles
    est += 2 * 7 * tn * F * b4                         # attn + ws + wt output blocks
    est += 3 * tn * F * b4                             # du_acc scratch
    est += weight_bufs * (5 * F * F * 2 + 5 * F * b4)  # weights + biases
    return est


def _pass2_vmem_estimate(tn, tm, F, weight_bufs):
    b4 = 4
    tile = tn * tm * F * b4
    est = 2 * tile                                     # edge_attr f32
    est += 2 * tn * tm * F * 2                         # ipe bf16 output
    est += 3 * tile                                    # live f32 temporaries
    est += 2 * 3 * (tn + tm) * F * b4                  # ws / wt blocks
    est += weight_bufs * (F * F * 2 + F * b4)
    return est


def _pick_tiles(N, F, budget, estimate, tn_step, tm_step, tn_cap, tm_cap):
    best = None
    for tm in _tile_candidates(N, tm_step, tm_cap):
        for tn in _tile_candidates(N, tn_step, tn_cap):
            if estimate(tn, tm, F) > budget:
                continue
            key = (tn * tm, min(tn, tm))
            if best is None or key > best[0]:
                best = (key, (tn, tm))
    if best is None:
        # TODO(synk): nothing fits (huge N*F); fall back to the smallest legal tiles and
        #             rely on vmem_limit_bytes / spilling.
        return (min(_tile_candidates(N, tn_step, tn_cap)),
                min(_tile_candidates(N, tm_step, tm_cap)))
    return best[1]


# --------------------------------------------------------------------------------------
# Wrapper
# --------------------------------------------------------------------------------------
def geoformer_mha(x, vec, dist, edge_attr, key_padding_mask, params, *,
                  num_heads, cutoff, tn=None, tm=None, tn2=None, tm2=None,
                  single_buffer_weights=True):
    f32, bf16 = jnp.float32, jnp.bfloat16
    B, N, F = x.shape
    H = num_heads
    assert F % H == 0
    D = F // H

    vmem_limit = _vmem_limit_bytes()
    budget = int(vmem_limit * 0.9)
    wbufs = 1 if single_buffer_weights else 2
    est1 = lambda a, b, Fv: _pass1_vmem_estimate(a, b, Fv, wbufs)
    est2 = lambda a, b, Fv: _pass2_vmem_estimate(a, b, Fv, wbufs)

    if tn is None or tm is None:
        atn, atm = _pick_tiles(N, F, budget, est1, 8, 128, 256, 512)
        tn = atn if tn is None else tn
        tm = atm if tm is None else tm
    if tn2 is None or tm2 is None:
        atn2, atm2 = _pick_tiles(N, F, budget, est2, 8, 8, 512, 512)
        tn2 = atn2 if tn2 is None else tn2
        tm2 = atm2 if tm2 is None else tm2

    def _check(t, step, name):
        assert N % t == 0, f"{name}={t} must divide N={N}"
        assert t == N or t % step == 0, f"{name}={t} must be a multiple of {step} or == N"

    _check(tn, 8, "tn"); _check(tm, 128, "tm")      # tm: lane dim of scale/keep/vec blocks
    _check(tn2, 8, "tn2"); _check(tm2, 8, "tm2")
    ni, nj = N // tn, N // tm
    ni2, nj2 = N // tn2, N // tm2

    # ---- operand prep ------------------------------------------------------------------
    x_f = x.astype(f32)

    def lin(z, w, b):
        return jnp.dot(z, jnp.asarray(w, f32).T) + jnp.asarray(b, f32)

    # q/k/v hoisted out of the (i, j) grid: O(B*N*F^2), negligible vs O(B*N^2*F^2).
    q = lin(x_f, params["q_w"], params["q_b"])
    k = lin(x_f, params["k_w"], params["k_b"])
    v = lin(x_f, params["v_w"], params["v_b"])

    # Lane-friendly layouts: (B,N,N) scalars and (B,3,N,N) vec (no 2/3-wide minor dim).
    keep = 1.0 - key_padding_mask.astype(f32)                               # (B, N, N)
    dist_f = dist.astype(f32)
    cut = 0.5 * (jnp.cos(dist_f * (math.pi / float(cutoff))) + 1.0)
    cut = cut * (dist_f < float(cutoff)).astype(f32)
    scale = cut * keep                                                      # (B, N, N)
    vec_t = jnp.transpose(vec.astype(f32), (0, 3, 1, 2))                    # (B, 3, N, N)

    def t_bf16(w):
        return jnp.asarray(w, f32).T.astype(bf16)

    dkw, duw, eaw = t_bf16(params["dk_w"]), t_bf16(params["du_w"]), t_bf16(params["ea_w"])
    dih = jnp.asarray(params["dih_w"], f32)            # (2F, F), torch layout (out, in)
    dihws = dih[:F, :].T.astype(bf16)                  # (F, F) -> ws half
    dihwt = dih[F:, :].T.astype(bf16)                  # (F, F) -> wt half
    dkb = jnp.asarray(params["dk_b"], f32).reshape(1, F)
    dub = jnp.asarray(params["du_b"], f32).reshape(1, F)
    eab = jnp.asarray(params["ea_b"], f32).reshape(1, F)

    head_id = jnp.arange(F) // D
    bd = (head_id[:, None] == head_id[None, :]).astype(bf16)   # (F, F) block-diag ones

    # Grid-invariant weights: single-buffer them to free VMEM for the streamed tiles.
    if single_buffer_weights:
        def wspec(shape):
            return pl.BlockSpec(shape, lambda b, i, j: (0,) * len(shape),
                                pipeline_mode=pl.Buffered(1))
    else:
        def wspec(shape):
            return pl.BlockSpec(shape, lambda b, i, j: (0,) * len(shape))

    # ------------------------------ pass 1 ---------------------------------------------
    in_specs1 = [
        pl.BlockSpec((1, tn, F), lambda b, i, j: (b, i, 0)),           # q rows
        pl.BlockSpec((1, tm, F), lambda b, i, j: (b, j, 0)),           # k rows
        pl.BlockSpec((1, tm, F), lambda b, i, j: (b, j, 0)),           # v rows
        pl.BlockSpec((1, tn, tm, F), lambda b, i, j: (b, i, j, 0)),    # edge_attr (HBM dtype)
        pl.BlockSpec((1, tn, tm), lambda b, i, j: (b, i, j)),          # cutoff * keep
        pl.BlockSpec((1, tn, tm), lambda b, i, j: (b, i, j)),          # keep
        pl.BlockSpec((1, 3, tn, tm), lambda b, i, j: (b, 0, i, j)),    # vec, 3 leading
        wspec((F, F)), wspec((1, F)),        # dk_proj
        wspec((F, F)), wspec((1, F)),        # du_update_proj
        wspec((F, F)),                       # block-diag head matrix
        wspec((F, F)), wspec((F, F)),        # dihedral_proj ws / wt halves (bf16)
    ]
    out_specs1 = [
        pl.BlockSpec((1, tn, F), lambda b, i, j: (b, i, 0)),           # attn (acc over m)
        pl.BlockSpec((1, 3, tn, F), lambda b, i, j: (b, 0, i, 0)),     # ws (written at last m)
        pl.BlockSpec((1, 3, tn, F), lambda b, i, j: (b, 0, i, 0)),     # wt
    ]
    out_shape1 = (
        jax.ShapeDtypeStruct((B, N, F), f32),
        jax.ShapeDtypeStruct((B, 3, N, F), f32),
        jax.ShapeDtypeStruct((B, 3, N, F), f32),
    )
    ea_bytes = int(edge_attr.dtype.itemsize)
    cost1 = pl.CostEstimate(
        flops=int(6 * B * N * N * F * F),
        transcendentals=int(2 * B * N * N * F),
        bytes_accessed=int(B * N * N * (ea_bytes * F + 12) + 40 * B * N * F),
    )
    attn, ws, wt = pl.pallas_call(
        _attn_du_kernel,
        out_shape=out_shape1,
        grid_spec=pltpu.PrefetchScalarGridSpec(
            num_scalar_prefetch=0,
            grid=(B, ni, nj),
            in_specs=in_specs1,
            out_specs=out_specs1,
            scratch_shapes=[pltpu.VMEM((3, tn, F), f32)],
        ),
        compiler_params=pltpu.CompilerParams(
            dimension_semantics=("parallel", "parallel", "arbitrary"),
            vmem_limit_bytes=vmem_limit,
        ),
        cost_estimate=cost1,
    )(q, k, v, edge_attr, scale, keep, vec_t,
      dkw, dkb, duw, dub, bd, dihws, dihwt)

    # ------------------------------ pass 2 ---------------------------------------------
    in_specs2 = [
        pl.BlockSpec((1, tn2, tm2, F), lambda b, i, j: (b, i, j, 0)),  # edge_attr tile
        pl.BlockSpec((1, 3, tn2, F), lambda b, i, j: (b, 0, i, 0)),    # ws (n rows)
        pl.BlockSpec((1, 3, tm2, F), lambda b, i, j: (b, 0, j, 0)),    # wt (m rows)
        wspec((F, F)), wspec((1, F)),                                  # edge_attr_update
    ]
    out_specs2 = pl.BlockSpec((1, tn2, tm2, F), lambda b, i, j: (b, i, j, 0))
    cost2 = pl.CostEstimate(
        flops=int(2 * B * N * N * F * F + 8 * B * N * N * F),
        transcendentals=int(B * N * N * F),
        bytes_accessed=int(B * N * N * F * (ea_bytes + 2)),
    )
    ipe = pl.pallas_call(
        _ipe_kernel,
        out_shape=jax.ShapeDtypeStruct((B, N, N, F), bf16),   # bf16: pass 2 is HBM-bound
        grid_spec=pltpu.PrefetchScalarGridSpec(
            num_scalar_prefetch=0,
            grid=(B, ni2, nj2),
            in_specs=in_specs2,
            out_specs=out_specs2,
        ),
        compiler_params=pltpu.CompilerParams(
            dimension_semantics=("parallel", "parallel", "parallel"),
            vmem_limit_bytes=vmem_limit,
        ),
        cost_estimate=cost2,
    )(edge_attr, ws, wt, eaw, eab)

    return attn, ipe


def geoformer_mha_robust(*args, **kwargs):
    """Prefer single-buffered weight specs; fall back if this build rejects Buffered(1)."""
    try:
        out = geoformer_mha(*args, single_buffer_weights=True, **kwargs)
        jax.block_until_ready(out)
        return out
    except Exception:
        # TODO(synk): pl.Buffered(1) single-buffering rejected by this JAX/Mosaic build;
        #             retry with default double-buffered weight BlockSpecs.
        out = geoformer_mha(*args, single_buffer_weights=False, **kwargs)
        jax.block_until_ready(out)
        return out


# --------------------------------------------------------------------------------------
# Self-test
# --------------------------------------------------------------------------------------
if __name__ == "__main__":

    def make_inputs(key, B, N, F):
        k_x, k_pos, k_ea, k_mask, k_p = jax.random.split(key, 5)
        x = jax.random.normal(k_x, (B, N, F), jnp.float32)
        pos = jax.random.uniform(k_pos, (B, N, 3), jnp.float32, 0.0, 4.0)
        vec = pos[:, :, None, :] - pos[:, None, :, :]                 # (B, N, N, 3)
        dist = jnp.sqrt(jnp.sum(vec * vec, axis=-1) + 1e-12)          # (B, N, N)
        edge_attr = jax.random.normal(k_ea, (B, N, N, F), jnp.float32)
        kpm = jax.random.bernoulli(k_mask, 0.2, (B, N, N))
        return x, vec, dist, edge_attr, kpm, k_p

    def ref_forward(x, vec, dist, edge_attr, kpm, params, H, cutoff):
        # pure-JAX f32 reference (exact erf GELU) as a coarse sanity check
        B, N, F = x.shape
        D = F // H
        gelu = lambda z: 0.5 * z * (1.0 + _jax_erf(z / jnp.sqrt(2.0).astype(jnp.float32)))
        lin = lambda z, w, b=None: (z @ jnp.asarray(w, jnp.float32).T
                                    + (0.0 if b is None else b))
        q = lin(x, params["q_w"], params["q_b"])
        k = lin(x, params["k_w"], params["k_b"])
        v = lin(x, params["v_w"], params["v_b"])
        dk = gelu(lin(edge_attr, params["dk_w"], params["dk_b"]))
        prod = q[:, :, None, :] * k[:, None, :, :] * dk
        aw = prod.reshape(B, N, N, H, D).sum(-1)
        aw = jnp.where(kpm[..., None], 0.0, aw)
        cut = 0.5 * (jnp.cos(dist * (jnp.pi / cutoff)) + 1.0) * (dist < cutoff)
        probs = gelu(aw) * cut[..., None]
        apn = jnp.repeat(probs, D, axis=-1) * v[:, None, :, :]
        attn_r = apn.sum(2)
        du_in = jnp.where(kpm[..., None], 0.0,
                          lin(apn, params["du_w"], params["du_b"]))
        du = jnp.einsum("bnmc,bnmf->bncf", vec, du_in)
        norm = jnp.maximum(jnp.sqrt((du * du).sum(axis=2)), 1e-12)
        mx = norm.max(-1, keepdims=True)
        mn = norm.min(-1, keepdims=True)
        delta = jnp.where(mx - mn == 0.0, 1.0, mx - mn)
        s = jnp.maximum((norm - mn) / delta, 0.0) / norm
        dun = du * s[:, :, None, :]
        dih = jnp.asarray(params["dih_w"], jnp.float32)
        ws_r = dun @ dih[:F].T
        wt_r = dun @ dih[F:].T
        ipe_r = jnp.einsum("bncf,bmcf->bnmf", ws_r, wt_r)
        ipe_r = gelu(lin(edge_attr, params["ea_w"], params["ea_b"])) * ipe_r
        return attn_r, ipe_r

    def run_case(key, B, N, F, H, cutoff, tn, tm):
        x, vec, dist, edge_attr, kpm, k_p = make_inputs(key, B, N, F)
        params = init_params(k_p, F)
        attn, ipe = geoformer_mha_robust(x, vec, dist, edge_attr, kpm, params,
                                         num_heads=H, cutoff=cutoff, tn=tn, tm=tm)
        jax.block_until_ready((attn, ipe))

        assert attn.shape == (B, N, F) and attn.dtype == jnp.float32
        assert ipe.shape == (B, N, N, F) and ipe.dtype == jnp.bfloat16
        attn_f = attn.astype(jnp.float32)
        ipe_f = ipe.astype(jnp.float32)
        assert bool(jnp.all(jnp.isfinite(attn_f))) and bool(jnp.all(jnp.isfinite(ipe_f)))

        attn_ref, ipe_ref = ref_forward(x, vec, dist, edge_attr, kpm, params, H, cutoff)
        attn_rel = float(jnp.linalg.norm(attn_f - attn_ref)
                         / (jnp.linalg.norm(attn_ref) + 1e-6))
        ipe_rel = float(jnp.linalg.norm(ipe_f - ipe_ref)
                        / (jnp.linalg.norm(ipe_ref) + 1e-6))
        # Loose bound: kernel uses bf16 MXU inputs + tanh GELU + approx reciprocal + bf16
        # ipe output, so only gross (indexing / contraction) errors would exceed this.
        assert attn_rel < 0.08 and ipe_rel < 0.08, (attn_rel, ipe_rel)

    root = jax.random.PRNGKey(0)
    k1, k2 = jax.random.split(root)
    # small shapes; tn=8 exercises the row-tiled path (grid = (2, 2, 1))
    run_case(k1, B=2, N=16, F=32, H=4, cutoff=5.0, tn=8, tm=16)
    # exercises the accumulating neighbor (m) reduction and finalize-at-last-tile
    # (grid = (1, 4, 2), tm = 128 keeps scale/keep/vec lane-aligned)
    run_case(k2, B=1, N=256, F=32, H=4, cutoff=5.0, tn=64, tm=128)

    print("KERNEL_OK")
</pallas_src>

<mosaic_0001>
module attributes {stable_mosaic.version = 11 : i64} {
  func.func @_attn_du_kernel(%arg0: i32, %arg1: i32, %arg2: i32, %arg3: memref<1x8x32xf32, #tpu.memory_space<vmem>>, %arg4: memref<1x16x32xf32, #tpu.memory_space<vmem>>, %arg5: memref<1x16x32xf32, #tpu.memory_space<vmem>>, %arg6: memref<1x8x16x32xf32, #tpu.memory_space<vmem>>, %arg7: memref<1x8x16xf32, #tpu.memory_space<vmem>>, %arg8: memref<1x8x16xf32, #tpu.memory_space<vmem>>, %arg9: memref<1x3x8x16xf32, #tpu.memory_space<vmem>>, %arg10: memref<32x32xbf16, #tpu.memory_space<vmem>>, %arg11: memref<1x32xf32, #tpu.memory_space<vmem>>, %arg12: memref<32x32xbf16, #tpu.memory_space<vmem>>, %arg13: memref<1x32xf32, #tpu.memory_space<vmem>>, %arg14: memref<32x32xbf16, #tpu.memory_space<vmem>>, %arg15: memref<32x32xbf16, #tpu.memory_space<vmem>>, %arg16: memref<32x32xbf16, #tpu.memory_space<vmem>>, %arg17: memref<1x8x32xf32, #tpu.memory_space<vmem>>, %arg18: memref<1x3x8x32xf32, #tpu.memory_space<vmem>>, %arg19: memref<1x3x8x32xf32, #tpu.memory_space<vmem>>, %arg20: memref<3x8x32xf32, #tpu.memory_space<vmem>>) attributes {dimension_semantics = [#tpu.dimension_semantics<parallel>, #tpu.dimension_semantics<parallel>, #tpu.dimension_semantics<arbitrary>], iteration_bounds = array<i64: 2, 2, 1>, scalar_prefetch = 0 : i64, scratch_operands = 1 : i64, tpu.core_type = #tpu.core_type<tc>, window_params = [{transform_indices = @transform_0, window_bounds = array<i64: 1, 8, 32>}, {transform_indices = @transform_1, window_bounds = array<i64: 1, 16, 32>}, {transform_indices = @transform_2, window_bounds = array<i64: 1, 16, 32>}, {transform_indices = @transform_3, window_bounds = array<i64: 1, 8, 16, 32>}, {transform_indices = @transform_4, window_bounds = array<i64: 1, 8, 16>}, {transform_indices = @transform_5, window_bounds = array<i64: 1, 8, 16>}, {transform_indices = @transform_6, window_bounds = array<i64: 1, 3, 8, 16>}, {pipeline_mode = #tpu.pipeline_mode<synchronous>, transform_indices = @transform_7, window_bounds = array<i64: 32, 32>}, {pipeline_mode = #tpu.pipeline_mode<synchronous>, transform_indices = @transform_8, window_bounds = array<i64: 1, 32>}, {pipeline_mode = #tpu.pipeline_mode<synchronous>, transform_indices = @transform_9, window_bounds = array<i64: 32, 32>}, {pipeline_mode = #tpu.pipeline_mode<synchronous>, transform_indices = @transform_10, window_bounds = array<i64: 1, 32>}, {pipeline_mode = #tpu.pipeline_mode<synchronous>, transform_indices = @transform_11, window_bounds = array<i64: 32, 32>}, {pipeline_mode = #tpu.pipeline_mode<synchronous>, transform_indices = @transform_12, window_bounds = array<i64: 32, 32>}, {pipeline_mode = #tpu.pipeline_mode<synchronous>, transform_indices = @transform_13, window_bounds = array<i64: 32, 32>}, {transform_indices = @transform_14, window_bounds = array<i64: 1, 8, 32>}, {transform_indices = @transform_15, window_bounds = array<i64: 1, 3, 8, 32>}, {transform_indices = @transform_16, window_bounds = array<i64: 1, 3, 8, 32>}]} {
    %c0_i32 = arith.constant 0 : i32
    %0 = arith.cmpi eq, %arg2, %c0_i32 : i32
    %1 = arith.extui %0 : i1 to i32
    %c0_i32_0 = arith.constant 0 : i32
    %2 = arith.cmpi ne, %1, %c0_i32_0 : i32
    scf.if %2 {
      %cst_79 = arith.constant 0.000000e+00 : f32
      %122 = vector.broadcast %cst_79 : f32 to vector<1x8x32xf32>
      %c0_80 = arith.constant 0 : index
      %c0_81 = arith.constant 0 : index
      %c0_82 = arith.constant 0 : index
      %123 = vector.load %arg17[%c0_80, %c0_81, %c0_82] : memref<1x8x32xf32, #tpu.memory_space<vmem>>, vector<1x8x32xf32>
      tpu.vector_store %arg17[%c0_80, %c0_81, %c0_82], %122 {strides = array<i32>} : memref<1x8x32xf32, #tpu.memory_space<vmem>>, vector<1x8x32xf32>,
      %cst_83 = arith.constant 0.000000e+00 : f32
      %124 = vector.broadcast %cst_83 : f32 to vector<3x8x32xf32>
      %c0_84 = arith.constant 0 : index
      %c0_85 = arith.constant 0 : index
      %c0_86 = arith.constant 0 : index
      %125 = vector.load %arg20[%c0_84, %c0_85, %c0_86] : memref<3x8x32xf32, #tpu.memory_space<vmem>>, vector<3x8x32xf32>
      tpu.vector_store %arg20[%c0_84, %c0_85, %c0_86], %124 {strides = array<i32>} : memref<3x8x32xf32, #tpu.memory_space<vmem>>, vector<3x8x32xf32>,
    } else {
    }
    %c0 = arith.constant 0 : index
    %c0_1 = arith.constant 0 : index
    %c0_2 = arith.constant 0 : index
    %3 = vector.load %arg3[%c0, %c0_1, %c0_2] : memref<1x8x32xf32, #tpu.memory_space<vmem>>, vector<1x8x32xf32>
    %4 = vector.shape_cast %3 : vector<1x8x32xf32> to vector<8x32xf32>
    %c0_3 = arith.constant 0 : index
    %c0_4 = arith.constant 0 : index
    %c0_5 = arith.constant 0 : index
    %5 = vector.load %arg4[%c0_3, %c0_4, %c0_5] : memref<1x16x32xf32, #tpu.memory_space<vmem>>, vector<1x16x32xf32>
    %6 = vector.shape_cast %5 : vector<1x16x32xf32> to vector<16x32xf32>
    %c0_6 = arith.constant 0 : index
    %c0_7 = arith.constant 0 : index
    %c0_8 = arith.constant 0 : index
    %7 = vector.load %arg5[%c0_6, %c0_7, %c0_8] : memref<1x16x32xf32, #tpu.memory_space<vmem>>, vector<1x16x32xf32>
    %8 = vector.shape_cast %7 : vector<1x16x32xf32> to vector<16x32xf32>
    %c0_9 = arith.constant 0 : index
    %c0_10 = arith.constant 0 : index
    %c0_11 = arith.constant 0 : index
    %c0_12 = arith.constant 0 : index
    %9 = vector.load %arg6[%c0_9, %c0_10, %c0_11, %c0_12] : memref<1x8x16x32xf32, #tpu.memory_space<vmem>>, vector<1x8x16x32xf32>
    %10 = vector.shape_cast %9 : vector<1x8x16x32xf32> to vector<8x16x32xf32>
    %11 = vector.shape_cast %10 : vector<8x16x32xf32> to vector<128x32xf32>
    %12 = arith.truncf %11 : vector<128x32xf32> to vector<128x32xbf16>
    %c0_13 = arith.constant 0 : index
    %c0_14 = arith.constant 0 : index
    %13 = vector.load %arg10[%c0_13, %c0_14] : memref<32x32xbf16, #tpu.memory_space<vmem>>, vector<32x32xbf16>
    %cst = arith.constant dense<0.000000e+00> : vector<128x32xf32>
    %14 = tpu.matmul %12, %13, %cst {dimension_numbers = #tpu.dot_dimension_numbers<[1], [0], [0], [1], [0, 0, 1, 1], [], []>} : vector<128x32xbf16>, vector<32x32xbf16>, vector<128x32xf32> -> vector<128x32xf32>
    %c0_15 = arith.constant 0 : index
    %c0_16 = arith.constant 0 : index
    %15 = vector.load %arg11[%c0_15, %c0_16] : memref<1x32xf32, #tpu.memory_space<vmem>>, vector<1x32xf32>
    %16 = vector.broadcast %15 : vector<1x32xf32> to vector<128x32xf32>
    %17 = arith.addf %14, %16 : vector<128x32xf32>
    %cst_17 = arith.constant 5.000000e-01 : f32
    %18 = vector.broadcast %cst_17 : f32 to vector<128x32xf32>
    %19 = arith.mulf %18, %17 : vector<128x32xf32>
    %cst_18 = arith.constant 4.471500e-02 : f32
    %20 = vector.broadcast %cst_18 : f32 to vector<128x32xf32>
    %21 = arith.mulf %20, %17 : vector<128x32xf32>
    %22 = arith.mulf %21, %17 : vector<128x32xf32>
    %23 = arith.mulf %22, %17 : vector<128x32xf32>
    %24 = arith.addf %17, %23 : vector<128x32xf32>
    %cst_19 = arith.constant 0.797884583 : f32
    %25 = vector.broadcast %cst_19 : f32 to vector<128x32xf32>
    %26 = arith.mulf %25, %24 : vector<128x32xf32>
    %27 = math.tanh %26 : vector<128x32xf32>
    %cst_20 = arith.constant 1.000000e+00 : f32
    %28 = vector.broadcast %cst_20 : f32 to vector<128x32xf32>
    %29 = arith.addf %28, %27 : vector<128x32xf32>
    %30 = arith.mulf %19, %29 : vector<128x32xf32>
    %31 = vector.shape_cast %4 : vector<8x32xf32> to vector<8x1x32xf32>
    %32 = vector.shape_cast %6 : vector<16x32xf32> to vector<1x16x32xf32>
    %33 = vector.broadcast %31 : vector<8x1x32xf32> to vector<8x16x32xf32>
    %34 = vector.broadcast %32 : vector<1x16x32xf32> to vector<8x16x32xf32>
    %35 = arith.mulf %33, %34 : vector<8x16x32xf32>
    %36 = vector.shape_cast %35 : vector<8x16x32xf32> to vector<128x32xf32>
    %37 = arith.mulf %36, %30 : vector<128x32xf32>
    %38 = arith.truncf %37 : vector<128x32xf32> to vector<128x32xbf16>
    %c0_21 = arith.constant 0 : index
    %c0_22 = arith.constant 0 : index
    %39 = vector.load %arg14[%c0_21, %c0_22] : memref<32x32xbf16, #tpu.memory_space<vmem>>, vector<32x32xbf16>
    %cst_23 = arith.constant dense<0.000000e+00> : vector<128x32xf32>
    %40 = tpu.matmul %38, %39, %cst_23 {dimension_numbers = #tpu.dot_dimension_numbers<[1], [0], [0], [1], [0, 0, 1, 1], [], []>} : vector<128x32xbf16>, vector<32x32xbf16>, vector<128x32xf32> -> vector<128x32xf32>
    %c0_24 = arith.constant 0 : index
    %c0_25 = arith.constant 0 : index
    %c0_26 = arith.constant 0 : index
    %41 = vector.load %arg7[%c0_24, %c0_25, %c0_26] : memref<1x8x16xf32, #tpu.memory_space<vmem>>, vector<1x8x16xf32>
    %42 = vector.shape_cast %41 : vector<1x8x16xf32> to vector<8x16xf32>
    %43 = vector.shape_cast %42 : vector<8x16xf32> to vector<8x16x1xf32>
    %c0_27 = arith.constant 0 : index
    %c0_28 = arith.constant 0 : index
    %c0_29 = arith.constant 0 : index
    %44 = vector.load %arg8[%c0_27, %c0_28, %c0_29] : memref<1x8x16xf32, #tpu.memory_space<vmem>>, vector<1x8x16xf32>
    %45 = vector.shape_cast %44 : vector<1x8x16xf32> to vector<8x16xf32>
    %46 = vector.shape_cast %45 : vector<8x16xf32> to vector<8x16x1xf32>
    %cst_30 = arith.constant 5.000000e-01 : f32
    %47 = vector.broadcast %cst_30 : f32 to vector<128x32xf32>
    %48 = arith.mulf %47, %40 : vector<128x32xf32>
    %cst_31 = arith.constant 4.471500e-02 : f32
    %49 = vector.broadcast %cst_31 : f32 to vector<128x32xf32>
    %50 = arith.mulf %49, %40 : vector<128x32xf32>
    %51 = arith.mulf %50, %40 : vector<128x32xf32>
    %52 = arith.mulf %51, %40 : vector<128x32xf32>
    %53 = arith.addf %40, %52 : vector<128x32xf32>
    %cst_32 = arith.constant 0.797884583 : f32
    %54 = vector.broadcast %cst_32 : f32 to vector<128x32xf32>
    %55 = arith.mulf %54, %53 : vector<128x32xf32>
    %56 = math.tanh %55 : vector<128x32xf32>
    %cst_33 = arith.constant 1.000000e+00 : f32
    %57 = vector.broadcast %cst_33 : f32 to vector<128x32xf32>
    %58 = arith.addf %57, %56 : vector<128x32xf32>
    %59 = arith.mulf %48, %58 : vector<128x32xf32>
    %60 = vector.shape_cast %59 : vector<128x32xf32> to vector<8x16x32xf32>
    %61 = vector.broadcast %43 : vector<8x16x1xf32> to vector<8x16x32xf32>
    %62 = arith.mulf %60, %61 : vector<8x16x32xf32>
    %63 = vector.shape_cast %8 : vector<16x32xf32> to vector<1x16x32xf32>
    %64 = vector.broadcast %63 : vector<1x16x32xf32> to vector<8x16x32xf32>
    %65 = arith.mulf %62, %64 : vector<8x16x32xf32>
    %c0_34 = arith.constant 0 : index
    %c0_35 = arith.constant 0 : index
    %c0_36 = arith.constant 0 : index
    %66 = vector.load %arg17[%c0_34, %c0_35, %c0_36] : memref<1x8x32xf32, #tpu.memory_space<vmem>>, vector<1x8x32xf32>
    %67 = vector.shape_cast %66 : vector<1x8x32xf32> to vector<8x32xf32>
    %cst_37 = arith.constant dense<0.000000e+00> : vector<8x32xf32>
    %68 = vector.multi_reduction <add>, %65, %cst_37 [1] : vector<8x16x32xf32> to vector<8x32xf32>
    %69 = arith.addf %67, %68 : vector<8x32xf32>
    %c0_38 = arith.constant 0 : index
    %c0_39 = arith.constant 0 : index
    %c0_40 = arith.constant 0 : index
    %70 = vector.load %arg17[%c0_38, %c0_39, %c0_40] : memref<1x8x32xf32, #tpu.memory_space<vmem>>, vector<1x8x32xf32>
    %71 = vector.shape_cast %70 : vector<1x8x32xf32> to vector<8x32xf32>
    %72 = vector.shape_cast %69 : vector<8x32xf32> to vector<1x8x32xf32>
    tpu.vector_store %arg17[%c0_38, %c0_39, %c0_40], %72 {strides = array<i32>} : memref<1x8x32xf32, #tpu.memory_space<vmem>>, vector<1x8x32xf32>,
    %73 = vector.shape_cast %65 : vector<8x16x32xf32> to vector<128x32xf32>
    %74 = arith.truncf %73 : vector<128x32xf32> to vector<128x32xbf16>
    %c0_41 = arith.constant 0 : index
    %c0_42 = arith.constant 0 : index
    %75 = vector.load %arg12[%c0_41, %c0_42] : memref<32x32xbf16, #tpu.memory_space<vmem>>, vector<32x32xbf16>
    %cst_43 = arith.constant dense<0.000000e+00> : vector<128x32xf32>
    %76 = tpu.matmul %74, %75, %cst_43 {dimension_numbers = #tpu.dot_dimension_numbers<[1], [0], [0], [1], [0, 0, 1, 1], [], []>} : vector<128x32xbf16>, vector<32x32xbf16>, vector<128x32xf32> -> vector<128x32xf32>
    %c0_44 = arith.constant 0 : index
    %c0_45 = arith.constant 0 : index
    %77 = vector.load %arg13[%c0_44, %c0_45] : memref<1x32xf32, #tpu.memory_space<vmem>>, vector<1x32xf32>
    %78 = vector.broadcast %77 : vector<1x32xf32> to vector<128x32xf32>
    %79 = arith.addf %76, %78 : vector<128x32xf32>
    %80 = vector.shape_cast %79 : vector<128x32xf32> to vector<8x16x32xf32>
    %81 = vector.broadcast %46 : vector<8x16x1xf32> to vector<8x16x32xf32>
    %82 = arith.mulf %80, %81 : vector<8x16x32xf32>
    %c0_46 = arith.constant 0 : index
    %c0_47 = arith.constant 0 : index
    %c0_48 = arith.constant 0 : index
    %83 = vector.load %arg20[%c0_46, %c0_47, %c0_48] : memref<3x8x32xf32, #tpu.memory_space<vmem>>, vector<1x8x32xf32>
    %84 = vector.shape_cast %83 : vector<1x8x32xf32> to vector<8x32xf32>
    %c0_49 = arith.constant 0 : index
    %c0_50 = arith.constant 0 : index
    %c0_51 = arith.constant 0 : index
    %c0_52 = arith.constant 0 : index
    %85 = vector.load %arg9[%c0_49, %c0_50, %c0_51, %c0_52] : memref<1x3x8x16xf32, #tpu.memory_space<vmem>>, vector<1x1x8x16xf32>
    %86 = vector.shape_cast %85 : vector<1x1x8x16xf32> to vector<8x16xf32>
    %87 = vector.shape_cast %86 : vector<8x16xf32> to vector<8x16x1xf32>
    %88 = vector.broadcast %87 : vector<8x16x1xf32> to vector<8x16x32xf32>
    %89 = arith.mulf %88, %82 : vector<8x16x32xf32>
    %cst_53 = arith.constant dense<0.000000e+00> : vector<8x32xf32>
    %90 = vector.multi_reduction <add>, %89, %cst_53 [1] : vector<8x16x32xf32> to vector<8x32xf32>
    %91 = arith.addf %84, %90 : vector<8x32xf32>
    %c0_54 = arith.constant 0 : index
    %c0_55 = arith.constant 0 : index
    %c0_56 = arith.constant 0 : index
    %92 = vector.load %arg20[%c0_54, %c0_55, %c0_56] : memref<3x8x32xf32, #tpu.memory_space<vmem>>, vector<1x8x32xf32>
    %93 = vector.shape_cast %92 : vector<1x8x32xf32> to vector<8x32xf32>
    %94 = vector.shape_cast %91 : vector<8x32xf32> to vector<1x8x32xf32>
    tpu.vector_store %arg20[%c0_54, %c0_55, %c0_56], %94 {strides = array<i32>} : memref<3x8x32xf32, #tpu.memory_space<vmem>>, vector<1x8x32xf32>,
    %c1 = arith.constant 1 : index
    %c0_57 = arith.constant 0 : index
    %c0_58 = arith.constant 0 : index
    %95 = vector.load %arg20[%c1, %c0_57, %c0_58] : memref<3x8x32xf32, #tpu.memory_space<vmem>>, vector<1x8x32xf32>
    %96 = vector.shape_cast %95 : vector<1x8x32xf32> to vector<8x32xf32>
    %c0_59 = arith.constant 0 : index
    %c1_60 = arith.constant 1 : index
    %c0_61 = arith.constant 0 : index
    %c0_62 = arith.constant 0 : index
    %97 = vector.load %arg9[%c0_59, %c1_60, %c0_61, %c0_62] : memref<1x3x8x16xf32, #tpu.memory_space<vmem>>, vector<1x1x8x16xf32>
    %98 = vector.shape_cast %97 : vector<1x1x8x16xf32> to vector<8x16xf32>
    %99 = vector.shape_cast %98 : vector<8x16xf32> to vector<8x16x1xf32>
    %100 = vector.broadcast %99 : vector<8x16x1xf32> to vector<8x16x32xf32>
    %101 = arith.mulf %100, %82 : vector<8x16x32xf32>
    %cst_63 = arith.constant dense<0.000000e+00> : vector<8x32xf32>
    %102 = vector.multi_reduction <add>, %101, %cst_63 [1] : vector<8x16x32xf32> to vector<8x32xf32>
    %103 = arith.addf %96, %102 : vector<8x32xf32>
    %c1_64 = arith.constant 1 : index
    %c0_65 = arith.constant 0 : index
    %c0_66 = arith.constant 0 : index
    %104 = vector.load %arg20[%c1_64, %c0_65, %c0_66] : memref<3x8x32xf32, #tpu.memory_space<vmem>>, vector<1x8x32xf32>
    %105 = vector.shape_cast %104 : vector<1x8x32xf32> to vector<8x32xf32>
    %106 = vector.shape_cast %103 : vector<8x32xf32> to vector<1x8x32xf32>
    tpu.vector_store %arg20[%c1_64, %c0_65, %c0_66], %106 {strides = array<i32>} : memref<3x8x32xf32, #tpu.memory_space<vmem>>, vector<1x8x32xf32>,
    %c2 = arith.constant 2 : index
    %c0_67 = arith.constant 0 : index
    %c0_68 = arith.constant 0 : index
    %107 = vector.load %arg20[%c2, %c0_67, %c0_68] : memref<3x8x32xf32, #tpu.memory_space<vmem>>, vector<1x8x32xf32>
    %108 = vector.shape_cast %107 : vector<1x8x32xf32> to vector<8x32xf32>
    %c0_69 = arith.constant 0 : index
    %c2_70 = arith.constant 2 : index
    %c0_71 = arith.constant 0 : index
    %c0_72 = arith.constant 0 : index
    %109 = vector.load %arg9[%c0_69, %c2_70, %c0_71, %c0_72] : memref<1x3x8x16xf32, #tpu.memory_space<vmem>>, vector<1x1x8x16xf32>
    %110 = vector.shape_cast %109 : vector<1x1x8x16xf32> to vector<8x16xf32>
    %111 = vector.shape_cast %110 : vector<8x16xf32> to vector<8x16x1xf32>
    %112 = vector.broadcast %111 : vector<8x16x1xf32> to vector<8x16x32xf32>
    %113 = arith.mulf %112, %82 : vector<8x16x32xf32>
    %cst_73 = arith.constant dense<0.000000e+00> : vector<8x32xf32>
    %114 = vector.multi_reduction <add>, %113, %cst_73 [1] : vector<8x16x32xf32> to vector<8x32xf32>
    %115 = arith.addf %108, %114 : vector<8x32xf32>
    %c2_74 = arith.constant 2 : index
    %c0_75 = arith.constant 0 : index
    %c0_76 = arith.constant 0 : index
    %116 = vector.load %arg20[%c2_74, %c0_75, %c0_76] : memref<3x8x32xf32, #tpu.memory_space<vmem>>, vector<1x8x32xf32>
    %117 = vector.shape_cast %116 : vector<1x8x32xf32> to vector<8x32xf32>
    %118 = vector.shape_cast %115 : vector<8x32xf32> to vector<1x8x32xf32>
    tpu.vector_store %arg20[%c2_74, %c0_75, %c0_76], %118 {strides = array<i32>} : memref<3x8x32xf32, #tpu.memory_space<vmem>>, vector<1x8x32xf32>,
    %c0_i32_77 = arith.constant 0 : i32
    %119 = arith.cmpi eq, %arg2, %c0_i32_77 : i32
    %120 = arith.extui %119 : i1 to i32
    %c0_i32_78 = arith.constant 0 : i32
    %121 = arith.cmpi ne, %120, %c0_i32_78 : i32
    scf.if %121 {
      %c0_79 = arith.constant 0 : index
      %c0_80 = arith.constant 0 : index
      %c0_81 = arith.constant 0 : index
      %122 = vector.load %arg20[%c0_79, %c0_80, %c0_81] : memref<3x8x32xf32, #tpu.memory_space<vmem>>, vector<1x8x32xf32>
      %123 = vector.shape_cast %122 : vector<1x8x32xf32> to vector<8x32xf32>
      %c1_82 = arith.constant 1 : index
      %c0_83 = arith.constant 0 : index
      %c0_84 = arith.constant 0 : index
      %124 = vector.load %arg20[%c1_82, %c0_83, %c0_84] : memref<3x8x32xf32, #tpu.memory_space<vmem>>, vector<1x8x32xf32>
      %125 = vector.shape_cast %124 : vector<1x8x32xf32> to vector<8x32xf32>
      %c2_85 = arith.constant 2 : index
      %c0_86 = arith.constant 0 : index
      %c0_87 = arith.constant 0 : index
      %126 = vector.load %arg20[%c2_85, %c0_86, %c0_87] : memref<3x8x32xf32, #tpu.memory_space<vmem>>, vector<1x8x32xf32>
      %127 = vector.shape_cast %126 : vector<1x8x32xf32> to vector<8x32xf32>
      %128 = arith.mulf %123, %123 : vector<8x32xf32>
      %129 = arith.mulf %125, %125 : vector<8x32xf32>
      %130 = arith.addf %128, %129 : vector<8x32xf32>
      %131 = arith.mulf %127, %127 : vector<8x32xf32>
      %132 = arith.addf %130, %131 : vector<8x32xf32>
      %133 = math.sqrt %132 : vector<8x32xf32>
      %cst_88 = arith.constant 9.99999996E-13 : f32
      %134 = vector.broadcast %cst_88 : f32 to vector<8x32xf32>
      %135 = arith.maximumf %133, %134 : vector<8x32xf32>
      %cst_89 = arith.constant dense<0xFF800000> : vector<8xf32>
      %136 = vector.multi_reduction <maximumf>, %135, %cst_89 [1] : vector<8x32xf32> to vector<8xf32>
      %137 = vector.shape_cast %136 : vector<8xf32> to vector<8x1xf32>
      %cst_90 = arith.constant dense<0x7F800000> : vector<8xf32>
      %138 = vector.multi_reduction <minimumf>, %135, %cst_90 [1] : vector<8x32xf32> to vector<8xf32>
      %139 = vector.shape_cast %138 : vector<8xf32> to vector<8x1xf32>
      %140 = arith.subf %137, %139 : vector<8x1xf32>
      %cst_91 = arith.constant 0.000000e+00 : f32
      %141 = vector.broadcast %cst_91 : f32 to vector<8x1xf32>
      %142 = arith.cmpf oeq, %140, %141 : vector<8x1xf32>
      %cst_92 = arith.constant 1.000000e+00 : f32
      %143 = vector.broadcast %cst_92 : f32 to vector<8x1xf32>
      %144 = arith.select %142, %143, %140 : vector<8x1xi1>, vector<8x1xf32>
      %145 = vector.broadcast %139 : vector<8x1xf32> to vector<8x32xf32>
      %146 = arith.subf %135, %145 : vector<8x32xf32>
      %147 = tpu.reciprocal %144 {approx = true} : vector<8x1xf32> -> vector<8x1xf32>
      %148 = vector.broadcast %147 : vector<8x1xf32> to vector<8x32xf32>
      %149 = arith.mulf %146, %148 : vector<8x32xf32>
      %cst_93 = arith.constant 0.000000e+00 : f32
      %150 = vector.broadcast %cst_93 : f32 to vector<8x32xf32>
      %151 = arith.maximumf %149, %150 : vector<8x32xf32>
      %152 = tpu.reciprocal %135 {approx = true} : vector<8x32xf32> -> vector<8x32xf32>
      %153 = arith.mulf %151, %152 : vector<8x32xf32>
      %154 = arith.mulf %123, %153 : vector<8x32xf32>
      %155 = arith.truncf %154 : vector<8x32xf32> to vector<8x32xbf16>
      %c0_94 = arith.constant 0 : index
      %c0_95 = arith.constant 0 : index
      %156 = vector.load %arg15[%c0_94, %c0_95] : memref<32x32xbf16, #tpu.memory_space<vmem>>, vector<32x32xbf16>
      %cst_96 = arith.constant dense<0.000000e+00> : vector<8x32xf32>
      %157 = tpu.matmul %155, %156, %cst_96 {dimension_numbers = #tpu.dot_dimension_numbers<[1], [0], [0], [1], [0, 0, 1, 1], [], []>} : vector<8x32xbf16>, vector<32x32xbf16>, vector<8x32xf32> -> vector<8x32xf32>
      %c0_97 = arith.constant 0 : index
      %c0_98 = arith.constant 0 : index
      %c0_99 = arith.constant 0 : index
      %c0_100 = arith.constant 0 : index
      %158 = vector.load %arg18[%c0_97, %c0_98, %c0_99, %c0_100] : memref<1x3x8x32xf32, #tpu.memory_space<vmem>>, vector<1x1x8x32xf32>
      %159 = vector.shape_cast %158 : vector<1x1x8x32xf32> to vector<8x32xf32>
      %160 = vector.shape_cast %157 : vector<8x32xf32> to vector<1x1x8x32xf32>
      tpu.vector_store %arg18[%c0_97, %c0_98, %c0_99, %c0_100], %160 {strides = array<i32>} : memref<1x3x8x32xf32, #tpu.memory_space<vmem>>, vector<1x1x8x32xf32>,
      %c0_101 = arith.constant 0 : index
      %c0_102 = arith.constant 0 : index
      %161 = vector.load %arg16[%c0_101, %c0_102] : memref<32x32xbf16, #tpu.memory_space<vmem>>, vector<32x32xbf16>
      %cst_103 = arith.constant dense<0.000000e+00> : vector<8x32xf32>
      %162 = tpu.matmul %155, %161, %cst_103 {dimension_numbers = #tpu.dot_dimension_numbers<[1], [0], [0], [1], [0, 0, 1, 1], [], []>} : vector<8x32xbf16>, vector<32x32xbf16>, vector<8x32xf32> -> vector<8x32xf32>
      %c0_104 = arith.constant 0 : index
      %c0_105 = arith.constant 0 : index
      %c0_106 = arith.constant 0 : index
      %c0_107 = arith.constant 0 : index
      %163 = vector.load %arg19[%c0_104, %c0_105, %c0_106, %c0_107] : memref<1x3x8x32xf32, #tpu.memory_space<vmem>>, vector<1x1x8x32xf32>
      %164 = vector.shape_cast %163 : vector<1x1x8x32xf32> to vector<8x32xf32>
      %165 = vector.shape_cast %162 : vector<8x32xf32> to vector<1x1x8x32xf32>
      tpu.vector_store %arg19[%c0_104, %c0_105, %c0_106, %c0_107], %165 {strides = array<i32>} : memref<1x3x8x32xf32, #tpu.memory_space<vmem>>, vector<1x1x8x32xf32>,
      %166 = arith.mulf %125, %153 : vector<8x32xf32>
      %167 = arith.truncf %166 : vector<8x32xf32> to vector<8x32xbf16>
      %c0_108 = arith.constant 0 : index
      %c0_109 = arith.constant 0 : index
      %168 = vector.load %arg15[%c0_108, %c0_109] : memref<32x32xbf16, #tpu.memory_space<vmem>>, vector<32x32xbf16>
      %cst_110 = arith.constant dense<0.000000e+00> : vector<8x32xf32>
      %169 = tpu.matmul %167, %168, %cst_110 {dimension_numbers = #tpu.dot_dimension_numbers<[1], [0], [0], [1], [0, 0, 1, 1], [], []>} : vector<8x32xbf16>, vector<32x32xbf16>, vector<8x32xf32> -> vector<8x32xf32>
      %c0_111 = arith.constant 0 : index
      %c1_112 = arith.constant 1 : index
      %c0_113 = arith.constant 0 : index
      %c0_114 = arith.constant 0 : index
      %170 = vector.load %arg18[%c0_111, %c1_112, %c0_113, %c0_114] : memref<1x3x8x32xf32, #tpu.memory_space<vmem>>, vector<1x1x8x32xf32>
      %171 = vector.shape_cast %170 : vector<1x1x8x32xf32> to vector<8x32xf32>
      %172 = vector.shape_cast %169 : vector<8x32xf32> to vector<1x1x8x32xf32>
      tpu.vector_store %arg18[%c0_111, %c1_112, %c0_113, %c0_114], %172 {strides = array<i32>} : memref<1x3x8x32xf32, #tpu.memory_space<vmem>>, vector<1x1x8x32xf32>,
      %c0_115 = arith.constant 0 : index
      %c0_116 = arith.constant 0 : index
      %173 = vector.load %arg16[%c0_115, %c0_116] : memref<32x32xbf16, #tpu.memory_space<vmem>>, vector<32x32xbf16>
      %cst_117 = arith.constant dense<0.000000e+00> : vector<8x32xf32>
      %174 = tpu.matmul %167, %173, %cst_117 {dimension_numbers = #tpu.dot_dimension_numbers<[1], [0], [0], [1], [0, 0, 1, 1], [], []>} : vector<8x32xbf16>, vector<32x32xbf16>, vector<8x32xf32> -> vector<8x32xf32>
      %c0_118 = arith.constant 0 : index
      %c1_119 = arith.constant 1 : index
      %c0_120 = arith.constant 0 : index
      %c0_121 = arith.constant 0 : index
      %175 = vector.load %arg19[%c0_118, %c1_119, %c0_120, %c0_121] : memref<1x3x8x32xf32, #tpu.memory_space<vmem>>, vector<1x1x8x32xf32>
      %176 = vector.shape_cast %175 : vector<1x1x8x32xf32> to vector<8x32xf32>
      %177 = vector.shape_cast %174 : vector<8x32xf32> to vector<1x1x8x32xf32>
      tpu.vector_store %arg19[%c0_118, %c1_119, %c0_120, %c0_121], %177 {strides = array<i32>} : memref<1x3x8x32xf32, #tpu.memory_space<vmem>>, vector<1x1x8x32xf32>,
      %178 = arith.mulf %127, %153 : vector<8x32xf32>
      %179 = arith.truncf %178 : vector<8x32xf32> to vector<8x32xbf16>
      %c0_122 = arith.constant 0 : index
      %c0_123 = arith.constant 0 : index
      %180 = vector.load %arg15[%c0_122, %c0_123] : memref<32x32xbf16, #tpu.memory_space<vmem>>, vector<32x32xbf16>
      %cst_124 = arith.constant dense<0.000000e+00> : vector<8x32xf32>
      %181 = tpu.matmul %179, %180, %cst_124 {dimension_numbers = #tpu.dot_dimension_numbers<[1], [0], [0], [1], [0, 0, 1, 1], [], []>} : vector<8x32xbf16>, vector<32x32xbf16>, vector<8x32xf32> -> vector<8x32xf32>
      %c0_125 = arith.constant 0 : index
      %c2_126 = arith.constant 2 : index
      %c0_127 = arith.constant 0 : index
      %c0_128 = arith.constant 0 : index
      %182 = vector.load %arg18[%c0_125, %c2_126, %c0_127, %c0_128] : memref<1x3x8x32xf32, #tpu.memory_space<vmem>>, vector<1x1x8x32xf32>
      %183 = vector.shape_cast %182 : vector<1x1x8x32xf32> to vector<8x32xf32>
      %184 = vector.shape_cast %181 : vector<8x32xf32> to vector<1x1x8x32xf32>
      tpu.vector_store %arg18[%c0_125, %c2_126, %c0_127, %c0_128], %184 {strides = array<i32>} : memref<1x3x8x32xf32, #tpu.memory_space<vmem>>, vector<1x1x8x32xf32>,
      %c0_129 = arith.constant 0 : index
      %c0_130 = arith.constant 0 : index
      %185 = vector.load %arg16[%c0_129, %c0_130] : memref<32x32xbf16, #tpu.memory_space<vmem>>, vector<32x32xbf16>
      %cst_131 = arith.constant dense<0.000000e+00> : vector<8x32xf32>
      %186 = tpu.matmul %179, %185, %cst_131 {dimension_numbers = #tpu.dot_dimension_numbers<[1], [0], [0], [1], [0, 0, 1, 1], [], []>} : vector<8x32xbf16>, vector<32x32xbf16>, vector<8x32xf32> -> vector<8x32xf32>
      %c0_132 = arith.constant 0 : index
      %c2_133 = arith.constant 2 : index
      %c0_134 = arith.constant 0 : index
      %c0_135 = arith.constant 0 : index
      %187 = vector.load %arg19[%c0_132, %c2_133, %c0_134, %c0_135] : memref<1x3x8x32xf32, #tpu.memory_space<vmem>>, vector<1x1x8x32xf32>
      %188 = vector.shape_cast %187 : vector<1x1x8x32xf32> to vector<8x32xf32>
      %189 = vector.shape_cast %186 : vector<8x32xf32> to vector<1x1x8x32xf32>
      tpu.vector_store %arg19[%c0_132, %c2_133, %c0_134, %c0_135], %189 {strides = array<i32>} : memref<1x3x8x32xf32, #tpu.memory_space<vmem>>, vector<1x1x8x32xf32>,
    } else {
    }
    return
  }
  func.func @transform_0(%arg0: i32, %arg1: i32, %arg2: i32) -> (i32, i32, i32) {
    %c0_i32 = arith.constant 0 : i32
    %c0_i32_0 = arith.constant 0 : i32
    return %arg0, %arg1, %c0_i32 : i32, i32, i32
  }
  func.func @transform_1(%arg0: i32, %arg1: i32, %arg2: i32) -> (i32, i32, i32) {
    %c0_i32 = arith.constant 0 : i32
    %c0_i32_0 = arith.constant 0 : i32
    return %arg0, %arg2, %c0_i32 : i32, i32, i32
  }
  func.func @transform_2(%arg0: i32, %arg1: i32, %arg2: i32) -> (i32, i32, i32) {
    %c0_i32 = arith.constant 0 : i32
    %c0_i32_0 = arith.constant 0 : i32
    return %arg0, %arg2, %c0_i32 : i32, i32, i32
  }
  func.func @transform_3(%arg0: i32, %arg1: i32, %arg2: i32) -> (i32, i32, i32, i32) {
    %c0_i32 = arith.constant 0 : i32
    %c0_i32_0 = arith.constant 0 : i32
    return %arg0, %arg1, %arg2, %c0_i32 : i32, i32, i32, i32
  }
  func.func @transform_4(%arg0: i32, %arg1: i32, %arg2: i32) -> (i32, i32, i32) {
    %c0_i32 = arith.constant 0 : i32
    return %arg0, %arg1, %arg2 : i32, i32, i32
  }
  func.func @transform_5(%arg0: i32, %arg1: i32, %arg2: i32) -> (i32, i32, i32) {
    %c0_i32 = arith.constant 0 : i32
    return %arg0, %arg1, %arg2 : i32, i32, i32
  }
  func.func @transform_6(%arg0: i32, %arg1: i32, %arg2: i32) -> (i32, i32, i32, i32) {
    %c0_i32 = arith.constant 0 : i32
    %c0_i32_0 = arith.constant 0 : i32
    return %arg0, %c0_i32, %arg1, %arg2 : i32, i32, i32, i32
  }
  func.func @transform_7(%arg0: i32, %arg1: i32, %arg2: i32) -> (i32, i32) {
    %c0_i32 = arith.constant 0 : i32
    %c0_i32_0 = arith.constant 0 : i32
    %c0_i32_1 = arith.constant 0 : i32
    return %c0_i32, %c0_i32_0 : i32, i32
  }
  func.func @transform_8(%arg0: i32, %arg1: i32, %arg2: i32) -> (i32, i32) {
    %c0_i32 = arith.constant 0 : i32
    %c0_i32_0 = arith.constant 0 : i32
    %c0_i32_1 = arith.constant 0 : i32
    return %c0_i32, %c0_i32_0 : i32, i32
  }
  func.func @transform_9(%arg0: i32, %arg1: i32, %arg2: i32) -> (i32, i32) {
    %c0_i32 = arith.constant 0 : i32
    %c0_i32_0 = arith.constant 0 : i32
    %c0_i32_1 = arith.constant 0 : i32
    return %c0_i32, %c0_i32_0 : i32, i32
  }
  func.func @transform_10(%arg0: i32, %arg1: i32, %arg2: i32) -> (i32, i32) {
    %c0_i32 = arith.constant 0 : i32
    %c0_i32_0 = arith.constant 0 : i32
    %c0_i32_1 = arith.constant 0 : i32
    return %c0_i32, %c0_i32_0 : i32, i32
  }
  func.func @transform_11(%arg0: i32, %arg1: i32, %arg2: i32) -> (i32, i32) {
    %c0_i32 = arith.constant 0 : i32
    %c0_i32_0 = arith.constant 0 : i32
    %c0_i32_1 = arith.constant 0 : i32
    return %c0_i32, %c0_i32_0 : i32, i32
  }
  func.func @transform_12(%arg0: i32, %arg1: i32, %arg2: i32) -> (i32, i32) {
    %c0_i32 = arith.constant 0 : i32
    %c0_i32_0 = arith.constant 0 : i32
    %c0_i32_1 = arith.constant 0 : i32
    return %c0_i32, %c0_i32_0 : i32, i32
  }
  func.func @transform_13(%arg0: i32, %arg1: i32, %arg2: i32) -> (i32, i32) {
    %c0_i32 = arith.constant 0 : i32
    %c0_i32_0 = arith.constant 0 : i32
    %c0_i32_1 = arith.constant 0 : i32
    return %c0_i32, %c0_i32_0 : i32, i32
  }
  func.func @transform_14(%arg0: i32, %arg1: i32, %arg2: i32) -> (i32, i32, i32) {
    %c0_i32 = arith.constant 0 : i32
    %c0_i32_0 = arith.constant 0 : i32
    return %arg0, %arg1, %c0_i32 : i32, i32, i32
  }
  func.func @transform_15(%arg0: i32, %arg1: i32, %arg2: i32) -> (i32, i32, i32, i32) {
    %c0_i32 = arith.constant 0 : i32
    %c0_i32_0 = arith.constant 0 : i32
    %c0_i32_1 = arith.constant 0 : i32
    return %arg0, %c0_i32, %arg1, %c0_i32_0 : i32, i32, i32, i32
  }
  func.func @transform_16(%arg0: i32, %arg1: i32, %arg2: i32) -> (i32, i32, i32, i32) {
    %c0_i32 = arith.constant 0 : i32
    %c0_i32_0 = arith.constant 0 : i32
    %c0_i32_1 = arith.constant 0 : i32
    return %arg0, %c0_i32, %arg1, %c0_i32_0 : i32, i32, i32, i32
  }
}

module attributes {stable_mosaic.version = 11 : i64} {
  func.func @_attn_du_kernel(%arg0: i32, %arg1: i32, %arg2: i32, %arg3: memref<1x8x32xf32, #tpu.memory_space<vmem>>, %arg4: memref<1x16x32xf32, #tpu.memory_space<vmem>>, %arg5: memref<1x16x32xf32, #tpu.memory_space<vmem>>, %arg6: memref<1x8x16x32xf32, #tpu.memory_space<vmem>>, %arg7: memref<1x8x16xf32, #tpu.memory_space<vmem>>, %arg8: memref<1x8x16xf32, #tpu.memory_space<vmem>>, %arg9: memref<1x3x8x16xf32, #tpu.memory_space<vmem>>, %arg10: memref<32x32xbf16, #tpu.memory_space<vmem>>, %arg11: memref<1x32xf32, #tpu.memory_space<vmem>>, %arg12: memref<32x32xbf16, #tpu.memory_space<vmem>>, %arg13: memref<1x32xf32, #tpu.memory_space<vmem>>, %arg14: memref<32x32xbf16, #tpu.memory_space<vmem>>, %arg15: memref<32x32xbf16, #tpu.memory_space<vmem>>, %arg16: memref<32x32xbf16, #tpu.memory_space<vmem>>, %arg17: memref<1x8x32xf32, #tpu.memory_space<vmem>>, %arg18: memref<1x3x8x32xf32, #tpu.memory_space<vmem>>, %arg19: memref<1x3x8x32xf32, #tpu.memory_space<vmem>>, %arg20: memref<3x8x32xf32, #tpu.memory_space<vmem>>) attributes {dimension_semantics = [#tpu.dimension_semantics<parallel>, #tpu.dimension_semantics<parallel>, #tpu.dimension_semantics<arbitrary>], iteration_bounds = array<i64: 2, 2, 1>, scalar_prefetch = 0 : i64, scratch_operands = 1 : i64, tpu.core_type = #tpu.core_type<tc>, window_params = [{transform_indices = @transform_0, window_bounds = array<i64: 1, 8, 32>}, {transform_indices = @transform_1, window_bounds = array<i64: 1, 16, 32>}, {transform_indices = @transform_2, window_bounds = array<i64: 1, 16, 32>}, {transform_indices = @transform_3, window_bounds = array<i64: 1, 8, 16, 32>}, {transform_indices = @transform_4, window_bounds = array<i64: 1, 8, 16>}, {transform_indices = @transform_5, window_bounds = array<i64: 1, 8, 16>}, {transform_indices = @transform_6, window_bounds = array<i64: 1, 3, 8, 16>}, {pipeline_mode = #tpu.pipeline_mode<synchronous>, transform_indices = @transform_7, window_bounds = array<i64: 32, 32>}, {pipeline_mode = #tpu.pipeline_mode<synchronous>, transform_indices = @transform_8, window_bounds = array<i64: 1, 32>}, {pipeline_mode = #tpu.pipeline_mode<synchronous>, transform_indices = @transform_9, window_bounds = array<i64: 32, 32>}, {pipeline_mode = #tpu.pipeline_mode<synchronous>, transform_indices = @transform_10, window_bounds = array<i64: 1, 32>}, {pipeline_mode = #tpu.pipeline_mode<synchronous>, transform_indices = @transform_11, window_bounds = array<i64: 32, 32>}, {pipeline_mode = #tpu.pipeline_mode<synchronous>, transform_indices = @transform_12, window_bounds = array<i64: 32, 32>}, {pipeline_mode = #tpu.pipeline_mode<synchronous>, transform_indices = @transform_13, window_bounds = array<i64: 32, 32>}, {transform_indices = @transform_14, window_bounds = array<i64: 1, 8, 32>}, {transform_indices = @transform_15, window_bounds = array<i64: 1, 3, 8, 32>}, {transform_indices = @transform_16, window_bounds = array<i64: 1, 3, 8, 32>}]} {
    %c0_i32 = arith.constant 0 : i32
    %0 = arith.cmpi eq, %arg2, %c0_i32 : i32
    %1 = arith.extui %0 : i1 to i32
    %c0_i32_0 = arith.constant 0 : i32
    %2 = arith.cmpi ne, %1, %c0_i32_0 : i32
    scf.if %2 {
      %cst_79 = arith.constant 0.000000e+00 : f32
      %122 = vector.broadcast %cst_79 : f32 to vector<1x8x32xf32>
      %c0_80 = arith.constant 0 : index
      %c0_81 = arith.constant 0 : index
      %c0_82 = arith.constant 0 : index
      %123 = vector.load %arg17[%c0_80, %c0_81, %c0_82] : memref<1x8x32xf32, #tpu.memory_space<vmem>>, vector<1x8x32xf32>
      tpu.vector_store %arg17[%c0_80, %c0_81, %c0_82], %122 {strides = array<i32>} : memref<1x8x32xf32, #tpu.memory_space<vmem>>, vector<1x8x32xf32>,
      %cst_83 = arith.constant 0.000000e+00 : f32
      %124 = vector.broadcast %cst_83 : f32 to vector<3x8x32xf32>
      %c0_84 = arith.constant 0 : index
      %c0_85 = arith.constant 0 : index
      %c0_86 = arith.constant 0 : index
      %125 = vector.load %arg20[%c0_84, %c0_85, %c0_86] : memref<3x8x32xf32, #tpu.memory_space<vmem>>, vector<3x8x32xf32>
      tpu.vector_store %arg20[%c0_84, %c0_85, %c0_86], %124 {strides = array<i32>} : memref<3x8x32xf32, #tpu.memory_space<vmem>>, vector<3x8x32xf32>,
    } else {
    }
    %c0 = arith.constant 0 : index
    %c0_1 = arith.constant 0 : index
    %c0_2 = arith.constant 0 : index
    %3 = vector.load %arg3[%c0, %c0_1, %c0_2] : memref<1x8x32xf32, #tpu.memory_space<vmem>>, vector<1x8x32xf32>
    %4 = vector.shape_cast %3 : vector<1x8x32xf32> to vector<8x32xf32>
    %c0_3 = arith.constant 0 : index
    %c0_4 = arith.constant 0 : index
    %c0_5 = arith.constant 0 : index
    %5 = vector.load %arg4[%c0_3, %c0_4, %c0_5] : memref<1x16x32xf32, #tpu.memory_space<vmem>>, vector<1x16x32xf32>
    %6 = vector.shape_cast %5 : vector<1x16x32xf32> to vector<16x32xf32>
    %c0_6 = arith.constant 0 : index
    %c0_7 = arith.constant 0 : index
    %c0_8 = arith.constant 0 : index
    %7 = vector.load %arg5[%c0_6, %c0_7, %c0_8] : memref<1x16x32xf32, #tpu.memory_space<vmem>>, vector<1x16x32xf32>
    %8 = vector.shape_cast %7 : vector<1x16x32xf32> to vector<16x32xf32>
    %c0_9 = arith.constant 0 : index
    %c0_10 = arith.constant 0 : index
    %c0_11 = arith.constant 0 : index
    %c0_12 = arith.constant 0 : index
    %9 = vector.load %arg6[%c0_9, %c0_10, %c0_11, %c0_12] : memref<1x8x16x32xf32, #tpu.memory_space<vmem>>, vector<1x8x16x32xf32>
    %10 = vector.shape_cast %9 : vector<1x8x16x32xf32> to vector<8x16x32xf32>
    %11 = vector.shape_cast %10 : vector<8x16x32xf32> to vector<128x32xf32>
    %12 = arith.truncf %11 : vector<128x32xf32> to vector<128x32xbf16>
    %c0_13 = arith.constant 0 : index
    %c0_14 = arith.constant 0 : index
    %13 = vector.load %arg10[%c0_13, %c0_14] : memref<32x32xbf16, #tpu.memory_space<vmem>>, vector<32x32xbf16>
    %cst = arith.constant dense<0.000000e+00> : vector<128x32xf32>
    %14 = tpu.matmul %12, %13, %cst {dimension_numbers = #tpu.dot_dimension_numbers<[1], [0], [0], [1], [0, 0, 1, 1], [], []>} : vector<128x32xbf16>, vector<32x32xbf16>, vector<128x32xf32> -> vector<128x32xf32>
    %c0_15 = arith.constant 0 : index
    %c0_16 = arith.constant 0 : index
    %15 = vector.load %arg11[%c0_15, %c0_16] : memref<1x32xf32, #tpu.memory_space<vmem>>, vector<1x32xf32>
    %16 = vector.broadcast %15 : vector<1x32xf32> to vector<128x32xf32>
    %17 = arith.addf %14, %16 : vector<128x32xf32>
    %cst_17 = arith.constant 5.000000e-01 : f32
    %18 = vector.broadcast %cst_17 : f32 to vector<128x32xf32>
    %19 = arith.mulf %18, %17 : vector<128x32xf32>
    %cst_18 = arith.constant 4.471500e-02 : f32
    %20 = vector.broadcast %cst_18 : f32 to vector<128x32xf32>
    %21 = arith.mulf %20, %17 : vector<128x32xf32>
    %22 = arith.mulf %21, %17 : vector<128x32xf32>
    %23 = arith.mulf %22, %17 : vector<128x32xf32>
    %24 = arith.addf %17, %23 : vector<128x32xf32>
    %cst_19 = arith.constant 0.797884583 : f32
    %25 = vector.broadcast %cst_19 : f32 to vector<128x32xf32>
    %26 = arith.mulf %25, %24 : vector<128x32xf32>
    %27 = math.tanh %26 : vector<128x32xf32>
    %cst_20 = arith.constant 1.000000e+00 : f32
    %28 = vector.broadcast %cst_20 : f32 to vector<128x32xf32>
    %29 = arith.addf %28, %27 : vector<128x32xf32>
    %30 = arith.mulf %19, %29 : vector<128x32xf32>
    %31 = vector.shape_cast %4 : vector<8x32xf32> to vector<8x1x32xf32>
    %32 = vector.shape_cast %6 : vector<16x32xf32> to vector<1x16x32xf32>
    %33 = vector.broadcast %31 : vector<8x1x32xf32> to vector<8x16x32xf32>
    %34 = vector.broadcast %32 : vector<1x16x32xf32> to vector<8x16x32xf32>
    %35 = arith.mulf %33, %34 : vector<8x16x32xf32>
    %36 = vector.shape_cast %35 : vector<8x16x32xf32> to vector<128x32xf32>
    %37 = arith.mulf %36, %30 : vector<128x32xf32>
    %38 = arith.truncf %37 : vector<128x32xf32> to vector<128x32xbf16>
    %c0_21 = arith.constant 0 : index
    %c0_22 = arith.constant 0 : index
    %39 = vector.load %arg14[%c0_21, %c0_22] : memref<32x32xbf16, #tpu.memory_space<vmem>>, vector<32x32xbf16>
    %cst_23 = arith.constant dense<0.000000e+00> : vector<128x32xf32>
    %40 = tpu.matmul %38, %39, %cst_23 {dimension_numbers = #tpu.dot_dimension_numbers<[1], [0], [0], [1], [0, 0, 1, 1], [], []>} : vector<128x32xbf16>, vector<32x32xbf16>, vector<128x32xf32> -> vector<128x32xf32>
    %c0_24 = arith.constant 0 : index
    %c0_25 = arith.constant 0 : index
    %c0_26 = arith.constant 0 : index
    %41 = vector.load %arg7[%c0_24, %c0_25, %c0_26] : memref<1x8x16xf32, #tpu.memory_space<vmem>>, vector<1x8x16xf32>
    %42 = vector.shape_cast %41 : vector<1x8x16xf32> to vector<8x16xf32>
    %43 = vector.shape_cast %42 : vector<8x16xf32> to vector<8x16x1xf32>
    %c0_27 = arith.constant 0 : index
    %c0_28 = arith.constant 0 : index
    %c0_29 = arith.constant 0 : index
    %44 = vector.load %arg8[%c0_27, %c0_28, %c0_29] : memref<1x8x16xf32, #tpu.memory_space<vmem>>, vector<1x8x16xf32>
    %45 = vector.shape_cast %44 : vector<1x8x16xf32> to vector<8x16xf32>
    %46 = vector.shape_cast %45 : vector<8x16xf32> to vector<8x16x1xf32>
    %cst_30 = arith.constant 5.000000e-01 : f32
    %47 = vector.broadcast %cst_30 : f32 to vector<128x32xf32>
    %48 = arith.mulf %47, %40 : vector<128x32xf32>
    %cst_31 = arith.constant 4.471500e-02 : f32
    %49 = vector.broadcast %cst_31 : f32 to vector<128x32xf32>
    %50 = arith.mulf %49, %40 : vector<128x32xf32>
    %51 = arith.mulf %50, %40 : vector<128x32xf32>
    %52 = arith.mulf %51, %40 : vector<128x32xf32>
    %53 = arith.addf %40, %52 : vector<128x32xf32>
    %cst_32 = arith.constant 0.797884583 : f32
    %54 = vector.broadcast %cst_32 : f32 to vector<128x32xf32>
    %55 = arith.mulf %54, %53 : vector<128x32xf32>
    %56 = math.tanh %55 : vector<128x32xf32>
    %cst_33 = arith.constant 1.000000e+00 : f32
    %57 = vector.broadcast %cst_33 : f32 to vector<128x32xf32>
    %58 = arith.addf %57, %56 : vector<128x32xf32>
    %59 = arith.mulf %48, %58 : vector<128x32xf32>
    %60 = vector.shape_cast %59 : vector<128x32xf32> to vector<8x16x32xf32>
    %61 = vector.broadcast %43 : vector<8x16x1xf32> to vector<8x16x32xf32>
    %62 = arith.mulf %60, %61 : vector<8x16x32xf32>
    %63 = vector.shape_cast %8 : vector<16x32xf32> to vector<1x16x32xf32>
    %64 = vector.broadcast %63 : vector<1x16x32xf32> to vector<8x16x32xf32>
    %65 = arith.mulf %62, %64 : vector<8x16x32xf32>
    %c0_34 = arith.constant 0 : index
    %c0_35 = arith.constant 0 : index
    %c0_36 = arith.constant 0 : index
    %66 = vector.load %arg17[%c0_34, %c0_35, %c0_36] : memref<1x8x32xf32, #tpu.memory_space<vmem>>, vector<1x8x32xf32>
    %67 = vector.shape_cast %66 : vector<1x8x32xf32> to vector<8x32xf32>
    %cst_37 = arith.constant dense<0.000000e+00> : vector<8x32xf32>
    %68 = vector.multi_reduction <add>, %65, %cst_37 [1] : vector<8x16x32xf32> to vector<8x32xf32>
    %69 = arith.addf %67, %68 : vector<8x32xf32>
    %c0_38 = arith.constant 0 : index
    %c0_39 = arith.constant 0 : index
    %c0_40 = arith.constant 0 : index
    %70 = vector.load %arg17[%c0_38, %c0_39, %c0_40] : memref<1x8x32xf32, #tpu.memory_space<vmem>>, vector<1x8x32xf32>
    %71 = vector.shape_cast %70 : vector<1x8x32xf32> to vector<8x32xf32>
    %72 = vector.shape_cast %69 : vector<8x32xf32> to vector<1x8x32xf32>
    tpu.vector_store %arg17[%c0_38, %c0_39, %c0_40], %72 {strides = array<i32>} : memref<1x8x32xf32, #tpu.memory_space<vmem>>, vector<1x8x32xf32>,
    %73 = vector.shape_cast %65 : vector<8x16x32xf32> to vector<128x32xf32>
    %74 = arith.truncf %73 : vector<128x32xf32> to vector<128x32xbf16>
    %c0_41 = arith.constant 0 : index
    %c0_42 = arith.constant 0 : index
    %75 = vector.load %arg12[%c0_41, %c0_42] : memref<32x32xbf16, #tpu.memory_space<vmem>>, vector<32x32xbf16>
    %cst_43 = arith.constant dense<0.000000e+00> : vector<128x32xf32>
    %76 = tpu.matmul %74, %75, %cst_43 {dimension_numbers = #tpu.dot_dimension_numbers<[1], [0], [0], [1], [0, 0, 1, 1], [], []>} : vector<128x32xbf16>, vector<32x32xbf16>, vector<128x32xf32> -> vector<128x32xf32>
    %c0_44 = arith.constant 0 : index
    %c0_45 = arith.constant 0 : index
    %77 = vector.load %arg13[%c0_44, %c0_45] : memref<1x32xf32, #tpu.memory_space<vmem>>, vector<1x32xf32>
    %78 = vector.broadcast %77 : vector<1x32xf32> to vector<128x32xf32>
    %79 = arith.addf %76, %78 : vector<128x32xf32>
    %80 = vector.shape_cast %79 : vector<128x32xf32> to vector<8x16x32xf32>
    %81 = vector.broadcast %46 : vector<8x16x1xf32> to vector<8x16x32xf32>
    %82 = arith.mulf %80, %81 : vector<8x16x32xf32>
    %c0_46 = arith.constant 0 : index
    %c0_47 = arith.constant 0 : index
    %c0_48 = arith.constant 0 : index
    %83 = vector.load %arg20[%c0_46, %c0_47, %c0_48] : memref<3x8x32xf32, #tpu.memory_space<vmem>>, vector<1x8x32xf32>
    %84 = vector.shape_cast %83 : vector<1x8x32xf32> to vector<8x32xf32>
    %c0_49 = arith.constant 0 : index
    %c0_50 = arith.constant 0 : index
    %c0_51 = arith.constant 0 : index
    %c0_52 = arith.constant 0 : index
    %85 = vector.load %arg9[%c0_49, %c0_50, %c0_51, %c0_52] : memref<1x3x8x16xf32, #tpu.memory_space<vmem>>, vector<1x1x8x16xf32>
    %86 = vector.shape_cast %85 : vector<1x1x8x16xf32> to vector<8x16xf32>
    %87 = vector.shape_cast %86 : vector<8x16xf32> to vector<8x16x1xf32>
    %88 = vector.broadcast %87 : vector<8x16x1xf32> to vector<8x16x32xf32>
    %89 = arith.mulf %88, %82 : vector<8x16x32xf32>
    %cst_53 = arith.constant dense<0.000000e+00> : vector<8x32xf32>
    %90 = vector.multi_reduction <add>, %89, %cst_53 [1] : vector<8x16x32xf32> to vector<8x32xf32>
    %91 = arith.addf %84, %90 : vector<8x32xf32>
    %c0_54 = arith.constant 0 : index
    %c0_55 = arith.constant 0 : index
    %c0_56 = arith.constant 0 : index
    %92 = vector.load %arg20[%c0_54, %c0_55, %c0_56] : memref<3x8x32xf32, #tpu.memory_space<vmem>>, vector<1x8x32xf32>
    %93 = vector.shape_cast %92 : vector<1x8x32xf32> to vector<8x32xf32>
    %94 = vector.shape_cast %91 : vector<8x32xf32> to vector<1x8x32xf32>
    tpu.vector_store %arg20[%c0_54, %c0_55, %c0_56], %94 {strides = array<i32>} : memref<3x8x32xf32, #tpu.memory_space<vmem>>, vector<1x8x32xf32>,
    %c1 = arith.constant 1 : index
    %c0_57 = arith.constant 0 : index
    %c0_58 = arith.constant 0 : index
    %95 = vector.load %arg20[%c1, %c0_57, %c0_58] : memref<3x8x32xf32, #tpu.memory_space<vmem>>, vector<1x8x32xf32>
    %96 = vector.shape_cast %95 : vector<1x8x32xf32> to vector<8x32xf32>
    %c0_59 = arith.constant 0 : index
    %c1_60 = arith.constant 1 : index
    %c0_61 = arith.constant 0 : index
    %c0_62 = arith.constant 0 : index
    %97 = vector.load %arg9[%c0_59, %c1_60, %c0_61, %c0_62] : memref<1x3x8x16xf32, #tpu.memory_space<vmem>>, vector<1x1x8x16xf32>
    %98 = vector.shape_cast %97 : vector<1x1x8x16xf32> to vector<8x16xf32>
    %99 = vector.shape_cast %98 : vector<8x16xf32> to vector<8x16x1xf32>
    %100 = vector.broadcast %99 : vector<8x16x1xf32> to vector<8x16x32xf32>
    %101 = arith.mulf %100, %82 : vector<8x16x32xf32>
    %cst_63 = arith.constant dense<0.000000e+00> : vector<8x32xf32>
    %102 = vector.multi_reduction <add>, %101, %cst_63 [1] : vector<8x16x32xf32> to vector<8x32xf32>
    %103 = arith.addf %96, %102 : vector<8x32xf32>
    %c1_64 = arith.constant 1 : index
    %c0_65 = arith.constant 0 : index
    %c0_66 = arith.constant 0 : index
    %104 = vector.load %arg20[%c1_64, %c0_65, %c0_66] : memref<3x8x32xf32, #tpu.memory_space<vmem>>, vector<1x8x32xf32>
    %105 = vector.shape_cast %104 : vector<1x8x32xf32> to vector<8x32xf32>
    %106 = vector.shape_cast %103 : vector<8x32xf32> to vector<1x8x32xf32>
    tpu.vector_store %arg20[%c1_64, %c0_65, %c0_66], %106 {strides = array<i32>} : memref<3x8x32xf32, #tpu.memory_space<vmem>>, vector<1x8x32xf32>,
    %c2 = arith.constant 2 : index
    %c0_67 = arith.constant 0 : index
    %c0_68 = arith.constant 0 : index
    %107 = vector.load %arg20[%c2, %c0_67, %c0_68] : memref<3x8x32xf32, #tpu.memory_space<vmem>>, vector<1x8x32xf32>
    %108 = vector.shape_cast %107 : vector<1x8x32xf32> to vector<8x32xf32>
    %c0_69 = arith.constant 0 : index
    %c2_70 = arith.constant 2 : index
    %c0_71 = arith.constant 0 : index
    %c0_72 = arith.constant 0 : index
    %109 = vector.load %arg9[%c0_69, %c2_70, %c0_71, %c0_72] : memref<1x3x8x16xf32, #tpu.memory_space<vmem>>, vector<1x1x8x16xf32>
    %110 = vector.shape_cast %109 : vector<1x1x8x16xf32> to vector<8x16xf32>
    %111 = vector.shape_cast %110 : vector<8x16xf32> to vector<8x16x1xf32>
    %112 = vector.broadcast %111 : vector<8x16x1xf32> to vector<8x16x32xf32>
    %113 = arith.mulf %112, %82 : vector<8x16x32xf32>
    %cst_73 = arith.constant dense<0.000000e+00> : vector<8x32xf32>
    %114 = vector.multi_reduction <add>, %113, %cst_73 [1] : vector<8x16x32xf32> to vector<8x32xf32>
    %115 = arith.addf %108, %114 : vector<8x32xf32>
    %c2_74 = arith.constant 2 : index
    %c0_75 = arith.constant 0 : index
    %c0_76 = arith.constant 0 : index
    %116 = vector.load %arg20[%c2_74, %c0_75, %c0_76] : memref<3x8x32xf32, #tpu.memory_space<vmem>>, vector<1x8x32xf32>
    %117 = vector.shape_cast %116 : vector<1x8x32xf32> to vector<8x32xf32>
    %118 = vector.shape_cast %115 : vector<8x32xf32> to vector<1x8x32xf32>
    tpu.vector_store %arg20[%c2_74, %c0_75, %c0_76], %118 {strides = array<i32>} : memref<3x8x32xf32, #tpu.memory_space<vmem>>, vector<1x8x32xf32>,
    %c0_i32_77 = arith.constant 0 : i32
    %119 = arith.cmpi eq, %arg2, %c0_i32_77 : i32
    %120 = arith.extui %119 : i1 to i32
    %c0_i32_78 = arith.constant 0 : i32
    %121 = arith.cmpi ne, %120, %c0_i32_78 : i32
    scf.if %121 {
      %c0_79 = arith.constant 0 : index
      %c0_80 = arith.constant 0 : index
      %c0_81 = arith.constant 0 : index
      %122 = vector.load %arg20[%c0_79, %c0_80, %c0_81] : memref<3x8x32xf32, #tpu.memory_space<vmem>>, vector<1x8x32xf32>
      %123 = vector.shape_cast %122 : vector<1x8x32xf32> to vector<8x32xf32>
      %c1_82 = arith.constant 1 : index
      %c0_83 = arith.constant 0 : index
      %c0_84 = arith.constant 0 : index
      %124 = vector.load %arg20[%c1_82, %c0_83, %c0_84] : memref<3x8x32xf32, #tpu.memory_space<vmem>>, vector<1x8x32xf32>
      %125 = vector.shape_cast %124 : vector<1x8x32xf32> to vector<8x32xf32>
      %c2_85 = arith.constant 2 : index
      %c0_86 = arith.constant 0 : index
      %c0_87 = arith.constant 0 : index
      %126 = vector.load %arg20[%c2_85, %c0_86, %c0_87] : memref<3x8x32xf32, #tpu.memory_space<vmem>>, vector<1x8x32xf32>
      %127 = vector.shape_cast %126 : vector<1x8x32xf32> to vector<8x32xf32>
      %128 = arith.mulf %123, %123 : vector<8x32xf32>
      %129 = arith.mulf %125, %125 : vector<8x32xf32>
      %130 = arith.addf %128, %129 : vector<8x32xf32>
      %131 = arith.mulf %127, %127 : vector<8x32xf32>
      %132 = arith.addf %130, %131 : vector<8x32xf32>
      %133 = math.sqrt %132 : vector<8x32xf32>
      %cst_88 = arith.constant 9.99999996E-13 : f32
      %134 = vector.broadcast %cst_88 : f32 to vector<8x32xf32>
      %135 = arith.maximumf %133, %134 : vector<8x32xf32>
      %cst_89 = arith.constant dense<0xFF800000> : vector<8xf32>
      %136 = vector.multi_reduction <maximumf>, %135, %cst_89 [1] : vector<8x32xf32> to vector<8xf32>
      %137 = vector.shape_cast %136 : vector<8xf32> to vector<8x1xf32>
      %cst_90 = arith.constant dense<0x7F800000> : vector<8xf32>
      %138 = vector.multi_reduction <minimumf>, %135, %cst_90 [1] : vector<8x32xf32> to vector<8xf32>
      %139 = vector.shape_cast %138 : vector<8xf32> to vector<8x1xf32>
      %140 = arith.subf %137, %139 : vector<8x1xf32>
      %cst_91 = arith.constant 0.000000e+00 : f32
      %141 = vector.broadcast %cst_91 : f32 to vector<8x1xf32>
      %142 = arith.cmpf oeq, %140, %141 : vector<8x1xf32>
      %cst_92 = arith.constant 1.000000e+00 : f32
      %143 = vector.broadcast %cst_92 : f32 to vector<8x1xf32>
      %144 = arith.select %142, %143, %140 : vector<8x1xi1>, vector<8x1xf32>
      %145 = vector.broadcast %139 : vector<8x1xf32> to vector<8x32xf32>
      %146 = arith.subf %135, %145 : vector<8x32xf32>
      %147 = tpu.reciprocal %144 {approx = true} : vector<8x1xf32> -> vector<8x1xf32>
      %148 = vector.broadcast %147 : vector<8x1xf32> to vector<8x32xf32>
      %149 = arith.mulf %146, %148 : vector<8x32xf32>
      %cst_93 = arith.constant 0.000000e+00 : f32
      %150 = vector.broadcast %cst_93 : f32 to vector<8x32xf32>
      %151 = arith.maximumf %149, %150 : vector<8x32xf32>
      %152 = tpu.reciprocal %135 {approx = true} : vector<8x32xf32> -> vector<8x32xf32>
      %153 = arith.mulf %151, %152 : vector<8x32xf32>
      %154 = arith.mulf %123, %153 : vector<8x32xf32>
      %155 = arith.truncf %154 : vector<8x32xf32> to vector<8x32xbf16>
      %c0_94 = arith.constant 0 : index
      %c0_95 = arith.constant 0 : index
      %156 = vector.load %arg15[%c0_94, %c0_95] : memref<32x32xbf16, #tpu.memory_space<vmem>>, vector<32x32xbf16>
      %cst_96 = arith.constant dense<0.000000e+00> : vector<8x32xf32>
      %157 = tpu.matmul %155, %156, %cst_96 {dimension_numbers = #tpu.dot_dimension_numbers<[1], [0], [0], [1], [0, 0, 1, 1], [], []>} : vector<8x32xbf16>, vector<32x32xbf16>, vector<8x32xf32> -> vector<8x32xf32>
      %c0_97 = arith.constant 0 : index
      %c0_98 = arith.constant 0 : index
      %c0_99 = arith.constant 0 : index
      %c0_100 = arith.constant 0 : index
      %158 = vector.load %arg18[%c0_97, %c0_98, %c0_99, %c0_100] : memref<1x3x8x32xf32, #tpu.memory_space<vmem>>, vector<1x1x8x32xf32>
      %159 = vector.shape_cast %158 : vector<1x1x8x32xf32> to vector<8x32xf32>
      %160 = vector.shape_cast %157 : vector<8x32xf32> to vector<1x1x8x32xf32>
      tpu.vector_store %arg18[%c0_97, %c0_98, %c0_99, %c0_100], %160 {strides = array<i32>} : memref<1x3x8x32xf32, #tpu.memory_space<vmem>>, vector<1x1x8x32xf32>,
      %c0_101 = arith.constant 0 : index
      %c0_102 = arith.constant 0 : index
      %161 = vector.load %arg16[%c0_101, %c0_102] : memref<32x32xbf16, #tpu.memory_space<vmem>>, vector<32x32xbf16>
      %cst_103 = arith.constant dense<0.000000e+00> : vector<8x32xf32>
      %162 = tpu.matmul %155, %161, %cst_103 {dimension_numbers = #tpu.dot_dimension_numbers<[1], [0], [0], [1], [0, 0, 1, 1], [], []>} : vector<8x32xbf16>, vector<32x32xbf16>, vector<8x32xf32> -> vector<8x32xf32>
      %c0_104 = arith.constant 0 : index
      %c0_105 = arith.constant 0 : index
      %c0_106 = arith.constant 0 : index
      %c0_107 = arith.constant 0 : index
      %163 = vector.load %arg19[%c0_104, %c0_105, %c0_106, %c0_107] : memref<1x3x8x32xf32, #tpu.memory_space<vmem>>, vector<1x1x8x32xf32>
      %164 = vector.shape_cast %163 : vector<1x1x8x32xf32> to vector<8x32xf32>
      %165 = vector.shape_cast %162 : vector<8x32xf32> to vector<1x1x8x32xf32>
      tpu.vector_store %arg19[%c0_104, %c0_105, %c0_106, %c0_107], %165 {strides = array<i32>} : memref<1x3x8x32xf32, #tpu.memory_space<vmem>>, vector<1x1x8x32xf32>,
      %166 = arith.mulf %125, %153 : vector<8x32xf32>
      %167 = arith.truncf %166 : vector<8x32xf32> to vector<8x32xbf16>
      %c0_108 = arith.constant 0 : index
      %c0_109 = arith.constant 0 : index
      %168 = vector.load %arg15[%c0_108, %c0_109] : memref<32x32xbf16, #tpu.memory_space<vmem>>, vector<32x32xbf16>
      %cst_110 = arith.constant dense<0.000000e+00> : vector<8x32xf32>
      %169 = tpu.matmul %167, %168, %cst_110 {dimension_numbers = #tpu.dot_dimension_numbers<[1], [0], [0], [1], [0, 0, 1, 1], [], []>} : vector<8x32xbf16>, vector<32x32xbf16>, vector<8x32xf32> -> vector<8x32xf32>
      %c0_111 = arith.constant 0 : index
      %c1_112 = arith.constant 1 : index
      %c0_113 = arith.constant 0 : index
      %c0_114 = arith.constant 0 : index
      %170 = vector.load %arg18[%c0_111, %c1_112, %c0_113, %c0_114] : memref<1x3x8x32xf32, #tpu.memory_space<vmem>>, vector<1x1x8x32xf32>
      %171 = vector.shape_cast %170 : vector<1x1x8x32xf32> to vector<8x32xf32>
      %172 = vector.shape_cast %169 : vector<8x32xf32> to vector<1x1x8x32xf32>
      tpu.vector_store %arg18[%c0_111, %c1_112, %c0_113, %c0_114], %172 {strides = array<i32>} : memref<1x3x8x32xf32, #tpu.memory_space<vmem>>, vector<1x1x8x32xf32>,
      %c0_115 = arith.constant 0 : index
      %c0_116 = arith.constant 0 : index
      %173 = vector.load %arg16[%c0_115, %c0_116] : memref<32x32xbf16, #tpu.memory_space<vmem>>, vector<32x32xbf16>
      %cst_117 = arith.constant dense<0.000000e+00> : vector<8x32xf32>
      %174 = tpu.matmul %167, %173, %cst_117 {dimension_numbers = #tpu.dot_dimension_numbers<[1], [0], [0], [1], [0, 0, 1, 1], [], []>} : vector<8x32xbf16>, vector<32x32xbf16>, vector<8x32xf32> -> vector<8x32xf32>
      %c0_118 = arith.constant 0 : index
      %c1_119 = arith.constant 1 : index
      %c0_120 = arith.constant 0 : index
      %c0_121 = arith.constant 0 : index
      %175 = vector.load %arg19[%c0_118, %c1_119, %c0_120, %c0_121] : memref<1x3x8x32xf32, #tpu.memory_space<vmem>>, vector<1x1x8x32xf32>
      %176 = vector.shape_cast %175 : vector<1x1x8x32xf32> to vector<8x32xf32>
      %177 = vector.shape_cast %174 : vector<8x32xf32> to vector<1x1x8x32xf32>
      tpu.vector_store %arg19[%c0_118, %c1_119, %c0_120, %c0_121], %177 {strides = array<i32>} : memref<1x3x8x32xf32, #tpu.memory_space<vmem>>, vector<1x1x8x32xf32>,
      %178 = arith.mulf %127, %153 : vector<8x32xf32>
      %179 = arith.truncf %178 : vector<8x32xf32> to vector<8x32xbf16>
      %c0_122 = arith.constant 0 : index
      %c0_123 = arith.constant 0 : index
      %180 = vector.load %arg15[%c0_122, %c0_123] : memref<32x32xbf16, #tpu.memory_space<vmem>>, vector<32x32xbf16>
      %cst_124 = arith.constant dense<0.000000e+00> : vector<8x32xf32>
      %181 = tpu.matmul %179, %180, %cst_124 {dimension_numbers = #tpu.dot_dimension_numbers<[1], [0], [0], [1], [0, 0, 1, 1], [], []>} : vector<8x32xbf16>, vector<32x32xbf16>, vector<8x32xf32> -> vector<8x32xf32>
      %c0_125 = arith.constant 0 : index
      %c2_126 = arith.constant 2 : index
      %c0_127 = arith.constant 0 : index
      %c0_128 = arith.constant 0 : index
      %182 = vector.load %arg18[%c0_125, %c2_126, %c0_127, %c0_128] : memref<1x3x8x32xf32, #tpu.memory_space<vmem>>, vector<1x1x8x32xf32>
      %183 = vector.shape_cast %182 : vector<1x1x8x32xf32> to vector<8x32xf32>
      %184 = vector.shape_cast %181 : vector<8x32xf32> to vector<1x1x8x32xf32>
      tpu.vector_store %arg18[%c0_125, %c2_126, %c0_127, %c0_128], %184 {strides = array<i32>} : memref<1x3x8x32xf32, #tpu.memory_space<vmem>>, vector<1x1x8x32xf32>,
      %c0_129 = arith.constant 0 : index
      %c0_130 = arith.constant 0 : index
      %185 = vector.load %arg16[%c0_129, %c0_130] : memref<32x32xbf16, #tpu.memory_space<vmem>>, vector<32x32xbf16>
      %cst_131 = arith.constant dense<0.000000e+00> : vector<8x32xf32>
      %186 = tpu.matmul %179, %185, %cst_131 {dimension_numbers = #tpu.dot_dimension_numbers<[1], [0], [0], [1], [0, 0, 1, 1], [], []>} : vector<8x32xbf16>, vector<32x32xbf16>, vector<8x32xf32> -> vector<8x32xf32>
      %c0_132 = arith.constant 0 : index
      %c2_133 = arith.constant 2 : index
      %c0_134 = arith.constant 0 : index
      %c0_135 = arith.constant 0 : index
      %187 = vector.load %arg19[%c0_132, %c2_133, %c0_134, %c0_135] : memref<1x3x8x32xf32, #tpu.memory_space<vmem>>, vector<1x1x8x32xf32>
      %188 = vector.shape_cast %187 : vector<1x1x8x32xf32> to vector<8x32xf32>
      %189 = vector.shape_cast %186 : vector<8x32xf32> to vector<1x1x8x32xf32>
      tpu.vector_store %arg19[%c0_132, %c2_133, %c0_134, %c0_135], %189 {strides = array<i32>} : memref<1x3x8x32xf32, #tpu.memory_space<vmem>>, vector<1x1x8x32xf32>,
    } else {
    }
    return
  }
  func.func @transform_0(%arg0: i32, %arg1: i32, %arg2: i32) -> (i32, i32, i32) {
    %c0_i32 = arith.constant 0 : i32
    %c0_i32_0 = arith.constant 0 : i32
    return %arg0, %arg1, %c0_i32 : i32, i32, i32
  }
  func.func @transform_1(%arg0: i32, %arg1: i32, %arg2: i32) -> (i32, i32, i32) {
    %c0_i32 = arith.constant 0 : i32
    %c0_i32_0 = arith.constant 0 : i32
    return %arg0, %arg2, %c0_i32 : i32, i32, i32
  }
  func.func @transform_2(%arg0: i32, %arg1: i32, %arg2: i32) -> (i32, i32, i32) {
    %c0_i32 = arith.constant 0 : i32
    %c0_i32_0 = arith.constant 0 : i32
    return %arg0, %arg2, %c0_i32 : i32, i32, i32
  }
  func.func @transform_3(%arg0: i32, %arg1: i32, %arg2: i32) -> (i32, i32, i32, i32) {
    %c0_i32 = arith.constant 0 : i32
    %c0_i32_0 = arith.constant 0 : i32
    return %arg0, %arg1, %arg2, %c0_i32 : i32, i32, i32, i32
  }
  func.func @transform_4(%arg0: i32, %arg1: i32, %arg2: i32) -> (i32, i32, i32) {
    %c0_i32 = arith.constant 0 : i32
    return %arg0, %arg1, %arg2 : i32, i32, i32
  }
  func.func @transform_5(%arg0: i32, %arg1: i32, %arg2: i32) -> (i32, i32, i32) {
    %c0_i32 = arith.constant 0 : i32
    return %arg0, %arg1, %arg2 : i32, i32, i32
  }
  func.func @transform_6(%arg0: i32, %arg1: i32, %arg2: i32) -> (i32, i32, i32, i32) {
    %c0_i32 = arith.constant 0 : i32
    %c0_i32_0 = arith.constant 0 : i32
    return %arg0, %c0_i32, %arg1, %arg2 : i32, i32, i32, i32
  }
  func.func @transform_7(%arg0: i32, %arg1: i32, %arg2: i32) -> (i32, i32) {
    %c0_i32 = arith.constant 0 : i32
    %c0_i32_0 = arith.constant 0 : i32
    %c0_i32_1 = arith.constant 0 : i32
    return %c0_i32, %c0_i32_0 : i32, i32
  }
  func.func @transform_8(%arg0: i32, %arg1: i32, %arg2: i32) -> (i32, i32) {
    %c0_i32 = arith.constant 0 : i32
    %c0_i32_0 = arith.constant 0 : i32
    %c0_i32_1 = arith.constant 0 : i32
    return %c0_i32, %c0_i32_0 : i32, i32
  }
  func.func @transform_9(%arg0: i32, %arg1: i32, %arg2: i32) -> (i32, i32) {
    %c0_i32 = arith.constant 0 : i32
    %c0_i32_0 = arith.constant 0 : i32
    %c0_i32_1 = arith.constant 0 : i32
    return %c0_i32, %c0_i32_0 : i32, i32
  }
  func.func @transform_10(%arg0: i32, %arg1: i32, %arg2: i32) -> (i32, i32) {
    %c0_i32 = arith.constant 0 : i32
    %c0_i32_0 = arith.constant 0 : i32
    %c0_i32_1 = arith.constant 0 : i32
    return %c0_i32, %c0_i32_0 : i32, i32
  }
  func.func @transform_11(%arg0: i32, %arg1: i32, %arg2: i32) -> (i32, i32) {
    %c0_i32 = arith.constant 0 : i32
    %c0_i32_0 = arith.constant 0 : i32
    %c0_i32_1 = arith.constant 0 : i32
    return %c0_i32, %c0_i32_0 : i32, i32
  }
  func.func @transform_12(%arg0: i32, %arg1: i32, %arg2: i32) -> (i32, i32) {
    %c0_i32 = arith.constant 0 : i32
    %c0_i32_0 = arith.constant 0 : i32
    %c0_i32_1 = arith.constant 0 : i32
    return %c0_i32, %c0_i32_0 : i32, i32
  }
  func.func @transform_13(%arg0: i32, %arg1: i32, %arg2: i32) -> (i32, i32) {
    %c0_i32 = arith.constant 0 : i32
    %c0_i32_0 = arith.constant 0 : i32
    %c0_i32_1 = arith.constant 0 : i32
    return %c0_i32, %c0_i32_0 : i32, i32
  }
  func.func @transform_14(%arg0: i32, %arg1: i32, %arg2: i32) -> (i32, i32, i32) {
    %c0_i32 = arith.constant 0 : i32
    %c0_i32_0 = arith.constant 0 : i32
    return %arg0, %arg1, %c0_i32 : i32, i32, i32
  }
  func.func @transform_15(%arg0: i32, %arg1: i32, %arg2: i32) -> (i32, i32, i32, i32) {
    %c0_i32 = arith.constant 0 : i32
    %c0_i32_0 = arith.constant 0 : i32
    %c0_i32_1 = arith.constant 0 : i32
    return %arg0, %c0_i32, %arg1, %c0_i32_0 : i32, i32, i32, i32
  }
  func.func @transform_16(%arg0: i32, %arg1: i32, %arg2: i32) -> (i32, i32, i32, i32) {
    %c0_i32 = arith.constant 0 : i32
    %c0_i32_0 = arith.constant 0 : i32
    %c0_i32_1 = arith.constant 0 : i32
    return %arg0, %c0_i32, %arg1, %c0_i32_0 : i32, i32, i32, i32
  }
}

</mosaic_0001>

<llo_original>
// kernel: tpu_custom_call.1
$region0: #{tpu_custom_call.1}
  #allocation0 [shape = 'u32[]', space=smem, size = 0x4, offset = 0x4, fixed_abs, tag = 'smem constant byte address 0x4 - core index']
  #allocation1 [shape = 'u32[144,128]{1,0:T(1,128)}', space=vmem, size = 0x12000, scoped, tag = 'internal scratch']
  #allocation2 [shape = 'f32[3,8,32]{2,1,0:T(8,128)}', space=vmem, size = 0x3000, scoped, tag = 'scratch operand']
  %s0 = inlined_call_operand.hbm [shape: f32[2,16,32], index: 0, kind: input, shape index: {}]
  %s1 = inlined_call_operand.hbm [shape: f32[2,16,32], index: 1, kind: input, shape index: {}]
  %s2 = inlined_call_operand.hbm [shape: f32[2,16,32], index: 2, kind: input, shape index: {}]
  %s3 = inlined_call_operand.hbm [shape: f32[2,16,16,32], index: 3, kind: input, shape index: {}]
  %s4 = inlined_call_operand.hbm [shape: f32[2,16,16], index: 4, kind: input, shape index: {}]
  %s5 = inlined_call_operand.hbm [shape: f32[2,16,16], index: 5, kind: input, shape index: {}]
  %s6 = inlined_call_operand.hbm [shape: f32[2,3,16,16], index: 6, kind: input, shape index: {}]
  %s7 = inlined_call_operand.vmem [shape: bf16[32,32], index: 7, kind: input, shape index: {}]
  %s8 = inlined_call_operand.vmem [shape: f32[1,32], index: 8, kind: input, shape index: {}]
  %s9 = inlined_call_operand.vmem [shape: bf16[32,32], index: 9, kind: input, shape index: {}]
  %s10 = inlined_call_operand.hbm [shape: f32[1,32], index: 10, kind: input, shape index: {}]
  %s11 = inlined_call_operand.hbm [shape: bf16[32,32], index: 11, kind: input, shape index: {}]
  %s12 = inlined_call_operand.hbm [shape: bf16[32,32], index: 12, kind: input, shape index: {}]
  %s13 = inlined_call_operand.vmem [shape: bf16[32,32], index: 13, kind: input, shape index: {}]
  %s14 = inlined_call_operand.hbm [shape: f32[2,16,32], index: 14, kind: output, shape index: {0}]
  %s15 = inlined_call_operand.hbm [shape: f32[2,3,16,32], index: 15, kind: output, shape index: {1}]
  %s16 = inlined_call_operand.hbm [shape: f32[2,3,16,32], index: 16, kind: output, shape index: {2}]
  %17 = xla_tuple %s14, %s15, %s16
  %s18 = sld [smem:[#allocation0]]
  $region153: #{tpu_custom_call.1} parent=0
    _
  %s20 = ssub.s32 1, %s18
  %s21 = scalar_select 0, %s20, %s18
  $region1: #{tpu_custom_call.1} parent=0
    #allocation3 [shape = 'u8[8192]{0}', space=vmem, size = 0x2000, scoped, tag = 'input window, operand 0']
    #allocation4 [shape = 's32[2]{0}', space=sflag, size = 0x8, scoped, tag = 'scoped memory for tpu_custom_call.1']
    #allocation5 [shape = 's32[2]{0}', space=sflag, size = 0x8, scoped, tag = 'scoped memory for tpu_custom_call.1']
    #allocation6 [shape = 'u8[16384]{0}', space=vmem, size = 0x4000, scoped, tag = 'input window, operand 1']
    #allocation7 [shape = 's32[2]{0}', space=sflag, size = 0x8, scoped, tag = 'scoped memory for tpu_custom_call.1']
    #allocation8 [shape = 'u8[16384]{0}', space=vmem, size = 0x4000, scoped, tag = 'input window, operand 2']
    #allocation9 [shape = 'u8[131072]{0}', space=vmem, size = 0x20000, scoped, tag = 'input window, operand 3']
    #allocation10 [shape = 's32[2]{0}', space=sflag, size = 0x8, scoped, tag = 'scoped memory for tpu_custom_call.1']
    #allocation11 [shape = 'u8[8192]{0}', space=vmem, size = 0x2000, scoped, tag = 'input window, operand 4']
    #allocation12 [shape = 'u8[8192]{0}', space=vmem, size = 0x2000, scoped, tag = 'input window, operand 5']
    #allocation13 [shape = 's32[2]{0}', space=sflag, size = 0x8, scoped, tag = 'scoped memory for tpu_custom_call.1']
    #allocation14 [shape = 'u8[24576]{0}', space=vmem, size = 0x6000, scoped, tag = 'input window, operand 6']
    #allocation15 [shape = 'u8[512]{0}', space=vmem, size = 0x400, scoped, tag = 'input window, operand 10, single buffered']
    #allocation16 [shape = 's32[1]{0}', space=sflag, size = 0x4, scoped, tag = 'scoped memory for tpu_custom_call.1']
    #allocation17 [shape = 'u8[8192]{0}', space=vmem, size = 0x2000, scoped, tag = 'input window, operand 11, single buffered']
    #allocation18 [shape = 'u8[8192]{0}', space=vmem, size = 0x2000, scoped, tag = 'input window, operand 12, single buffered']
    #allocation19 [shape = 's32[1]{0}', space=sflag, size = 0x4, scoped, tag = 'scoped memory for tpu_custom_call.1']
    #allocation20 [shape = 'u8[8192]{0}', space=vmem, size = 0x2000, scoped, tag = 'output window, operand 0']
    #allocation21 [shape = 'u8[24576]{0}', space=vmem, size = 0x6000, scoped, tag = 'output window, operand 1']
    #allocation22 [shape = 's32[2]{0}', space=sflag, size = 0x8, scoped, tag = 'scoped memory for tpu_custom_call.1']
    #allocation23 [shape = 'u8[24576]{0}', space=vmem, size = 0x6000, scoped, tag = 'output window, operand 2']
    %22 = vsyncpa [#allocation4], 0
    %s23 = scalar_lea.sflag [#allocation4], 1
    %24 = vsyncpa %s23, 0
    %25 = vsyncpa [#allocation7], 0
    %s26 = scalar_lea.sflag [#allocation7], 1
    %27 = vsyncpa %s26, 0
    %28 = vsyncpa [#allocation10], 0
    %s29 = scalar_lea.sflag [#allocation10], 1
    %30 = vsyncpa %s29, 0
    %31 = vsyncpa [#allocation13], 0
    %s32 = scalar_lea.sflag [#allocation13], 1
    %33 = vsyncpa %s32, 0
    %34 = vsyncpa [#allocation16], 0
    %35 = vsyncpa [#allocation19], 0
    %36 = vsyncpa [#allocation5], 0
    %s37 = scalar_lea.sflag [#allocation5], 1
    %38 = vsyncpa %s37, 0
    %39 = vsyncpa [#allocation22], 0
    %s40 = scalar_lea.sflag [#allocation22], 1
    %41 = vsyncpa %s40, 0
    loop: start=0, step=1, limit=6
    $region2: #{tpu_custom_call.1} parent=1 // loop_pre_header
      _
    $region3: #{tpu_custom_call.1} parent=1 // loop_header
      %s43 = sphi 0, %s47
      %p44 = scmp.ge.s32.totalorder %s43, 6
      %s50 = sphi 0, %s69
      %s51 = sphi 0, %s65
      %s52 = sphi 0, %s61
      %s53 = sphi 0, %s50
      %s54 = sphi 0, %s51
      %s55 = sphi 0, %s52
      %s56 = sphi 0, %s53
      %s57 = sphi 0, %s54
      %s58 = sphi 0, %s55
      %s74 = sphi 0, %s76
      %s77 = sphi 0, %s74
      %s78 = sphi 0, %s77
      %s94 = sphi 0, %s78
      %s102 = sphi 0, %s104
      %s105 = sphi 0, %s102
      %s106 = sphi 0, %s105
      %s122 = sphi 0, %s106
      %s130 = sphi 0, %s132
      %s133 = sphi 0, %s130
      %s134 = sphi 0, %s133
      %s150 = sphi 0, %s134
      %s160 = sphi 0, %s162
      %s163 = sphi 0, %s160
      %s164 = sphi 0, %s163
      %s180 = sphi 0, %s164
      %s190 = sphi 0, %s192
      %s193 = sphi 0, %s190
      %s194 = sphi 0, %s193
      %s210 = sphi 0, %s194
      %s220 = sphi 0, %s222
      %s223 = sphi 0, %s220
      %s224 = sphi 0, %s223
      %s240 = sphi 0, %s224
      %s250 = sphi 0, %s252
      %s253 = sphi 0, %s250
      %s254 = sphi 0, %s253
      %s270 = sphi 0, %s254
      %s274 = sphi 0, %s274
      %s276 = sphi 0, %s274
      %s277 = sphi 0, %s276
      %s291 = sphi 0, %s277
      %s295 = sphi 0, %s295
      %s297 = sphi 0, %s295
      %s298 = sphi 0, %s297
      %s312 = sphi 0, %s298
      %s316 = sphi 0, %s316
      %s318 = sphi 0, %s316
      %s319 = sphi 0, %s318
      %s333 = sphi 0, %s319
      %s337 = sphi 0, %s337
      %s339 = sphi 0, %s337
      %s340 = sphi 0, %s339
      %s354 = sphi 0, %s340
      %s358 = sphi 0, %s358
      %s360 = sphi 0, %s358
      %s361 = sphi 0, %s360
      %s375 = sphi 0, %s361
      %s379 = sphi 0, %s379
      %s381 = sphi 0, %s379
      %s382 = sphi 0, %s381
      %s396 = sphi 0, %s382
      %s400 = sphi 0, %s400
      %s402 = sphi 0, %s400
      %s403 = sphi 0, %s402
      %s417 = sphi 0, %s403
      %s425 = sphi 0, %s427
      %s428 = sphi 0, %s425
      %s429 = sphi 0, %s428
      %s445 = sphi 0, %s429
      %s453 = sphi 0, %s455
      %s456 = sphi 0, %s453
      %s457 = sphi 0, %s456
      %s473 = sphi 0, %s457
      %s481 = sphi 0, %s483
      %s484 = sphi 0, %s481
      %s485 = sphi 0, %s484
      %s501 = sphi 0, %s485
    $region4: #{tpu_custom_call.1} parent=1 // loop_header_branch
      %46 = sbr.rel (%p44) target = $region8
    $region5: #{tpu_custom_call.1} parent=1 // loop_body
      %s48 = ssub.s32 %s43, 1
      %s49 = ssub.s32 %s43, 2
      %s59 = sadd.s32 1, %s52
      %p60 = scmp.ge.s32.totalorder %s59, 1
      %s61 = scalar_select %p60, 0, %s59
      %s62 = sadd.s32 1, %s51
      %s63 = scalar_select %p60, %s62, %s51
      %p64 = scmp.ge.s32.totalorder %s63, 2
      %s65 = scalar_select %p64, 0, %s63
      %s66 = sadd.s32 1, %s50
      %s67 = scalar_select %p64, %s66, %s50
      %p68 = scmp.ge.s32.totalorder %s67, 2
      %s69 = scalar_select %p68, 0, %s67
      %s70 = ssub.s32 %s50, %s69
      %s71 = ssub.s32 %s51, %s65
      %s72 = sor.u32 %s70, %s71
      %p73 = scmp.eq.s32.totalorder %s72, 0
      %s75 = sadd.s32 %s74, 1
      %s76 = scalar_select %p73, %s74, %s75
      %p79 = pneg %p73
      %p80 = scmp.eq.s32.totalorder %s43, 3
      %p81 = por %p79, %p80
      %p82 = scmp.ne.s32.totalorder %s74, %s77
      %p83 = scmp.eq.s32.totalorder %s43, 0
      %p84 = por %p82, %p83
      %p85 = scmp.ne.s32.totalorder %s74, %s77
      %p86 = scmp.eq.s32.totalorder %s48, 3
      %p87 = por %p85, %p86
      %p88 = scmp.ne.s32.totalorder %s77, %s78
      %p89 = scmp.eq.s32.totalorder %s48, 0
      %p90 = por %p88, %p89
      %p91 = scmp.ne.s32.totalorder %s77, %s78
      %p92 = scmp.eq.s32.totalorder %s49, 3
      %p93 = por %p91, %p92
      %p95 = scmp.ne.s32.totalorder %s78, %s94
      %p96 = scmp.eq.s32.totalorder %s49, 0
      %p97 = por %p95, %p96
      %s98 = ssub.s32 %s50, %s69
      %s99 = ssub.s32 %s52, %s61
      %s100 = sor.u32 %s98, %s99
      %p101 = scmp.eq.s32.totalorder %s100, 0
      %s103 = sadd.s32 %s102, 1
      %s104 = scalar_select %p101, %s102, %s103
      %p107 = pneg %p101
      %p108 = scmp.eq.s32.totalorder %s43, 3
      %p109 = por %p107, %p108
      %p110 = scmp.ne.s32.totalorder %s102, %s105
      %p111 = scmp.eq.s32.totalorder %s43, 0
      %p112 = por %p110, %p111
      %p113 = scmp.ne.s32.totalorder %s102, %s105
      %p114 = scmp.eq.s32.totalorder %s48, 3
      %p115 = por %p113, %p114
      %p116 = scmp.ne.s32.totalorder %s105, %s106
      %p117 = scmp.eq.s32.totalorder %s48, 0
      %p118 = por %p116, %p117
      %p119 = scmp.ne.s32.totalorder %s105, %s106
      %p120 = scmp.eq.s32.totalorder %s49, 3
      %p121 = por %p119, %p120
      %p123 = scmp.ne.s32.totalorder %s106, %s122
      %p124 = scmp.eq.s32.totalorder %s49, 0
      %p125 = por %p123, %p124
      %s126 = ssub.s32 %s50, %s69
      %s127 = ssub.s32 %s52, %s61
      %s128 = sor.u32 %s126, %s127
      %p129 = scmp.eq.s32.totalorder %s128, 0
      %s131 = sadd.s32 %s130, 1
      %s132 = scalar_select %p129, %s130, %s131
      %p135 = pneg %p129
      %p136 = scmp.eq.s32.totalorder %s43, 3
      %p137 = por %p135, %p136
      %p138 = scmp.ne.s32.totalorder %s130, %s133
      %p139 = scmp.eq.s32.totalorder %s43, 0
      %p140 = por %p138, %p139
      %p141 = scmp.ne.s32.totalorder %s130, %s133
      %p142 = scmp.eq.s32.totalorder %s48, 3
      %p143 = por %p141, %p142
      %p144 = scmp.ne.s32.totalorder %s133, %s134
      %p145 = scmp.eq.s32.totalorder %s48, 0
      %p146 = por %p144, %p145
      %p147 = scmp.ne.s32.totalorder %s133, %s134
      %p148 = scmp.eq.s32.totalorder %s49, 3
      %p149 = por %p147, %p148
      %p151 = scmp.ne.s32.totalorder %s134, %s150
      %p152 = scmp.eq.s32.totalorder %s49, 0
      %p153 = por %p151, %p152
      %s154 = ssub.s32 %s50, %s69
      %s155 = ssub.s32 %s51, %s65
      %s156 = sor.u32 %s154, %s155
      %s157 = ssub.s32 %s52, %s61
      %s158 = sor.u32 %s156, %s157
      %p159 = scmp.eq.s32.totalorder %s158, 0
      %s161 = sadd.s32 %s160, 1
      %s162 = scalar_select %p159, %s160, %s161
      %p165 = pneg %p159
      %p166 = scmp.eq.s32.totalorder %s43, 3
      %p167 = por %p165, %p166
      %p168 = scmp.ne.s32.totalorder %s160, %s163
      %p169 = scmp.eq.s32.totalorder %s43, 0
      %p170 = por %p168, %p169
      %p171 = scmp.ne.s32.totalorder %s160, %s163
      %p172 = scmp.eq.s32.totalorder %s48, 3
      %p173 = por %p171, %p172
      %p174 = scmp.ne.s32.totalorder %s163, %s164
      %p175 = scmp.eq.s32.totalorder %s48, 0
      %p176 = por %p174, %p175
      %p177 = scmp.ne.s32.totalorder %s163, %s164
      %p178 = scmp.eq.s32.totalorder %s49, 3
      %p179 = por %p177, %p178
      %p181 = scmp.ne.s32.totalorder %s164, %s180
      %p182 = scmp.eq.s32.totalorder %s49, 0
      %p183 = por %p181, %p182
      %s184 = ssub.s32 %s50, %s69
      %s185 = ssub.s32 %s51, %s65
      %s186 = sor.u32 %s184, %s185
      %s187 = ssub.s32 %s52, %s61
      %s188 = sor.u32 %s186, %s187
      %p189 = scmp.eq.s32.totalorder %s188, 0
      %s191 = sadd.s32 %s190, 1
      %s192 = scalar_select %p189, %s190, %s191
      %p195 = pneg %p189
      %p196 = scmp.eq.s32.totalorder %s43, 3
      %p197 = por %p195, %p196
      %p198 = scmp.ne.s32.totalorder %s190, %s193
      %p199 = scmp.eq.s32.totalorder %s43, 0
      %p200 = por %p198, %p199
      %p201 = scmp.ne.s32.totalorder %s190, %s193
      %p202 = scmp.eq.s32.totalorder %s48, 3
      %p203 = por %p201, %p202
      %p204 = scmp.ne.s32.totalorder %s193, %s194
      %p205 = scmp.eq.s32.totalorder %s48, 0
      %p206 = por %p204, %p205
      %p207 = scmp.ne.s32.totalorder %s193, %s194
      %p208 = scmp.eq.s32.totalorder %s49, 3
      %p209 = por %p207, %p208
      %p211 = scmp.ne.s32.totalorder %s194, %s210
      %p212 = scmp.eq.s32.totalorder %s49, 0
      %p213 = por %p211, %p212
      %s214 = ssub.s32 %s50, %s69
      %s215 = ssub.s32 %s51, %s65
      %s216 = sor.u32 %s214, %s215
      %s217 = ssub.s32 %s52, %s61
      %s218 = sor.u32 %s216, %s217
      %p219 = scmp.eq.s32.totalorder %s218, 0
      %s221 = sadd.s32 %s220, 1
      %s222 = scalar_select %p219, %s220, %s221
      %p225 = pneg %p219
      %p226 = scmp.eq.s32.totalorder %s43, 3
      %p227 = por %p225, %p226
      %p228 = scmp.ne.s32.totalorder %s220, %s223
      %p229 = scmp.eq.s32.totalorder %s43, 0
      %p230 = por %p228, %p229
      %p231 = scmp.ne.s32.totalorder %s220, %s223
      %p232 = scmp.eq.s32.totalorder %s48, 3
      %p233 = por %p231, %p232
      %p234 = scmp.ne.s32.totalorder %s223, %s224
      %p235 = scmp.eq.s32.totalorder %s48, 0
      %p236 = por %p234, %p235
      %p237 = scmp.ne.s32.totalorder %s223, %s224
      %p238 = scmp.eq.s32.totalorder %s49, 3
      %p239 = por %p237, %p238
      %p241 = scmp.ne.s32.totalorder %s224, %s240
      %p242 = scmp.eq.s32.totalorder %s49, 0
      %p243 = por %p241, %p242
      %s244 = ssub.s32 %s50, %s69
      %s245 = ssub.s32 %s51, %s65
      %s246 = sor.u32 %s244, %s245
      %s247 = ssub.s32 %s52, %s61
      %s248 = sor.u32 %s246, %s247
      %p249 = scmp.eq.s32.totalorder %s248, 0
      %s251 = sadd.s32 %s250, 1
      %s252 = scalar_select %p249, %s250, %s251
      %p255 = pneg %p249
      %p256 = scmp.eq.s32.totalorder %s43, 3
      %p257 = por %p255, %p256
      %p258 = scmp.ne.s32.totalorder %s250, %s253
      %p259 = scmp.eq.s32.totalorder %s43, 0
      %p260 = por %p258, %p259
      %p261 = scmp.ne.s32.totalorder %s250, %s253
      %p262 = scmp.eq.s32.totalorder %s48, 3
      %p263 = por %p261, %p262
      %p264 = scmp.ne.s32.totalorder %s253, %s254
      %p265 = scmp.eq.s32.totalorder %s48, 0
      %p266 = por %p264, %p265
      %p267 = scmp.ne.s32.totalorder %s253, %s254
      %p268 = scmp.eq.s32.totalorder %s49, 3
      %p269 = por %p267, %p268
      %p271 = scmp.ne.s32.totalorder %s254, %s270
      %p272 = scmp.eq.s32.totalorder %s49, 0
      %p273 = por %p271, %p272
      %s275 = sadd.s32 %s274, 1
      %p278 = scmp.eq.s32.totalorder %s43, 3
      %p279 = scmp.ne.s32.totalorder %s274, %s276
      %p280 = scmp.eq.s32.totalorder %s43, 0
      %p281 = por %p279, %p280
      %p282 = scmp.ne.s32.totalorder %s274, %s276
      %p283 = scmp.eq.s32.totalorder %s48, 3
      %p284 = por %p282, %p283
      %p285 = scmp.ne.s32.totalorder %s276, %s277
      %p286 = scmp.eq.s32.totalorder %s48, 0
      %p287 = por %p285, %p286
      %p288 = scmp.ne.s32.totalorder %s276, %s277
      %p289 = scmp.eq.s32.totalorder %s49, 3
      %p290 = por %p288, %p289
      %p292 = scmp.ne.s32.totalorder %s277, %s291
      %p293 = scmp.eq.s32.totalorder %s49, 0
      %p294 = por %p292, %p293
      %s296 = sadd.s32 %s295, 1
      %p299 = scmp.eq.s32.totalorder %s43, 3
      %p300 = scmp.ne.s32.totalorder %s295, %s297
      %p301 = scmp.eq.s32.totalorder %s43, 0
      %p302 = por %p300, %p301
      %p303 = scmp.ne.s32.totalorder %s295, %s297
      %p304 = scmp.eq.s32.totalorder %s48, 3
      %p305 = por %p303, %p304
      %p306 = scmp.ne.s32.totalorder %s297, %s298
      %p307 = scmp.eq.s32.totalorder %s48, 0
      %p308 = por %p306, %p307
      %p309 = scmp.ne.s32.totalorder %s297, %s298
      %p310 = scmp.eq.s32.totalorder %s49, 3
      %p311 = por %p309, %p310
      %p313 = scmp.ne.s32.totalorder %s298, %s312
      %p314 = scmp.eq.s32.totalorder %s49, 0
      %p315 = por %p313, %p314
      %s317 = sadd.s32 %s316, 1
      %p320 = scmp.eq.s32.totalorder %s43, 3
      %p321 = scmp.ne.s32.totalorder %s316, %s318
      %p322 = scmp.eq.s32.totalorder %s43, 0
      %p323 = por %p321, %p322
      %p324 = scmp.ne.s32.totalorder %s316, %s318
      %p325 = scmp.eq.s32.totalorder %s48, 3
      %p326 = por %p324, %p325
      %p327 = scmp.ne.s32.totalorder %s318, %s319
      %p328 = scmp.eq.s32.totalorder %s48, 0
      %p329 = por %p327, %p328
      %p330 = scmp.ne.s32.totalorder %s318, %s319
      %p331 = scmp.eq.s32.totalorder %s49, 3
      %p332 = por %p330, %p331
      %p334 = scmp.ne.s32.totalorder %s319, %s333
      %p335 = scmp.eq.s32.totalorder %s49, 0
      %p336 = por %p334, %p335
      %s338 = sadd.s32 %s337, 1
      %p341 = scmp.eq.s32.totalorder %s43, 3
      %p342 = scmp.ne.s32.totalorder %s337, %s339
      %p343 = scmp.eq.s32.totalorder %s43, 0
      %p344 = por %p342, %p343
      %p345 = scmp.ne.s32.totalorder %s337, %s339
      %p346 = scmp.eq.s32.totalorder %s48, 3
      %p347 = por %p345, %p346
      %p348 = scmp.ne.s32.totalorder %s339, %s340
      %p349 = scmp.eq.s32.totalorder %s48, 0
      %p350 = por %p348, %p349
      %p351 = scmp.ne.s32.totalorder %s339, %s340
      %p352 = scmp.eq.s32.totalorder %s49, 3
      %p353 = por %p351, %p352
      %p355 = scmp.ne.s32.totalorder %s340, %s354
      %p356 = scmp.eq.s32.totalorder %s49, 0
      %p357 = por %p355, %p356
      %s359 = sadd.s32 %s358, 1
      %p362 = scmp.eq.s32.totalorder %s43, 3
      %p363 = scmp.ne.s32.totalorder %s358, %s360
      %p364 = scmp.eq.s32.totalorder %s43, 0
      %p365 = por %p363, %p364
      %p366 = scmp.ne.s32.totalorder %s358, %s360
      %p367 = scmp.eq.s32.totalorder %s48, 3
      %p368 = por %p366, %p367
      %p369 = scmp.ne.s32.totalorder %s360, %s361
      %p370 = scmp.eq.s32.totalorder %s48, 0
      %p371 = por %p369, %p370
      %p372 = scmp.ne.s32.totalorder %s360, %s361
      %p373 = scmp.eq.s32.totalorder %s49, 3
      %p374 = por %p372, %p373
      %p376 = scmp.ne.s32.totalorder %s361, %s375
      %p377 = scmp.eq.s32.totalorder %s49, 0
      %p378 = por %p376, %p377
      %s380 = sadd.s32 %s379, 1
      %p383 = scmp.eq.s32.totalorder %s43, 3
      %p384 = scmp.ne.s32.totalorder %s379, %s381
      %p385 = scmp.eq.s32.totalorder %s43, 0
      %p386 = por %p384, %p385
      %p387 = scmp.ne.s32.totalorder %s379, %s381
      %p388 = scmp.eq.s32.totalorder %s48, 3
      %p389 = por %p387, %p388
      %p390 = scmp.ne.s32.totalorder %s381, %s382
      %p391 = scmp.eq.s32.totalorder %s48, 0
      %p392 = por %p390, %p391
      %p393 = scmp.ne.s32.totalorder %s381, %s382
      %p394 = scmp.eq.s32.totalorder %s49, 3
      %p395 = por %p393, %p394
      %p397 = scmp.ne.s32.totalorder %s382, %s396
      %p398 = scmp.eq.s32.totalorder %s49, 0
      %p399 = por %p397, %p398
      %s401 = sadd.s32 %s400, 1
      %p404 = scmp.eq.s32.totalorder %s43, 3
      %p405 = scmp.ne.s32.totalorder %s400, %s402
      %p406 = scmp.eq.s32.totalorder %s43, 0
      %p407 = por %p405, %p406
      %p408 = scmp.ne.s32.totalorder %s400, %s402
      %p409 = scmp.eq.s32.totalorder %s48, 3
      %p410 = por %p408, %p409
      %p411 = scmp.ne.s32.totalorder %s402, %s403
      %p412 = scmp.eq.s32.totalorder %s48, 0
      %p413 = por %p411, %p412
      %p414 = scmp.ne.s32.totalorder %s402, %s403
      %p415 = scmp.eq.s32.totalorder %s49, 3
      %p416 = por %p414, %p415
      %p418 = scmp.ne.s32.totalorder %s403, %s417
      %p419 = scmp.eq.s32.totalorder %s49, 0
      %p420 = por %p418, %p419
      %s421 = ssub.s32 %s50, %s69
      %s422 = ssub.s32 %s51, %s65
      %s423 = sor.u32 %s421, %s422
      %p424 = scmp.eq.s32.totalorder %s423, 0
      %s426 = sadd.s32 %s425, 1
      %s427 = scalar_select %p424, %s425, %s426
      %p430 = pneg %p424
      %p431 = scmp.eq.s32.totalorder %s43, 3
      %p432 = por %p430, %p431
      %p433 = scmp.ne.s32.totalorder %s425, %s428
      %p434 = scmp.eq.s32.totalorder %s43, 0
      %p435 = por %p433, %p434
      %p436 = scmp.ne.s32.totalorder %s425, %s428
      %p437 = scmp.eq.s32.totalorder %s48, 3
      %p438 = por %p436, %p437
      %p439 = scmp.ne.s32.totalorder %s428, %s429
      %p440 = scmp.eq.s32.totalorder %s48, 0
      %p441 = por %p439, %p440
      %p442 = scmp.ne.s32.totalorder %s428, %s429
      %p443 = scmp.eq.s32.totalorder %s49, 3
      %p444 = por %p442, %p443
      %p446 = scmp.ne.s32.totalorder %s429, %s445
      %p447 = scmp.eq.s32.totalorder %s49, 0
      %p448 = por %p446, %p447
      %s449 = ssub.s32 %s50, %s69
      %s450 = ssub.s32 %s51, %s65
      %s451 = sor.u32 %s449, %s450
      %p452 = scmp.eq.s32.totalorder %s451, 0
      %s454 = sadd.s32 %s453, 1
      %s455 = scalar_select %p452, %s453, %s454
      %p458 = pneg %p452
      %p459 = scmp.eq.s32.totalorder %s43, 3
      %p460 = por %p458, %p459
      %p461 = scmp.ne.s32.totalorder %s453, %s456
      %p462 = scmp.eq.s32.totalorder %s43, 0
      %p463 = por %p461, %p462
      %p464 = scmp.ne.s32.totalorder %s453, %s456
      %p465 = scmp.eq.s32.totalorder %s48, 3
      %p466 = por %p464, %p465
      %p467 = scmp.ne.s32.totalorder %s456, %s457
      %p468 = scmp.eq.s32.totalorder %s48, 0
      %p469 = por %p467, %p468
      %p470 = scmp.ne.s32.totalorder %s456, %s457
      %p471 = scmp.eq.s32.totalorder %s49, 3
      %p472 = por %p470, %p471
      %p474 = scmp.ne.s32.totalorder %s457, %s473
      %p475 = scmp.eq.s32.totalorder %s49, 0
      %p476 = por %p474, %p475
      %s477 = ssub.s32 %s50, %s69
      %s478 = ssub.s32 %s51, %s65
      %s479 = sor.u32 %s477, %s478
      %p480 = scmp.eq.s32.totalorder %s479, 0
      %s482 = sadd.s32 %s481, 1
      %s483 = scalar_select %p480, %s481, %s482
      %p486 = pneg %p480
      %p487 = scmp.eq.s32.totalorder %s43, 3
      %p488 = por %p486, %p487
      %p489 = scmp.ne.s32.totalorder %s481, %s484
      %p490 = scmp.eq.s32.totalorder %s43, 0
      %p491 = por %p489, %p490
      %p492 = scmp.ne.s32.totalorder %s481, %s484
      %p493 = scmp.eq.s32.totalorder %s48, 3
      %p494 = por %p492, %p493
      %p495 = scmp.ne.s32.totalorder %s484, %s485
      %p496 = scmp.eq.s32.totalorder %s48, 0
      %p497 = por %p495, %p496
      %p498 = scmp.ne.s32.totalorder %s484, %s485
      %p499 = scmp.eq.s32.totalorder %s49, 3
      %p500 = por %p498, %p499
      %p502 = scmp.ne.s32.totalorder %s485, %s501
      %p503 = scmp.eq.s32.totalorder %s49, 0
      %p504 = por %p502, %p503
      %p505 = scmp.le.s32.totalorder 1, %s43
      %p506 = scmp.lt.s32.totalorder %s43, 5
      %p507 = pnand %p505, %p506
      %p508 = pneg %p507
      // Predicated region
      $region9: #{tpu_custom_call.1} parent=5 // pred_check
        _
      $region10: #{tpu_custom_call.1} parent=5 // pred_check_branch
        %510 = sbr.rel (%p507) target = $region12
      $region11: #{tpu_custom_call.1} parent=5 // pred_region
        %s511 = ssub.s32 %s43, 1
        // Predicated region
        $region13: #{tpu_custom_call.1} parent=11 // pred_check
          %p512 = pneg %p287
        $region14: #{tpu_custom_call.1} parent=11 // pred_check_branch
          %514 = sbr.rel (%p512) target = $region16
        $region15: #{tpu_custom_call.1} parent=11 // pred_region
          _
        $region16: #{tpu_custom_call.1} parent=11 // pred_fallthru
          _
        // Predicated region
        $region17: #{tpu_custom_call.1} parent=11 // pred_check
          %p515 = pneg %p308
        $region18: #{tpu_custom_call.1} parent=11 // pred_check_branch
          %517 = sbr.rel (%p515) target = $region20
        $region19: #{tpu_custom_call.1} parent=11 // pred_region
          _
        $region20: #{tpu_custom_call.1} parent=11 // pred_fallthru
          _
        // Predicated region
        $region21: #{tpu_custom_call.1} parent=11 // pred_check
          %p518 = pneg %p329
        $region22: #{tpu_custom_call.1} parent=11 // pred_check_branch
          %520 = sbr.rel (%p518) target = $region24
        $region23: #{tpu_custom_call.1} parent=11 // pred_region
          _
        $region24: #{tpu_custom_call.1} parent=11 // pred_fallthru
          _
        // Predicated region
        $region25: #{tpu_custom_call.1} parent=11 // pred_check
          %p521 = pneg %p350
        $region26: #{tpu_custom_call.1} parent=11 // pred_check_branch
          %523 = sbr.rel (%p521) target = $region28
        $region27: #{tpu_custom_call.1} parent=11 // pred_region
          %s525 = ssub.s32 16, 16
          %526 = vsyncadd [#allocation16], %s525
          %s528 = sshll.u32 [#allocation15], 4
          %s529 = int_to_ptr.vmem [resolvable:$true] %s528
          %531 = dma.hbm_to_vmem [thread:$0]  %s10, 16, %s529, [#allocation16]
        $region28: #{tpu_custom_call.1} parent=11 // pred_fallthru
          _
        // Predicated region
        $region29: #{tpu_custom_call.1} parent=11 // pred_check
          %p532 = pneg %p371
        $region30: #{tpu_custom_call.1} parent=11 // pred_check_branch
          %534 = sbr.rel (%p532) target = $region32
        $region31: #{tpu_custom_call.1} parent=11 // pred_region
          %s536 = ssub.s32 256, 256
          %537 = vsyncadd [#allocation16], %s536
          %s538 = sshll.u32 [#allocation17], 4
          %s539 = int_to_ptr.vmem [resolvable:$true] %s538
          %544 = dma.hbm_to_vmem [thread:$0]  %s11, 256, %s539, [#allocation16], 64, 64, 4
        $region32: #{tpu_custom_call.1} parent=11 // pred_fallthru
          _
        // Predicated region
        $region33: #{tpu_custom_call.1} parent=11 // pred_check
          %p545 = pneg %p392
        $region34: #{tpu_custom_call.1} parent=11 // pred_check_branch
          %547 = sbr.rel (%p545) target = $region36
        $region35: #{tpu_custom_call.1} parent=11 // pred_region
          %s549 = ssub.s32 256, 256
          %550 = vsyncadd [#allocation19], %s549
          %s551 = sshll.u32 [#allocation18], 4
          %s552 = int_to_ptr.vmem [resolvable:$true] %s551
          %557 = dma.hbm_to_vmem [thread:$0]  %s12, 256, %s552, [#allocation19], 64, 64, 4
        $region36: #{tpu_custom_call.1} parent=11 // pred_fallthru
          _
        // Predicated region
        $region37: #{tpu_custom_call.1} parent=11 // pred_check
          %p558 = pneg %p413
        $region38: #{tpu_custom_call.1} parent=11 // pred_check_branch
          %560 = sbr.rel (%p558) target = $region40
        $region39: #{tpu_custom_call.1} parent=11 // pred_region
          _
        $region40: #{tpu_custom_call.1} parent=11 // pred_fallthru
          _
      $region12: #{tpu_custom_call.1} parent=5 // pred_fallthru
        _
      %p561 = scmp.lt.s32.totalorder %s43, 4
      // Predicated region
      $region41: #{tpu_custom_call.1} parent=5 // pred_check
        %p562 = pneg %p561
      $region42: #{tpu_custom_call.1} parent=5 // pred_check_branch
        %564 = sbr.rel (%p562) target = $region44
      $region43: #{tpu_custom_call.1} parent=5 // pred_region
        // Predicated region
        $region45: #{tpu_custom_call.1} parent=43 // pred_check
          %p565 = pneg %p84
        $region46: #{tpu_custom_call.1} parent=43 // pred_check_branch
          %567 = sbr.rel (%p565) target = $region48
        $region47: #{tpu_custom_call.1} parent=43 // pred_region
          %s568 = sand.u32 %s74, 1
          %s569 = scalar_lea.sflag [#allocation4], %s568
          %s570 = sand.u32 %s74, 1
          %s571 = smul.addr %s570, 8
          %s572 = scalar_lea.vmem [#allocation3], %s571
          %s574 = ssub.s32 128, 128
          %575 = vsyncadd %s569, %s574
          %s576 = smul.addr %s50, 2
          %s577 = sadd.s32 %s51, %s576
          %s578 = smul.addr %s577, 128
          %s579 = scalar_lea.hbm %s0, %s578
          %s581 = sshll.u32 %s572, 4
          %s582 = int_to_ptr.vmem [resolvable:$true] %s581
          %584 = dma.hbm_to_vmem [thread:$0]  %s579, 128, %s582, %s569
        $region48: #{tpu_custom_call.1} parent=43 // pred_fallthru
          _
        // Predicated region
        $region49: #{tpu_custom_call.1} parent=43 // pred_check
          %p585 = pneg %p112
        $region50: #{tpu_custom_call.1} parent=43 // pred_check_branch
          %587 = sbr.rel (%p585) target = $region52
        $region51: #{tpu_custom_call.1} parent=43 // pred_region
          %s588 = sand.u32 %s43, 1
          %s589 = scalar_lea.sflag [#allocation7], %s588
          %s590 = sand.u32 %s102, 1
          %s591 = smul.addr %s590, 16
          %s592 = scalar_lea.vmem [#allocation6], %s591
          %s593 = smul.u32 2, %s52
          %s595 = ssub.s32 256, 256
          %596 = vsyncadd %s589, %s595
          %s597 = smul.addr %s50, 2
          %s598 = sadd.s32 %s593, %s597
          %s599 = smul.addr %s598, 128
          %s600 = scalar_lea.hbm %s1, %s599
          %s601 = sshll.u32 %s592, 4
          %s602 = int_to_ptr.vmem [resolvable:$true] %s601
          %607 = dma.hbm_to_vmem [thread:$0]  %s600, 256, %s602, %s589, 128, 128, 8
        $region52: #{tpu_custom_call.1} parent=43 // pred_fallthru
          _
        // Predicated region
        $region53: #{tpu_custom_call.1} parent=43 // pred_check
          %p608 = pneg %p140
        $region54: #{tpu_custom_call.1} parent=43 // pred_check_branch
          %610 = sbr.rel (%p608) target = $region56
        $region55: #{tpu_custom_call.1} parent=43 // pred_region
          %s611 = sand.u32 %s43, 1
          %s612 = scalar_lea.sflag [#allocation7], %s611
          %s613 = sand.u32 %s130, 1
          %s614 = smul.addr %s613, 16
          %s615 = scalar_lea.vmem [#allocation8], %s614
          %s616 = smul.u32 2, %s52
          %s618 = ssub.s32 256, 256
          %619 = vsyncadd %s612, %s618
          %s620 = smul.addr %s50, 2
          %s621 = sadd.s32 %s616, %s620
          %s622 = smul.addr %s621, 128
          %s623 = scalar_lea.hbm %s2, %s622
          %s624 = sshll.u32 %s615, 4
          %s625 = int_to_ptr.vmem [resolvable:$true] %s624
          %630 = dma.hbm_to_vmem [thread:$0]  %s623, 256, %s625, %s612, 128, 128, 8
        $region56: #{tpu_custom_call.1} parent=43 // pred_fallthru
          _
        // Predicated region
        $region57: #{tpu_custom_call.1} parent=43 // pred_check
          %p631 = pneg %p170
        $region58: #{tpu_custom_call.1} parent=43 // pred_check_branch
          %633 = sbr.rel (%p631) target = $region60
        $region59: #{tpu_custom_call.1} parent=43 // pred_region
          %s634 = sand.u32 %s43, 1
          %s635 = scalar_lea.sflag [#allocation10], %s634
          %s636 = sand.u32 %s160, 1
          %s637 = smul.addr %s636, 128
          %s638 = scalar_lea.vmem [#allocation9], %s637
          %s639 = smul.u32 8, %s51
          %s640 = smul.u32 2, %s52
          %s642 = ssub.s32 2048, 2048
          %643 = vsyncadd %s635, %s642
          %s644 = smul.addr %s639, 2
          %s645 = sadd.s32 %s640, %s644
          %s646 = smul.addr %s50, 32
          %s647 = sadd.s32 %s645, %s646
          %s648 = smul.addr %s647, 128
          %s649 = scalar_lea.hbm %s3, %s648
          %s650 = sshll.u32 %s638, 4
          %s651 = int_to_ptr.vmem [resolvable:$true] %s650
          %656 = dma.hbm_to_vmem [thread:$0]  %s649, 2048, %s651, %s635, 128, 128, 8
        $region60: #{tpu_custom_call.1} parent=43 // pred_fallthru
          _
        // Predicated region
        $region61: #{tpu_custom_call.1} parent=43 // pred_check
          %p657 = pneg %p200
        $region62: #{tpu_custom_call.1} parent=43 // pred_check_branch
          %659 = sbr.rel (%p657) target = $region64
        $region63: #{tpu_custom_call.1} parent=43 // pred_region
          %s660 = sand.u32 %s43, 1
          %s661 = scalar_lea.sflag [#allocation10], %s660
          %s662 = sand.u32 %s190, 1
          %s663 = smul.addr %s662, 8
          %s664 = scalar_lea.vmem [#allocation11], %s663
          %s666 = ssub.s32 128, 128
          %667 = vsyncadd %s661, %s666
          %s668 = sadd.s32 %s52, %s51
          %s669 = smul.addr %s50, 2
          %s670 = sadd.s32 %s668, %s669
          %s671 = smul.addr %s670, 128
          %s672 = scalar_lea.hbm %s4, %s671
          %s674 = sshll.u32 %s664, 4
          %s675 = int_to_ptr.vmem [resolvable:$true] %s674
          %677 = dma.hbm_to_vmem [thread:$0]  %s672, 128, %s675, %s661
        $region64: #{tpu_custom_call.1} parent=43 // pred_fallthru
          _
        // Predicated region
        $region65: #{tpu_custom_call.1} parent=43 // pred_check
          %p678 = pneg %p230
        $region66: #{tpu_custom_call.1} parent=43 // pred_check_branch
          %680 = sbr.rel (%p678) target = $region68
        $region67: #{tpu_custom_call.1} parent=43 // pred_region
          %s681 = sand.u32 %s43, 1
          %s682 = scalar_lea.sflag [#allocation13], %s681
          %s683 = sand.u32 %s220, 1
          %s684 = smul.addr %s683, 8
          %s685 = scalar_lea.vmem [#allocation12], %s684
          %s687 = ssub.s32 128, 128
          %688 = vsyncadd %s682, %s687
          %s689 = sadd.s32 %s52, %s51
          %s690 = smul.addr %s50, 2
          %s691 = sadd.s32 %s689, %s690
          %s692 = smul.addr %s691, 128
          %s693 = scalar_lea.hbm %s5, %s692
          %s695 = sshll.u32 %s685, 4
          %s696 = int_to_ptr.vmem [resolvable:$true] %s695
          %698 = dma.hbm_to_vmem [thread:$0]  %s693, 128, %s696, %s682
        $region68: #{tpu_custom_call.1} parent=43 // pred_fallthru
          _
        // Predicated region
        $region69: #{tpu_custom_call.1} parent=43 // pred_check
          %p699 = pneg %p260
        $region70: #{tpu_custom_call.1} parent=43 // pred_check_branch
          %701 = sbr.rel (%p699) target = $region72
        $region71: #{tpu_custom_call.1} parent=43 // pred_region
          %s702 = sand.u32 %s43, 1
          %s703 = scalar_lea.sflag [#allocation13], %s702
          %s704 = sand.u32 %s250, 1
          %s705 = smul.addr %s704, 24
          %s706 = scalar_lea.vmem [#allocation14], %s705
          %s708 = ssub.s32 384, 384
          %709 = vsyncadd %s703, %s708
          %s710 = sadd.s32 %s52, %s51
          %s711 = smul.addr %s50, 6
          %s712 = sadd.s32 %s710, %s711
          %s713 = smul.addr %s712, 128
          %s714 = scalar_lea.hbm %s6, %s713
          %s715 = sshll.u32 %s706, 4
          %s716 = int_to_ptr.vmem [resolvable:$true] %s715
          %721 = dma.hbm_to_vmem [thread:$0]  %s714, 384, %s716, %s703, 256, 128, 8
        $region72: #{tpu_custom_call.1} parent=43 // pred_fallthru
          _
      $region44: #{tpu_custom_call.1} parent=5 // pred_fallthru
        _
      %p722 = scmp.le.s32.totalorder 1, %s43
      %p723 = scmp.lt.s32.totalorder %s43, 5
      %p724 = pnand %p722, %p723
      %p725 = pneg %p724
      // Predicated region
      $region73: #{tpu_custom_call.1} parent=5 // pred_check
        _
      $region74: #{tpu_custom_call.1} parent=5 // pred_check_branch
        %727 = sbr.rel (%p724) target = $region76
      $region75: #{tpu_custom_call.1} parent=5 // pred_region
        %s728 = ssub.s32 %s43, 1
        %s729 = sand.u32 %s77, 1
        %s730 = scalar_lea.sflag [#allocation4], %s729
        %s731 = sand.u32 %s77, 1
        %s732 = smul.addr %s731, 8
        %s733 = scalar_lea.vmem [#allocation3], %s732
        // Predicated region
        $region77: #{tpu_custom_call.1} parent=75 // pred_check
          %p734 = pneg %p90
        $region78: #{tpu_custom_call.1} parent=75 // pred_check_branch
          %736 = sbr.rel (%p734) target = $region80
        $region79: #{tpu_custom_call.1} parent=75 // pred_region
          %737 = dma.done %s730, 128
        $region80: #{tpu_custom_call.1} parent=75 // pred_fallthru
          _
        %s738 = sand.u32 %s48, 1
        %s739 = scalar_lea.sflag [#allocation7], %s738
        %s740 = sand.u32 %s105, 1
        %s741 = smul.addr %s740, 16
        %s742 = scalar_lea.vmem [#allocation6], %s741
        // Predicated region
        $region81: #{tpu_custom_call.1} parent=75 // pred_check
          %p743 = pneg %p118
        $region82: #{tpu_custom_call.1} parent=75 // pred_check_branch
          %745 = sbr.rel (%p743) target = $region84
        $region83: #{tpu_custom_call.1} parent=75 // pred_region
          %746 = dma.done %s739, 256
        $region84: #{tpu_custom_call.1} parent=75 // pred_fallthru
          _
        %s747 = sand.u32 %s48, 1
        %s748 = scalar_lea.sflag [#allocation7], %s747
        %s749 = sand.u32 %s133, 1
        %s750 = smul.addr %s749, 16
        %s751 = scalar_lea.vmem [#allocation8], %s750
        // Predicated region
        $region85: #{tpu_custom_call.1} parent=75 // pred_check
          %p752 = pneg %p146
        $region86: #{tpu_custom_call.1} parent=75 // pred_check_branch
          %754 = sbr.rel (%p752) target = $region88
        $region87: #{tpu_custom_call.1} parent=75 // pred_region
          %755 = dma.done %s748, 256
        $region88: #{tpu_custom_call.1} parent=75 // pred_fallthru
          _
        %s756 = sand.u32 %s48, 1
        %s757 = scalar_lea.sflag [#allocation10], %s756
        %s758 = sand.u32 %s163, 1
        %s759 = smul.addr %s758, 128
        %s760 = scalar_lea.vmem [#allocation9], %s759
        // Predicated region
        $region89: #{tpu_custom_call.1} parent=75 // pred_check
          %p761 = pneg %p176
        $region90: #{tpu_custom_call.1} parent=75 // pred_check_branch
          %763 = sbr.rel (%p761) target = $region92
        $region91: #{tpu_custom_call.1} parent=75 // pred_region
          %764 = dma.done %s757, 2048
        $region92: #{tpu_custom_call.1} parent=75 // pred_fallthru
          _
        %s765 = sand.u32 %s48, 1
        %s766 = scalar_lea.sflag [#allocation10], %s765
        %s767 = sand.u32 %s193, 1
        %s768 = smul.addr %s767, 8
        %s769 = scalar_lea.vmem [#allocation11], %s768
        // Predicated region
        $region93: #{tpu_custom_call.1} parent=75 // pred_check
          %p770 = pneg %p206
        $region94: #{tpu_custom_call.1} parent=75 // pred_check_branch
          %772 = sbr.rel (%p770) target = $region96
        $region95: #{tpu_custom_call.1} parent=75 // pred_region
          %773 = dma.done %s766, 128
        $region96: #{tpu_custom_call.1} parent=75 // pred_fallthru
          _
        %s774 = sand.u32 %s48, 1
        %s775 = scalar_lea.sflag [#allocation13], %s774
        %s776 = sand.u32 %s223, 1
        %s777 = smul.addr %s776, 8
        %s778 = scalar_lea.vmem [#allocation12], %s777
        // Predicated region
        $region97: #{tpu_custom_call.1} parent=75 // pred_check
          %p779 = pneg %p236
        $region98: #{tpu_custom_call.1} parent=75 // pred_check_branch
          %781 = sbr.rel (%p779) target = $region100
        $region99: #{tpu_custom_call.1} parent=75 // pred_region
          %782 = dma.done %s775, 128
        $region100: #{tpu_custom_call.1} parent=75 // pred_fallthru
          _
        %s783 = sand.u32 %s48, 1
        %s784 = scalar_lea.sflag [#allocation13], %s783
        %s785 = sand.u32 %s253, 1
        %s786 = smul.addr %s785, 24
        %s787 = scalar_lea.vmem [#allocation14], %s786
        // Predicated region
        $region101: #{tpu_custom_call.1} parent=75 // pred_check
          %p788 = pneg %p266
        $region102: #{tpu_custom_call.1} parent=75 // pred_check_branch
          %790 = sbr.rel (%p788) target = $region104
        $region103: #{tpu_custom_call.1} parent=75 // pred_region
          %791 = dma.done %s784, 384
        $region104: #{tpu_custom_call.1} parent=75 // pred_fallthru
          _
        // Predicated region
        $region105: #{tpu_custom_call.1} parent=75 // pred_check
          %p792 = pneg %p350
        $region106: #{tpu_custom_call.1} parent=75 // pred_check_branch
          %794 = sbr.rel (%p792) target = $region108
        $region107: #{tpu_custom_call.1} parent=75 // pred_region
          %795 = dma.done [#allocation16], 16
        $region108: #{tpu_custom_call.1} parent=75 // pred_fallthru
          _
        // Predicated region
        $region109: #{tpu_custom_call.1} parent=75 // pred_check
          %p796 = pneg %p371
        $region110: #{tpu_custom_call.1} parent=75 // pred_check_branch
          %798 = sbr.rel (%p796) target = $region112
        $region111: #{tpu_custom_call.1} parent=75 // pred_region
          %799 = dma.done [#allocation16], 256
        $region112: #{tpu_custom_call.1} parent=75 // pred_fallthru
          _
        // Predicated region
        $region113: #{tpu_custom_call.1} parent=75 // pred_check
          %p800 = pneg %p392
        $region114: #{tpu_custom_call.1} parent=75 // pred_check_branch
          %802 = sbr.rel (%p800) target = $region116
        $region115: #{tpu_custom_call.1} parent=75 // pred_region
          %803 = dma.done [#allocation19], 256
        $region116: #{tpu_custom_call.1} parent=75 // pred_fallthru
          _
        %s804 = sand.u32 %s77, 1
        %s805 = scalar_lea.sflag [#allocation4], %s804
        %s806 = sand.u32 %s77, 1
        %s807 = smul.addr %s806, 8
        %s808 = scalar_lea.vmem [#allocation3], %s807
        %p809 = pneg %p90
        %p810 = pneg %p87
        %s811 = sand.u32 %s48, 1
        %s812 = scalar_lea.sflag [#allocation7], %s811
        %s813 = sand.u32 %s105, 1
        %s814 = smul.addr %s813, 16
        %s815 = scalar_lea.vmem [#allocation6], %s814
        %p816 = pneg %p118
        %p817 = pneg %p115
        %s818 = sand.u32 %s48, 1
        %s819 = scalar_lea.sflag [#allocation7], %s818
        %s820 = sand.u32 %s133, 1
        %s821 = smul.addr %s820, 16
        %s822 = scalar_lea.vmem [#allocation8], %s821
        %p823 = pneg %p146
        %p824 = pneg %p143
        %s825 = sand.u32 %s48, 1
        %s826 = scalar_lea.sflag [#allocation10], %s825
        %s827 = sand.u32 %s163, 1
        %s828 = smul.addr %s827, 128
        %s829 = scalar_lea.vmem [#allocation9], %s828
        %p830 = pneg %p176
        %p831 = pneg %p173
        %s832 = sand.u32 %s48, 1
        %s833 = scalar_lea.sflag [#allocation10], %s832
        %s834 = sand.u32 %s193, 1
        %s835 = smul.addr %s834, 8
        %s836 = scalar_lea.vmem [#allocation11], %s835
        %p837 = pneg %p206
        %p838 = pneg %p203
        %s839 = sand.u32 %s48, 1
        %s840 = scalar_lea.sflag [#allocation13], %s839
        %s841 = sand.u32 %s223, 1
        %s842 = smul.addr %s841, 8
        %s843 = scalar_lea.vmem [#allocation12], %s842
        %p844 = pneg %p236
        %p845 = pneg %p233
        %s846 = sand.u32 %s48, 1
        %s847 = scalar_lea.sflag [#allocation13], %s846
        %s848 = sand.u32 %s253, 1
        %s849 = smul.addr %s848, 24
        %s850 = scalar_lea.vmem [#allocation14], %s849
        %p851 = pneg %p266
        %p852 = pneg %p263
        %p853 = pneg %p287
        %p854 = pneg %p284
        %p855 = pneg %p308
        %p856 = pneg %p305
        %p857 = pneg %p329
        %p858 = pneg %p326
        %p859 = pneg %p350
        %p860 = pneg %p347
        %p861 = pneg %p371
        %p862 = pneg %p368
        %p863 = pneg %p392
        %p864 = pneg %p389
        %p865 = pneg %p413
        %p866 = pneg %p410
        %p867 = pneg %p441
        %p868 = pneg %p438
        %s869 = sand.u32 %s428, 1
        %s870 = scalar_lea.sflag [#allocation5], %s869
        %s871 = sand.u32 %s428, 1
        %s872 = smul.addr %s871, 8
        %s873 = scalar_lea.vmem [#allocation20], %s872
        %p874 = pneg %p469
        %p875 = pneg %p466
        %s876 = sand.u32 %s48, 1
        %s877 = scalar_lea.sflag [#allocation22], %s876
        %s878 = sand.u32 %s456, 1
        %s879 = smul.addr %s878, 24
        %s880 = scalar_lea.vmem [#allocation21], %s879
        %p881 = pneg %p497
        %p882 = pneg %p494
        %s883 = sand.u32 %s48, 1
        %s884 = scalar_lea.sflag [#allocation22], %s883
        %s885 = sand.u32 %s484, 1
        %s886 = smul.addr %s885, 24
        %s887 = scalar_lea.vmem [#allocation23], %s886
        %s888 = smul.u32 2, %s55
        %s889 = smul.u32 2, %s55
        %s890 = smul.u32 8, %s54
        %s891 = smul.u32 2, %s55
        %p893 = scmp.eq.s32.totalorder %s55, 0
        // Predicated region
        $region117: #{tpu_custom_call.1} parent=75 // pred_check
          %p894 = pneg %p893
        $region118: #{tpu_custom_call.1} parent=75 // pred_check_branch
          %896 = sbr.rel (%p894) target = $region120
        $region119: #{tpu_custom_call.1} parent=75 // pred_region
          %vm897 = vcmask 261120
          %898 = vst.msk [vmem:[%s873] sm:$0xff] %vm897, 0.0
          %899 = vst.msk [vmem:[#allocation2] sm:$0xff] %vm897, 0.0
          %900 = vst.msk [vmem:[#allocation2 + $0x8] sm:$0xff] %vm897, 0.0
          %901 = vst.msk [vmem:[#allocation2 + $0x10] sm:$0xff] %vm897, 0.0
        $region120: #{tpu_custom_call.1} parent=75 // pred_fallthru
          _
        %v902 = vld [vmem:[%s733] sm:$0xff]
        %v903 = vld [vmem:[%s742] sm:$0xff]
        %v904 = vld [vmem:[%s742 + $0x8] sm:$0xff]
        %v905 = vld [vmem:[%s751] sm:$0xff]
        %v906 = vld [vmem:[%s751 + $0x8] sm:$0xff]
        %v907 = vld [vmem:[%s760] sm:$0xff]
        %v908 = vld [vmem:[%s760 + $0x8] sm:$0xff]
        %v909 = vld [vmem:[%s760 + $0x10] sm:$0xff]
        %v910 = vld [vmem:[%s760 + $0x18] sm:$0xff]
        %v911 = vld [vmem:[%s760 + $0x20] sm:$0xff]
        %v912 = vld [vmem:[%s760 + $0x28] sm:$0xff]
        %v913 = vld [vmem:[%s760 + $0x30] sm:$0xff]
        %v914 = vld [vmem:[%s760 + $0x38] sm:$0xff]
        %v915 = vld [vmem:[%s760 + $0x40] sm:$0xff]
        %v916 = vld [vmem:[%s760 + $0x48] sm:$0xff]
        %v917 = vld [vmem:[%s760 + $0x50] sm:$0xff]
        %v918 = vld [vmem:[%s760 + $0x58] sm:$0xff]
        %v919 = vld [vmem:[%s760 + $0x60] sm:$0xff]
        %v920 = vld [vmem:[%s760 + $0x68] sm:$0xff]
        %v921 = vld [vmem:[%s760 + $0x70] sm:$0xff]
        %v922 = vld [vmem:[%s760 + $0x78] sm:$0xff]
        %v923 = vpack.c.bf16 %v908, %v907
        %v924 = vpack.c.bf16 %v910, %v909
        %v925 = vpack.c.bf16 %v912, %v911
        %v926 = vpack.c.bf16 %v914, %v913
        %v927 = vpack.c.bf16 %v916, %v915
        %v928 = vpack.c.bf16 %v918, %v917
        %v929 = vpack.c.bf16 %v920, %v919
        %v930 = vpack.c.bf16 %v922, %v921
        %v931 = vld [vmem:[%s7] sm:$0xf]
        %v932 = vld [vmem:[%s7 + $0x4] sm:$0xf]
        %v933 = vld [vmem:[%s7 + $0x8] sm:$0xf]
        %v934 = vld [vmem:[%s7 + $0xc] sm:$0xf]
        %v935 = vld [vmem:[%s8] sm:$0x1]
        %v937 = vlaneseq
        %v938 = vshrl.u32 %v937, 7
        %v939 = vsub.s32 0, %v938
        %v940 = vrot.slane %v935, %v939
        %v946 = vunpack.c.l.b16 %v931
        %v947 = vunpack.c.l.b16 %v932
        %v948 = vunpack.c.l.b16 %v933
        %v949 = vunpack.c.l.b16 %v934
        %v950 = vpack.c.b16 %v947, %v946
        %v951 = vpack.c.b16 %v949, %v948
        %vm954 = vcmask 261120
        %v956 = vsel %vm954, %v923, 0
        %v959 = vsel %vm954, %v924, 0
        %v962 = vsel %vm954, %v925, 0
        %v965 = vsel %vm954, %v926, 0
        %v968 = vsel %vm954, %v927, 0
        %v971 = vsel %vm954, %v928, 0
        %v974 = vsel %vm954, %v929, 0
        %v977 = vsel %vm954, %v930, 0
        %979 = vmatprep.subr.bf16.mxu0 0
        %980 = vmatpush1.bf16.msra.mxu0 %v950
        %981 = vmatprep.subr.bf16.mxu0 0
        %982 = vmatpush1.bf16.msra.mxu0 %v951
        %983 = vmatprep.subr.bf16.mxu0 0
        %984 = vmatpush1.bf16.msra.mxu0 0
        %985 = vmatprep.subr.bf16.mxu0 0
        %986 = vmatpush1.bf16.msra.mxu0 0
        %987 = vmatprep.subr.bf16.mxu0 0
        %988 = vmatpush1.bf16.msra.mxu0 0
        %989 = vmatprep.subr.bf16.mxu0 0
        %990 = vmatpush1.bf16.msra.mxu0 0
        %991 = vmatprep.subr.bf16.mxu0 0
        %992 = vmatpush1.bf16.msra.mxu0 0
        %993 = vmatprep.subr.bf16.mxu0 0
        %994 = vmatpush1.bf16.msra.mxu0 0
        %995 = vmatprep.subr.bf16.mxu0 0
        %996 = vmatpush1.bf16.msra.mxu0 0
        %997 = vmatprep.subr.bf16.mxu0 0
        %998 = vmatpush1.bf16.msra.mxu0 0
        %999 = vmatprep.subr.bf16.mxu0 0
        %1000 = vmatpush1.bf16.msra.mxu0 0
        %1001 = vmatprep.subr.bf16.mxu0 0
        %1002 = vmatpush1.bf16.msra.mxu0 0
        %1003 = vmatprep.subr.bf16.mxu0 0
        %1004 = vmatpush1.bf16.msra.mxu0 0
        %1005 = vmatprep.subr.bf16.mxu0 0
        %1006 = vmatpush1.bf16.msra.mxu0 0
        %1007 = vmatprep.subr.bf16.mxu0 0
        %1008 = vmatpush1.bf16.msra.mxu0 0
        %1009 = vmatprep.subr.bf16.mxu0 0
        %1010 = vmatpush1.bf16.msra.mxu0 0
        %1011 = vmatprep.mubr.bf16.mxu0 0
        %1012 = vmatmul.mubr.bf16.gmra.mrb[0].mxu0 %v956
        %v1013 = vpop.f32.mrb[0].mxu0
        %v1014 = vadd.f32 %v940, %v1013
        %v1015 = vpop.f32.mrb[0].mxu0
        %v1016 = vpop.f32.mrb[0].mxu0
        %v1017 = vadd.f32 %v940, %v1016
        %v1018 = vpop.f32.mrb[0].mxu0
        %1019 = vmatprep.mubr.bf16.mxu0 0
        %1020 = vmatmul.mubr.bf16.gmra.mrb[0].mxu0 %v959
        %v1021 = vpop.f32.mrb[0].mxu0
        %v1022 = vadd.f32 %v940, %v1021
        %v1023 = vpop.f32.mrb[0].mxu0
        %v1024 = vpop.f32.mrb[0].mxu0
        %v1025 = vadd.f32 %v940, %v1024
        %v1026 = vpop.f32.mrb[0].mxu0
        %1027 = vmatprep.mubr.bf16.mxu0 0
        %1028 = vmatmul.mubr.bf16.gmra.mrb[0].mxu0 %v962
        %v1029 = vpop.f32.mrb[0].mxu0
        %v1030 = vadd.f32 %v940, %v1029
        %v1031 = vpop.f32.mrb[0].mxu0
        %v1032 = vpop.f32.mrb[0].mxu0
        %v1033 = vadd.f32 %v940, %v1032
        %v1034 = vpop.f32.mrb[0].mxu0
        %1035 = vmatprep.mubr.bf16.mxu0 0
        %1036 = vmatmul.mubr.bf16.gmra.mrb[0].mxu0 %v965
        %v1037 = vpop.f32.mrb[0].mxu0
        %v1038 = vadd.f32 %v940, %v1037
        %v1039 = vpop.f32.mrb[0].mxu0
        %v1040 = vpop.f32.mrb[0].mxu0
        %v1041 = vadd.f32 %v940, %v1040
        %v1042 = vpop.f32.mrb[0].mxu0
        %1043 = vmatprep.mubr.bf16.mxu0 0
        %1044 = vmatmul.mubr.bf16.gmra.mrb[0].mxu0 %v968
        %v1045 = vpop.f32.mrb[0].mxu0
        %v1046 = vadd.f32 %v940, %v1045
        %v1047 = vpop.f32.mrb[0].mxu0
        %v1048 = vpop.f32.mrb[0].mxu0
        %v1049 = vadd.f32 %v940, %v1048
        %v1050 = vpop.f32.mrb[0].mxu0
        %1051 = vmatprep.mubr.bf16.mxu0 0
        %1052 = vmatmul.mubr.bf16.gmra.mrb[0].mxu0 %v971
        %v1053 = vpop.f32.mrb[0].mxu0
        %v1054 = vadd.f32 %v940, %v1053
        %v1055 = vpop.f32.mrb[0].mxu0
        %v1056 = vpop.f32.mrb[0].mxu0
        %v1057 = vadd.f32 %v940, %v1056
        %v1058 = vpop.f32.mrb[0].mxu0
        %1059 = vmatprep.mubr.bf16.mxu0 0
        %1060 = vmatmul.mubr.bf16.gmra.mrb[0].mxu0 %v974
        %v1061 = vpop.f32.mrb[0].mxu0
        %v1062 = vadd.f32 %v940, %v1061
        %v1063 = vpop.f32.mrb[0].mxu0
        %v1064 = vpop.f32.mrb[0].mxu0
        %v1065 = vadd.f32 %v940, %v1064
        %v1066 = vpop.f32.mrb[0].mxu0
        %1067 = vmatprep.mubr.bf16.mxu0 0
        %1068 = vmatmul.mubr.bf16.gmra.mrb[0].mxu0 %v977
        %v1069 = vpop.f32.mrb[0].mxu0
        %v1070 = vadd.f32 %v940, %v1069
        %v1071 = vpop.f32.mrb[0].mxu0
        %v1072 = vpop.f32.mrb[0].mxu0
        %v1073 = vadd.f32 %v940, %v1072
        %v1074 = vpop.f32.mrb[0].mxu0
        %1075 = vdwg.mxu0
        %v1076 = vmul.f32 %v1014, 0.5
        %v1077 = vmul.f32 %v1017, 0.5
        %v1078 = vmul.f32 %v1022, 0.5
        %v1079 = vmul.f32 %v1025, 0.5
        %v1080 = vmul.f32 %v1030, 0.5
        %v1081 = vmul.f32 %v1033, 0.5
        %v1082 = vmul.f32 %v1038, 0.5
        %v1083 = vmul.f32 %v1041, 0.5
        %v1084 = vmul.f32 %v1046, 0.5
        %v1085 = vmul.f32 %v1049, 0.5
        %v1086 = vmul.f32 %v1054, 0.5
        %v1087 = vmul.f32 %v1057, 0.5
        %v1088 = vmul.f32 %v1062, 0.5
        %v1089 = vmul.f32 %v1065, 0.5
        %v1090 = vmul.f32 %v1070, 0.5
        %v1091 = vmul.f32 %v1073, 0.5
        %v1092 = vmul.f32 %v1014, 0.044715
        %v1093 = vmul.f32 %v1017, 0.044715
        %v1094 = vmul.f32 %v1022, 0.044715
        %v1095 = vmul.f32 %v1025, 0.044715
        %v1096 = vmul.f32 %v1030, 0.044715
        %v1097 = vmul.f32 %v1033, 0.044715
        %v1098 = vmul.f32 %v1038, 0.044715
        %v1099 = vmul.f32 %v1041, 0.044715
        %v1100 = vmul.f32 %v1046, 0.044715
        %v1101 = vmul.f32 %v1049, 0.044715
        %v1102 = vmul.f32 %v1054, 0.044715
        %v1103 = vmul.f32 %v1057, 0.044715
        %v1104 = vmul.f32 %v1062, 0.044715
        %v1105 = vmul.f32 %v1065, 0.044715
        %v1106 = vmul.f32 %v1070, 0.044715
        %v1107 = vmul.f32 %v1073, 0.044715
        %v1108 = vmul.f32 %v1092, %v1014
        %v1109 = vmul.f32 %v1093, %v1017
        %v1110 = vmul.f32 %v1094, %v1022
        %v1111 = vmul.f32 %v1095, %v1025
        %v1112 = vmul.f32 %v1096, %v1030
        %v1113 = vmul.f32 %v1097, %v1033
        %v1114 = vmul.f32 %v1098, %v1038
        %v1115 = vmul.f32 %v1099, %v1041
        %v1116 = vmul.f32 %v1100, %v1046
        %v1117 = vmul.f32 %v1101, %v1049
        %v1118 = vmul.f32 %v1102, %v1054
        %v1119 = vmul.f32 %v1103, %v1057
        %v1120 = vmul.f32 %v1104, %v1062
        %v1121 = vmul.f32 %v1105, %v1065
        %v1122 = vmul.f32 %v1106, %v1070
        %v1123 = vmul.f32 %v1107, %v1073
        %v1124 = vmul.f32 %v1108, %v1014
        %v1125 = vmul.f32 %v1109, %v1017
        %v1126 = vmul.f32 %v1110, %v1022
        %v1127 = vmul.f32 %v1111, %v1025
        %v1128 = vmul.f32 %v1112, %v1030
        %v1129 = vmul.f32 %v1113, %v1033
        %v1130 = vmul.f32 %v1114, %v1038
        %v1131 = vmul.f32 %v1115, %v1041
        %v1132 = vmul.f32 %v1116, %v1046
        %v1133 = vmul.f32 %v1117, %v1049
        %v1134 = vmul.f32 %v1118, %v1054
        %v1135 = vmul.f32 %v1119, %v1057
        %v1136 = vmul.f32 %v1120, %v1062
        %v1137 = vmul.f32 %v1121, %v1065
        %v1138 = vmul.f32 %v1122, %v1070
        %v1139 = vmul.f32 %v1123, %v1073
        %v1140 = vadd.f32 %v1014, %v1124
        %v1141 = vadd.f32 %v1017, %v1125
        %v1142 = vadd.f32 %v1022, %v1126
        %v1143 = vadd.f32 %v1025, %v1127
        %v1144 = vadd.f32 %v1030, %v1128
        %v1145 = vadd.f32 %v1033, %v1129
        %v1146 = vadd.f32 %v1038, %v1130
        %v1147 = vadd.f32 %v1041, %v1131
        %v1148 = vadd.f32 %v1046, %v1132
        %v1149 = vadd.f32 %v1049, %v1133
        %v1150 = vadd.f32 %v1054, %v1134
        %v1151 = vadd.f32 %v1057, %v1135
        %v1152 = vadd.f32 %v1062, %v1136
        %v1153 = vadd.f32 %v1065, %v1137
        %v1154 = vadd.f32 %v1070, %v1138
        %v1155 = vadd.f32 %v1073, %v1139
        %v1156 = vmul.f32 %v1140, 0.7978846
        %v1157 = vmul.f32 %v1141, 0.7978846
        %v1158 = vmul.f32 %v1142, 0.7978846
        %v1159 = vmul.f32 %v1143, 0.7978846
        %v1160 = vmul.f32 %v1144, 0.7978846
        %v1161 = vmul.f32 %v1145, 0.7978846
        %v1162 = vmul.f32 %v1146, 0.7978846
        %v1163 = vmul.f32 %v1147, 0.7978846
        %v1164 = vmul.f32 %v1148, 0.7978846
        %v1165 = vmul.f32 %v1149, 0.7978846
        %v1166 = vmul.f32 %v1150, 0.7978846
        %v1167 = vmul.f32 %v1151, 0.7978846
        %v1168 = vmul.f32 %v1152, 0.7978846
        %v1169 = vmul.f32 %v1153, 0.7978846
        %v1170 = vmul.f32 %v1154, 0.7978846
        %v1171 = vmul.f32 %v1155, 0.7978846
        %v1172 = vtanh.pop %v1156
        %v1173 = vtanh.pop %v1157
        %v1174 = vtanh.pop %v1158
        %v1175 = vtanh.pop %v1159
        %v1176 = vtanh.pop %v1160
        %v1177 = vtanh.pop %v1161
        %v1178 = vtanh.pop %v1162
        %v1179 = vtanh.pop %v1163
        %v1180 = vtanh.pop %v1164
        %v1181 = vtanh.pop %v1165
        %v1182 = vtanh.pop %v1166
        %v1183 = vtanh.pop %v1167
        %v1184 = vtanh.pop %v1168
        %v1185 = vtanh.pop %v1169
        %v1186 = vtanh.pop %v1170
        %v1187 = vtanh.pop %v1171
        %v1188 = vadd.f32 %v1172, 1.0
        %v1189 = vadd.f32 %v1173, 1.0
        %v1190 = vadd.f32 %v1174, 1.0
        %v1191 = vadd.f32 %v1175, 1.0
        %v1192 = vadd.f32 %v1176, 1.0
        %v1193 = vadd.f32 %v1177, 1.0
        %v1194 = vadd.f32 %v1178, 1.0
        %v1195 = vadd.f32 %v1179, 1.0
        %v1196 = vadd.f32 %v1180, 1.0
        %v1197 = vadd.f32 %v1181, 1.0
        %v1198 = vadd.f32 %v1182, 1.0
        %v1199 = vadd.f32 %v1183, 1.0
        %v1200 = vadd.f32 %v1184, 1.0
        %v1201 = vadd.f32 %v1185, 1.0
        %v1202 = vadd.f32 %v1186, 1.0
        %v1203 = vadd.f32 %v1187, 1.0
        %v1204 = vmul.f32 %v1076, %v1188
        %v1205 = vmul.f32 %v1077, %v1189
        %v1206 = vmul.f32 %v1078, %v1190
        %v1207 = vmul.f32 %v1079, %v1191
        %v1208 = vmul.f32 %v1080, %v1192
        %v1209 = vmul.f32 %v1081, %v1193
        %v1210 = vmul.f32 %v1082, %v1194
        %v1211 = vmul.f32 %v1083, %v1195
        %v1212 = vmul.f32 %v1084, %v1196
        %v1213 = vmul.f32 %v1085, %v1197
        %v1214 = vmul.f32 %v1086, %v1198
        %v1215 = vmul.f32 %v1087, %v1199
        %v1216 = vmul.f32 %v1088, %v1200
        %v1217 = vmul.f32 %v1089, %v1201
        %v1218 = vmul.f32 %v1090, %v1202
        %v1219 = vmul.f32 %v1091, %v1203
        %v1221 = vcombine.high %v902, %v902
        %v1223 = vunpack.c.l.s4 1966171168
        %v1224 = vunpack.c.0.s8 %v1223
        %v1225 = vlaneseq
        %v1226 = vshrl.u32 %v1225, 7
        %v1227 = vsub.s32 %v1224, %v1226
        %v1228 = vrot.slane %v902, %v1227
        %v1230 = vunpack.c.l.s4 1966171168
        %v1231 = vunpack.c.0.s8 %v1230
        %v1232 = vlaneseq
        %v1233 = vshrl.u32 %v1232, 7
        %v1234 = vsub.s32 %v1231, %v1233
        %v1235 = vrot.slane %v1221, %v1234
        %v1236 = vcombine.high %v1228, %v1228
        %v1237 = vcombine.high %v1235, %v1235
        %v1239 = vunpack.c.l.s4 1966171168
        %v1240 = vunpack.c.0.s8 %v1239
        %v1241 = vlaneseq
        %v1242 = vshrl.u32 %v1241, 7
        %v1243 = vsub.s32 %v1240, %v1242
        %v1244 = vrot.slane %v1228, %v1243
        %v1246 = vunpack.c.l.s4 1966171168
        %v1247 = vunpack.c.0.s8 %v1246
        %v1248 = vlaneseq
        %v1249 = vshrl.u32 %v1248, 7
        %v1250 = vsub.s32 %v1247, %v1249
        %v1251 = vrot.slane %v1235, %v1250
        %v1253 = vunpack.c.l.s4 1966171168
        %v1254 = vunpack.c.0.s8 %v1253
        %v1255 = vlaneseq
        %v1256 = vshrl.u32 %v1255, 7
        %v1257 = vsub.s32 %v1254, %v1256
        %v1258 = vrot.slane %v1236, %v1257
        %v1260 = vunpack.c.l.s4 1966171168
        %v1261 = vunpack.c.0.s8 %v1260
        %v1262 = vlaneseq
        %v1263 = vshrl.u32 %v1262, 7
        %v1264 = vsub.s32 %v1261, %v1263
        %v1265 = vrot.slane %v1237, %v1264
        %v1266 = vcombine.high %v1244, %v1244
        %v1267 = vcombine.high %v1251, %v1251
        %v1268 = vcombine.high %v1258, %v1258
        %v1269 = vcombine.high %v1265, %v1265
        %v1270 = vlaneseq
        %v1271 = vshrl.u32 %v1270, 7
        %v1272 = vsub.s32 0, %v1271
        %v1273 = vrot.slane %v1244, %v1272
        %v1274 = vlaneseq
        %v1275 = vshrl.u32 %v1274, 7
        %v1276 = vsub.s32 0, %v1275
        %v1277 = vrot.slane %v1258, %v1276
        %v1278 = vlaneseq
        %v1279 = vshrl.u32 %v1278, 7
        %v1280 = vsub.s32 0, %v1279
        %v1281 = vrot.slane %v1266, %v1280
        %v1282 = vlaneseq
        %v1283 = vshrl.u32 %v1282, 7
        %v1284 = vsub.s32 0, %v1283
        %v1285 = vrot.slane %v1268, %v1284
        %v1286 = vlaneseq
        %v1287 = vshrl.u32 %v1286, 7
        %v1288 = vsub.s32 0, %v1287
        %v1289 = vrot.slane %v1251, %v1288
        %v1290 = vlaneseq
        %v1291 = vshrl.u32 %v1290, 7
        %v1292 = vsub.s32 0, %v1291
        %v1293 = vrot.slane %v1265, %v1292
        %v1294 = vlaneseq
        %v1295 = vshrl.u32 %v1294, 7
        %v1296 = vsub.s32 0, %v1295
        %v1297 = vrot.slane %v1267, %v1296
        %v1298 = vlaneseq
        %v1299 = vshrl.u32 %v1298, 7
        %v1300 = vsub.s32 0, %v1299
        %v1301 = vrot.slane %v1269, %v1300
        %v1310 = vmul.f32 %v1273, %v903
        %v1311 = vmul.f32 %v1273, %v904
        %v1312 = vmul.f32 %v1277, %v903
        %v1313 = vmul.f32 %v1277, %v904
        %v1314 = vmul.f32 %v1281, %v903
        %v1315 = vmul.f32 %v1281, %v904
        %v1316 = vmul.f32 %v1285, %v903
        %v1317 = vmul.f32 %v1285, %v904
        %v1318 = vmul.f32 %v1289, %v903
        %v1319 = vmul.f32 %v1289, %v904
        %v1320 = vmul.f32 %v1293, %v903
        %v1321 = vmul.f32 %v1293, %v904
        %v1322 = vmul.f32 %v1297, %v903
        %v1323 = vmul.f32 %v1297, %v904
        %v1324 = vmul.f32 %v1301, %v903
        %v1325 = vmul.f32 %v1301, %v904
        %v1326 = vmul.f32 %v1310, %v1204
        %v1327 = vmul.f32 %v1311, %v1205
        %v1328 = vmul.f32 %v1312, %v1206
        %v1329 = vmul.f32 %v1313, %v1207
        %v1330 = vmul.f32 %v1314, %v1208
        %v1331 = vmul.f32 %v1315, %v1209
        %v1332 = vmul.f32 %v1316, %v1210
        %v1333 = vmul.f32 %v1317, %v1211
        %v1334 = vmul.f32 %v1318, %v1212
        %v1335 = vmul.f32 %v1319, %v1213
        %v1336 = vmul.f32 %v1320, %v1214
        %v1337 = vmul.f32 %v1321, %v1215
        %v1338 = vmul.f32 %v1322, %v1216
        %v1339 = vmul.f32 %v1323, %v1217
        %v1340 = vmul.f32 %v1324, %v1218
        %v1341 = vmul.f32 %v1325, %v1219
        %v1342 = vpack.c.bf16 %v1327, %v1326
        %v1343 = vpack.c.bf16 %v1329, %v1328
        %v1344 = vpack.c.bf16 %v1331, %v1330
        %v1345 = vpack.c.bf16 %v1333, %v1332
        %v1346 = vpack.c.bf16 %v1335, %v1334
        %v1347 = vpack.c.bf16 %v1337, %v1336
        %v1348 = vpack.c.bf16 %v1339, %v1338
        %v1349 = vpack.c.bf16 %v1341, %v1340
        %v1350 = vld [vmem:[#allocation17] sm:$0xf]
        %v1351 = vld [vmem:[#allocation17 + $0x4] sm:$0xf]
        %v1352 = vld [vmem:[#allocation17 + $0x8] sm:$0xf]
        %v1353 = vld [vmem:[#allocation17 + $0xc] sm:$0xf]
        %v1358 = vunpack.c.l.b16 %v1350
        %v1359 = vunpack.c.l.b16 %v1351
        %v1360 = vunpack.c.l.b16 %v1352
        %v1361 = vunpack.c.l.b16 %v1353
        %v1362 = vpack.c.b16 %v1359, %v1358
        %v1363 = vpack.c.b16 %v1361, %v1360
        %v1367 = vsel %vm954, %v1342, 0
        %v1370 = vsel %vm954, %v1343, 0
        %v1373 = vsel %vm954, %v1344, 0
        %v1376 = vsel %vm954, %v1345, 0
        %v1379 = vsel %vm954, %v1346, 0
        %v1382 = vsel %vm954, %v1347, 0
        %v1385 = vsel %vm954, %v1348, 0
        %v1388 = vsel %vm954, %v1349, 0
        %1390 = vmatprep.subr.bf16.mxu0 0
        %1391 = vmatpush1.bf16.msra.mxu0 %v1362
        %1392 = vmatprep.subr.bf16.mxu0 0
        %1393 = vmatpush1.bf16.msra.mxu0 %v1363
        %1394 = vmatprep.subr.bf16.mxu0 0
        %1395 = vmatpush1.bf16.msra.mxu0 0
        %1396 = vmatprep.subr.bf16.mxu0 0
        %1397 = vmatpush1.bf16.msra.mxu0 0
        %1398 = vmatprep.subr.bf16.mxu0 0
        %1399 = vmatpush1.bf16.msra.mxu0 0
        %1400 = vmatprep.subr.bf16.mxu0 0
        %1401 = vmatpush1.bf16.msra.mxu0 0
        %1402 = vmatprep.subr.bf16.mxu0 0
        %1403 = vmatpush1.bf16.msra.mxu0 0
        %1404 = vmatprep.subr.bf16.mxu0 0
        %1405 = vmatpush1.bf16.msra.mxu0 0
        %1406 = vmatprep.subr.bf16.mxu0 0
        %1407 = vmatpush1.bf16.msra.mxu0 0
        %1408 = vmatprep.subr.bf16.mxu0 0
        %1409 = vmatpush1.bf16.msra.mxu0 0
        %1410 = vmatprep.subr.bf16.mxu0 0
        %1411 = vmatpush1.bf16.msra.mxu0 0
        %1412 = vmatprep.subr.bf16.mxu0 0
        %1413 = vmatpush1.bf16.msra.mxu0 0
        %1414 = vmatprep.subr.bf16.mxu0 0
        %1415 = vmatpush1.bf16.msra.mxu0 0
        %1416 = vmatprep.subr.bf16.mxu0 0
        %1417 = vmatpush1.bf16.msra.mxu0 0
        %1418 = vmatprep.subr.bf16.mxu0 0
        %1419 = vmatpush1.bf16.msra.mxu0 0
        %1420 = vmatprep.subr.bf16.mxu0 0
        %1421 = vmatpush1.bf16.msra.mxu0 0
        %1422 = vmatprep.mubr.bf16.mxu0 0
        %1423 = vmatmul.mubr.bf16.gmra.mrb[0].mxu0 %v1367
        %v1424 = vpop.f32.mrb[0].mxu0
        %v1425 = vadd.f32 0.0, %v1424
        %v1426 = vpop.f32.mrb[0].mxu0
        %v1427 = vpop.f32.mrb[0].mxu0
        %v1428 = vadd.f32 0.0, %v1427
        %v1429 = vpop.f32.mrb[0].mxu0
        %1430 = vmatprep.mubr.bf16.mxu0 0
        %1431 = vmatmul.mubr.bf16.gmra.mrb[0].mxu0 %v1370
        %v1432 = vpop.f32.mrb[0].mxu0
        %v1433 = vadd.f32 0.0, %v1432
        %v1434 = vpop.f32.mrb[0].mxu0
        %v1435 = vpop.f32.mrb[0].mxu0
        %v1436 = vadd.f32 0.0, %v1435
        %v1437 = vpop.f32.mrb[0].mxu0
        %1438 = vmatprep.mubr.bf16.mxu0 0
        %1439 = vmatmul.mubr.bf16.gmra.mrb[0].mxu0 %v1373
        %v1440 = vpop.f32.mrb[0].mxu0
        %v1441 = vadd.f32 0.0, %v1440
        %v1442 = vpop.f32.mrb[0].mxu0
        %v1443 = vpop.f32.mrb[0].mxu0
        %v1444 = vadd.f32 0.0, %v1443
        %v1445 = vpop.f32.mrb[0].mxu0
        %1446 = vmatprep.mubr.bf16.mxu0 0
        %1447 = vmatmul.mubr.bf16.gmra.mrb[0].mxu0 %v1376
        %v1448 = vpop.f32.mrb[0].mxu0
        %v1449 = vadd.f32 0.0, %v1448
        %v1450 = vpop.f32.mrb[0].mxu0
        %v1451 = vpop.f32.mrb[0].mxu0
        %v1452 = vadd.f32 0.0, %v1451
        %v1453 = vpop.f32.mrb[0].mxu0
        %1454 = vmatprep.mubr.bf16.mxu0 0
        %1455 = vmatmul.mubr.bf16.gmra.mrb[0].mxu0 %v1379
        %v1456 = vpop.f32.mrb[0].mxu0
        %v1457 = vadd.f32 0.0, %v1456
        %v1458 = vpop.f32.mrb[0].mxu0
        %v1459 = vpop.f32.mrb[0].mxu0
        %v1460 = vadd.f32 0.0, %v1459
        %v1461 = vpop.f32.mrb[0].mxu0
        %1462 = vmatprep.mubr.bf16.mxu0 0
        %1463 = vmatmul.mubr.bf16.gmra.mrb[0].mxu0 %v1382
        %v1464 = vpop.f32.mrb[0].mxu0
        %v1465 = vadd.f32 0.0, %v1464
        %v1466 = vpop.f32.mrb[0].mxu0
        %v1467 = vpop.f32.mrb[0].mxu0
        %v1468 = vadd.f32 0.0, %v1467
        %v1469 = vpop.f32.mrb[0].mxu0
        %1470 = vmatprep.mubr.bf16.mxu0 0
        %1471 = vmatmul.mubr.bf16.gmra.mrb[0].mxu0 %v1385
        %v1472 = vpop.f32.mrb[0].mxu0
        %v1473 = vadd.f32 0.0, %v1472
        %v1474 = vpop.f32.mrb[0].mxu0
        %v1475 = vpop.f32.mrb[0].mxu0
        %v1476 = vadd.f32 0.0, %v1475
        %v1477 = vpop.f32.mrb[0].mxu0
        %1478 = vmatprep.mubr.bf16.mxu0 0
        %1479 = vmatmul.mubr.bf16.gmra.mrb[0].mxu0 %v1388
        %v1480 = vpop.f32.mrb[0].mxu0
        %v1481 = vadd.f32 0.0, %v1480
        %v1482 = vpop.f32.mrb[0].mxu0
        %v1483 = vpop.f32.mrb[0].mxu0
        %v1484 = vadd.f32 0.0, %v1483
        %v1485 = vpop.f32.mrb[0].mxu0
        %1486 = vdwg.mxu0
        %v1487 = vld [vmem:[%s769] sm:$0xff]
        %v1488 = vlaneseq
        %v1489 = vshrl.u32 %v1488, 7
        %v1490 = vsub.s32 0, %v1489
        %v1491 = vrot.slane %v1487, %v1490
        %1493 = vbcast.lane.b32.xlu0 %v1491, 256
        %v1494 = vpop.permute.xlu0 %1493
        %s1496 = sor.u32 256, 8
        %1497 = vbcast.lane.b32.xlu0 %v1491, %s1496
        %v1498 = vpop.permute.xlu0 %1497
        %v1499 = vlaneseq
        %v1500 = vshrl.u32 %v1499, 7
        %v1501 = vsub.s32 1, %v1500
        %v1502 = vrot.slane %v1487, %v1501
        %1504 = vbcast.lane.b32.xlu0 %v1502, 256
        %v1505 = vpop.permute.xlu0 %1504
        %s1507 = sor.u32 256, 8
        %1508 = vbcast.lane.b32.xlu0 %v1502, %s1507
        %v1509 = vpop.permute.xlu0 %1508
        %v1510 = vlaneseq
        %v1511 = vshrl.u32 %v1510, 7
        %v1512 = vsub.s32 2, %v1511
        %v1513 = vrot.slane %v1487, %v1512
        %1515 = vbcast.lane.b32.xlu0 %v1513, 256
        %v1516 = vpop.permute.xlu0 %1515
        %s1518 = sor.u32 256, 8
        %1519 = vbcast.lane.b32.xlu0 %v1513, %s1518
        %v1520 = vpop.permute.xlu0 %1519
        %v1521 = vlaneseq
        %v1522 = vshrl.u32 %v1521, 7
        %v1523 = vsub.s32 3, %v1522
        %v1524 = vrot.slane %v1487, %v1523
        %1526 = vbcast.lane.b32.xlu0 %v1524, 256
        %v1527 = vpop.permute.xlu0 %1526
        %s1529 = sor.u32 256, 8
        %1530 = vbcast.lane.b32.xlu0 %v1524, %s1529
        %v1531 = vpop.permute.xlu0 %1530
        %v1532 = vlaneseq
        %v1533 = vshrl.u32 %v1532, 7
        %v1534 = vsub.s32 4, %v1533
        %v1535 = vrot.slane %v1487, %v1534
        %1537 = vbcast.lane.b32.xlu0 %v1535, 256
        %v1538 = vpop.permute.xlu0 %1537
        %s1540 = sor.u32 256, 8
        %1541 = vbcast.lane.b32.xlu0 %v1535, %s1540
        %v1542 = vpop.permute.xlu0 %1541
        %v1543 = vlaneseq
        %v1544 = vshrl.u32 %v1543, 7
        %v1545 = vsub.s32 5, %v1544
        %v1546 = vrot.slane %v1487, %v1545
        %1548 = vbcast.lane.b32.xlu0 %v1546, 256
        %v1549 = vpop.permute.xlu0 %1548
        %s1551 = sor.u32 256, 8
        %1552 = vbcast.lane.b32.xlu0 %v1546, %s1551
        %v1553 = vpop.permute.xlu0 %1552
        %v1554 = vlaneseq
        %v1555 = vshrl.u32 %v1554, 7
        %v1556 = vsub.s32 6, %v1555
        %v1557 = vrot.slane %v1487, %v1556
        %1559 = vbcast.lane.b32.xlu0 %v1557, 256
        %v1560 = vpop.permute.xlu0 %1559
        %s1562 = sor.u32 256, 8
        %1563 = vbcast.lane.b32.xlu0 %v1557, %s1562
        %v1564 = vpop.permute.xlu0 %1563
        %v1565 = vlaneseq
        %v1566 = vshrl.u32 %v1565, 7
        %v1567 = vsub.s32 7, %v1566
        %v1568 = vrot.slane %v1487, %v1567
        %1570 = vbcast.lane.b32.xlu0 %v1568, 256
        %v1571 = vpop.permute.xlu0 %1570
        %s1573 = sor.u32 256, 8
        %1574 = vbcast.lane.b32.xlu0 %v1568, %s1573
        %v1575 = vpop.permute.xlu0 %1574
        %v1576 = vld [vmem:[%s778] sm:$0xff]
        %v1577 = vlaneseq
        %v1578 = vshrl.u32 %v1577, 7
        %v1579 = vsub.s32 0, %v1578
        %v1580 = vrot.slane %v1576, %v1579
        %1582 = vbcast.lane.b32.xlu0 %v1580, 256
        %v1583 = vpop.permute.xlu0 %1582
        %s1585 = sor.u32 256, 8
        %1586 = vbcast.lane.b32.xlu0 %v1580, %s1585
        %v1587 = vpop.permute.xlu0 %1586
        %v1588 = vlaneseq
        %v1589 = vshrl.u32 %v1588, 7
        %v1590 = vsub.s32 1, %v1589
        %v1591 = vrot.slane %v1576, %v1590
        %1593 = vbcast.lane.b32.xlu0 %v1591, 256
        %v1594 = vpop.permute.xlu0 %1593
        %s1596 = sor.u32 256, 8
        %1597 = vbcast.lane.b32.xlu0 %v1591, %s1596
        %v1598 = vpop.permute.xlu0 %1597
        %v1599 = vlaneseq
        %v1600 = vshrl.u32 %v1599, 7
        %v1601 = vsub.s32 2, %v1600
        %v1602 = vrot.slane %v1576, %v1601
        %1604 = vbcast.lane.b32.xlu0 %v1602, 256
        %v1605 = vpop.permute.xlu0 %1604
        %s1607 = sor.u32 256, 8
        %1608 = vbcast.lane.b32.xlu0 %v1602, %s1607
        %v1609 = vpop.permute.xlu0 %1608
        %v1610 = vlaneseq
        %v1611 = vshrl.u32 %v1610, 7
        %v1612 = vsub.s32 3, %v1611
        %v1613 = vrot.slane %v1576, %v1612
        %1615 = vbcast.lane.b32.xlu0 %v1613, 256
        %v1616 = vpop.permute.xlu0 %1615
        %s1618 = sor.u32 256, 8
        %1619 = vbcast.lane.b32.xlu0 %v1613, %s1618
        %v1620 = vpop.permute.xlu0 %1619
        %v1621 = vlaneseq
        %v1622 = vshrl.u32 %v1621, 7
        %v1623 = vsub.s32 4, %v1622
        %v1624 = vrot.slane %v1576, %v1623
        %1626 = vbcast.lane.b32.xlu0 %v1624, 256
        %v1627 = vpop.permute.xlu0 %1626
        %s1629 = sor.u32 256, 8
        %1630 = vbcast.lane.b32.xlu0 %v1624, %s1629
        %v1631 = vpop.permute.xlu0 %1630
        %v1632 = vlaneseq
        %v1633 = vshrl.u32 %v1632, 7
        %v1634 = vsub.s32 5, %v1633
        %v1635 = vrot.slane %v1576, %v1634
        %1637 = vbcast.lane.b32.xlu0 %v1635, 256
        %v1638 = vpop.permute.xlu0 %1637
        %s1640 = sor.u32 256, 8
        %1641 = vbcast.lane.b32.xlu0 %v1635, %s1640
        %v1642 = vpop.permute.xlu0 %1641
        %v1643 = vlaneseq
        %v1644 = vshrl.u32 %v1643, 7
        %v1645 = vsub.s32 6, %v1644
        %v1646 = vrot.slane %v1576, %v1645
        %1648 = vbcast.lane.b32.xlu0 %v1646, 256
        %v1649 = vpop.permute.xlu0 %1648
        %s1651 = sor.u32 256, 8
        %1652 = vbcast.lane.b32.xlu0 %v1646, %s1651
        %v1653 = vpop.permute.xlu0 %1652
        %v1654 = vlaneseq
        %v1655 = vshrl.u32 %v1654, 7
        %v1656 = vsub.s32 7, %v1655
        %v1657 = vrot.slane %v1576, %v1656
        %1659 = vbcast.lane.b32.xlu0 %v1657, 256
        %v1660 = vpop.permute.xlu0 %1659
        %s1662 = sor.u32 256, 8
        %1663 = vbcast.lane.b32.xlu0 %v1657, %s1662
        %v1664 = vpop.permute.xlu0 %1663
        %v1665 = vmul.f32 %v1425, 0.5
        %v1666 = vmul.f32 %v1428, 0.5
        %v1667 = vmul.f32 %v1433, 0.5
        %v1668 = vmul.f32 %v1436, 0.5
        %v1669 = vmul.f32 %v1441, 0.5
        %v1670 = vmul.f32 %v1444, 0.5
        %v1671 = vmul.f32 %v1449, 0.5
        %v1672 = vmul.f32 %v1452, 0.5
        %v1673 = vmul.f32 %v1457, 0.5
        %v1674 = vmul.f32 %v1460, 0.5
        %v1675 = vmul.f32 %v1465, 0.5
        %v1676 = vmul.f32 %v1468, 0.5
        %v1677 = vmul.f32 %v1473, 0.5
        %v1678 = vmul.f32 %v1476, 0.5
        %v1679 = vmul.f32 %v1481, 0.5
        %v1680 = vmul.f32 %v1484, 0.5
        %v1681 = vmul.f32 %v1425, 0.044715
        %v1682 = vmul.f32 %v1428, 0.044715
        %v1683 = vmul.f32 %v1433, 0.044715
        %v1684 = vmul.f32 %v1436, 0.044715
        %v1685 = vmul.f32 %v1441, 0.044715
        %v1686 = vmul.f32 %v1444, 0.044715
        %v1687 = vmul.f32 %v1449, 0.044715
        %v1688 = vmul.f32 %v1452, 0.044715
        %v1689 = vmul.f32 %v1457, 0.044715
        %v1690 = vmul.f32 %v1460, 0.044715
        %v1691 = vmul.f32 %v1465, 0.044715
        %v1692 = vmul.f32 %v1468, 0.044715
        %v1693 = vmul.f32 %v1473, 0.044715
        %v1694 = vmul.f32 %v1476, 0.044715
        %v1695 = vmul.f32 %v1481, 0.044715
        %v1696 = vmul.f32 %v1484, 0.044715
        %v1697 = vmul.f32 %v1681, %v1425
        %v1698 = vmul.f32 %v1682, %v1428
        %v1699 = vmul.f32 %v1683, %v1433
        %v1700 = vmul.f32 %v1684, %v1436
        %v1701 = vmul.f32 %v1685, %v1441
        %v1702 = vmul.f32 %v1686, %v1444
        %v1703 = vmul.f32 %v1687, %v1449
        %v1704 = vmul.f32 %v1688, %v1452
        %v1705 = vmul.f32 %v1689, %v1457
        %v1706 = vmul.f32 %v1690, %v1460
        %v1707 = vmul.f32 %v1691, %v1465
        %v1708 = vmul.f32 %v1692, %v1468
        %v1709 = vmul.f32 %v1693, %v1473
        %v1710 = vmul.f32 %v1694, %v1476
        %v1711 = vmul.f32 %v1695, %v1481
        %v1712 = vmul.f32 %v1696, %v1484
        %v1713 = vmul.f32 %v1697, %v1425
        %v1714 = vmul.f32 %v1698, %v1428
        %v1715 = vmul.f32 %v1699, %v1433
        %v1716 = vmul.f32 %v1700, %v1436
        %v1717 = vmul.f32 %v1701, %v1441
        %v1718 = vmul.f32 %v1702, %v1444
        %v1719 = vmul.f32 %v1703, %v1449
        %v1720 = vmul.f32 %v1704, %v1452
        %v1721 = vmul.f32 %v1705, %v1457
        %v1722 = vmul.f32 %v1706, %v1460
        %v1723 = vmul.f32 %v1707, %v1465
        %v1724 = vmul.f32 %v1708, %v1468
        %v1725 = vmul.f32 %v1709, %v1473
        %v1726 = vmul.f32 %v1710, %v1476
        %v1727 = vmul.f32 %v1711, %v1481
        %v1728 = vmul.f32 %v1712, %v1484
        %v1729 = vadd.f32 %v1425, %v1713
        %v1730 = vadd.f32 %v1428, %v1714
        %v1731 = vadd.f32 %v1433, %v1715
        %v1732 = vadd.f32 %v1436, %v1716
        %v1733 = vadd.f32 %v1441, %v1717
        %v1734 = vadd.f32 %v1444, %v1718
        %v1735 = vadd.f32 %v1449, %v1719
        %v1736 = vadd.f32 %v1452, %v1720
        %v1737 = vadd.f32 %v1457, %v1721
        %v1738 = vadd.f32 %v1460, %v1722
        %v1739 = vadd.f32 %v1465, %v1723
        %v1740 = vadd.f32 %v1468, %v1724
        %v1741 = vadd.f32 %v1473, %v1725
        %v1742 = vadd.f32 %v1476, %v1726
        %v1743 = vadd.f32 %v1481, %v1727
        %v1744 = vadd.f32 %v1484, %v1728
        %v1745 = vmul.f32 %v1729, 0.7978846
        %v1746 = vmul.f32 %v1730, 0.7978846
        %v1747 = vmul.f32 %v1731, 0.7978846
        %v1748 = vmul.f32 %v1732, 0.7978846
        %v1749 = vmul.f32 %v1733, 0.7978846
        %v1750 = vmul.f32 %v1734, 0.7978846
        %v1751 = vmul.f32 %v1735, 0.7978846
        %v1752 = vmul.f32 %v1736, 0.7978846
        %v1753 = vmul.f32 %v1737, 0.7978846
        %v1754 = vmul.f32 %v1738, 0.7978846
        %v1755 = vmul.f32 %v1739, 0.7978846
        %v1756 = vmul.f32 %v1740, 0.7978846
        %v1757 = vmul.f32 %v1741, 0.7978846
        %v1758 = vmul.f32 %v1742, 0.7978846
        %v1759 = vmul.f32 %v1743, 0.7978846
        %v1760 = vmul.f32 %v1744, 0.7978846
        %v1761 = vtanh.pop %v1745
        %v1762 = vtanh.pop %v1746
        %v1763 = vtanh.pop %v1747
        %v1764 = vtanh.pop %v1748
        %v1765 = vtanh.pop %v1749
        %v1766 = vtanh.pop %v1750
        %v1767 = vtanh.pop %v1751
        %v1768 = vtanh.pop %v1752
        %v1769 = vtanh.pop %v1753
        %v1770 = vtanh.pop %v1754
        %v1771 = vtanh.pop %v1755
        %v1772 = vtanh.pop %v1756
        %v1773 = vtanh.pop %v1757
        %v1774 = vtanh.pop %v1758
        %v1775 = vtanh.pop %v1759
        %v1776 = vtanh.pop %v1760
        %v1777 = vadd.f32 %v1761, 1.0
        %v1778 = vadd.f32 %v1762, 1.0
        %v1779 = vadd.f32 %v1763, 1.0
        %v1780 = vadd.f32 %v1764, 1.0
        %v1781 = vadd.f32 %v1765, 1.0
        %v1782 = vadd.f32 %v1766, 1.0
        %v1783 = vadd.f32 %v1767, 1.0
        %v1784 = vadd.f32 %v1768, 1.0
        %v1785 = vadd.f32 %v1769, 1.0
        %v1786 = vadd.f32 %v1770, 1.0
        %v1787 = vadd.f32 %v1771, 1.0
        %v1788 = vadd.f32 %v1772, 1.0
        %v1789 = vadd.f32 %v1773, 1.0
        %v1790 = vadd.f32 %v1774, 1.0
        %v1791 = vadd.f32 %v1775, 1.0
        %v1792 = vadd.f32 %v1776, 1.0
        %v1793 = vmul.f32 %v1665, %v1777
        %v1794 = vmul.f32 %v1666, %v1778
        %v1795 = vmul.f32 %v1667, %v1779
        %v1796 = vmul.f32 %v1668, %v1780
        %v1797 = vmul.f32 %v1669, %v1781
        %v1798 = vmul.f32 %v1670, %v1782
        %v1799 = vmul.f32 %v1671, %v1783
        %v1800 = vmul.f32 %v1672, %v1784
        %v1801 = vmul.f32 %v1673, %v1785
        %v1802 = vmul.f32 %v1674, %v1786
        %v1803 = vmul.f32 %v1675, %v1787
        %v1804 = vmul.f32 %v1676, %v1788
        %v1805 = vmul.f32 %v1677, %v1789
        %v1806 = vmul.f32 %v1678, %v1790
        %v1807 = vmul.f32 %v1679, %v1791
        %v1808 = vmul.f32 %v1680, %v1792
        %v1809 = vmul.f32 %v1793, %v1494
        %v1810 = vmul.f32 %v1794, %v1498
        %v1811 = vmul.f32 %v1795, %v1505
        %v1812 = vmul.f32 %v1796, %v1509
        %v1813 = vmul.f32 %v1797, %v1516
        %v1814 = vmul.f32 %v1798, %v1520
        %v1815 = vmul.f32 %v1799, %v1527
        %v1816 = vmul.f32 %v1800, %v1531
        %v1817 = vmul.f32 %v1801, %v1538
        %v1818 = vmul.f32 %v1802, %v1542
        %v1819 = vmul.f32 %v1803, %v1549
        %v1820 = vmul.f32 %v1804, %v1553
        %v1821 = vmul.f32 %v1805, %v1560
        %v1822 = vmul.f32 %v1806, %v1564
        %v1823 = vmul.f32 %v1807, %v1571
        %v1824 = vmul.f32 %v1808, %v1575
        %v1825 = vmul.f32 %v1809, %v905
        %v1826 = vmul.f32 %v1810, %v906
        %v1827 = vmul.f32 %v1811, %v905
        %v1828 = vmul.f32 %v1812, %v906
        %v1829 = vmul.f32 %v1813, %v905
        %v1830 = vmul.f32 %v1814, %v906
        %v1831 = vmul.f32 %v1815, %v905
        %v1832 = vmul.f32 %v1816, %v906
        %v1833 = vmul.f32 %v1817, %v905
        %v1834 = vmul.f32 %v1818, %v906
        %v1835 = vmul.f32 %v1819, %v905
        %v1836 = vmul.f32 %v1820, %v906
        %v1837 = vmul.f32 %v1821, %v905
        %v1838 = vmul.f32 %v1822, %v906
        %v1839 = vmul.f32 %v1823, %v905
        %v1840 = vmul.f32 %v1824, %v906
        %v1841 = vld [vmem:[%s873] sm:$0xff]
        %v1842 = vsel %vm954, %v1825, 0.0
        %v1843 = vsel %vm954, %v1826, 0.0
        %v1844 = vadd.f32 %v1842, %v1843
        %v1845 = vrot.slane %v1844, 4
        %v1846 = vadd.f32 %v1844, %v1845
        %v1847 = vrot.slane %v1846, 2
        %v1848 = vadd.f32 %v1846, %v1847
        %v1849 = vrot.slane %v1848, 1
        %v1850 = vadd.f32 %v1848, %v1849
        %v1851 = vsel %vm954, %v1827, 0.0
        %v1852 = vsel %vm954, %v1828, 0.0
        %v1853 = vadd.f32 %v1851, %v1852
        %v1854 = vrot.slane %v1853, 4
        %v1855 = vadd.f32 %v1853, %v1854
        %v1856 = vrot.slane %v1855, 2
        %v1857 = vadd.f32 %v1855, %v1856
        %v1858 = vrot.slane %v1857, 1
        %v1859 = vadd.f32 %v1857, %v1858
        %v1860 = vsel %vm954, %v1829, 0.0
        %v1861 = vsel %vm954, %v1830, 0.0
        %v1862 = vadd.f32 %v1860, %v1861
        %v1863 = vrot.slane %v1862, 4
        %v1864 = vadd.f32 %v1862, %v1863
        %v1865 = vrot.slane %v1864, 2
        %v1866 = vadd.f32 %v1864, %v1865
        %v1867 = vrot.slane %v1866, 1
        %v1868 = vadd.f32 %v1866, %v1867
        %v1869 = vsel %vm954, %v1831, 0.0
        %v1870 = vsel %vm954, %v1832, 0.0
        %v1871 = vadd.f32 %v1869, %v1870
        %v1872 = vrot.slane %v1871, 4
        %v1873 = vadd.f32 %v1871, %v1872
        %v1874 = vrot.slane %v1873, 2
        %v1875 = vadd.f32 %v1873, %v1874
        %v1876 = vrot.slane %v1875, 1
        %v1877 = vadd.f32 %v1875, %v1876
        %v1878 = vsel %vm954, %v1833, 0.0
        %v1879 = vsel %vm954, %v1834, 0.0
        %v1880 = vadd.f32 %v1878, %v1879
        %v1881 = vrot.slane %v1880, 4
        %v1882 = vadd.f32 %v1880, %v1881
        %v1883 = vrot.slane %v1882, 2
        %v1884 = vadd.f32 %v1882, %v1883
        %v1885 = vrot.slane %v1884, 1
        %v1886 = vadd.f32 %v1884, %v1885
        %v1887 = vsel %vm954, %v1835, 0.0
        %v1888 = vsel %vm954, %v1836, 0.0
        %v1889 = vadd.f32 %v1887, %v1888
        %v1890 = vrot.slane %v1889, 4
        %v1891 = vadd.f32 %v1889, %v1890
        %v1892 = vrot.slane %v1891, 2
        %v1893 = vadd.f32 %v1891, %v1892
        %v1894 = vrot.slane %v1893, 1
        %v1895 = vadd.f32 %v1893, %v1894
        %v1896 = vsel %vm954, %v1837, 0.0
        %v1897 = vsel %vm954, %v1838, 0.0
        %v1898 = vadd.f32 %v1896, %v1897
        %v1899 = vrot.slane %v1898, 4
        %v1900 = vadd.f32 %v1898, %v1899
        %v1901 = vrot.slane %v1900, 2
        %v1902 = vadd.f32 %v1900, %v1901
        %v1903 = vrot.slane %v1902, 1
        %v1904 = vadd.f32 %v1902, %v1903
        %v1905 = vsel %vm954, %v1839, 0.0
        %v1906 = vsel %vm954, %v1840, 0.0
        %v1907 = vadd.f32 %v1905, %v1906
        %v1908 = vrot.slane %v1907, 4
        %v1909 = vadd.f32 %v1907, %v1908
        %v1910 = vrot.slane %v1909, 2
        %v1911 = vadd.f32 %v1909, %v1910
        %v1912 = vrot.slane %v1911, 1
        %v1913 = vadd.f32 %v1911, %v1912
        %vm1922 = vcmask 1041409
        %v1923 = vsel %vm1922, %v1859, %v1850
        %vm1924 = vcmask 1042434
        %v1925 = vsel %vm1924, %v1868, %v1923
        %vm1926 = vcmask 1043459
        %v1927 = vsel %vm1926, %v1877, %v1925
        %vm1928 = vcmask 1044484
        %v1929 = vsel %vm1928, %v1886, %v1927
        %vm1930 = vcmask 1045509
        %v1931 = vsel %vm1930, %v1895, %v1929
        %vm1932 = vcmask 1046534
        %v1933 = vsel %vm1932, %v1904, %v1931
        %vm1934 = vcmask 1047559
        %v1935 = vsel %vm1934, %v1913, %v1933
        %v1937 = vadd.f32 %v1841, %v1935
        %1938 = vst.msk [vmem:[%s873] sm:$0xff] %vm954, %v1937
        %v1939 = vpack.c.bf16 %v1826, %v1825
        %v1940 = vpack.c.bf16 %v1828, %v1827
        %v1941 = vpack.c.bf16 %v1830, %v1829
        %v1942 = vpack.c.bf16 %v1832, %v1831
        %v1943 = vpack.c.bf16 %v1834, %v1833
        %v1944 = vpack.c.bf16 %v1836, %v1835
        %v1945 = vpack.c.bf16 %v1838, %v1837
        %v1946 = vpack.c.bf16 %v1840, %v1839
        %v1947 = vld [vmem:[%s9] sm:$0xf]
        %v1948 = vld [vmem:[%s9 + $0x4] sm:$0xf]
        %v1949 = vld [vmem:[%s9 + $0x8] sm:$0xf]
        %v1950 = vld [vmem:[%s9 + $0xc] sm:$0xf]
        %v1951 = vld [vmem:[#allocation15] sm:$0x1]
        %v1953 = vlaneseq
        %v1954 = vshrl.u32 %v1953, 7
        %v1955 = vsub.s32 0, %v1954
        %v1956 = vrot.slane %v1951, %v1955
        %v1962 = vunpack.c.l.b16 %v1947
        %v1963 = vunpack.c.l.b16 %v1948
        %v1964 = vunpack.c.l.b16 %v1949
        %v1965 = vunpack.c.l.b16 %v1950
        %v1966 = vpack.c.b16 %v1963, %v1962
        %v1967 = vpack.c.b16 %v1965, %v1964
        %v1971 = vsel %vm954, %v1939, 0
        %v1974 = vsel %vm954, %v1940, 0
        %v1977 = vsel %vm954, %v1941, 0
        %v1980 = vsel %vm954, %v1942, 0
        %v1983 = vsel %vm954, %v1943, 0
        %v1986 = vsel %vm954, %v1944, 0
        %v1989 = vsel %vm954, %v1945, 0
        %v1992 = vsel %vm954, %v1946, 0
        %1994 = vmatprep.subr.bf16.mxu0 0
        %1995 = vmatpush1.bf16.msra.mxu0 %v1966
        %1996 = vmatprep.subr.bf16.mxu0 0
        %1997 = vmatpush1.bf16.msra.mxu0 %v1967
        %1998 = vmatprep.subr.bf16.mxu0 0
        %1999 = vmatpush1.bf16.msra.mxu0 0
        %2000 = vmatprep.subr.bf16.mxu0 0
        %2001 = vmatpush1.bf16.msra.mxu0 0
        %2002 = vmatprep.subr.bf16.mxu0 0
        %2003 = vmatpush1.bf16.msra.mxu0 0
        %2004 = vmatprep.subr.bf16.mxu0 0
        %2005 = vmatpush1.bf16.msra.mxu0 0
        %2006 = vmatprep.subr.bf16.mxu0 0
        %2007 = vmatpush1.bf16.msra.mxu0 0
        %2008 = vmatprep.subr.bf16.mxu0 0
        %2009 = vmatpush1.bf16.msra.mxu0 0
        %2010 = vmatprep.subr.bf16.mxu0 0
        %2011 = vmatpush1.bf16.msra.mxu0 0
        %2012 = vmatprep.subr.bf16.mxu0 0
        %2013 = vmatpush1.bf16.msra.mxu0 0
        %2014 = vmatprep.subr.bf16.mxu0 0
        %2015 = vmatpush1.bf16.msra.mxu0 0
        %2016 = vmatprep.subr.bf16.mxu0 0
        %2017 = vmatpush1.bf16.msra.mxu0 0
        %2018 = vmatprep.subr.bf16.mxu0 0
        %2019 = vmatpush1.bf16.msra.mxu0 0
        %2020 = vmatprep.subr.bf16.mxu0 0
        %2021 = vmatpush1.bf16.msra.mxu0 0
        %2022 = vmatprep.subr.bf16.mxu0 0
        %2023 = vmatpush1.bf16.msra.mxu0 0
        %2024 = vmatprep.subr.bf16.mxu0 0
        %2025 = vmatpush1.bf16.msra.mxu0 0
        %2026 = vmatprep.mubr.bf16.mxu0 0
        %2027 = vmatmul.mubr.bf16.gmra.mrb[0].mxu0 %v1971
        %v2028 = vpop.f32.mrb[0].mxu0
        %v2029 = vadd.f32 %v1956, %v2028
        %v2030 = vpop.f32.mrb[0].mxu0
        %v2031 = vpop.f32.mrb[0].mxu0
        %v2032 = vadd.f32 %v1956, %v2031
        %v2033 = vpop.f32.mrb[0].mxu0
        %2034 = vmatprep.mubr.bf16.mxu0 0
        %2035 = vmatmul.mubr.bf16.gmra.mrb[0].mxu0 %v1974
        %v2036 = vpop.f32.mrb[0].mxu0
        %v2037 = vadd.f32 %v1956, %v2036
        %v2038 = vpop.f32.mrb[0].mxu0
        %v2039 = vpop.f32.mrb[0].mxu0
        %v2040 = vadd.f32 %v1956, %v2039
        %v2041 = vpop.f32.mrb[0].mxu0
        %2042 = vmatprep.mubr.bf16.mxu0 0
        %2043 = vmatmul.mubr.bf16.gmra.mrb[0].mxu0 %v1977
        %v2044 = vpop.f32.mrb[0].mxu0
        %v2045 = vadd.f32 %v1956, %v2044
        %v2046 = vpop.f32.mrb[0].mxu0
        %v2047 = vpop.f32.mrb[0].mxu0
        %v2048 = vadd.f32 %v1956, %v2047
        %v2049 = vpop.f32.mrb[0].mxu0
        %2050 = vmatprep.mubr.bf16.mxu0 0
        %2051 = vmatmul.mubr.bf16.gmra.mrb[0].mxu0 %v1980
        %v2052 = vpop.f32.mrb[0].mxu0
        %v2053 = vadd.f32 %v1956, %v2052
        %v2054 = vpop.f32.mrb[0].mxu0
        %v2055 = vpop.f32.mrb[0].mxu0
        %v2056 = vadd.f32 %v1956, %v2055
        %v2057 = vpop.f32.mrb[0].mxu0
        %2058 = vmatprep.mubr.bf16.mxu0 0
        %2059 = vmatmul.mubr.bf16.gmra.mrb[0].mxu0 %v1983
        %v2060 = vpop.f32.mrb[0].mxu0
        %v2061 = vadd.f32 %v1956, %v2060
        %v2062 = vpop.f32.mrb[0].mxu0
        %v2063 = vpop.f32.mrb[0].mxu0
        %v2064 = vadd.f32 %v1956, %v2063
        %v2065 = vpop.f32.mrb[0].mxu0
        %2066 = vmatprep.mubr.bf16.mxu0 0
        %2067 = vmatmul.mubr.bf16.gmra.mrb[0].mxu0 %v1986
        %v2068 = vpop.f32.mrb[0].mxu0
        %v2069 = vadd.f32 %v1956, %v2068
        %v2070 = vpop.f32.mrb[0].mxu0
        %v2071 = vpop.f32.mrb[0].mxu0
        %v2072 = vadd.f32 %v1956, %v2071
        %v2073 = vpop.f32.mrb[0].mxu0
        %2074 = vmatprep.mubr.bf16.mxu0 0
        %2075 = vmatmul.mubr.bf16.gmra.mrb[0].mxu0 %v1989
        %v2076 = vpop.f32.mrb[0].mxu0
        %v2077 = vadd.f32 %v1956, %v2076
        %v2078 = vpop.f32.mrb[0].mxu0
        %v2079 = vpop.f32.mrb[0].mxu0
        %v2080 = vadd.f32 %v1956, %v2079
        %v2081 = vpop.f32.mrb[0].mxu0
        %2082 = vmatprep.mubr.bf16.mxu0 0
        %2083 = vmatmul.mubr.bf16.gmra.mrb[0].mxu0 %v1992
        %v2084 = vpop.f32.mrb[0].mxu0
        %v2085 = vadd.f32 %v1956, %v2084
        %v2086 = vpop.f32.mrb[0].mxu0
        %v2087 = vpop.f32.mrb[0].mxu0
        %v2088 = vadd.f32 %v1956, %v2087
        %v2089 = vpop.f32.mrb[0].mxu0
        %2090 = vdwg.mxu0
        %v2091 = vmul.f32 %v2029, %v1583
        %v2092 = vmul.f32 %v2032, %v1587
        %v2093 = vmul.f32 %v2037, %v1594
        %v2094 = vmul.f32 %v2040, %v1598
        %v2095 = vmul.f32 %v2045, %v1605
        %v2096 = vmul.f32 %v2048, %v1609
        %v2097 = vmul.f32 %v2053, %v1616
        %v2098 = vmul.f32 %v2056, %v1620
        %v2099 = vmul.f32 %v2061, %v1627
        %v2100 = vmul.f32 %v2064, %v1631
        %v2101 = vmul.f32 %v2069, %v1638
        %v2102 = vmul.f32 %v2072, %v1642
        %v2103 = vmul.f32 %v2077, %v1649
        %v2104 = vmul.f32 %v2080, %v1653
        %v2105 = vmul.f32 %v2085, %v1660
        %v2106 = vmul.f32 %v2088, %v1664
        %v2107 = vld [vmem:[#allocation2] sm:$0xff]
        %v2108 = vld [vmem:[%s787] sm:$0xff]
        %v2109 = vlaneseq
        %v2110 = vshrl.u32 %v2109, 7
        %v2111 = vsub.s32 0, %v2110
        %v2112 = vrot.slane %v2108, %v2111
        %2114 = vbcast.lane.b32.xlu0 %v2112, 256
        %v2115 = vpop.permute.xlu0 %2114
        %s2117 = sor.u32 256, 8
        %2118 = vbcast.lane.b32.xlu0 %v2112, %s2117
        %v2119 = vpop.permute.xlu0 %2118
        %v2120 = vlaneseq
        %v2121 = vshrl.u32 %v2120, 7
        %v2122 = vsub.s32 1, %v2121
        %v2123 = vrot.slane %v2108, %v2122
        %2125 = vbcast.lane.b32.xlu0 %v2123, 256
        %v2126 = vpop.permute.xlu0 %2125
        %s2128 = sor.u32 256, 8
        %2129 = vbcast.lane.b32.xlu0 %v2123, %s2128
        %v2130 = vpop.permute.xlu0 %2129
        %v2131 = vlaneseq
        %v2132 = vshrl.u32 %v2131, 7
        %v2133 = vsub.s32 2, %v2132
        %v2134 = vrot.slane %v2108, %v2133
        %2136 = vbcast.lane.b32.xlu0 %v2134, 256
        %v2137 = vpop.permute.xlu0 %2136
        %s2139 = sor.u32 256, 8
        %2140 = vbcast.lane.b32.xlu0 %v2134, %s2139
        %v2141 = vpop.permute.xlu0 %2140
        %v2142 = vlaneseq
        %v2143 = vshrl.u32 %v2142, 7
        %v2144 = vsub.s32 3, %v2143
        %v2145 = vrot.slane %v2108, %v2144
        %2147 = vbcast.lane.b32.xlu0 %v2145, 256
        %v2148 = vpop.permute.xlu0 %2147
        %s2150 = sor.u32 256, 8
        %2151 = vbcast.lane.b32.xlu0 %v2145, %s2150
        %v2152 = vpop.permute.xlu0 %2151
        %v2153 = vlaneseq
        %v2154 = vshrl.u32 %v2153, 7
        %v2155 = vsub.s32 4, %v2154
        %v2156 = vrot.slane %v2108, %v2155
        %2158 = vbcast.lane.b32.xlu0 %v2156, 256
        %v2159 = vpop.permute.xlu0 %2158
        %s2161 = sor.u32 256, 8
        %2162 = vbcast.lane.b32.xlu0 %v2156, %s2161
        %v2163 = vpop.permute.xlu0 %2162
        %v2164 = vlaneseq
        %v2165 = vshrl.u32 %v2164, 7
        %v2166 = vsub.s32 5, %v2165
        %v2167 = vrot.slane %v2108, %v2166
        %2169 = vbcast.lane.b32.xlu0 %v2167, 256
        %v2170 = vpop.permute.xlu0 %2169
        %s2172 = sor.u32 256, 8
        %2173 = vbcast.lane.b32.xlu0 %v2167, %s2172
        %v2174 = vpop.permute.xlu0 %2173
        %v2175 = vlaneseq
        %v2176 = vshrl.u32 %v2175, 7
        %v2177 = vsub.s32 6, %v2176
        %v2178 = vrot.slane %v2108, %v2177
        %2180 = vbcast.lane.b32.xlu0 %v2178, 256
        %v2181 = vpop.permute.xlu0 %2180
        %s2183 = sor.u32 256, 8
        %2184 = vbcast.lane.b32.xlu0 %v2178, %s2183
        %v2185 = vpop.permute.xlu0 %2184
        %v2186 = vlaneseq
        %v2187 = vshrl.u32 %v2186, 7
        %v2188 = vsub.s32 7, %v2187
        %v2189 = vrot.slane %v2108, %v2188
        %2191 = vbcast.lane.b32.xlu0 %v2189, 256
        %v2192 = vpop.permute.xlu0 %2191
        %s2194 = sor.u32 256, 8
        %2195 = vbcast.lane.b32.xlu0 %v2189, %s2194
        %v2196 = vpop.permute.xlu0 %2195
        %v2197 = vmul.f32 %v2115, %v2091
        %v2198 = vmul.f32 %v2119, %v2092
        %v2199 = vmul.f32 %v2126, %v2093
        %v2200 = vmul.f32 %v2130, %v2094
        %v2201 = vmul.f32 %v2137, %v2095
        %v2202 = vmul.f32 %v2141, %v2096
        %v2203 = vmul.f32 %v2148, %v2097
        %v2204 = vmul.f32 %v2152, %v2098
        %v2205 = vmul.f32 %v2159, %v2099
        %v2206 = vmul.f32 %v2163, %v2100
        %v2207 = vmul.f32 %v2170, %v2101
        %v2208 = vmul.f32 %v2174, %v2102
        %v2209 = vmul.f32 %v2181, %v2103
        %v2210 = vmul.f32 %v2185, %v2104
        %v2211 = vmul.f32 %v2192, %v2105
        %v2212 = vmul.f32 %v2196, %v2106
        %v2213 = vsel %vm954, %v2197, 0.0
        %v2214 = vsel %vm954, %v2198, 0.0
        %v2215 = vadd.f32 %v2213, %v2214
        %v2216 = vrot.slane %v2215, 4
        %v2217 = vadd.f32 %v2215, %v2216
        %v2218 = vrot.slane %v2217, 2
        %v2219 = vadd.f32 %v2217, %v2218
        %v2220 = vrot.slane %v2219, 1
        %v2221 = vadd.f32 %v2219, %v2220
        %v2222 = vsel %vm954, %v2199, 0.0
        %v2223 = vsel %vm954, %v2200, 0.0
        %v2224 = vadd.f32 %v2222, %v2223
        %v2225 = vrot.slane %v2224, 4
        %v2226 = vadd.f32 %v2224, %v2225
        %v2227 = vrot.slane %v2226, 2
        %v2228 = vadd.f32 %v2226, %v2227
        %v2229 = vrot.slane %v2228, 1
        %v2230 = vadd.f32 %v2228, %v2229
        %v2231 = vsel %vm954, %v2201, 0.0
        %v2232 = vsel %vm954, %v2202, 0.0
        %v2233 = vadd.f32 %v2231, %v2232
        %v2234 = vrot.slane %v2233, 4
        %v2235 = vadd.f32 %v2233, %v2234
        %v2236 = vrot.slane %v2235, 2
        %v2237 = vadd.f32 %v2235, %v2236
        %v2238 = vrot.slane %v2237, 1
        %v2239 = vadd.f32 %v2237, %v2238
        %v2240 = vsel %vm954, %v2203, 0.0
        %v2241 = vsel %vm954, %v2204, 0.0
        %v2242 = vadd.f32 %v2240, %v2241
        %v2243 = vrot.slane %v2242, 4
        %v2244 = vadd.f32 %v2242, %v2243
        %v2245 = vrot.slane %v2244, 2
        %v2246 = vadd.f32 %v2244, %v2245
        %v2247 = vrot.slane %v2246, 1
        %v2248 = vadd.f32 %v2246, %v2247
        %v2249 = vsel %vm954, %v2205, 0.0
        %v2250 = vsel %vm954, %v2206, 0.0
        %v2251 = vadd.f32 %v2249, %v2250
        %v2252 = vrot.slane %v2251, 4
        %v2253 = vadd.f32 %v2251, %v2252
        %v2254 = vrot.slane %v2253, 2
        %v2255 = vadd.f32 %v2253, %v2254
        %v2256 = vrot.slane %v2255, 1
        %v2257 = vadd.f32 %v2255, %v2256
        %v2258 = vsel %vm954, %v2207, 0.0
        %v2259 = vsel %vm954, %v2208, 0.0
        %v2260 = vadd.f32 %v2258, %v2259
        %v2261 = vrot.slane %v2260, 4
        %v2262 = vadd.f32 %v2260, %v2261
        %v2263 = vrot.slane %v2262, 2
        %v2264 = vadd.f32 %v2262, %v2263
        %v2265 = vrot.slane %v2264, 1
        %v2266 = vadd.f32 %v2264, %v2265
        %v2267 = vsel %vm954, %v2209, 0.0
        %v2268 = vsel %vm954, %v2210, 0.0
        %v2269 = vadd.f32 %v2267, %v2268
        %v2270 = vrot.slane %v2269, 4
        %v2271 = vadd.f32 %v2269, %v2270
        %v2272 = vrot.slane %v2271, 2
        %v2273 = vadd.f32 %v2271, %v2272
        %v2274 = vrot.slane %v2273, 1
        %v2275 = vadd.f32 %v2273, %v2274
        %v2276 = vsel %vm954, %v2211, 0.0
        %v2277 = vsel %vm954, %v2212, 0.0
        %v2278 = vadd.f32 %v2276, %v2277
        %v2279 = vrot.slane %v2278, 4
        %v2280 = vadd.f32 %v2278, %v2279
        %v2281 = vrot.slane %v2280, 2
        %v2282 = vadd.f32 %v2280, %v2281
        %v2283 = vrot.slane %v2282, 1
        %v2284 = vadd.f32 %v2282, %v2283
        %v2293 = vsel %vm1922, %v2230, %v2221
        %v2294 = vsel %vm1924, %v2239, %v2293
        %v2295 = vsel %vm1926, %v2248, %v2294
        %v2296 = vsel %vm1928, %v2257, %v2295
        %v2297 = vsel %vm1930, %v2266, %v2296
        %v2298 = vsel %vm1932, %v2275, %v2297
        %v2299 = vsel %vm1934, %v2284, %v2298
        %v2301 = vadd.f32 %v2107, %v2299
        %2302 = vst.msk [vmem:[#allocation2] sm:$0xff] %vm954, %v2301
        %s2303 = scalar_lea.vmem [#allocation2], 8
        %v2304 = vld [vmem:[%s2303] sm:$0xff]
        %s2305 = scalar_lea.vmem %s787, 8 [#allocation14]
        %v2306 = vld [vmem:[%s2305] sm:$0xff]
        %v2307 = vlaneseq
        %v2308 = vshrl.u32 %v2307, 7
        %v2309 = vsub.s32 0, %v2308
        %v2310 = vrot.slane %v2306, %v2309
        %2312 = vbcast.lane.b32.xlu0 %v2310, 256
        %v2313 = vpop.permute.xlu0 %2312
        %s2315 = sor.u32 256, 8
        %2316 = vbcast.lane.b32.xlu0 %v2310, %s2315
        %v2317 = vpop.permute.xlu0 %2316
        %v2318 = vlaneseq
        %v2319 = vshrl.u32 %v2318, 7
        %v2320 = vsub.s32 1, %v2319
        %v2321 = vrot.slane %v2306, %v2320
        %2323 = vbcast.lane.b32.xlu0 %v2321, 256
        %v2324 = vpop.permute.xlu0 %2323
        %s2326 = sor.u32 256, 8
        %2327 = vbcast.lane.b32.xlu0 %v2321, %s2326
        %v2328 = vpop.permute.xlu0 %2327
        %v2329 = vlaneseq
        %v2330 = vshrl.u32 %v2329, 7
        %v2331 = vsub.s32 2, %v2330
        %v2332 = vrot.slane %v2306, %v2331
        %2334 = vbcast.lane.b32.xlu0 %v2332, 256
        %v2335 = vpop.permute.xlu0 %2334
        %s2337 = sor.u32 256, 8
        %2338 = vbcast.lane.b32.xlu0 %v2332, %s2337
        %v2339 = vpop.permute.xlu0 %2338
        %v2340 = vlaneseq
        %v2341 = vshrl.u32 %v2340, 7
        %v2342 = vsub.s32 3, %v2341
        %v2343 = vrot.slane %v2306, %v2342
        %2345 = vbcast.lane.b32.xlu0 %v2343, 256
        %v2346 = vpop.permute.xlu0 %2345
        %s2348 = sor.u32 256, 8
        %2349 = vbcast.lane.b32.xlu0 %v2343, %s2348
        %v2350 = vpop.permute.xlu0 %2349
        %v2351 = vlaneseq
        %v2352 = vshrl.u32 %v2351, 7
        %v2353 = vsub.s32 4, %v2352
        %v2354 = vrot.slane %v2306, %v2353
        %2356 = vbcast.lane.b32.xlu0 %v2354, 256
        %v2357 = vpop.permute.xlu0 %2356
        %s2359 = sor.u32 256, 8
        %2360 = vbcast.lane.b32.xlu0 %v2354, %s2359
        %v2361 = vpop.permute.xlu0 %2360
        %v2362 = vlaneseq
        %v2363 = vshrl.u32 %v2362, 7
        %v2364 = vsub.s32 5, %v2363
        %v2365 = vrot.slane %v2306, %v2364
        %2367 = vbcast.lane.b32.xlu0 %v2365, 256
        %v2368 = vpop.permute.xlu0 %2367
        %s2370 = sor.u32 256, 8
        %2371 = vbcast.lane.b32.xlu0 %v2365, %s2370
        %v2372 = vpop.permute.xlu0 %2371
        %v2373 = vlaneseq
        %v2374 = vshrl.u32 %v2373, 7
        %v2375 = vsub.s32 6, %v2374
        %v2376 = vrot.slane %v2306, %v2375
        %2378 = vbcast.lane.b32.xlu0 %v2376, 256
        %v2379 = vpop.permute.xlu0 %2378
        %s2381 = sor.u32 256, 8
        %2382 = vbcast.lane.b32.xlu0 %v2376, %s2381
        %v2383 = vpop.permute.xlu0 %2382
        %v2384 = vlaneseq
        %v2385 = vshrl.u32 %v2384, 7
        %v2386 = vsub.s32 7, %v2385
        %v2387 = vrot.slane %v2306, %v2386
        %2389 = vbcast.lane.b32.xlu0 %v2387, 256
        %v2390 = vpop.permute.xlu0 %2389
        %s2392 = sor.u32 256, 8
        %2393 = vbcast.lane.b32.xlu0 %v2387, %s2392
        %v2394 = vpop.permute.xlu0 %2393
        %v2395 = vmul.f32 %v2313, %v2091
        %v2396 = vmul.f32 %v2317, %v2092
        %v2397 = vmul.f32 %v2324, %v2093
        %v2398 = vmul.f32 %v2328, %v2094
        %v2399 = vmul.f32 %v2335, %v2095
        %v2400 = vmul.f32 %v2339, %v2096
        %v2401 = vmul.f32 %v2346, %v2097
        %v2402 = vmul.f32 %v2350, %v2098
        %v2403 = vmul.f32 %v2357, %v2099
        %v2404 = vmul.f32 %v2361, %v2100
        %v2405 = vmul.f32 %v2368, %v2101
        %v2406 = vmul.f32 %v2372, %v2102
        %v2407 = vmul.f32 %v2379, %v2103
        %v2408 = vmul.f32 %v2383, %v2104
        %v2409 = vmul.f32 %v2390, %v2105
        %v2410 = vmul.f32 %v2394, %v2106
        %v2411 = vsel %vm954, %v2395, 0.0
        %v2412 = vsel %vm954, %v2396, 0.0
        %v2413 = vadd.f32 %v2411, %v2412
        %v2414 = vrot.slane %v2413, 4
        %v2415 = vadd.f32 %v2413, %v2414
        %v2416 = vrot.slane %v2415, 2
        %v2417 = vadd.f32 %v2415, %v2416
        %v2418 = vrot.slane %v2417, 1
        %v2419 = vadd.f32 %v2417, %v2418
        %v2420 = vsel %vm954, %v2397, 0.0
        %v2421 = vsel %vm954, %v2398, 0.0
        %v2422 = vadd.f32 %v2420, %v2421
        %v2423 = vrot.slane %v2422, 4
        %v2424 = vadd.f32 %v2422, %v2423
        %v2425 = vrot.slane %v2424, 2
        %v2426 = vadd.f32 %v2424, %v2425
        %v2427 = vrot.slane %v2426, 1
        %v2428 = vadd.f32 %v2426, %v2427
        %v2429 = vsel %vm954, %v2399, 0.0
        %v2430 = vsel %vm954, %v2400, 0.0
        %v2431 = vadd.f32 %v2429, %v2430
        %v2432 = vrot.slane %v2431, 4
        %v2433 = vadd.f32 %v2431, %v2432
        %v2434 = vrot.slane %v2433, 2
        %v2435 = vadd.f32 %v2433, %v2434
        %v2436 = vrot.slane %v2435, 1
        %v2437 = vadd.f32 %v2435, %v2436
        %v2438 = vsel %vm954, %v2401, 0.0
        %v2439 = vsel %vm954, %v2402, 0.0
        %v2440 = vadd.f32 %v2438, %v2439
        %v2441 = vrot.slane %v2440, 4
        %v2442 = vadd.f32 %v2440, %v2441
        %v2443 = vrot.slane %v2442, 2
        %v2444 = vadd.f32 %v2442, %v2443
        %v2445 = vrot.slane %v2444, 1
        %v2446 = vadd.f32 %v2444, %v2445
        %v2447 = vsel %vm954, %v2403, 0.0
        %v2448 = vsel %vm954, %v2404, 0.0
        %v2449 = vadd.f32 %v2447, %v2448
        %v2450 = vrot.slane %v2449, 4
        %v2451 = vadd.f32 %v2449, %v2450
        %v2452 = vrot.slane %v2451, 2
        %v2453 = vadd.f32 %v2451, %v2452
        %v2454 = vrot.slane %v2453, 1
        %v2455 = vadd.f32 %v2453, %v2454
        %v2456 = vsel %vm954, %v2405, 0.0
        %v2457 = vsel %vm954, %v2406, 0.0
        %v2458 = vadd.f32 %v2456, %v2457
        %v2459 = vrot.slane %v2458, 4
        %v2460 = vadd.f32 %v2458, %v2459
        %v2461 = vrot.slane %v2460, 2
        %v2462 = vadd.f32 %v2460, %v2461
        %v2463 = vrot.slane %v2462, 1
        %v2464 = vadd.f32 %v2462, %v2463
        %v2465 = vsel %vm954, %v2407, 0.0
        %v2466 = vsel %vm954, %v2408, 0.0
        %v2467 = vadd.f32 %v2465, %v2466
        %v2468 = vrot.slane %v2467, 4
        %v2469 = vadd.f32 %v2467, %v2468
        %v2470 = vrot.slane %v2469, 2
        %v2471 = vadd.f32 %v2469, %v2470
        %v2472 = vrot.slane %v2471, 1
        %v2473 = vadd.f32 %v2471, %v2472
        %v2474 = vsel %vm954, %v2409, 0.0
        %v2475 = vsel %vm954, %v2410, 0.0
        %v2476 = vadd.f32 %v2474, %v2475
        %v2477 = vrot.slane %v2476, 4
        %v2478 = vadd.f32 %v2476, %v2477
        %v2479 = vrot.slane %v2478, 2
        %v2480 = vadd.f32 %v2478, %v2479
        %v2481 = vrot.slane %v2480, 1
        %v2482 = vadd.f32 %v2480, %v2481
        %v2491 = vsel %vm1922, %v2428, %v2419
        %v2492 = vsel %vm1924, %v2437, %v2491
        %v2493 = vsel %vm1926, %v2446, %v2492
        %v2494 = vsel %vm1928, %v2455, %v2493
        %v2495 = vsel %vm1930, %v2464, %v2494
        %v2496 = vsel %vm1932, %v2473, %v2495
        %v2497 = vsel %vm1934, %v2482, %v2496
        %v2499 = vadd.f32 %v2304, %v2497
        %2500 = vst.msk [vmem:[%s2303] sm:$0xff] %vm954, %v2499
        %s2501 = scalar_lea.vmem [#allocation2], 16
        %v2502 = vld [vmem:[%s2501] sm:$0xff]
        %s2503 = scalar_lea.vmem %s787, 16 [#allocation14]
        %v2504 = vld [vmem:[%s2503] sm:$0xff]
        %v2505 = vlaneseq
        %v2506 = vshrl.u32 %v2505, 7
        %v2507 = vsub.s32 0, %v2506
        %v2508 = vrot.slane %v2504, %v2507
        %2510 = vbcast.lane.b32.xlu0 %v2508, 256
        %v2511 = vpop.permute.xlu0 %2510
        %s2513 = sor.u32 256, 8
        %2514 = vbcast.lane.b32.xlu0 %v2508, %s2513
        %v2515 = vpop.permute.xlu0 %2514
        %v2516 = vlaneseq
        %v2517 = vshrl.u32 %v2516, 7
        %v2518 = vsub.s32 1, %v2517
        %v2519 = vrot.slane %v2504, %v2518
        %2521 = vbcast.lane.b32.xlu0 %v2519, 256
        %v2522 = vpop.permute.xlu0 %2521
        %s2524 = sor.u32 256, 8
        %2525 = vbcast.lane.b32.xlu0 %v2519, %s2524
        %v2526 = vpop.permute.xlu0 %2525
        %v2527 = vlaneseq
        %v2528 = vshrl.u32 %v2527, 7
        %v2529 = vsub.s32 2, %v2528
        %v2530 = vrot.slane %v2504, %v2529
        %2532 = vbcast.lane.b32.xlu0 %v2530, 256
        %v2533 = vpop.permute.xlu0 %2532
        %s2535 = sor.u32 256, 8
        %2536 = vbcast.lane.b32.xlu0 %v2530, %s2535
        %v2537 = vpop.permute.xlu0 %2536
        %v2538 = vlaneseq
        %v2539 = vshrl.u32 %v2538, 7
        %v2540 = vsub.s32 3, %v2539
        %v2541 = vrot.slane %v2504, %v2540
        %2543 = vbcast.lane.b32.xlu0 %v2541, 256
        %v2544 = vpop.permute.xlu0 %2543
        %s2546 = sor.u32 256, 8
        %2547 = vbcast.lane.b32.xlu0 %v2541, %s2546
        %v2548 = vpop.permute.xlu0 %2547
        %v2549 = vlaneseq
        %v2550 = vshrl.u32 %v2549, 7
        %v2551 = vsub.s32 4, %v2550
        %v2552 = vrot.slane %v2504, %v2551
        %2554 = vbcast.lane.b32.xlu0 %v2552, 256
        %v2555 = vpop.permute.xlu0 %2554
        %s2557 = sor.u32 256, 8
        %2558 = vbcast.lane.b32.xlu0 %v2552, %s2557
        %v2559 = vpop.permute.xlu0 %2558
        %v2560 = vlaneseq
        %v2561 = vshrl.u32 %v2560, 7
        %v2562 = vsub.s32 5, %v2561
        %v2563 = vrot.slane %v2504, %v2562
        %2565 = vbcast.lane.b32.xlu0 %v2563, 256
        %v2566 = vpop.permute.xlu0 %2565
        %s2568 = sor.u32 256, 8
        %2569 = vbcast.lane.b32.xlu0 %v2563, %s2568
        %v2570 = vpop.permute.xlu0 %2569
        %v2571 = vlaneseq
        %v2572 = vshrl.u32 %v2571, 7
        %v2573 = vsub.s32 6, %v2572
        %v2574 = vrot.slane %v2504, %v2573
        %2576 = vbcast.lane.b32.xlu0 %v2574, 256
        %v2577 = vpop.permute.xlu0 %2576
        %s2579 = sor.u32 256, 8
        %2580 = vbcast.lane.b32.xlu0 %v2574, %s2579
        %v2581 = vpop.permute.xlu0 %2580
        %v2582 = vlaneseq
        %v2583 = vshrl.u32 %v2582, 7
        %v2584 = vsub.s32 7, %v2583
        %v2585 = vrot.slane %v2504, %v2584
        %2587 = vbcast.lane.b32.xlu0 %v2585, 256
        %v2588 = vpop.permute.xlu0 %2587
        %s2590 = sor.u32 256, 8
        %2591 = vbcast.lane.b32.xlu0 %v2585, %s2590
        %v2592 = vpop.permute.xlu0 %2591
        %v2593 = vmul.f32 %v2511, %v2091
        %v2594 = vmul.f32 %v2515, %v2092
        %v2595 = vmul.f32 %v2522, %v2093
        %v2596 = vmul.f32 %v2526, %v2094
        %v2597 = vmul.f32 %v2533, %v2095
        %v2598 = vmul.f32 %v2537, %v2096
        %v2599 = vmul.f32 %v2544, %v2097
        %v2600 = vmul.f32 %v2548, %v2098
        %v2601 = vmul.f32 %v2555, %v2099
        %v2602 = vmul.f32 %v2559, %v2100
        %v2603 = vmul.f32 %v2566, %v2101
        %v2604 = vmul.f32 %v2570, %v2102
        %v2605 = vmul.f32 %v2577, %v2103
        %v2606 = vmul.f32 %v2581, %v2104
        %v2607 = vmul.f32 %v2588, %v2105
        %v2608 = vmul.f32 %v2592, %v2106
        %v2609 = vsel %vm954, %v2593, 0.0
        %v2610 = vsel %vm954, %v2594, 0.0
        %v2611 = vadd.f32 %v2609, %v2610
        %v2612 = vrot.slane %v2611, 4
        %v2613 = vadd.f32 %v2611, %v2612
        %v2614 = vrot.slane %v2613, 2
        %v2615 = vadd.f32 %v2613, %v2614
        %v2616 = vrot.slane %v2615, 1
        %v2617 = vadd.f32 %v2615, %v2616
        %v2618 = vsel %vm954, %v2595, 0.0
        %v2619 = vsel %vm954, %v2596, 0.0
        %v2620 = vadd.f32 %v2618, %v2619
        %v2621 = vrot.slane %v2620, 4
        %v2622 = vadd.f32 %v2620, %v2621
        %v2623 = vrot.slane %v2622, 2
        %v2624 = vadd.f32 %v2622, %v2623
        %v2625 = vrot.slane %v2624, 1
        %v2626 = vadd.f32 %v2624, %v2625
        %v2627 = vsel %vm954, %v2597, 0.0
        %v2628 = vsel %vm954, %v2598, 0.0
        %v2629 = vadd.f32 %v2627, %v2628
        %v2630 = vrot.slane %v2629, 4
        %v2631 = vadd.f32 %v2629, %v2630
        %v2632 = vrot.slane %v2631, 2
        %v2633 = vadd.f32 %v2631, %v2632
        %v2634 = vrot.slane %v2633, 1
        %v2635 = vadd.f32 %v2633, %v2634
        %v2636 = vsel %vm954, %v2599, 0.0
        %v2637 = vsel %vm954, %v2600, 0.0
        %v2638 = vadd.f32 %v2636, %v2637
        %v2639 = vrot.slane %v2638, 4
        %v2640 = vadd.f32 %v2638, %v2639
        %v2641 = vrot.slane %v2640, 2
        %v2642 = vadd.f32 %v2640, %v2641
        %v2643 = vrot.slane %v2642, 1
        %v2644 = vadd.f32 %v2642, %v2643
        %v2645 = vsel %vm954, %v2601, 0.0
        %v2646 = vsel %vm954, %v2602, 0.0
        %v2647 = vadd.f32 %v2645, %v2646
        %v2648 = vrot.slane %v2647, 4
        %v2649 = vadd.f32 %v2647, %v2648
        %v2650 = vrot.slane %v2649, 2
        %v2651 = vadd.f32 %v2649, %v2650
        %v2652 = vrot.slane %v2651, 1
        %v2653 = vadd.f32 %v2651, %v2652
        %v2654 = vsel %vm954, %v2603, 0.0
        %v2655 = vsel %vm954, %v2604, 0.0
        %v2656 = vadd.f32 %v2654, %v2655
        %v2657 = vrot.slane %v2656, 4
        %v2658 = vadd.f32 %v2656, %v2657
        %v2659 = vrot.slane %v2658, 2
        %v2660 = vadd.f32 %v2658, %v2659
        %v2661 = vrot.slane %v2660, 1
        %v2662 = vadd.f32 %v2660, %v2661
        %v2663 = vsel %vm954, %v2605, 0.0
        %v2664 = vsel %vm954, %v2606, 0.0
        %v2665 = vadd.f32 %v2663, %v2664
        %v2666 = vrot.slane %v2665, 4
        %v2667 = vadd.f32 %v2665, %v2666
        %v2668 = vrot.slane %v2667, 2
        %v2669 = vadd.f32 %v2667, %v2668
        %v2670 = vrot.slane %v2669, 1
        %v2671 = vadd.f32 %v2669, %v2670
        %v2672 = vsel %vm954, %v2607, 0.0
        %v2673 = vsel %vm954, %v2608, 0.0
        %v2674 = vadd.f32 %v2672, %v2673
        %v2675 = vrot.slane %v2674, 4
        %v2676 = vadd.f32 %v2674, %v2675
        %v2677 = vrot.slane %v2676, 2
        %v2678 = vadd.f32 %v2676, %v2677
        %v2679 = vrot.slane %v2678, 1
        %v2680 = vadd.f32 %v2678, %v2679
        %v2689 = vsel %vm1922, %v2626, %v2617
        %v2690 = vsel %vm1924, %v2635, %v2689
        %v2691 = vsel %vm1926, %v2644, %v2690
        %v2692 = vsel %vm1928, %v2653, %v2691
        %v2693 = vsel %vm1930, %v2662, %v2692
        %v2694 = vsel %vm1932, %v2671, %v2693
        %v2695 = vsel %vm1934, %v2680, %v2694
        %v2697 = vadd.f32 %v2502, %v2695
        %2698 = vst.msk [vmem:[%s2501] sm:$0xff] %vm954, %v2697
        // Predicated region
        $region121: #{tpu_custom_call.1} parent=75 // pred_check
          %p2699 = pneg %p893
        $region122: #{tpu_custom_call.1} parent=75 // pred_check_branch
          %2701 = sbr.rel (%p2699) target = $region124
        $region123: #{tpu_custom_call.1} parent=75 // pred_region
          %v2702 = vld [vmem:[#allocation2] sm:$0xff]
          %v2703 = vld [vmem:[%s2303] sm:$0xff]
          %v2704 = vld [vmem:[%s2501] sm:$0xff]
          %v2705 = vmul.f32 %v2702, %v2702
          %v2706 = vmul.f32 %v2703, %v2703
          %v2707 = vadd.f32 %v2705, %v2706
          %v2708 = vmul.f32 %v2704, %v2704
          %v2709 = vadd.f32 %v2707, %v2708
          %v2710 = vrsqrt.pop %v2709
          %v2711 = vmul.f32 %v2709, %v2710
          %vm2712 = vcmp.eq.f32.partialorder %v2709, inf
          %v2713 = vsel %vm2712, %v2709, %v2711
          %vm2714 = vcmp.eq.f32.partialorder %v2709, 0.0
          %v2715 = vand.u32 %v2709, 2147483648
          %v2716 = vsel %vm2714, %v2715, %v2713
          %v2717 = vmax.f32 %v2716, 1e-12
          %v2718 = vsel %vm954, %v2717, -inf
          %2719 = vmax.xlane.f32.xlu0 %v2718
          %v2720 = vpop.xlane.xlu0 %2719
          %v2721 = vsel %vm954, %v2717, inf
          %2722 = vmin.xlane.f32.xlu0 %v2721
          %v2723 = vpop.xlane.xlu0 %2722
          %v2724 = vsub.f32 %v2720, %v2723
          %vm2725 = vcmp.eq.f32.partialorder %v2724, 0.0
          %v2726 = vsel %vm2725, 1.0, %v2724
          %v2727 = vsub.f32 %v2717, %v2723
          %v2728 = vrcp.pop %v2726
          %v2729 = vmul.f32 %v2727, %v2728
          %v2730 = vmax.f32 %v2729, 0.0
          %v2731 = vrcp.pop %v2717
          %v2732 = vmul.f32 %v2730, %v2731
          %v2733 = vmul.f32 %v2702, %v2732
          %v2734 = vpack.c.bf16 %v2733, %v2733
          %v2735 = vld [vmem:[#allocation18] sm:$0xf]
          %v2736 = vld [vmem:[#allocation18 + $0x4] sm:$0xf]
          %v2737 = vld [vmem:[#allocation18 + $0x8] sm:$0xf]
          %v2738 = vld [vmem:[#allocation18 + $0xc] sm:$0xf]
          %v2743 = vunpack.c.l.b16 %v2735
          %v2744 = vunpack.c.l.b16 %v2736
          %v2745 = vunpack.c.l.b16 %v2737
          %v2746 = vunpack.c.l.b16 %v2738
          %v2747 = vpack.c.b16 %v2744, %v2743
          %v2748 = vpack.c.b16 %v2746, %v2745
          %v2752 = vsel %vm954, %v2734, 0
          %2754 = vmatprep.subr.bf16.mxu0 0
          %2755 = vmatpush1.bf16.msra.mxu0 %v2747
          %2756 = vmatprep.subr.bf16.mxu0 0
          %2757 = vmatpush1.bf16.msra.mxu0 %v2748
          %2758 = vmatprep.subr.bf16.mxu0 0
          %2759 = vmatpush1.bf16.msra.mxu0 0
          %2760 = vmatprep.subr.bf16.mxu0 0
          %2761 = vmatpush1.bf16.msra.mxu0 0
          %2762 = vmatprep.subr.bf16.mxu0 0
          %2763 = vmatpush1.bf16.msra.mxu0 0
          %2764 = vmatprep.subr.bf16.mxu0 0
          %2765 = vmatpush1.bf16.msra.mxu0 0
          %2766 = vmatprep.subr.bf16.mxu0 0
          %2767 = vmatpush1.bf16.msra.mxu0 0
          %2768 = vmatprep.subr.bf16.mxu0 0
          %2769 = vmatpush1.bf16.msra.mxu0 0
          %2770 = vmatprep.subr.bf16.mxu0 0
          %2771 = vmatpush1.bf16.msra.mxu0 0
          %2772 = vmatprep.subr.bf16.mxu0 0
          %2773 = vmatpush1.bf16.msra.mxu0 0
          %2774 = vmatprep.subr.bf16.mxu0 0
          %2775 = vmatpush1.bf16.msra.mxu0 0
          %2776 = vmatprep.subr.bf16.mxu0 0
          %2777 = vmatpush1.bf16.msra.mxu0 0
          %2778 = vmatprep.subr.bf16.mxu0 0
          %2779 = vmatpush1.bf16.msra.mxu0 0
          %2780 = vmatprep.subr.bf16.mxu0 0
          %2781 = vmatpush1.bf16.msra.mxu0 0
          %2782 = vmatprep.subr.bf16.mxu0 0
          %2783 = vmatpush1.bf16.msra.mxu0 0
          %2784 = vmatprep.subr.bf16.mxu0 0
          %2785 = vmatpush1.bf16.msra.mxu0 0
          %2786 = vmatprep.mubr.bf16.mxu0 0
          %2787 = vmatmul.mubr.bf16.gmra.mrb[0].mxu0 %v2752
          %v2788 = vpop.f32.mrb[0].mxu0
          %v2789 = vadd.f32 0.0, %v2788
          %v2790 = vpop.f32.mrb[0].mxu0
          %v2791 = vpop.f32.mrb[0].mxu0
          %v2792 = vpop.f32.mrb[0].mxu0
          %2793 = vdwg.mxu0
          %2794 = vst.msk [vmem:[%s880] sm:$0xff] %vm954, %v2789
          %v2795 = vld [vmem:[%s13] sm:$0xf]
          %v2796 = vld [vmem:[%s13 + $0x4] sm:$0xf]
          %v2797 = vld [vmem:[%s13 + $0x8] sm:$0xf]
          %v2798 = vld [vmem:[%s13 + $0xc] sm:$0xf]
          %v2803 = vunpack.c.l.b16 %v2795
          %v2804 = vunpack.c.l.b16 %v2796
          %v2805 = vunpack.c.l.b16 %v2797
          %v2806 = vunpack.c.l.b16 %v2798
          %v2807 = vpack.c.b16 %v2804, %v2803
          %v2808 = vpack.c.b16 %v2806, %v2805
          %2811 = vmatprep.subr.bf16.mxu0 0
          %2812 = vmatpush1.bf16.msra.mxu0 %v2807
          %2813 = vmatprep.subr.bf16.mxu0 0
          %2814 = vmatpush1.bf16.msra.mxu0 %v2808
          %2815 = vmatprep.subr.bf16.mxu0 0
          %2816 = vmatpush1.bf16.msra.mxu0 0
          %2817 = vmatprep.subr.bf16.mxu0 0
          %2818 = vmatpush1.bf16.msra.mxu0 0
          %2819 = vmatprep.subr.bf16.mxu0 0
          %2820 = vmatpush1.bf16.msra.mxu0 0
          %2821 = vmatprep.subr.bf16.mxu0 0
          %2822 = vmatpush1.bf16.msra.mxu0 0
          %2823 = vmatprep.subr.bf16.mxu0 0
          %2824 = vmatpush1.bf16.msra.mxu0 0
          %2825 = vmatprep.subr.bf16.mxu0 0
          %2826 = vmatpush1.bf16.msra.mxu0 0
          %2827 = vmatprep.subr.bf16.mxu0 0
          %2828 = vmatpush1.bf16.msra.mxu0 0
          %2829 = vmatprep.subr.bf16.mxu0 0
          %2830 = vmatpush1.bf16.msra.mxu0 0
          %2831 = vmatprep.subr.bf16.mxu0 0
          %2832 = vmatpush1.bf16.msra.mxu0 0
          %2833 = vmatprep.subr.bf16.mxu0 0
          %2834 = vmatpush1.bf16.msra.mxu0 0
          %2835 = vmatprep.subr.bf16.mxu0 0
          %2836 = vmatpush1.bf16.msra.mxu0 0
          %2837 = vmatprep.subr.bf16.mxu0 0
          %2838 = vmatpush1.bf16.msra.mxu0 0
          %2839 = vmatprep.subr.bf16.mxu0 0
          %2840 = vmatpush1.bf16.msra.mxu0 0
          %2841 = vmatprep.subr.bf16.mxu0 0
          %2842 = vmatpush1.bf16.msra.mxu0 0
          %2843 = vmatprep.mubr.bf16.mxu0 0
          %2844 = vmatmul.mubr.bf16.gmra.mrb[0].mxu0 %v2752
          %v2845 = vpop.f32.mrb[0].mxu0
          %v2846 = vadd.f32 0.0, %v2845
          %v2847 = vpop.f32.mrb[0].mxu0
          %v2848 = vpop.f32.mrb[0].mxu0
          %v2849 = vpop.f32.mrb[0].mxu0
          %2850 = vdwg.mxu0
          %2851 = vst.msk [vmem:[%s887] sm:$0xff] %vm954, %v2846
          %v2852 = vmul.f32 %v2703, %v2732
          %v2853 = vpack.c.bf16 %v2852, %v2852
          %v2854 = vld [vmem:[#allocation18] sm:$0xf]
          %v2855 = vld [vmem:[#allocation18 + $0x4] sm:$0xf]
          %v2856 = vld [vmem:[#allocation18 + $0x8] sm:$0xf]
          %v2857 = vld [vmem:[#allocation18 + $0xc] sm:$0xf]
          %v2862 = vunpack.c.l.b16 %v2854
          %v2863 = vunpack.c.l.b16 %v2855
          %v2864 = vunpack.c.l.b16 %v2856
          %v2865 = vunpack.c.l.b16 %v2857
          %v2866 = vpack.c.b16 %v2863, %v2862
          %v2867 = vpack.c.b16 %v2865, %v2864
          %v2871 = vsel %vm954, %v2853, 0
          %2873 = vmatprep.subr.bf16.mxu0 0
          %2874 = vmatpush1.bf16.msra.mxu0 %v2866
          %2875 = vmatprep.subr.bf16.mxu0 0
          %2876 = vmatpush1.bf16.msra.mxu0 %v2867
          %2877 = vmatprep.subr.bf16.mxu0 0
          %2878 = vmatpush1.bf16.msra.mxu0 0
          %2879 = vmatprep.subr.bf16.mxu0 0
          %2880 = vmatpush1.bf16.msra.mxu0 0
          %2881 = vmatprep.subr.bf16.mxu0 0
          %2882 = vmatpush1.bf16.msra.mxu0 0
          %2883 = vmatprep.subr.bf16.mxu0 0
          %2884 = vmatpush1.bf16.msra.mxu0 0
          %2885 = vmatprep.subr.bf16.mxu0 0
          %2886 = vmatpush1.bf16.msra.mxu0 0
          %2887 = vmatprep.subr.bf16.mxu0 0
          %2888 = vmatpush1.bf16.msra.mxu0 0
          %2889 = vmatprep.subr.bf16.mxu0 0
          %2890 = vmatpush1.bf16.msra.mxu0 0
          %2891 = vmatprep.subr.bf16.mxu0 0
          %2892 = vmatpush1.bf16.msra.mxu0 0
          %2893 = vmatprep.subr.bf16.mxu0 0
          %2894 = vmatpush1.bf16.msra.mxu0 0
          %2895 = vmatprep.subr.bf16.mxu0 0
          %2896 = vmatpush1.bf16.msra.mxu0 0
          %2897 = vmatprep.subr.bf16.mxu0 0
          %2898 = vmatpush1.bf16.msra.mxu0 0
          %2899 = vmatprep.subr.bf16.mxu0 0
          %2900 = vmatpush1.bf16.msra.mxu0 0
          %2901 = vmatprep.subr.bf16.mxu0 0
          %2902 = vmatpush1.bf16.msra.mxu0 0
          %2903 = vmatprep.subr.bf16.mxu0 0
          %2904 = vmatpush1.bf16.msra.mxu0 0
          %2905 = vmatprep.mubr.bf16.mxu0 0
          %2906 = vmatmul.mubr.bf16.gmra.mrb[0].mxu0 %v2871
          %v2907 = vpop.f32.mrb[0].mxu0
          %v2908 = vadd.f32 0.0, %v2907
          %v2909 = vpop.f32.mrb[0].mxu0
          %v2910 = vpop.f32.mrb[0].mxu0
          %v2911 = vpop.f32.mrb[0].mxu0
          %2912 = vdwg.mxu0
          %s2913 = scalar_lea.vmem %s880, 8 [#allocation21]
          %2914 = vst.msk [vmem:[%s2913] sm:$0xff] %vm954, %v2908
          %v2915 = vld [vmem:[%s13] sm:$0xf]
          %v2916 = vld [vmem:[%s13 + $0x4] sm:$0xf]
          %v2917 = vld [vmem:[%s13 + $0x8] sm:$0xf]
          %v2918 = vld [vmem:[%s13 + $0xc] sm:$0xf]
          %v2923 = vunpack.c.l.b16 %v2915
          %v2924 = vunpack.c.l.b16 %v2916
          %v2925 = vunpack.c.l.b16 %v2917
          %v2926 = vunpack.c.l.b16 %v2918
          %v2927 = vpack.c.b16 %v2924, %v2923
          %v2928 = vpack.c.b16 %v2926, %v2925
          %2931 = vmatprep.subr.bf16.mxu0 0
          %2932 = vmatpush1.bf16.msra.mxu0 %v2927
          %2933 = vmatprep.subr.bf16.mxu0 0
          %2934 = vmatpush1.bf16.msra.mxu0 %v2928
          %2935 = vmatprep.subr.bf16.mxu0 0
          %2936 = vmatpush1.bf16.msra.mxu0 0
          %2937 = vmatprep.subr.bf16.mxu0 0
          %2938 = vmatpush1.bf16.msra.mxu0 0
          %2939 = vmatprep.subr.bf16.mxu0 0
          %2940 = vmatpush1.bf16.msra.mxu0 0
          %2941 = vmatprep.subr.bf16.mxu0 0
          %2942 = vmatpush1.bf16.msra.mxu0 0
          %2943 = vmatprep.subr.bf16.mxu0 0
          %2944 = vmatpush1.bf16.msra.mxu0 0
          %2945 = vmatprep.subr.bf16.mxu0 0
          %2946 = vmatpush1.bf16.msra.mxu0 0
          %2947 = vmatprep.subr.bf16.mxu0 0
          %2948 = vmatpush1.bf16.msra.mxu0 0
          %2949 = vmatprep.subr.bf16.mxu0 0
          %2950 = vmatpush1.bf16.msra.mxu0 0
          %2951 = vmatprep.subr.bf16.mxu0 0
          %2952 = vmatpush1.bf16.msra.mxu0 0
          %2953 = vmatprep.subr.bf16.mxu0 0
          %2954 = vmatpush1.bf16.msra.mxu0 0
          %2955 = vmatprep.subr.bf16.mxu0 0
          %2956 = vmatpush1.bf16.msra.mxu0 0
          %2957 = vmatprep.subr.bf16.mxu0 0
          %2958 = vmatpush1.bf16.msra.mxu0 0
          %2959 = vmatprep.subr.bf16.mxu0 0
          %2960 = vmatpush1.bf16.msra.mxu0 0
          %2961 = vmatprep.subr.bf16.mxu0 0
          %2962 = vmatpush1.bf16.msra.mxu0 0
          %2963 = vmatprep.mubr.bf16.mxu0 0
          %2964 = vmatmul.mubr.bf16.gmra.mrb[0].mxu0 %v2871
          %v2965 = vpop.f32.mrb[0].mxu0
          %v2966 = vadd.f32 0.0, %v2965
          %v2967 = vpop.f32.mrb[0].mxu0
          %v2968 = vpop.f32.mrb[0].mxu0
          %v2969 = vpop.f32.mrb[0].mxu0
          %2970 = vdwg.mxu0
          %s2971 = scalar_lea.vmem %s887, 8 [#allocation23]
          %2972 = vst.msk [vmem:[%s2971] sm:$0xff] %vm954, %v2966
          %v2973 = vmul.f32 %v2704, %v2732
          %v2974 = vpack.c.bf16 %v2973, %v2973
          %v2975 = vld [vmem:[#allocation18] sm:$0xf]
          %v2976 = vld [vmem:[#allocation18 + $0x4] sm:$0xf]
          %v2977 = vld [vmem:[#allocation18 + $0x8] sm:$0xf]
          %v2978 = vld [vmem:[#allocation18 + $0xc] sm:$0xf]
          %v2983 = vunpack.c.l.b16 %v2975
          %v2984 = vunpack.c.l.b16 %v2976
          %v2985 = vunpack.c.l.b16 %v2977
          %v2986 = vunpack.c.l.b16 %v2978
          %v2987 = vpack.c.b16 %v2984, %v2983
          %v2988 = vpack.c.b16 %v2986, %v2985
          %v2992 = vsel %vm954, %v2974, 0
          %2994 = vmatprep.subr.bf16.mxu0 0
          %2995 = vmatpush1.bf16.msra.mxu0 %v2987
          %2996 = vmatprep.subr.bf16.mxu0 0
          %2997 = vmatpush1.bf16.msra.mxu0 %v2988
          %2998 = vmatprep.subr.bf16.mxu0 0
          %2999 = vmatpush1.bf16.msra.mxu0 0
          %3000 = vmatprep.subr.bf16.mxu0 0
          %3001 = vmatpush1.bf16.msra.mxu0 0
          %3002 = vmatprep.subr.bf16.mxu0 0
          %3003 = vmatpush1.bf16.msra.mxu0 0
          %3004 = vmatprep.subr.bf16.mxu0 0
          %3005 = vmatpush1.bf16.msra.mxu0 0
          %3006 = vmatprep.subr.bf16.mxu0 0
          %3007 = vmatpush1.bf16.msra.mxu0 0
          %3008 = vmatprep.subr.bf16.mxu0 0
          %3009 = vmatpush1.bf16.msra.mxu0 0
          %3010 = vmatprep.subr.bf16.mxu0 0
          %3011 = vmatpush1.bf16.msra.mxu0 0
          %3012 = vmatprep.subr.bf16.mxu0 0
          %3013 = vmatpush1.bf16.msra.mxu0 0
          %3014 = vmatprep.subr.bf16.mxu0 0
          %3015 = vmatpush1.bf16.msra.mxu0 0
          %3016 = vmatprep.subr.bf16.mxu0 0
          %3017 = vmatpush1.bf16.msra.mxu0 0
          %3018 = vmatprep.subr.bf16.mxu0 0
          %3019 = vmatpush1.bf16.msra.mxu0 0
          %3020 = vmatprep.subr.bf16.mxu0 0
          %3021 = vmatpush1.bf16.msra.mxu0 0
          %3022 = vmatprep.subr.bf16.mxu0 0
          %3023 = vmatpush1.bf16.msra.mxu0 0
          %3024 = vmatprep.subr.bf16.mxu0 0
          %3025 = vmatpush1.bf16.msra.mxu0 0
          %3026 = vmatprep.mubr.bf16.mxu0 0
          %3027 = vmatmul.mubr.bf16.gmra.mrb[0].mxu0 %v2992
          %v3028 = vpop.f32.mrb[0].mxu0
          %v3029 = vadd.f32 0.0, %v3028
          %v3030 = vpop.f32.mrb[0].mxu0
          %v3031 = vpop.f32.mrb[0].mxu0
          %v3032 = vpop.f32.mrb[0].mxu0
          %3033 = vdwg.mxu0
          %s3034 = scalar_lea.vmem %s880, 16 [#allocation21]
          %3035 = vst.msk [vmem:[%s3034] sm:$0xff] %vm954, %v3029
          %v3036 = vld [vmem:[%s13] sm:$0xf]
          %v3037 = vld [vmem:[%s13 + $0x4] sm:$0xf]
          %v3038 = vld [vmem:[%s13 + $0x8] sm:$0xf]
          %v3039 = vld [vmem:[%s13 + $0xc] sm:$0xf]
          %v3044 = vunpack.c.l.b16 %v3036
          %v3045 = vunpack.c.l.b16 %v3037
          %v3046 = vunpack.c.l.b16 %v3038
          %v3047 = vunpack.c.l.b16 %v3039
          %v3048 = vpack.c.b16 %v3045, %v3044
          %v3049 = vpack.c.b16 %v3047, %v3046
          %3052 = vmatprep.subr.bf16.mxu0 0
          %3053 = vmatpush1.bf16.msra.mxu0 %v3048
          %3054 = vmatprep.subr.bf16.mxu0 0
          %3055 = vmatpush1.bf16.msra.mxu0 %v3049
          %3056 = vmatprep.subr.bf16.mxu0 0
          %3057 = vmatpush1.bf16.msra.mxu0 0
          %3058 = vmatprep.subr.bf16.mxu0 0
          %3059 = vmatpush1.bf16.msra.mxu0 0
          %3060 = vmatprep.subr.bf16.mxu0 0
          %3061 = vmatpush1.bf16.msra.mxu0 0
          %3062 = vmatprep.subr.bf16.mxu0 0
          %3063 = vmatpush1.bf16.msra.mxu0 0
          %3064 = vmatprep.subr.bf16.mxu0 0
          %3065 = vmatpush1.bf16.msra.mxu0 0
          %3066 = vmatprep.subr.bf16.mxu0 0
          %3067 = vmatpush1.bf16.msra.mxu0 0
          %3068 = vmatprep.subr.bf16.mxu0 0
          %3069 = vmatpush1.bf16.msra.mxu0 0
          %3070 = vmatprep.subr.bf16.mxu0 0
          %3071 = vmatpush1.bf16.msra.mxu0 0
          %3072 = vmatprep.subr.bf16.mxu0 0
          %3073 = vmatpush1.bf16.msra.mxu0 0
          %3074 = vmatprep.subr.bf16.mxu0 0
          %3075 = vmatpush1.bf16.msra.mxu0 0
          %3076 = vmatprep.subr.bf16.mxu0 0
          %3077 = vmatpush1.bf16.msra.mxu0 0
          %3078 = vmatprep.subr.bf16.mxu0 0
          %3079 = vmatpush1.bf16.msra.mxu0 0
          %3080 = vmatprep.subr.bf16.mxu0 0
          %3081 = vmatpush1.bf16.msra.mxu0 0
          %3082 = vmatprep.subr.bf16.mxu0 0
          %3083 = vmatpush1.bf16.msra.mxu0 0
          %3084 = vmatprep.mubr.bf16.mxu0 0
          %3085 = vmatmul.mubr.bf16.gmra.mrb[0].mxu0 %v2992
          %v3086 = vpop.f32.mrb[0].mxu0
          %v3087 = vadd.f32 0.0, %v3086
          %v3088 = vpop.f32.mrb[0].mxu0
          %v3089 = vpop.f32.mrb[0].mxu0
          %v3090 = vpop.f32.mrb[0].mxu0
          %3091 = vdwg.mxu0
          %s3092 = scalar_lea.vmem %s887, 16 [#allocation23]
          %3093 = vst.msk [vmem:[%s3092] sm:$0xff] %vm954, %v3087
        $region124: #{tpu_custom_call.1} parent=75 // pred_fallthru
          _
        %s3094 = sand.u32 %s428, 1
        %s3095 = scalar_lea.sflag [#allocation5], %s3094
        %s3096 = sand.u32 %s428, 1
        %s3097 = smul.addr %s3096, 8
        %s3098 = scalar_lea.vmem [#allocation20], %s3097
        %s3099 = sand.u32 %s48, 1
        %s3100 = scalar_lea.sflag [#allocation22], %s3099
        %s3101 = sand.u32 %s456, 1
        %s3102 = smul.addr %s3101, 24
        %s3103 = scalar_lea.vmem [#allocation21], %s3102
        %s3104 = sand.u32 %s48, 1
        %s3105 = scalar_lea.sflag [#allocation22], %s3104
        %s3106 = sand.u32 %s484, 1
        %s3107 = smul.addr %s3106, 24
        %s3108 = scalar_lea.vmem [#allocation23], %s3107
        // Predicated region
        $region125: #{tpu_custom_call.1} parent=75 // pred_check
          %p3109 = pneg %p438
        $region126: #{tpu_custom_call.1} parent=75 // pred_check_branch
          %3111 = sbr.rel (%p3109) target = $region128
        $region127: #{tpu_custom_call.1} parent=75 // pred_region
          %s3113 = ssub.s32 128, 128
          %3114 = vsyncadd %s3095, %s3113
          %s3115 = smul.addr %s53, 2
          %s3116 = sadd.s32 %s54, %s3115
          %s3117 = smul.addr %s3116, 128
          %s3118 = scalar_lea.hbm %s14, %s3117
          %s3120 = sshll.u32 %s3098, 4
          %s3121 = int_to_ptr.vmem [resolvable:$true] %s3120
          %3123 = dma.vmem_to_hbm [thread:$0]  %s3121, 128, %s3118, %s3095
        $region128: #{tpu_custom_call.1} parent=75 // pred_fallthru
          _
        // Predicated region
        $region129: #{tpu_custom_call.1} parent=75 // pred_check
          %p3124 = pneg %p466
        $region130: #{tpu_custom_call.1} parent=75 // pred_check_branch
          %3126 = sbr.rel (%p3124) target = $region132
        $region131: #{tpu_custom_call.1} parent=75 // pred_region
          %s3128 = ssub.s32 384, 384
          %3129 = vsyncadd %s3100, %s3128
          %s3130 = smul.addr %s53, 6
          %s3131 = sadd.s32 %s54, %s3130
          %s3132 = smul.addr %s3131, 128
          %s3133 = scalar_lea.hbm %s15, %s3132
          %s3134 = sshll.u32 %s3103, 4
          %s3135 = int_to_ptr.vmem [resolvable:$true] %s3134
          %3140 = dma.vmem_to_hbm [thread:$0]  %s3135, 384, %s3133, %s3100, 128, 256, 8
        $region132: #{tpu_custom_call.1} parent=75 // pred_fallthru
          _
        // Predicated region
        $region133: #{tpu_custom_call.1} parent=75 // pred_check
          %p3141 = pneg %p494
        $region134: #{tpu_custom_call.1} parent=75 // pred_check_branch
          %3143 = sbr.rel (%p3141) target = $region136
        $region135: #{tpu_custom_call.1} parent=75 // pred_region
          %s3145 = ssub.s32 384, 384
          %3146 = vsyncadd %s3105, %s3145
          %s3147 = smul.addr %s53, 6
          %s3148 = sadd.s32 %s54, %s3147
          %s3149 = smul.addr %s3148, 128
          %s3150 = scalar_lea.hbm %s16, %s3149
          %s3151 = sshll.u32 %s3108, 4
          %s3152 = int_to_ptr.vmem [resolvable:$true] %s3151
          %3157 = dma.vmem_to_hbm [thread:$0]  %s3152, 384, %s3150, %s3105, 128, 256, 8
        $region136: #{tpu_custom_call.1} parent=75 // pred_fallthru
          _
      $region76: #{tpu_custom_call.1} parent=5 // pred_fallthru
        _
      %p3158 = scmp.le.s32.totalorder 2, %s43
      // Predicated region
      $region137: #{tpu_custom_call.1} parent=5 // pred_check
        %p3159 = pneg %p3158
      $region138: #{tpu_custom_call.1} parent=5 // pred_check_branch
        %3161 = sbr.rel (%p3159) target = $region140
      $region139: #{tpu_custom_call.1} parent=5 // pred_region
        %s3162 = ssub.s32 %s43, 2
        // Predicated region
        $region141: #{tpu_custom_call.1} parent=139 // pred_check
          %p3163 = pneg %p444
        $region142: #{tpu_custom_call.1} parent=139 // pred_check_branch
          %3165 = sbr.rel (%p3163) target = $region144
        $region143: #{tpu_custom_call.1} parent=139 // pred_region
          %s3166 = sand.u32 %s429, 1
          %s3167 = scalar_lea.sflag [#allocation5], %s3166
          %s3168 = sand.u32 %s429, 1
          %s3169 = smul.addr %s3168, 8
          %s3170 = scalar_lea.vmem [#allocation20], %s3169
          %3171 = dma.done %s3167, 128
        $region144: #{tpu_custom_call.1} parent=139 // pred_fallthru
          _
        // Predicated region
        $region145: #{tpu_custom_call.1} parent=139 // pred_check
          %p3172 = pneg %p472
        $region146: #{tpu_custom_call.1} parent=139 // pred_check_branch
          %3174 = sbr.rel (%p3172) target = $region148
        $region147: #{tpu_custom_call.1} parent=139 // pred_region
          %s3175 = sand.u32 %s49, 1
          %s3176 = scalar_lea.sflag [#allocation22], %s3175
          %s3177 = sand.u32 %s457, 1
          %s3178 = smul.addr %s3177, 24
          %s3179 = scalar_lea.vmem [#allocation21], %s3178
          %3180 = dma.done %s3176, 384
        $region148: #{tpu_custom_call.1} parent=139 // pred_fallthru
          _
        // Predicated region
        $region149: #{tpu_custom_call.1} parent=139 // pred_check
          %p3181 = pneg %p500
        $region150: #{tpu_custom_call.1} parent=139 // pred_check_branch
          %3183 = sbr.rel (%p3181) target = $region152
        $region151: #{tpu_custom_call.1} parent=139 // pred_region
          %s3184 = sand.u32 %s49, 1
          %s3185 = scalar_lea.sflag [#allocation22], %s3184
          %s3186 = sand.u32 %s485, 1
          %s3187 = smul.addr %s3186, 24
          %s3188 = scalar_lea.vmem [#allocation23], %s3187
          %3189 = dma.done %s3185, 384
        $region152: #{tpu_custom_call.1} parent=139 // pred_fallthru
          _
      $region140: #{tpu_custom_call.1} parent=5 // pred_fallthru
        _
    $region6: #{tpu_custom_call.1} parent=1 // loop_footer
      %s47 = sadd.s32 1, %s43
    $region7: #{tpu_custom_call.1} parent=1 // loop_footer_branch
      %42 = sbr.rel target = $region3
    $region8: #{tpu_custom_call.1} parent=1 // loop_exit
      _
    %3190 = vsyncpa [#allocation4], 1
    %s3191 = scalar_lea.sflag [#allocation4], 1
    %3192 = vsyncpa %s3191, 1
    %3193 = vsyncpa [#allocation7], 1
    %s3194 = scalar_lea.sflag [#allocation7], 1
    %3195 = vsyncpa %s3194, 1
    %3196 = vsyncpa [#allocation10], 1
    %s3197 = scalar_lea.sflag [#allocation10], 1
    %3198 = vsyncpa %s3197, 1
    %3199 = vsyncpa [#allocation13], 1
    %s3200 = scalar_lea.sflag [#allocation13], 1
    %3201 = vsyncpa %s3200, 1
    %3202 = vsyncpa [#allocation16], 1
    %3203 = vsyncpa [#allocation19], 1
    %3204 = vsyncpa [#allocation5], 1
    %s3205 = scalar_lea.sflag [#allocation5], 1
    %3206 = vsyncpa %s3205, 1
    %3207 = vsyncpa [#allocation22], 1
    %s3208 = scalar_lea.sflag [#allocation22], 1
    %3209 = vsyncpa %s3208, 1

// kernel: tpu_custom_call.1
$region0: #{tpu_custom_call.1}
  #allocation0 [shape = 'u32[]', space=smem, size = 0x4, offset = 0x4, fixed_abs, tag = 'smem constant byte address 0x4 - core index']
  #allocation1 [shape = 'u32[144,128]{1,0:T(1,128)}', space=vmem, size = 0x12000, scoped, tag = 'internal scratch']
  #allocation2 [shape = 'f32[3,8,32]{2,1,0:T(8,128)}', space=vmem, size = 0x3000, scoped, tag = 'scratch operand']
  %s0 = inlined_call_operand.hbm [shape: f32[2,16,32], index: 0, kind: input, shape index: {}]
  %s1 = inlined_call_operand.hbm [shape: f32[2,16,32], index: 1, kind: input, shape index: {}]
  %s2 = inlined_call_operand.hbm [shape: f32[2,16,32], index: 2, kind: input, shape index: {}]
  %s3 = inlined_call_operand.hbm [shape: f32[2,16,16,32], index: 3, kind: input, shape index: {}]
  %s4 = inlined_call_operand.hbm [shape: f32[2,16,16], index: 4, kind: input, shape index: {}]
  %s5 = inlined_call_operand.hbm [shape: f32[2,16,16], index: 5, kind: input, shape index: {}]
  %s6 = inlined_call_operand.hbm [shape: f32[2,3,16,16], index: 6, kind: input, shape index: {}]
  %s7 = inlined_call_operand.vmem [shape: bf16[32,32], index: 7, kind: input, shape index: {}]
  %s8 = inlined_call_operand.vmem [shape: f32[1,32], index: 8, kind: input, shape index: {}]
  %s9 = inlined_call_operand.vmem [shape: bf16[32,32], index: 9, kind: input, shape index: {}]
  %s10 = inlined_call_operand.hbm [shape: f32[1,32], index: 10, kind: input, shape index: {}]
  %s11 = inlined_call_operand.hbm [shape: bf16[32,32], index: 11, kind: input, shape index: {}]
  %s12 = inlined_call_operand.hbm [shape: bf16[32,32], index: 12, kind: input, shape index: {}]
  %s13 = inlined_call_operand.vmem [shape: bf16[32,32], index: 13, kind: input, shape index: {}]
  %s14 = inlined_call_operand.hbm [shape: f32[2,16,32], index: 14, kind: output, shape index: {0}]
  %s15 = inlined_call_operand.hbm [shape: f32[2,3,16,32], index: 15, kind: output, shape index: {1}]
  %s16 = inlined_call_operand.hbm [shape: f32[2,3,16,32], index: 16, kind: output, shape index: {2}]
  %17 = xla_tuple %s14, %s15, %s16
  %s18 = sld [smem:[#allocation0]]
  $region153: #{tpu_custom_call.1} parent=0
    _
  %s20 = ssub.s32 1, %s18
  %s21 = scalar_select 0, %s20, %s18
  $region1: #{tpu_custom_call.1} parent=0
    #allocation3 [shape = 'u8[8192]{0}', space=vmem, size = 0x2000, scoped, tag = 'input window, operand 0']
    #allocation4 [shape = 's32[2]{0}', space=sflag, size = 0x8, scoped, tag = 'scoped memory for tpu_custom_call.1']
    #allocation5 [shape = 's32[2]{0}', space=sflag, size = 0x8, scoped, tag = 'scoped memory for tpu_custom_call.1']
    #allocation6 [shape = 'u8[16384]{0}', space=vmem, size = 0x4000, scoped, tag = 'input window, operand 1']
    #allocation7 [shape = 's32[2]{0}', space=sflag, size = 0x8, scoped, tag = 'scoped memory for tpu_custom_call.1']
    #allocation8 [shape = 'u8[16384]{0}', space=vmem, size = 0x4000, scoped, tag = 'input window, operand 2']
    #allocation9 [shape = 'u8[131072]{0}', space=vmem, size = 0x20000, scoped, tag = 'input window, operand 3']
    #allocation10 [shape = 's32[2]{0}', space=sflag, size = 0x8, scoped, tag = 'scoped memory for tpu_custom_call.1']
    #allocation11 [shape = 'u8[8192]{0}', space=vmem, size = 0x2000, scoped, tag = 'input window, operand 4']
    #allocation12 [shape = 'u8[8192]{0}', space=vmem, size = 0x2000, scoped, tag = 'input window, operand 5']
    #allocation13 [shape = 's32[2]{0}', space=sflag, size = 0x8, scoped, tag = 'scoped memory for tpu_custom_call.1']
    #allocation14 [shape = 'u8[24576]{0}', space=vmem, size = 0x6000, scoped, tag = 'input window, operand 6']
    #allocation15 [shape = 'u8[512]{0}', space=vmem, size = 0x400, scoped, tag = 'input window, operand 10, single buffered']
    #allocation16 [shape = 's32[1]{0}', space=sflag, size = 0x4, scoped, tag = 'scoped memory for tpu_custom_call.1']
    #allocation17 [shape = 'u8[8192]{0}', space=vmem, size = 0x2000, scoped, tag = 'input window, operand 11, single buffered']
    #allocation18 [shape = 'u8[8192]{0}', space=vmem, size = 0x2000, scoped, tag = 'input window, operand 12, single buffered']
    #allocation19 [shape = 's32[1]{0}', space=sflag, size = 0x4, scoped, tag = 'scoped memory for tpu_custom_call.1']
    #allocation20 [shape = 'u8[8192]{0}', space=vmem, size = 0x2000, scoped, tag = 'output window, operand 0']
    #allocation21 [shape = 'u8[24576]{0}', space=vmem, size = 0x6000, scoped, tag = 'output window, operand 1']
    #allocation22 [shape = 's32[2]{0}', space=sflag, size = 0x8, scoped, tag = 'scoped memory for tpu_custom_call.1']
    #allocation23 [shape = 'u8[24576]{0}', space=vmem, size = 0x6000, scoped, tag = 'output window, operand 2']
    %22 = vsyncpa [#allocation4], 0
    %s23 = scalar_lea.sflag [#allocation4], 1
    %24 = vsyncpa %s23, 0
    %25 = vsyncpa [#allocation7], 0
    %s26 = scalar_lea.sflag [#allocation7], 1
    %27 = vsyncpa %s26, 0
    %28 = vsyncpa [#allocation10], 0
    %s29 = scalar_lea.sflag [#allocation10], 1
    %30 = vsyncpa %s29, 0
    %31 = vsyncpa [#allocation13], 0
    %s32 = scalar_lea.sflag [#allocation13], 1
    %33 = vsyncpa %s32, 0
    %34 = vsyncpa [#allocation16], 0
    %35 = vsyncpa [#allocation19], 0
    %36 = vsyncpa [#allocation5], 0
    %s37 = scalar_lea.sflag [#allocation5], 1
    %38 = vsyncpa %s37, 0
    %39 = vsyncpa [#allocation22], 0
    %s40 = scalar_lea.sflag [#allocation22], 1
    %41 = vsyncpa %s40, 0
    loop: start=0, step=1, limit=6
    $region2: #{tpu_custom_call.1} parent=1 // loop_pre_header
      _
    $region3: #{tpu_custom_call.1} parent=1 // loop_header
      %s43 = sphi 0, %s47
      %p44 = scmp.ge.s32.totalorder %s43, 6
      %s50 = sphi 0, %s69
      %s51 = sphi 0, %s65
      %s52 = sphi 0, %s61
      %s53 = sphi 0, %s50
      %s54 = sphi 0, %s51
      %s55 = sphi 0, %s52
      %s56 = sphi 0, %s53
      %s57 = sphi 0, %s54
      %s58 = sphi 0, %s55
      %s74 = sphi 0, %s76
      %s77 = sphi 0, %s74
      %s78 = sphi 0, %s77
      %s94 = sphi 0, %s78
      %s102 = sphi 0, %s104
      %s105 = sphi 0, %s102
      %s106 = sphi 0, %s105
      %s122 = sphi 0, %s106
      %s130 = sphi 0, %s132
      %s133 = sphi 0, %s130
      %s134 = sphi 0, %s133
      %s150 = sphi 0, %s134
      %s160 = sphi 0, %s162
      %s163 = sphi 0, %s160
      %s164 = sphi 0, %s163
      %s180 = sphi 0, %s164
      %s190 = sphi 0, %s192
      %s193 = sphi 0, %s190
      %s194 = sphi 0, %s193
      %s210 = sphi 0, %s194
      %s220 = sphi 0, %s222
      %s223 = sphi 0, %s220
      %s224 = sphi 0, %s223
      %s240 = sphi 0, %s224
      %s250 = sphi 0, %s252
      %s253 = sphi 0, %s250
      %s254 = sphi 0, %s253
      %s270 = sphi 0, %s254
      %s274 = sphi 0, %s274
      %s276 = sphi 0, %s274
      %s277 = sphi 0, %s276
      %s291 = sphi 0, %s277
      %s295 = sphi 0, %s295
      %s297 = sphi 0, %s295
      %s298 = sphi 0, %s297
      %s312 = sphi 0, %s298
      %s316 = sphi 0, %s316
      %s318 = sphi 0, %s316
      %s319 = sphi 0, %s318
      %s333 = sphi 0, %s319
      %s337 = sphi 0, %s337
      %s339 = sphi 0, %s337
      %s340 = sphi 0, %s339
      %s354 = sphi 0, %s340
      %s358 = sphi 0, %s358
      %s360 = sphi 0, %s358
      %s361 = sphi 0, %s360
      %s375 = sphi 0, %s361
      %s379 = sphi 0, %s379
      %s381 = sphi 0, %s379
      %s382 = sphi 0, %s381
      %s396 = sphi 0, %s382
      %s400 = sphi 0, %s400
      %s402 = sphi 0, %s400
      %s403 = sphi 0, %s402
      %s417 = sphi 0, %s403
      %s425 = sphi 0, %s427
      %s428 = sphi 0, %s425
      %s429 = sphi 0, %s428
      %s445 = sphi 0, %s429
      %s453 = sphi 0, %s455
      %s456 = sphi 0, %s453
      %s457 = sphi 0, %s456
      %s473 = sphi 0, %s457
      %s481 = sphi 0, %s483
      %s484 = sphi 0, %s481
      %s485 = sphi 0, %s484
      %s501 = sphi 0, %s485
    $region4: #{tpu_custom_call.1} parent=1 // loop_header_branch
      %46 = sbr.rel (%p44) target = $region8
    $region5: #{tpu_custom_call.1} parent=1 // loop_body
      %s48 = ssub.s32 %s43, 1
      %s49 = ssub.s32 %s43, 2
      %s59 = sadd.s32 1, %s52
      %p60 = scmp.ge.s32.totalorder %s59, 1
      %s61 = scalar_select %p60, 0, %s59
      %s62 = sadd.s32 1, %s51
      %s63 = scalar_select %p60, %s62, %s51
      %p64 = scmp.ge.s32.totalorder %s63, 2
      %s65 = scalar_select %p64, 0, %s63
      %s66 = sadd.s32 1, %s50
      %s67 = scalar_select %p64, %s66, %s50
      %p68 = scmp.ge.s32.totalorder %s67, 2
      %s69 = scalar_select %p68, 0, %s67
      %s70 = ssub.s32 %s50, %s69
      %s71 = ssub.s32 %s51, %s65
      %s72 = sor.u32 %s70, %s71
      %p73 = scmp.eq.s32.totalorder %s72, 0
      %s75 = sadd.s32 %s74, 1
      %s76 = scalar_select %p73, %s74, %s75
      %p79 = pneg %p73
      %p80 = scmp.eq.s32.totalorder %s43, 3
      %p81 = por %p79, %p80
      %p82 = scmp.ne.s32.totalorder %s74, %s77
      %p83 = scmp.eq.s32.totalorder %s43, 0
      %p84 = por %p82, %p83
      %p85 = scmp.ne.s32.totalorder %s74, %s77
      %p86 = scmp.eq.s32.totalorder %s48, 3
      %p87 = por %p85, %p86
      %p88 = scmp.ne.s32.totalorder %s77, %s78
      %p89 = scmp.eq.s32.totalorder %s48, 0
      %p90 = por %p88, %p89
      %p91 = scmp.ne.s32.totalorder %s77, %s78
      %p92 = scmp.eq.s32.totalorder %s49, 3
      %p93 = por %p91, %p92
      %p95 = scmp.ne.s32.totalorder %s78, %s94
      %p96 = scmp.eq.s32.totalorder %s49, 0
      %p97 = por %p95, %p96
      %s98 = ssub.s32 %s50, %s69
      %s99 = ssub.s32 %s52, %s61
      %s100 = sor.u32 %s98, %s99
      %p101 = scmp.eq.s32.totalorder %s100, 0
      %s103 = sadd.s32 %s102, 1
      %s104 = scalar_select %p101, %s102, %s103
      %p107 = pneg %p101
      %p108 = scmp.eq.s32.totalorder %s43, 3
      %p109 = por %p107, %p108
      %p110 = scmp.ne.s32.totalorder %s102, %s105
      %p111 = scmp.eq.s32.totalorder %s43, 0
      %p112 = por %p110, %p111
      %p113 = scmp.ne.s32.totalorder %s102, %s105
      %p114 = scmp.eq.s32.totalorder %s48, 3
      %p115 = por %p113, %p114
      %p116 = scmp.ne.s32.totalorder %s105, %s106
      %p117 = scmp.eq.s32.totalorder %s48, 0
      %p118 = por %p116, %p117
      %p119 = scmp.ne.s32.totalorder %s105, %s106
      %p120 = scmp.eq.s32.totalorder %s49, 3
      %p121 = por %p119, %p120
      %p123 = scmp.ne.s32.totalorder %s106, %s122
      %p124 = scmp.eq.s32.totalorder %s49, 0
      %p125 = por %p123, %p124
      %s126 = ssub.s32 %s50, %s69
      %s127 = ssub.s32 %s52, %s61
      %s128 = sor.u32 %s126, %s127
      %p129 = scmp.eq.s32.totalorder %s128, 0
      %s131 = sadd.s32 %s130, 1
      %s132 = scalar_select %p129, %s130, %s131
      %p135 = pneg %p129
      %p136 = scmp.eq.s32.totalorder %s43, 3
      %p137 = por %p135, %p136
      %p138 = scmp.ne.s32.totalorder %s130, %s133
      %p139 = scmp.eq.s32.totalorder %s43, 0
      %p140 = por %p138, %p139
      %p141 = scmp.ne.s32.totalorder %s130, %s133
      %p142 = scmp.eq.s32.totalorder %s48, 3
      %p143 = por %p141, %p142
      %p144 = scmp.ne.s32.totalorder %s133, %s134
      %p145 = scmp.eq.s32.totalorder %s48, 0
      %p146 = por %p144, %p145
      %p147 = scmp.ne.s32.totalorder %s133, %s134
      %p148 = scmp.eq.s32.totalorder %s49, 3
      %p149 = por %p147, %p148
      %p151 = scmp.ne.s32.totalorder %s134, %s150
      %p152 = scmp.eq.s32.totalorder %s49, 0
      %p153 = por %p151, %p152
      %s154 = ssub.s32 %s50, %s69
      %s155 = ssub.s32 %s51, %s65
      %s156 = sor.u32 %s154, %s155
      %s157 = ssub.s32 %s52, %s61
      %s158 = sor.u32 %s156, %s157
      %p159 = scmp.eq.s32.totalorder %s158, 0
      %s161 = sadd.s32 %s160, 1
      %s162 = scalar_select %p159, %s160, %s161
      %p165 = pneg %p159
      %p166 = scmp.eq.s32.totalorder %s43, 3
      %p167 = por %p165, %p166
      %p168 = scmp.ne.s32.totalorder %s160, %s163
      %p169 = scmp.eq.s32.totalorder %s43, 0
      %p170 = por %p168, %p169
      %p171 = scmp.ne.s32.totalorder %s160, %s163
      %p172 = scmp.eq.s32.totalorder %s48, 3
      %p173 = por %p171, %p172
      %p174 = scmp.ne.s32.totalorder %s163, %s164
      %p175 = scmp.eq.s32.totalorder %s48, 0
      %p176 = por %p174, %p175
      %p177 = scmp.ne.s32.totalorder %s163, %s164
      %p178 = scmp.eq.s32.totalorder %s49, 3
      %p179 = por %p177, %p178
      %p181 = scmp.ne.s32.totalorder %s164, %s180
      %p182 = scmp.eq.s32.totalorder %s49, 0
      %p183 = por %p181, %p182
      %s184 = ssub.s32 %s50, %s69
      %s185 = ssub.s32 %s51, %s65
      %s186 = sor.u32 %s184, %s185
      %s187 = ssub.s32 %s52, %s61
      %s188 = sor.u32 %s186, %s187
      %p189 = scmp.eq.s32.totalorder %s188, 0
      %s191 = sadd.s32 %s190, 1
      %s192 = scalar_select %p189, %s190, %s191
      %p195 = pneg %p189
      %p196 = scmp.eq.s32.totalorder %s43, 3
      %p197 = por %p195, %p196
      %p198 = scmp.ne.s32.totalorder %s190, %s193
      %p199 = scmp.eq.s32.totalorder %s43, 0
      %p200 = por %p198, %p199
      %p201 = scmp.ne.s32.totalorder %s190, %s193
      %p202 = scmp.eq.s32.totalorder %s48, 3
      %p203 = por %p201, %p202
      %p204 = scmp.ne.s32.totalorder %s193, %s194
      %p205 = scmp.eq.s32.totalorder %s48, 0
      %p206 = por %p204, %p205
      %p207 = scmp.ne.s32.totalorder %s193, %s194
      %p208 = scmp.eq.s32.totalorder %s49, 3
      %p209 = por %p207, %p208
      %p211 = scmp.ne.s32.totalorder %s194, %s210
      %p212 = scmp.eq.s32.totalorder %s49, 0
      %p213 = por %p211, %p212
      %s214 = ssub.s32 %s50, %s69
      %s215 = ssub.s32 %s51, %s65
      %s216 = sor.u32 %s214, %s215
      %s217 = ssub.s32 %s52, %s61
      %s218 = sor.u32 %s216, %s217
      %p219 = scmp.eq.s32.totalorder %s218, 0
      %s221 = sadd.s32 %s220, 1
      %s222 = scalar_select %p219, %s220, %s221
      %p225 = pneg %p219
      %p226 = scmp.eq.s32.totalorder %s43, 3
      %p227 = por %p225, %p226
      %p228 = scmp.ne.s32.totalorder %s220, %s223
      %p229 = scmp.eq.s32.totalorder %s43, 0
      %p230 = por %p228, %p229
      %p231 = scmp.ne.s32.totalorder %s220, %s223
      %p232 = scmp.eq.s32.totalorder %s48, 3
      %p233 = por %p231, %p232
      %p234 = scmp.ne.s32.totalorder %s223, %s224
      %p235 = scmp.eq.s32.totalorder %s48, 0
      %p236 = por %p234, %p235
      %p237 = scmp.ne.s32.totalorder %s223, %s224
      %p238 = scmp.eq.s32.totalorder %s49, 3
      %p239 = por %p237, %p238
      %p241 = scmp.ne.s32.totalorder %s224, %s240
      %p242 = scmp.eq.s32.totalorder %s49, 0
      %p243 = por %p241, %p242
      %s244 = ssub.s32 %s50, %s69
      %s245 = ssub.s32 %s51, %s65
      %s246 = sor.u32 %s244, %s245
      %s247 = ssub.s32 %s52, %s61
      %s248 = sor.u32 %s246, %s247
      %p249 = scmp.eq.s32.totalorder %s248, 0
      %s251 = sadd.s32 %s250, 1
      %s252 = scalar_select %p249, %s250, %s251
      %p255 = pneg %p249
      %p256 = scmp.eq.s32.totalorder %s43, 3
      %p257 = por %p255, %p256
      %p258 = scmp.ne.s32.totalorder %s250, %s253
      %p259 = scmp.eq.s32.totalorder %s43, 0
      %p260 = por %p258, %p259
      %p261 = scmp.ne.s32.totalorder %s250, %s253
      %p262 = scmp.eq.s32.totalorder %s48, 3
      %p263 = por %p261, %p262
      %p264 = scmp.ne.s32.totalorder %s253, %s254
      %p265 = scmp.eq.s32.totalorder %s48, 0
      %p266 = por %p264, %p265
      %p267 = scmp.ne.s32.totalorder %s253, %s254
      %p268 = scmp.eq.s32.totalorder %s49, 3
      %p269 = por %p267, %p268
      %p271 = scmp.ne.s32.totalorder %s254, %s270
      %p272 = scmp.eq.s32.totalorder %s49, 0
      %p273 = por %p271, %p272
      %s275 = sadd.s32 %s274, 1
      %p278 = scmp.eq.s32.totalorder %s43, 3
      %p279 = scmp.ne.s32.totalorder %s274, %s276
      %p280 = scmp.eq.s32.totalorder %s43, 0
      %p281 = por %p279, %p280
      %p282 = scmp.ne.s32.totalorder %s274, %s276
      %p283 = scmp.eq.s32.totalorder %s48, 3
      %p284 = por %p282, %p283
      %p285 = scmp.ne.s32.totalorder %s276, %s277
      %p286 = scmp.eq.s32.totalorder %s48, 0
      %p287 = por %p285, %p286
      %p288 = scmp.ne.s32.totalorder %s276, %s277
      %p289 = scmp.eq.s32.totalorder %s49, 3
      %p290 = por %p288, %p289
      %p292 = scmp.ne.s32.totalorder %s277, %s291
      %p293 = scmp.eq.s32.totalorder %s49, 0
      %p294 = por %p292, %p293
      %s296 = sadd.s32 %s295, 1
      %p299 = scmp.eq.s32.totalorder %s43, 3
      %p300 = scmp.ne.s32.totalorder %s295, %s297
      %p301 = scmp.eq.s32.totalorder %s43, 0
      %p302 = por %p300, %p301
      %p303 = scmp.ne.s32.totalorder %s295, %s297
      %p304 = scmp.eq.s32.totalorder %s48, 3
      %p305 = por %p303, %p304
      %p306 = scmp.ne.s32.totalorder %s297, %s298
      %p307 = scmp.eq.s32.totalorder %s48, 0
      %p308 = por %p306, %p307
      %p309 = scmp.ne.s32.totalorder %s297, %s298
      %p310 = scmp.eq.s32.totalorder %s49, 3
      %p311 = por %p309, %p310
      %p313 = scmp.ne.s32.totalorder %s298, %s312
      %p314 = scmp.eq.s32.totalorder %s49, 0
      %p315 = por %p313, %p314
      %s317 = sadd.s32 %s316, 1
      %p320 = scmp.eq.s32.totalorder %s43, 3
      %p321 = scmp.ne.s32.totalorder %s316, %s318
      %p322 = scmp.eq.s32.totalorder %s43, 0
      %p323 = por %p321, %p322
      %p324 = scmp.ne.s32.totalorder %s316, %s318
      %p325 = scmp.eq.s32.totalorder %s48, 3
      %p326 = por %p324, %p325
      %p327 = scmp.ne.s32.totalorder %s318, %s319
      %p328 = scmp.eq.s32.totalorder %s48, 0
      %p329 = por %p327, %p328
      %p330 = scmp.ne.s32.totalorder %s318, %s319
      %p331 = scmp.eq.s32.totalorder %s49, 3
      %p332 = por %p330, %p331
      %p334 = scmp.ne.s32.totalorder %s319, %s333
      %p335 = scmp.eq.s32.totalorder %s49, 0
      %p336 = por %p334, %p335
      %s338 = sadd.s32 %s337, 1
      %p341 = scmp.eq.s32.totalorder %s43, 3
      %p342 = scmp.ne.s32.totalorder %s337, %s339
      %p343 = scmp.eq.s32.totalorder %s43, 0
      %p344 = por %p342, %p343
      %p345 = scmp.ne.s32.totalorder %s337, %s339
      %p346 = scmp.eq.s32.totalorder %s48, 3
      %p347 = por %p345, %p346
      %p348 = scmp.ne.s32.totalorder %s339, %s340
      %p349 = scmp.eq.s32.totalorder %s48, 0
      %p350 = por %p348, %p349
      %p351 = scmp.ne.s32.totalorder %s339, %s340
      %p352 = scmp.eq.s32.totalorder %s49, 3
      %p353 = por %p351, %p352
      %p355 = scmp.ne.s32.totalorder %s340, %s354
      %p356 = scmp.eq.s32.totalorder %s49, 0
      %p357 = por %p355, %p356
      %s359 = sadd.s32 %s358, 1
      %p362 = scmp.eq.s32.totalorder %s43, 3
      %p363 = scmp.ne.s32.totalorder %s358, %s360
      %p364 = scmp.eq.s32.totalorder %s43, 0
      %p365 = por %p363, %p364
      %p366 = scmp.ne.s32.totalorder %s358, %s360
      %p367 = scmp.eq.s32.totalorder %s48, 3
      %p368 = por %p366, %p367
      %p369 = scmp.ne.s32.totalorder %s360, %s361
      %p370 = scmp.eq.s32.totalorder %s48, 0
      %p371 = por %p369, %p370
      %p372 = scmp.ne.s32.totalorder %s360, %s361
      %p373 = scmp.eq.s32.totalorder %s49, 3
      %p374 = por %p372, %p373
      %p376 = scmp.ne.s32.totalorder %s361, %s375
      %p377 = scmp.eq.s32.totalorder %s49, 0
      %p378 = por %p376, %p377
      %s380 = sadd.s32 %s379, 1
      %p383 = scmp.eq.s32.totalorder %s43, 3
      %p384 = scmp.ne.s32.totalorder %s379, %s381
      %p385 = scmp.eq.s32.totalorder %s43, 0
      %p386 = por %p384, %p385
      %p387 = scmp.ne.s32.totalorder %s379, %s381
      %p388 = scmp.eq.s32.totalorder %s48, 3
      %p389 = por %p387, %p388
      %p390 = scmp.ne.s32.totalorder %s381, %s382
      %p391 = scmp.eq.s32.totalorder %s48, 0
      %p392 = por %p390, %p391
      %p393 = scmp.ne.s32.totalorder %s381, %s382
      %p394 = scmp.eq.s32.totalorder %s49, 3
      %p395 = por %p393, %p394
      %p397 = scmp.ne.s32.totalorder %s382, %s396
      %p398 = scmp.eq.s32.totalorder %s49, 0
      %p399 = por %p397, %p398
      %s401 = sadd.s32 %s400, 1
      %p404 = scmp.eq.s32.totalorder %s43, 3
      %p405 = scmp.ne.s32.totalorder %s400, %s402
      %p406 = scmp.eq.s32.totalorder %s43, 0
      %p407 = por %p405, %p406
      %p408 = scmp.ne.s32.totalorder %s400, %s402
      %p409 = scmp.eq.s32.totalorder %s48, 3
      %p410 = por %p408, %p409
      %p411 = scmp.ne.s32.totalorder %s402, %s403
      %p412 = scmp.eq.s32.totalorder %s48, 0
      %p413 = por %p411, %p412
      %p414 = scmp.ne.s32.totalorder %s402, %s403
      %p415 = scmp.eq.s32.totalorder %s49, 3
      %p416 = por %p414, %p415
      %p418 = scmp.ne.s32.totalorder %s403, %s417
      %p419 = scmp.eq.s32.totalorder %s49, 0
      %p420 = por %p418, %p419
      %s421 = ssub.s32 %s50, %s69
      %s422 = ssub.s32 %s51, %s65
      %s423 = sor.u32 %s421, %s422
      %p424 = scmp.eq.s32.totalorder %s423, 0
      %s426 = sadd.s32 %s425, 1
      %s427 = scalar_select %p424, %s425, %s426
      %p430 = pneg %p424
      %p431 = scmp.eq.s32.totalorder %s43, 3
      %p432 = por %p430, %p431
      %p433 = scmp.ne.s32.totalorder %s425, %s428
      %p434 = scmp.eq.s32.totalorder %s43, 0
      %p435 = por %p433, %p434
      %p436 = scmp.ne.s32.totalorder %s425, %s428
      %p437 = scmp.eq.s32.totalorder %s48, 3
      %p438 = por %p436, %p437
      %p439 = scmp.ne.s32.totalorder %s428, %s429
      %p440 = scmp.eq.s32.totalorder %s48, 0
      %p441 = por %p439, %p440
      %p442 = scmp.ne.s32.totalorder %s428, %s429
      %p443 = scmp.eq.s32.totalorder %s49, 3
      %p444 = por %p442, %p443
      %p446 = scmp.ne.s32.totalorder %s429, %s445
      %p447 = scmp.eq.s32.totalorder %s49, 0
      %p448 = por %p446, %p447
      %s449 = ssub.s32 %s50, %s69
      %s450 = ssub.s32 %s51, %s65
      %s451 = sor.u32 %s449, %s450
      %p452 = scmp.eq.s32.totalorder %s451, 0
      %s454 = sadd.s32 %s453, 1
      %s455 = scalar_select %p452, %s453, %s454
      %p458 = pneg %p452
      %p459 = scmp.eq.s32.totalorder %s43, 3
      %p460 = por %p458, %p459
      %p461 = scmp.ne.s32.totalorder %s453, %s456
      %p462 = scmp.eq.s32.totalorder %s43, 0
      %p463 = por %p461, %p462
      %p464 = scmp.ne.s32.totalorder %s453, %s456
      %p465 = scmp.eq.s32.totalorder %s48, 3
      %p466 = por %p464, %p465
      %p467 = scmp.ne.s32.totalorder %s456, %s457
      %p468 = scmp.eq.s32.totalorder %s48, 0
      %p469 = por %p467, %p468
      %p470 = scmp.ne.s32.totalorder %s456, %s457
      %p471 = scmp.eq.s32.totalorder %s49, 3
      %p472 = por %p470, %p471
      %p474 = scmp.ne.s32.totalorder %s457, %s473
      %p475 = scmp.eq.s32.totalorder %s49, 0
      %p476 = por %p474, %p475
      %s477 = ssub.s32 %s50, %s69
      %s478 = ssub.s32 %s51, %s65
      %s479 = sor.u32 %s477, %s478
      %p480 = scmp.eq.s32.totalorder %s479, 0
      %s482 = sadd.s32 %s481, 1
      %s483 = scalar_select %p480, %s481, %s482
      %p486 = pneg %p480
      %p487 = scmp.eq.s32.totalorder %s43, 3
      %p488 = por %p486, %p487
      %p489 = scmp.ne.s32.totalorder %s481, %s484
      %p490 = scmp.eq.s32.totalorder %s43, 0
      %p491 = por %p489, %p490
      %p492 = scmp.ne.s32.totalorder %s481, %s484
      %p493 = scmp.eq.s32.totalorder %s48, 3
      %p494 = por %p492, %p493
      %p495 = scmp.ne.s32.totalorder %s484, %s485
      %p496 = scmp.eq.s32.totalorder %s48, 0
      %p497 = por %p495, %p496
      %p498 = scmp.ne.s32.totalorder %s484, %s485
      %p499 = scmp.eq.s32.totalorder %s49, 3
      %p500 = por %p498, %p499
      %p502 = scmp.ne.s32.totalorder %s485, %s501
      %p503 = scmp.eq.s32.totalorder %s49, 0
      %p504 = por %p502, %p503
      %p505 = scmp.le.s32.totalorder 1, %s43
      %p506 = scmp.lt.s32.totalorder %s43, 5
      %p507 = pnand %p505, %p506
      %p508 = pneg %p507
      // Predicated region
      $region9: #{tpu_custom_call.1} parent=5 // pred_check
        _
      $region10: #{tpu_custom_call.1} parent=5 // pred_check_branch
        %510 = sbr.rel (%p507) target = $region12
      $region11: #{tpu_custom_call.1} parent=5 // pred_region
        %s511 = ssub.s32 %s43, 1
        // Predicated region
        $region13: #{tpu_custom_call.1} parent=11 // pred_check
          %p512 = pneg %p287
        $region14: #{tpu_custom_call.1} parent=11 // pred_check_branch
          %514 = sbr.rel (%p512) target = $region16
        $region15: #{tpu_custom_call.1} parent=11 // pred_region
          _
        $region16: #{tpu_custom_call.1} parent=11 // pred_fallthru
          _
        // Predicated region
        $region17: #{tpu_custom_call.1} parent=11 // pred_check
          %p515 = pneg %p308
        $region18: #{tpu_custom_call.1} parent=11 // pred_check_branch
          %517 = sbr.rel (%p515) target = $region20
        $region19: #{tpu_custom_call.1} parent=11 // pred_region
          _
        $region20: #{tpu_custom_call.1} parent=11 // pred_fallthru
          _
        // Predicated region
        $region21: #{tpu_custom_call.1} parent=11 // pred_check
          %p518 = pneg %p329
        $region22: #{tpu_custom_call.1} parent=11 // pred_check_branch
          %520 = sbr.rel (%p518) target = $region24
        $region23: #{tpu_custom_call.1} parent=11 // pred_region
          _
        $region24: #{tpu_custom_call.1} parent=11 // pred_fallthru
          _
        // Predicated region
        $region25: #{tpu_custom_call.1} parent=11 // pred_check
          %p521 = pneg %p350
        $region26: #{tpu_custom_call.1} parent=11 // pred_check_branch
          %523 = sbr.rel (%p521) target = $region28
        $region27: #{tpu_custom_call.1} parent=11 // pred_region
          %s525 = ssub.s32 16, 16
          %526 = vsyncadd [#allocation16], %s525
          %s528 = sshll.u32 [#allocation15], 4
          %s529 = int_to_ptr.vmem [resolvable:$true] %s528
          %531 = dma.hbm_to_vmem [thread:$0]  %s10, 16, %s529, [#allocation16]
        $region28: #{tpu_custom_call.1} parent=11 // pred_fallthru
          _
        // Predicated region
        $region29: #{tpu_custom_call.1} parent=11 // pred_check
          %p532 = pneg %p371
        $region30: #{tpu_custom_call.1} parent=11 // pred_check_branch
          %534 = sbr.rel (%p532) target = $region32
        $region31: #{tpu_custom_call.1} parent=11 // pred_region
          %s536 = ssub.s32 256, 256
          %537 = vsyncadd [#allocation16], %s536
          %s538 = sshll.u32 [#allocation17], 4
          %s539 = int_to_ptr.vmem [resolvable:$true] %s538
          %544 = dma.hbm_to_vmem [thread:$0]  %s11, 256, %s539, [#allocation16], 64, 64, 4
        $region32: #{tpu_custom_call.1} parent=11 // pred_fallthru
          _
        // Predicated region
        $region33: #{tpu_custom_call.1} parent=11 // pred_check
          %p545 = pneg %p392
        $region34: #{tpu_custom_call.1} parent=11 // pred_check_branch
          %547 = sbr.rel (%p545) target = $region36
        $region35: #{tpu_custom_call.1} parent=11 // pred_region
          %s549 = ssub.s32 256, 256
          %550 = vsyncadd [#allocation19], %s549
          %s551 = sshll.u32 [#allocation18], 4
          %s552 = int_to_ptr.vmem [resolvable:$true] %s551
          %557 = dma.hbm_to_vmem [thread:$0]  %s12, 256, %s552, [#allocation19], 64, 64, 4
        $region36: #{tpu_custom_call.1} parent=11 // pred_fallthru
          _
        // Predicated region
        $region37: #{tpu_custom_call.1} parent=11 // pred_check
          %p558 = pneg %p413
        $region38: #{tpu_custom_call.1} parent=11 // pred_check_branch
          %560 = sbr.rel (%p558) target = $region40
        $region39: #{tpu_custom_call.1} parent=11 // pred_region
          _
        $region40: #{tpu_custom_call.1} parent=11 // pred_fallthru
          _
      $region12: #{tpu_custom_call.1} parent=5 // pred_fallthru
        _
      %p561 = scmp.lt.s32.totalorder %s43, 4
      // Predicated region
      $region41: #{tpu_custom_call.1} parent=5 // pred_check
        %p562 = pneg %p561
      $region42: #{tpu_custom_call.1} parent=5 // pred_check_branch
        %564 = sbr.rel (%p562) target = $region44
      $region43: #{tpu_custom_call.1} parent=5 // pred_region
        // Predicated region
        $region45: #{tpu_custom_call.1} parent=43 // pred_check
          %p565 = pneg %p84
        $region46: #{tpu_custom_call.1} parent=43 // pred_check_branch
          %567 = sbr.rel (%p565) target = $region48
        $region47: #{tpu_custom_call.1} parent=43 // pred_region
          %s568 = sand.u32 %s74, 1
          %s569 = scalar_lea.sflag [#allocation4], %s568
          %s570 = sand.u32 %s74, 1
          %s571 = smul.addr %s570, 8
          %s572 = scalar_lea.vmem [#allocation3], %s571
          %s574 = ssub.s32 128, 128
          %575 = vsyncadd %s569, %s574
          %s576 = smul.addr %s50, 2
          %s577 = sadd.s32 %s51, %s576
          %s578 = smul.addr %s577, 128
          %s579 = scalar_lea.hbm %s0, %s578
          %s581 = sshll.u32 %s572, 4
          %s582 = int_to_ptr.vmem [resolvable:$true] %s581
          %584 = dma.hbm_to_vmem [thread:$0]  %s579, 128, %s582, %s569
        $region48: #{tpu_custom_call.1} parent=43 // pred_fallthru
          _
        // Predicated region
        $region49: #{tpu_custom_call.1} parent=43 // pred_check
          %p585 = pneg %p112
        $region50: #{tpu_custom_call.1} parent=43 // pred_check_branch
          %587 = sbr.rel (%p585) target = $region52
        $region51: #{tpu_custom_call.1} parent=43 // pred_region
          %s588 = sand.u32 %s43, 1
          %s589 = scalar_lea.sflag [#allocation7], %s588
          %s590 = sand.u32 %s102, 1
          %s591 = smul.addr %s590, 16
          %s592 = scalar_lea.vmem [#allocation6], %s591
          %s593 = smul.u32 2, %s52
          %s595 = ssub.s32 256, 256
          %596 = vsyncadd %s589, %s595
          %s597 = smul.addr %s50, 2
          %s598 = sadd.s32 %s593, %s597
          %s599 = smul.addr %s598, 128
          %s600 = scalar_lea.hbm %s1, %s599
          %s601 = sshll.u32 %s592, 4
          %s602 = int_to_ptr.vmem [resolvable:$true] %s601
          %607 = dma.hbm_to_vmem [thread:$0]  %s600, 256, %s602, %s589, 128, 128, 8
        $region52: #{tpu_custom_call.1} parent=43 // pred_fallthru
          _
        // Predicated region
        $region53: #{tpu_custom_call.1} parent=43 // pred_check
          %p608 = pneg %p140
        $region54: #{tpu_custom_call.1} parent=43 // pred_check_branch
          %610 = sbr.rel (%p608) target = $region56
        $region55: #{tpu_custom_call.1} parent=43 // pred_region
          %s611 = sand.u32 %s43, 1
          %s612 = scalar_lea.sflag [#allocation7], %s611
          %s613 = sand.u32 %s130, 1
          %s614 = smul.addr %s613, 16
          %s615 = scalar_lea.vmem [#allocation8], %s614
          %s616 = smul.u32 2, %s52
          %s618 = ssub.s32 256, 256
          %619 = vsyncadd %s612, %s618
          %s620 = smul.addr %s50, 2
          %s621 = sadd.s32 %s616, %s620
          %s622 = smul.addr %s621, 128
          %s623 = scalar_lea.hbm %s2, %s622
          %s624 = sshll.u32 %s615, 4
          %s625 = int_to_ptr.vmem [resolvable:$true] %s624
          %630 = dma.hbm_to_vmem [thread:$0]  %s623, 256, %s625, %s612, 128, 128, 8
        $region56: #{tpu_custom_call.1} parent=43 // pred_fallthru
          _
        // Predicated region
        $region57: #{tpu_custom_call.1} parent=43 // pred_check
          %p631 = pneg %p170
        $region58: #{tpu_custom_call.1} parent=43 // pred_check_branch
          %633 = sbr.rel (%p631) target = $region60
        $region59: #{tpu_custom_call.1} parent=43 // pred_region
          %s634 = sand.u32 %s43, 1
          %s635 = scalar_lea.sflag [#allocation10], %s634
          %s636 = sand.u32 %s160, 1
          %s637 = smul.addr %s636, 128
          %s638 = scalar_lea.vmem [#allocation9], %s637
          %s639 = smul.u32 8, %s51
          %s640 = smul.u32 2, %s52
          %s642 = ssub.s32 2048, 2048
          %643 = vsyncadd %s635, %s642
          %s644 = smul.addr %s639, 2
          %s645 = sadd.s32 %s640, %s644
          %s646 = smul.addr %s50, 32
          %s647 = sadd.s32 %s645, %s646
          %s648 = smul.addr %s647, 128
          %s649 = scalar_lea.hbm %s3, %s648
          %s650 = sshll.u32 %s638, 4
          %s651 = int_to_ptr.vmem [resolvable:$true] %s650
          %656 = dma.hbm_to_vmem [thread:$0]  %s649, 2048, %s651, %s635, 128, 128, 8
        $region60: #{tpu_custom_call.1} parent=43 // pred_fallthru
          _
        // Predicated region
        $region61: #{tpu_custom_call.1} parent=43 // pred_check
          %p657 = pneg %p200
        $region62: #{tpu_custom_call.1} parent=43 // pred_check_branch
          %659 = sbr.rel (%p657) target = $region64
        $region63: #{tpu_custom_call.1} parent=43 // pred_region
          %s660 = sand.u32 %s43, 1
          %s661 = scalar_lea.sflag [#allocation10], %s660
          %s662 = sand.u32 %s190, 1
          %s663 = smul.addr %s662, 8
          %s664 = scalar_lea.vmem [#allocation11], %s663
          %s666 = ssub.s32 128, 128
          %667 = vsyncadd %s661, %s666
          %s668 = sadd.s32 %s52, %s51
          %s669 = smul.addr %s50, 2
          %s670 = sadd.s32 %s668, %s669
          %s671 = smul.addr %s670, 128
          %s672 = scalar_lea.hbm %s4, %s671
          %s674 = sshll.u32 %s664, 4
          %s675 = int_to_ptr.vmem [resolvable:$true] %s674
          %677 = dma.hbm_to_vmem [thread:$0]  %s672, 128, %s675, %s661
        $region64: #{tpu_custom_call.1} parent=43 // pred_fallthru
          _
        // Predicated region
        $region65: #{tpu_custom_call.1} parent=43 // pred_check
          %p678 = pneg %p230
        $region66: #{tpu_custom_call.1} parent=43 // pred_check_branch
          %680 = sbr.rel (%p678) target = $region68
        $region67: #{tpu_custom_call.1} parent=43 // pred_region
          %s681 = sand.u32 %s43, 1
          %s682 = scalar_lea.sflag [#allocation13], %s681
          %s683 = sand.u32 %s220, 1
          %s684 = smul.addr %s683, 8
          %s685 = scalar_lea.vmem [#allocation12], %s684
          %s687 = ssub.s32 128, 128
          %688 = vsyncadd %s682, %s687
          %s689 = sadd.s32 %s52, %s51
          %s690 = smul.addr %s50, 2
          %s691 = sadd.s32 %s689, %s690
          %s692 = smul.addr %s691, 128
          %s693 = scalar_lea.hbm %s5, %s692
          %s695 = sshll.u32 %s685, 4
          %s696 = int_to_ptr.vmem [resolvable:$true] %s695
          %698 = dma.hbm_to_vmem [thread:$0]  %s693, 128, %s696, %s682
        $region68: #{tpu_custom_call.1} parent=43 // pred_fallthru
          _
        // Predicated region
        $region69: #{tpu_custom_call.1} parent=43 // pred_check
          %p699 = pneg %p260
        $region70: #{tpu_custom_call.1} parent=43 // pred_check_branch
          %701 = sbr.rel (%p699) target = $region72
        $region71: #{tpu_custom_call.1} parent=43 // pred_region
          %s702 = sand.u32 %s43, 1
          %s703 = scalar_lea.sflag [#allocation13], %s702
          %s704 = sand.u32 %s250, 1
          %s705 = smul.addr %s704, 24
          %s706 = scalar_lea.vmem [#allocation14], %s705
          %s708 = ssub.s32 384, 384
          %709 = vsyncadd %s703, %s708
          %s710 = sadd.s32 %s52, %s51
          %s711 = smul.addr %s50, 6
          %s712 = sadd.s32 %s710, %s711
          %s713 = smul.addr %s712, 128
          %s714 = scalar_lea.hbm %s6, %s713
          %s715 = sshll.u32 %s706, 4
          %s716 = int_to_ptr.vmem [resolvable:$true] %s715
          %721 = dma.hbm_to_vmem [thread:$0]  %s714, 384, %s716, %s703, 256, 128, 8
        $region72: #{tpu_custom_call.1} parent=43 // pred_fallthru
          _
      $region44: #{tpu_custom_call.1} parent=5 // pred_fallthru
        _
      %p722 = scmp.le.s32.totalorder 1, %s43
      %p723 = scmp.lt.s32.totalorder %s43, 5
      %p724 = pnand %p722, %p723
      %p725 = pneg %p724
      // Predicated region
      $region73: #{tpu_custom_call.1} parent=5 // pred_check
        _
      $region74: #{tpu_custom_call.1} parent=5 // pred_check_branch
        %727 = sbr.rel (%p724) target = $region76
      $region75: #{tpu_custom_call.1} parent=5 // pred_region
        %s728 = ssub.s32 %s43, 1
        %s729 = sand.u32 %s77, 1
        %s730 = scalar_lea.sflag [#allocation4], %s729
        %s731 = sand.u32 %s77, 1
        %s732 = smul.addr %s731, 8
        %s733 = scalar_lea.vmem [#allocation3], %s732
        // Predicated region
        $region77: #{tpu_custom_call.1} parent=75 // pred_check
          %p734 = pneg %p90
        $region78: #{tpu_custom_call.1} parent=75 // pred_check_branch
          %736 = sbr.rel (%p734) target = $region80
        $region79: #{tpu_custom_call.1} parent=75 // pred_region
          %737 = dma.done %s730, 128
        $region80: #{tpu_custom_call.1} parent=75 // pred_fallthru
          _
        %s738 = sand.u32 %s48, 1
        %s739 = scalar_lea.sflag [#allocation7], %s738
        %s740 = sand.u32 %s105, 1
        %s741 = smul.addr %s740, 16
        %s742 = scalar_lea.vmem [#allocation6], %s741
        // Predicated region
        $region81: #{tpu_custom_call.1} parent=75 // pred_check
          %p743 = pneg %p118
        $region82: #{tpu_custom_call.1} parent=75 // pred_check_branch
          %745 = sbr.rel (%p743) target = $region84
        $region83: #{tpu_custom_call.1} parent=75 // pred_region
          %746 = dma.done %s739, 256
        $region84: #{tpu_custom_call.1} parent=75 // pred_fallthru
          _
        %s747 = sand.u32 %s48, 1
        %s748 = scalar_lea.sflag [#allocation7], %s747
        %s749 = sand.u32 %s133, 1
        %s750 = smul.addr %s749, 16
        %s751 = scalar_lea.vmem [#allocation8], %s750
        // Predicated region
        $region85: #{tpu_custom_call.1} parent=75 // pred_check
          %p752 = pneg %p146
        $region86: #{tpu_custom_call.1} parent=75 // pred_check_branch
          %754 = sbr.rel (%p752) target = $region88
        $region87: #{tpu_custom_call.1} parent=75 // pred_region
          %755 = dma.done %s748, 256
        $region88: #{tpu_custom_call.1} parent=75 // pred_fallthru
          _
        %s756 = sand.u32 %s48, 1
        %s757 = scalar_lea.sflag [#allocation10], %s756
        %s758 = sand.u32 %s163, 1
        %s759 = smul.addr %s758, 128
        %s760 = scalar_lea.vmem [#allocation9], %s759
        // Predicated region
        $region89: #{tpu_custom_call.1} parent=75 // pred_check
          %p761 = pneg %p176
        $region90: #{tpu_custom_call.1} parent=75 // pred_check_branch
          %763 = sbr.rel (%p761) target = $region92
        $region91: #{tpu_custom_call.1} parent=75 // pred_region
          %764 = dma.done %s757, 2048
        $region92: #{tpu_custom_call.1} parent=75 // pred_fallthru
          _
        %s765 = sand.u32 %s48, 1
        %s766 = scalar_lea.sflag [#allocation10], %s765
        %s767 = sand.u32 %s193, 1
        %s768 = smul.addr %s767, 8
        %s769 = scalar_lea.vmem [#allocation11], %s768
        // Predicated region
        $region93: #{tpu_custom_call.1} parent=75 // pred_check
          %p770 = pneg %p206
        $region94: #{tpu_custom_call.1} parent=75 // pred_check_branch
          %772 = sbr.rel (%p770) target = $region96
        $region95: #{tpu_custom_call.1} parent=75 // pred_region
          %773 = dma.done %s766, 128
        $region96: #{tpu_custom_call.1} parent=75 // pred_fallthru
          _
        %s774 = sand.u32 %s48, 1
        %s775 = scalar_lea.sflag [#allocation13], %s774
        %s776 = sand.u32 %s223, 1
        %s777 = smul.addr %s776, 8
        %s778 = scalar_lea.vmem [#allocation12], %s777
        // Predicated region
        $region97: #{tpu_custom_call.1} parent=75 // pred_check
          %p779 = pneg %p236
        $region98: #{tpu_custom_call.1} parent=75 // pred_check_branch
          %781 = sbr.rel (%p779) target = $region100
        $region99: #{tpu_custom_call.1} parent=75 // pred_region
          %782 = dma.done %s775, 128
        $region100: #{tpu_custom_call.1} parent=75 // pred_fallthru
          _
        %s783 = sand.u32 %s48, 1
        %s784 = scalar_lea.sflag [#allocation13], %s783
        %s785 = sand.u32 %s253, 1
        %s786 = smul.addr %s785, 24
        %s787 = scalar_lea.vmem [#allocation14], %s786
        // Predicated region
        $region101: #{tpu_custom_call.1} parent=75 // pred_check
          %p788 = pneg %p266
        $region102: #{tpu_custom_call.1} parent=75 // pred_check_branch
          %790 = sbr.rel (%p788) target = $region104
        $region103: #{tpu_custom_call.1} parent=75 // pred_region
          %791 = dma.done %s784, 384
        $region104: #{tpu_custom_call.1} parent=75 // pred_fallthru
          _
        // Predicated region
        $region105: #{tpu_custom_call.1} parent=75 // pred_check
          %p792 = pneg %p350
        $region106: #{tpu_custom_call.1} parent=75 // pred_check_branch
          %794 = sbr.rel (%p792) target = $region108
        $region107: #{tpu_custom_call.1} parent=75 // pred_region
          %795 = dma.done [#allocation16], 16
        $region108: #{tpu_custom_call.1} parent=75 // pred_fallthru
          _
        // Predicated region
        $region109: #{tpu_custom_call.1} parent=75 // pred_check
          %p796 = pneg %p371
        $region110: #{tpu_custom_call.1} parent=75 // pred_check_branch
          %798 = sbr.rel (%p796) target = $region112
        $region111: #{tpu_custom_call.1} parent=75 // pred_region
          %799 = dma.done [#allocation16], 256
        $region112: #{tpu_custom_call.1} parent=75 // pred_fallthru
          _
        // Predicated region
        $region113: #{tpu_custom_call.1} parent=75 // pred_check
          %p800 = pneg %p392
        $region114: #{tpu_custom_call.1} parent=75 // pred_check_branch
          %802 = sbr.rel (%p800) target = $region116
        $region115: #{tpu_custom_call.1} parent=75 // pred_region
          %803 = dma.done [#allocation19], 256
        $region116: #{tpu_custom_call.1} parent=75 // pred_fallthru
          _
        %s804 = sand.u32 %s77, 1
        %s805 = scalar_lea.sflag [#allocation4], %s804
        %s806 = sand.u32 %s77, 1
        %s807 = smul.addr %s806, 8
        %s808 = scalar_lea.vmem [#allocation3], %s807
        %p809 = pneg %p90
        %p810 = pneg %p87
        %s811 = sand.u32 %s48, 1
        %s812 = scalar_lea.sflag [#allocation7], %s811
        %s813 = sand.u32 %s105, 1
        %s814 = smul.addr %s813, 16
        %s815 = scalar_lea.vmem [#allocation6], %s814
        %p816 = pneg %p118
        %p817 = pneg %p115
        %s818 = sand.u32 %s48, 1
        %s819 = scalar_lea.sflag [#allocation7], %s818
        %s820 = sand.u32 %s133, 1
        %s821 = smul.addr %s820, 16
        %s822 = scalar_lea.vmem [#allocation8], %s821
        %p823 = pneg %p146
        %p824 = pneg %p143
        %s825 = sand.u32 %s48, 1
        %s826 = scalar_lea.sflag [#allocation10], %s825
        %s827 = sand.u32 %s163, 1
        %s828 = smul.addr %s827, 128
        %s829 = scalar_lea.vmem [#allocation9], %s828
        %p830 = pneg %p176
        %p831 = pneg %p173
        %s832 = sand.u32 %s48, 1
        %s833 = scalar_lea.sflag [#allocation10], %s832
        %s834 = sand.u32 %s193, 1
        %s835 = smul.addr %s834, 8
        %s836 = scalar_lea.vmem [#allocation11], %s835
        %p837 = pneg %p206
        %p838 = pneg %p203
        %s839 = sand.u32 %s48, 1
        %s840 = scalar_lea.sflag [#allocation13], %s839
        %s841 = sand.u32 %s223, 1
        %s842 = smul.addr %s841, 8
        %s843 = scalar_lea.vmem [#allocation12], %s842
        %p844 = pneg %p236
        %p845 = pneg %p233
        %s846 = sand.u32 %s48, 1
        %s847 = scalar_lea.sflag [#allocation13], %s846
        %s848 = sand.u32 %s253, 1
        %s849 = smul.addr %s848, 24
        %s850 = scalar_lea.vmem [#allocation14], %s849
        %p851 = pneg %p266
        %p852 = pneg %p263
        %p853 = pneg %p287
        %p854 = pneg %p284
        %p855 = pneg %p308
        %p856 = pneg %p305
        %p857 = pneg %p329
        %p858 = pneg %p326
        %p859 = pneg %p350
        %p860 = pneg %p347
        %p861 = pneg %p371
        %p862 = pneg %p368
        %p863 = pneg %p392
        %p864 = pneg %p389
        %p865 = pneg %p413
        %p866 = pneg %p410
        %p867 = pneg %p441
        %p868 = pneg %p438
        %s869 = sand.u32 %s428, 1
        %s870 = scalar_lea.sflag [#allocation5], %s869
        %s871 = sand.u32 %s428, 1
        %s872 = smul.addr %s871, 8
        %s873 = scalar_lea.vmem [#allocation20], %s872
        %p874 = pneg %p469
        %p875 = pneg %p466
        %s876 = sand.u32 %s48, 1
        %s877 = scalar_lea.sflag [#allocation22], %s876
        %s878 = sand.u32 %s456, 1
        %s879 = smul.addr %s878, 24
        %s880 = scalar_lea.vmem [#allocation21], %s879
        %p881 = pneg %p497
        %p882 = pneg %p494
        %s883 = sand.u32 %s48, 1
        %s884 = scalar_lea.sflag [#allocation22], %s883
        %s885 = sand.u32 %s484, 1
        %s886 = smul.addr %s885, 24
        %s887 = scalar_lea.vmem [#allocation23], %s886
        %s888 = smul.u32 2, %s55
        %s889 = smul.u32 2, %s55
        %s890 = smul.u32 8, %s54
        %s891 = smul.u32 2, %s55
        %p893 = scmp.eq.s32.totalorder %s55, 0
        // Predicated region
        $region117: #{tpu_custom_call.1} parent=75 // pred_check
          %p894 = pneg %p893
        $region118: #{tpu_custom_call.1} parent=75 // pred_check_branch
          %896 = sbr.rel (%p894) target = $region120
        $region119: #{tpu_custom_call.1} parent=75 // pred_region
          %vm897 = vcmask 261120
          %898 = vst.msk [vmem:[%s873] sm:$0xff] %vm897, 0.0
          %899 = vst.msk [vmem:[#allocation2] sm:$0xff] %vm897, 0.0
          %900 = vst.msk [vmem:[#allocation2 + $0x8] sm:$0xff] %vm897, 0.0
          %901 = vst.msk [vmem:[#allocation2 + $0x10] sm:$0xff] %vm897, 0.0
        $region120: #{tpu_custom_call.1} parent=75 // pred_fallthru
          _
        %v902 = vld [vmem:[%s733] sm:$0xff]
        %v903 = vld [vmem:[%s742] sm:$0xff]
        %v904 = vld [vmem:[%s742 + $0x8] sm:$0xff]
        %v905 = vld [vmem:[%s751] sm:$0xff]
        %v906 = vld [vmem:[%s751 + $0x8] sm:$0xff]
        %v907 = vld [vmem:[%s760] sm:$0xff]
        %v908 = vld [vmem:[%s760 + $0x8] sm:$0xff]
        %v909 = vld [vmem:[%s760 + $0x10] sm:$0xff]
        %v910 = vld [vmem:[%s760 + $0x18] sm:$0xff]
        %v911 = vld [vmem:[%s760 + $0x20] sm:$0xff]
        %v912 = vld [vmem:[%s760 + $0x28] sm:$0xff]
        %v913 = vld [vmem:[%s760 + $0x30] sm:$0xff]
        %v914 = vld [vmem:[%s760 + $0x38] sm:$0xff]
        %v915 = vld [vmem:[%s760 + $0x40] sm:$0xff]
        %v916 = vld [vmem:[%s760 + $0x48] sm:$0xff]
        %v917 = vld [vmem:[%s760 + $0x50] sm:$0xff]
        %v918 = vld [vmem:[%s760 + $0x58] sm:$0xff]
        %v919 = vld [vmem:[%s760 + $0x60] sm:$0xff]
        %v920 = vld [vmem:[%s760 + $0x68] sm:$0xff]
        %v921 = vld [vmem:[%s760 + $0x70] sm:$0xff]
        %v922 = vld [vmem:[%s760 + $0x78] sm:$0xff]
        %v923 = vpack.c.bf16 %v908, %v907
        %v924 = vpack.c.bf16 %v910, %v909
        %v925 = vpack.c.bf16 %v912, %v911
        %v926 = vpack.c.bf16 %v914, %v913
        %v927 = vpack.c.bf16 %v916, %v915
        %v928 = vpack.c.bf16 %v918, %v917
        %v929 = vpack.c.bf16 %v920, %v919
        %v930 = vpack.c.bf16 %v922, %v921
        %v931 = vld [vmem:[%s7] sm:$0xf]
        %v932 = vld [vmem:[%s7 + $0x4] sm:$0xf]
        %v933 = vld [vmem:[%s7 + $0x8] sm:$0xf]
        %v934 = vld [vmem:[%s7 + $0xc] sm:$0xf]
        %v935 = vld [vmem:[%s8] sm:$0x1]
        %v937 = vlaneseq
        %v938 = vshrl.u32 %v937, 7
        %v939 = vsub.s32 0, %v938
        %v940 = vrot.slane %v935, %v939
        %v946 = vunpack.c.l.b16 %v931
        %v947 = vunpack.c.l.b16 %v932
        %v948 = vunpack.c.l.b16 %v933
        %v949 = vunpack.c.l.b16 %v934
        %v950 = vpack.c.b16 %v947, %v946
        %v951 = vpack.c.b16 %v949, %v948
        %vm954 = vcmask 261120
        %v956 = vsel %vm954, %v923, 0
        %v959 = vsel %vm954, %v924, 0
        %v962 = vsel %vm954, %v925, 0
        %v965 = vsel %vm954, %v926, 0
        %v968 = vsel %vm954, %v927, 0
        %v971 = vsel %vm954, %v928, 0
        %v974 = vsel %vm954, %v929, 0
        %v977 = vsel %vm954, %v930, 0
        %979 = vmatprep.subr.bf16.mxu0 0
        %980 = vmatpush1.bf16.msra.mxu0 %v950
        %981 = vmatprep.subr.bf16.mxu0 0
        %982 = vmatpush1.bf16.msra.mxu0 %v951
        %983 = vmatprep.subr.bf16.mxu0 0
        %984 = vmatpush1.bf16.msra.mxu0 0
        %985 = vmatprep.subr.bf16.mxu0 0
        %986 = vmatpush1.bf16.msra.mxu0 0
        %987 = vmatprep.subr.bf16.mxu0 0
        %988 = vmatpush1.bf16.msra.mxu0 0
        %989 = vmatprep.subr.bf16.mxu0 0
        %990 = vmatpush1.bf16.msra.mxu0 0
        %991 = vmatprep.subr.bf16.mxu0 0
        %992 = vmatpush1.bf16.msra.mxu0 0
        %993 = vmatprep.subr.bf16.mxu0 0
        %994 = vmatpush1.bf16.msra.mxu0 0
        %995 = vmatprep.subr.bf16.mxu0 0
        %996 = vmatpush1.bf16.msra.mxu0 0
        %997 = vmatprep.subr.bf16.mxu0 0
        %998 = vmatpush1.bf16.msra.mxu0 0
        %999 = vmatprep.subr.bf16.mxu0 0
        %1000 = vmatpush1.bf16.msra.mxu0 0
        %1001 = vmatprep.subr.bf16.mxu0 0
        %1002 = vmatpush1.bf16.msra.mxu0 0
        %1003 = vmatprep.subr.bf16.mxu0 0
        %1004 = vmatpush1.bf16.msra.mxu0 0
        %1005 = vmatprep.subr.bf16.mxu0 0
        %1006 = vmatpush1.bf16.msra.mxu0 0
        %1007 = vmatprep.subr.bf16.mxu0 0
        %1008 = vmatpush1.bf16.msra.mxu0 0
        %1009 = vmatprep.subr.bf16.mxu0 0
        %1010 = vmatpush1.bf16.msra.mxu0 0
        %1011 = vmatprep.mubr.bf16.mxu0 0
        %1012 = vmatmul.mubr.bf16.gmra.mrb[0].mxu0 %v956
        %v1013 = vpop.f32.mrb[0].mxu0
        %v1014 = vadd.f32 %v940, %v1013
        %v1015 = vpop.f32.mrb[0].mxu0
        %v1016 = vpop.f32.mrb[0].mxu0
        %v1017 = vadd.f32 %v940, %v1016
        %v1018 = vpop.f32.mrb[0].mxu0
        %1019 = vmatprep.mubr.bf16.mxu0 0
        %1020 = vmatmul.mubr.bf16.gmra.mrb[0].mxu0 %v959
        %v1021 = vpop.f32.mrb[0].mxu0
        %v1022 = vadd.f32 %v940, %v1021
        %v1023 = vpop.f32.mrb[0].mxu0
        %v1024 = vpop.f32.mrb[0].mxu0
        %v1025 = vadd.f32 %v940, %v1024
        %v1026 = vpop.f32.mrb[0].mxu0
        %1027 = vmatprep.mubr.bf16.mxu0 0
        %1028 = vmatmul.mubr.bf16.gmra.mrb[0].mxu0 %v962
        %v1029 = vpop.f32.mrb[0].mxu0
        %v1030 = vadd.f32 %v940, %v1029
        %v1031 = vpop.f32.mrb[0].mxu0
        %v1032 = vpop.f32.mrb[0].mxu0
        %v1033 = vadd.f32 %v940, %v1032
        %v1034 = vpop.f32.mrb[0].mxu0
        %1035 = vmatprep.mubr.bf16.mxu0 0
        %1036 = vmatmul.mubr.bf16.gmra.mrb[0].mxu0 %v965
        %v1037 = vpop.f32.mrb[0].mxu0
        %v1038 = vadd.f32 %v940, %v1037
        %v1039 = vpop.f32.mrb[0].mxu0
        %v1040 = vpop.f32.mrb[0].mxu0
        %v1041 = vadd.f32 %v940, %v1040
        %v1042 = vpop.f32.mrb[0].mxu0
        %1043 = vmatprep.mubr.bf16.mxu0 0
        %1044 = vmatmul.mubr.bf16.gmra.mrb[0].mxu0 %v968
        %v1045 = vpop.f32.mrb[0].mxu0
        %v1046 = vadd.f32 %v940, %v1045
        %v1047 = vpop.f32.mrb[0].mxu0
        %v1048 = vpop.f32.mrb[0].mxu0
        %v1049 = vadd.f32 %v940, %v1048
        %v1050 = vpop.f32.mrb[0].mxu0
        %1051 = vmatprep.mubr.bf16.mxu0 0
        %1052 = vmatmul.mubr.bf16.gmra.mrb[0].mxu0 %v971
        %v1053 = vpop.f32.mrb[0].mxu0
        %v1054 = vadd.f32 %v940, %v1053
        %v1055 = vpop.f32.mrb[0].mxu0
        %v1056 = vpop.f32.mrb[0].mxu0
        %v1057 = vadd.f32 %v940, %v1056
        %v1058 = vpop.f32.mrb[0].mxu0
        %1059 = vmatprep.mubr.bf16.mxu0 0
        %1060 = vmatmul.mubr.bf16.gmra.mrb[0].mxu0 %v974
        %v1061 = vpop.f32.mrb[0].mxu0
        %v1062 = vadd.f32 %v940, %v1061
        %v1063 = vpop.f32.mrb[0].mxu0
        %v1064 = vpop.f32.mrb[0].mxu0
        %v1065 = vadd.f32 %v940, %v1064
        %v1066 = vpop.f32.mrb[0].mxu0
        %1067 = vmatprep.mubr.bf16.mxu0 0
        %1068 = vmatmul.mubr.bf16.gmra.mrb[0].mxu0 %v977
        %v1069 = vpop.f32.mrb[0].mxu0
        %v1070 = vadd.f32 %v940, %v1069
        %v1071 = vpop.f32.mrb[0].mxu0
        %v1072 = vpop.f32.mrb[0].mxu0
        %v1073 = vadd.f32 %v940, %v1072
        %v1074 = vpop.f32.mrb[0].mxu0
        %1075 = vdwg.mxu0
        %v1076 = vmul.f32 %v1014, 0.5
        %v1077 = vmul.f32 %v1017, 0.5
        %v1078 = vmul.f32 %v1022, 0.5
        %v1079 = vmul.f32 %v1025, 0.5
        %v1080 = vmul.f32 %v1030, 0.5
        %v1081 = vmul.f32 %v1033, 0.5
        %v1082 = vmul.f32 %v1038, 0.5
        %v1083 = vmul.f32 %v1041, 0.5
        %v1084 = vmul.f32 %v1046, 0.5
        %v1085 = vmul.f32 %v1049, 0.5
        %v1086 = vmul.f32 %v1054, 0.5
        %v1087 = vmul.f32 %v1057, 0.5
        %v1088 = vmul.f32 %v1062, 0.5
        %v1089 = vmul.f32 %v1065, 0.5
        %v1090 = vmul.f32 %v1070, 0.5
        %v1091 = vmul.f32 %v1073, 0.5
        %v1092 = vmul.f32 %v1014, 0.044715
        %v1093 = vmul.f32 %v1017, 0.044715
        %v1094 = vmul.f32 %v1022, 0.044715
        %v1095 = vmul.f32 %v1025, 0.044715
        %v1096 = vmul.f32 %v1030, 0.044715
        %v1097 = vmul.f32 %v1033, 0.044715
        %v1098 = vmul.f32 %v1038, 0.044715
        %v1099 = vmul.f32 %v1041, 0.044715
        %v1100 = vmul.f32 %v1046, 0.044715
        %v1101 = vmul.f32 %v1049, 0.044715
        %v1102 = vmul.f32 %v1054, 0.044715
        %v1103 = vmul.f32 %v1057, 0.044715
        %v1104 = vmul.f32 %v1062, 0.044715
        %v1105 = vmul.f32 %v1065, 0.044715
        %v1106 = vmul.f32 %v1070, 0.044715
        %v1107 = vmul.f32 %v1073, 0.044715
        %v1108 = vmul.f32 %v1092, %v1014
        %v1109 = vmul.f32 %v1093, %v1017
        %v1110 = vmul.f32 %v1094, %v1022
        %v1111 = vmul.f32 %v1095, %v1025
        %v1112 = vmul.f32 %v1096, %v1030
        %v1113 = vmul.f32 %v1097, %v1033
        %v1114 = vmul.f32 %v1098, %v1038
        %v1115 = vmul.f32 %v1099, %v1041
        %v1116 = vmul.f32 %v1100, %v1046
        %v1117 = vmul.f32 %v1101, %v1049
        %v1118 = vmul.f32 %v1102, %v1054
        %v1119 = vmul.f32 %v1103, %v1057
        %v1120 = vmul.f32 %v1104, %v1062
        %v1121 = vmul.f32 %v1105, %v1065
        %v1122 = vmul.f32 %v1106, %v1070
        %v1123 = vmul.f32 %v1107, %v1073
        %v1124 = vmul.f32 %v1108, %v1014
        %v1125 = vmul.f32 %v1109, %v1017
        %v1126 = vmul.f32 %v1110, %v1022
        %v1127 = vmul.f32 %v1111, %v1025
        %v1128 = vmul.f32 %v1112, %v1030
        %v1129 = vmul.f32 %v1113, %v1033
        %v1130 = vmul.f32 %v1114, %v1038
        %v1131 = vmul.f32 %v1115, %v1041
        %v1132 = vmul.f32 %v1116, %v1046
        %v1133 = vmul.f32 %v1117, %v1049
        %v1134 = vmul.f32 %v1118, %v1054
        %v1135 = vmul.f32 %v1119, %v1057
        %v1136 = vmul.f32 %v1120, %v1062
        %v1137 = vmul.f32 %v1121, %v1065
        %v1138 = vmul.f32 %v1122, %v1070
        %v1139 = vmul.f32 %v1123, %v1073
        %v1140 = vadd.f32 %v1014, %v1124
        %v1141 = vadd.f32 %v1017, %v1125
        %v1142 = vadd.f32 %v1022, %v1126
        %v1143 = vadd.f32 %v1025, %v1127
        %v1144 = vadd.f32 %v1030, %v1128
        %v1145 = vadd.f32 %v1033, %v1129
        %v1146 = vadd.f32 %v1038, %v1130
        %v1147 = vadd.f32 %v1041, %v1131
        %v1148 = vadd.f32 %v1046, %v1132
        %v1149 = vadd.f32 %v1049, %v1133
        %v1150 = vadd.f32 %v1054, %v1134
        %v1151 = vadd.f32 %v1057, %v1135
        %v1152 = vadd.f32 %v1062, %v1136
        %v1153 = vadd.f32 %v1065, %v1137
        %v1154 = vadd.f32 %v1070, %v1138
        %v1155 = vadd.f32 %v1073, %v1139
        %v1156 = vmul.f32 %v1140, 0.7978846
        %v1157 = vmul.f32 %v1141, 0.7978846
        %v1158 = vmul.f32 %v1142, 0.7978846
        %v1159 = vmul.f32 %v1143, 0.7978846
        %v1160 = vmul.f32 %v1144, 0.7978846
        %v1161 = vmul.f32 %v1145, 0.7978846
        %v1162 = vmul.f32 %v1146, 0.7978846
        %v1163 = vmul.f32 %v1147, 0.7978846
        %v1164 = vmul.f32 %v1148, 0.7978846
        %v1165 = vmul.f32 %v1149, 0.7978846
        %v1166 = vmul.f32 %v1150, 0.7978846
        %v1167 = vmul.f32 %v1151, 0.7978846
        %v1168 = vmul.f32 %v1152, 0.7978846
        %v1169 = vmul.f32 %v1153, 0.7978846
        %v1170 = vmul.f32 %v1154, 0.7978846
        %v1171 = vmul.f32 %v1155, 0.7978846
        %v1172 = vtanh.pop %v1156
        %v1173 = vtanh.pop %v1157
        %v1174 = vtanh.pop %v1158
        %v1175 = vtanh.pop %v1159
        %v1176 = vtanh.pop %v1160
        %v1177 = vtanh.pop %v1161
        %v1178 = vtanh.pop %v1162
        %v1179 = vtanh.pop %v1163
        %v1180 = vtanh.pop %v1164
        %v1181 = vtanh.pop %v1165
        %v1182 = vtanh.pop %v1166
        %v1183 = vtanh.pop %v1167
        %v1184 = vtanh.pop %v1168
        %v1185 = vtanh.pop %v1169
        %v1186 = vtanh.pop %v1170
        %v1187 = vtanh.pop %v1171
        %v1188 = vadd.f32 %v1172, 1.0
        %v1189 = vadd.f32 %v1173, 1.0
        %v1190 = vadd.f32 %v1174, 1.0
        %v1191 = vadd.f32 %v1175, 1.0
        %v1192 = vadd.f32 %v1176, 1.0
        %v1193 = vadd.f32 %v1177, 1.0
        %v1194 = vadd.f32 %v1178, 1.0
        %v1195 = vadd.f32 %v1179, 1.0
        %v1196 = vadd.f32 %v1180, 1.0
        %v1197 = vadd.f32 %v1181, 1.0
        %v1198 = vadd.f32 %v1182, 1.0
        %v1199 = vadd.f32 %v1183, 1.0
        %v1200 = vadd.f32 %v1184, 1.0
        %v1201 = vadd.f32 %v1185, 1.0
        %v1202 = vadd.f32 %v1186, 1.0
        %v1203 = vadd.f32 %v1187, 1.0
        %v1204 = vmul.f32 %v1076, %v1188
        %v1205 = vmul.f32 %v1077, %v1189
        %v1206 = vmul.f32 %v1078, %v1190
        %v1207 = vmul.f32 %v1079, %v1191
        %v1208 = vmul.f32 %v1080, %v1192
        %v1209 = vmul.f32 %v1081, %v1193
        %v1210 = vmul.f32 %v1082, %v1194
        %v1211 = vmul.f32 %v1083, %v1195
        %v1212 = vmul.f32 %v1084, %v1196
        %v1213 = vmul.f32 %v1085, %v1197
        %v1214 = vmul.f32 %v1086, %v1198
        %v1215 = vmul.f32 %v1087, %v1199
        %v1216 = vmul.f32 %v1088, %v1200
        %v1217 = vmul.f32 %v1089, %v1201
        %v1218 = vmul.f32 %v1090, %v1202
        %v1219 = vmul.f32 %v1091, %v1203
        %v1221 = vcombine.high %v902, %v902
        %v1223 = vunpack.c.l.s4 1966171168
        %v1224 = vunpack.c.0.s8 %v1223
        %v1225 = vlaneseq
        %v1226 = vshrl.u32 %v1225, 7
        %v1227 = vsub.s32 %v1224, %v1226
        %v1228 = vrot.slane %v902, %v1227
        %v1230 = vunpack.c.l.s4 1966171168
        %v1231 = vunpack.c.0.s8 %v1230
        %v1232 = vlaneseq
        %v1233 = vshrl.u32 %v1232, 7
        %v1234 = vsub.s32 %v1231, %v1233
        %v1235 = vrot.slane %v1221, %v1234
        %v1236 = vcombine.high %v1228, %v1228
        %v1237 = vcombine.high %v1235, %v1235
        %v1239 = vunpack.c.l.s4 1966171168
        %v1240 = vunpack.c.0.s8 %v1239
        %v1241 = vlaneseq
        %v1242 = vshrl.u32 %v1241, 7
        %v1243 = vsub.s32 %v1240, %v1242
        %v1244 = vrot.slane %v1228, %v1243
        %v1246 = vunpack.c.l.s4 1966171168
        %v1247 = vunpack.c.0.s8 %v1246
        %v1248 = vlaneseq
        %v1249 = vshrl.u32 %v1248, 7
        %v1250 = vsub.s32 %v1247, %v1249
        %v1251 = vrot.slane %v1235, %v1250
        %v1253 = vunpack.c.l.s4 1966171168
        %v1254 = vunpack.c.0.s8 %v1253
        %v1255 = vlaneseq
        %v1256 = vshrl.u32 %v1255, 7
        %v1257 = vsub.s32 %v1254, %v1256
        %v1258 = vrot.slane %v1236, %v1257
        %v1260 = vunpack.c.l.s4 1966171168
        %v1261 = vunpack.c.0.s8 %v1260
        %v1262 = vlaneseq
        %v1263 = vshrl.u32 %v1262, 7
        %v1264 = vsub.s32 %v1261, %v1263
        %v1265 = vrot.slane %v1237, %v1264
        %v1266 = vcombine.high %v1244, %v1244
        %v1267 = vcombine.high %v1251, %v1251
        %v1268 = vcombine.high %v1258, %v1258
        %v1269 = vcombine.high %v1265, %v1265
        %v1270 = vlaneseq
        %v1271 = vshrl.u32 %v1270, 7
        %v1272 = vsub.s32 0, %v1271
        %v1273 = vrot.slane %v1244, %v1272
        %v1274 = vlaneseq
        %v1275 = vshrl.u32 %v1274, 7
        %v1276 = vsub.s32 0, %v1275
        %v1277 = vrot.slane %v1258, %v1276
        %v1278 = vlaneseq
        %v1279 = vshrl.u32 %v1278, 7
        %v1280 = vsub.s32 0, %v1279
        %v1281 = vrot.slane %v1266, %v1280
        %v1282 = vlaneseq
        %v1283 = vshrl.u32 %v1282, 7
        %v1284 = vsub.s32 0, %v1283
        %v1285 = vrot.slane %v1268, %v1284
        %v1286 = vlaneseq
        %v1287 = vshrl.u32 %v1286, 7
        %v1288 = vsub.s32 0, %v1287
        %v1289 = vrot.slane %v1251, %v1288
        %v1290 = vlaneseq
        %v1291 = vshrl.u32 %v1290, 7
        %v1292 = vsub.s32 0, %v1291
        %v1293 = vrot.slane %v1265, %v1292
        %v1294 = vlaneseq
        %v1295 = vshrl.u32 %v1294, 7
        %v1296 = vsub.s32 0, %v1295
        %v1297 = vrot.slane %v1267, %v1296
        %v1298 = vlaneseq
        %v1299 = vshrl.u32 %v1298, 7
        %v1300 = vsub.s32 0, %v1299
        %v1301 = vrot.slane %v1269, %v1300
        %v1310 = vmul.f32 %v1273, %v903
        %v1311 = vmul.f32 %v1273, %v904
        %v1312 = vmul.f32 %v1277, %v903
        %v1313 = vmul.f32 %v1277, %v904
        %v1314 = vmul.f32 %v1281, %v903
        %v1315 = vmul.f32 %v1281, %v904
        %v1316 = vmul.f32 %v1285, %v903
        %v1317 = vmul.f32 %v1285, %v904
        %v1318 = vmul.f32 %v1289, %v903
        %v1319 = vmul.f32 %v1289, %v904
        %v1320 = vmul.f32 %v1293, %v903
        %v1321 = vmul.f32 %v1293, %v904
        %v1322 = vmul.f32 %v1297, %v903
        %v1323 = vmul.f32 %v1297, %v904
        %v1324 = vmul.f32 %v1301, %v903
        %v1325 = vmul.f32 %v1301, %v904
        %v1326 = vmul.f32 %v1310, %v1204
        %v1327 = vmul.f32 %v1311, %v1205
        %v1328 = vmul.f32 %v1312, %v1206
        %v1329 = vmul.f32 %v1313, %v1207
        %v1330 = vmul.f32 %v1314, %v1208
        %v1331 = vmul.f32 %v1315, %v1209
        %v1332 = vmul.f32 %v1316, %v1210
        %v1333 = vmul.f32 %v1317, %v1211
        %v1334 = vmul.f32 %v1318, %v1212
        %v1335 = vmul.f32 %v1319, %v1213
        %v1336 = vmul.f32 %v1320, %v1214
        %v1337 = vmul.f32 %v1321, %v1215
        %v1338 = vmul.f32 %v1322, %v1216
        %v1339 = vmul.f32 %v1323, %v1217
        %v1340 = vmul.f32 %v1324, %v1218
        %v1341 = vmul.f32 %v1325, %v1219
        %v1342 = vpack.c.bf16 %v1327, %v1326
        %v1343 = vpack.c.bf16 %v1329, %v1328
        %v1344 = vpack.c.bf16 %v1331, %v1330
        %v1345 = vpack.c.bf16 %v1333, %v1332
        %v1346 = vpack.c.bf16 %v1335, %v1334
        %v1347 = vpack.c.bf16 %v1337, %v1336
        %v1348 = vpack.c.bf16 %v1339, %v1338
        %v1349 = vpack.c.bf16 %v1341, %v1340
        %v1350 = vld [vmem:[#allocation17] sm:$0xf]
        %v1351 = vld [vmem:[#allocation17 + $0x4] sm:$0xf]
        %v1352 = vld [vmem:[#allocation17 + $0x8] sm:$0xf]
        %v1353 = vld [vmem:[#allocation17 + $0xc] sm:$0xf]
        %v1358 = vunpack.c.l.b16 %v1350
        %v1359 = vunpack.c.l.b16 %v1351
        %v1360 = vunpack.c.l.b16 %v1352
        %v1361 = vunpack.c.l.b16 %v1353
        %v1362 = vpack.c.b16 %v1359, %v1358
        %v1363 = vpack.c.b16 %v1361, %v1360
        %v1367 = vsel %vm954, %v1342, 0
        %v1370 = vsel %vm954, %v1343, 0
        %v1373 = vsel %vm954, %v1344, 0
        %v1376 = vsel %vm954, %v1345, 0
        %v1379 = vsel %vm954, %v1346, 0
        %v1382 = vsel %vm954, %v1347, 0
        %v1385 = vsel %vm954, %v1348, 0
        %v1388 = vsel %vm954, %v1349, 0
        %1390 = vmatprep.subr.bf16.mxu0 0
        %1391 = vmatpush1.bf16.msra.mxu0 %v1362
        %1392 = vmatprep.subr.bf16.mxu0 0
        %1393 = vmatpush1.bf16.msra.mxu0 %v1363
        %1394 = vmatprep.subr.bf16.mxu0 0
        %1395 = vmatpush1.bf16.msra.mxu0 0
        %1396 = vmatprep.subr.bf16.mxu0 0
        %1397 = vmatpush1.bf16.msra.mxu0 0
        %1398 = vmatprep.subr.bf16.mxu0 0
        %1399 = vmatpush1.bf16.msra.mxu0 0
        %1400 = vmatprep.subr.bf16.mxu0 0
        %1401 = vmatpush1.bf16.msra.mxu0 0
        %1402 = vmatprep.subr.bf16.mxu0 0
        %1403 = vmatpush1.bf16.msra.mxu0 0
        %1404 = vmatprep.subr.bf16.mxu0 0
        %1405 = vmatpush1.bf16.msra.mxu0 0
        %1406 = vmatprep.subr.bf16.mxu0 0
        %1407 = vmatpush1.bf16.msra.mxu0 0
        %1408 = vmatprep.subr.bf16.mxu0 0
        %1409 = vmatpush1.bf16.msra.mxu0 0
        %1410 = vmatprep.subr.bf16.mxu0 0
        %1411 = vmatpush1.bf16.msra.mxu0 0
        %1412 = vmatprep.subr.bf16.mxu0 0
        %1413 = vmatpush1.bf16.msra.mxu0 0
        %1414 = vmatprep.subr.bf16.mxu0 0
        %1415 = vmatpush1.bf16.msra.mxu0 0
        %1416 = vmatprep.subr.bf16.mxu0 0
        %1417 = vmatpush1.bf16.msra.mxu0 0
        %1418 = vmatprep.subr.bf16.mxu0 0
        %1419 = vmatpush1.bf16.msra.mxu0 0
        %1420 = vmatprep.subr.bf16.mxu0 0
        %1421 = vmatpush1.bf16.msra.mxu0 0
        %1422 = vmatprep.mubr.bf16.mxu0 0
        %1423 = vmatmul.mubr.bf16.gmra.mrb[0].mxu0 %v1367
        %v1424 = vpop.f32.mrb[0].mxu0
        %v1425 = vadd.f32 0.0, %v1424
        %v1426 = vpop.f32.mrb[0].mxu0
        %v1427 = vpop.f32.mrb[0].mxu0
        %v1428 = vadd.f32 0.0, %v1427
        %v1429 = vpop.f32.mrb[0].mxu0
        %1430 = vmatprep.mubr.bf16.mxu0 0
        %1431 = vmatmul.mubr.bf16.gmra.mrb[0].mxu0 %v1370
        %v1432 = vpop.f32.mrb[0].mxu0
        %v1433 = vadd.f32 0.0, %v1432
        %v1434 = vpop.f32.mrb[0].mxu0
        %v1435 = vpop.f32.mrb[0].mxu0
        %v1436 = vadd.f32 0.0, %v1435
        %v1437 = vpop.f32.mrb[0].mxu0
        %1438 = vmatprep.mubr.bf16.mxu0 0
        %1439 = vmatmul.mubr.bf16.gmra.mrb[0].mxu0 %v1373
        %v1440 = vpop.f32.mrb[0].mxu0
        %v1441 = vadd.f32 0.0, %v1440
        %v1442 = vpop.f32.mrb[0].mxu0
        %v1443 = vpop.f32.mrb[0].mxu0
        %v1444 = vadd.f32 0.0, %v1443
        %v1445 = vpop.f32.mrb[0].mxu0
        %1446 = vmatprep.mubr.bf16.mxu0 0
        %1447 = vmatmul.mubr.bf16.gmra.mrb[0].mxu0 %v1376
        %v1448 = vpop.f32.mrb[0].mxu0
        %v1449 = vadd.f32 0.0, %v1448
        %v1450 = vpop.f32.mrb[0].mxu0
        %v1451 = vpop.f32.mrb[0].mxu0
        %v1452 = vadd.f32 0.0, %v1451
        %v1453 = vpop.f32.mrb[0].mxu0
        %1454 = vmatprep.mubr.bf16.mxu0 0
        %1455 = vmatmul.mubr.bf16.gmra.mrb[0].mxu0 %v1379
        %v1456 = vpop.f32.mrb[0].mxu0
        %v1457 = vadd.f32 0.0, %v1456
        %v1458 = vpop.f32.mrb[0].mxu0
        %v1459 = vpop.f32.mrb[0].mxu0
        %v1460 = vadd.f32 0.0, %v1459
        %v1461 = vpop.f32.mrb[0].mxu0
        %1462 = vmatprep.mubr.bf16.mxu0 0
        %1463 = vmatmul.mubr.bf16.gmra.mrb[0].mxu0 %v1382
        %v1464 = vpop.f32.mrb[0].mxu0
        %v1465 = vadd.f32 0.0, %v1464
        %v1466 = vpop.f32.mrb[0].mxu0
        %v1467 = vpop.f32.mrb[0].mxu0
        %v1468 = vadd.f32 0.0, %v1467
        %v1469 = vpop.f32.mrb[0].mxu0
        %1470 = vmatprep.mubr.bf16.mxu0 0
        %1471 = vmatmul.mubr.bf16.gmra.mrb[0].mxu0 %v1385
        %v1472 = vpop.f32.mrb[0].mxu0
        %v1473 = vadd.f32 0.0, %v1472
        %v1474 = vpop.f32.mrb[0].mxu0
        %v1475 = vpop.f32.mrb[0].mxu0
        %v1476 = vadd.f32 0.0, %v1475
        %v1477 = vpop.f32.mrb[0].mxu0
        %1478 = vmatprep.mubr.bf16.mxu0 0
        %1479 = vmatmul.mubr.bf16.gmra.mrb[0].mxu0 %v1388
        %v1480 = vpop.f32.mrb[0].mxu0
        %v1481 = vadd.f32 0.0, %v1480
        %v1482 = vpop.f32.mrb[0].mxu0
        %v1483 = vpop.f32.mrb[0].mxu0
        %v1484 = vadd.f32 0.0, %v1483
        %v1485 = vpop.f32.mrb[0].mxu0
        %1486 = vdwg.mxu0
        %v1487 = vld [vmem:[%s769] sm:$0xff]
        %v1488 = vlaneseq
        %v1489 = vshrl.u32 %v1488, 7
        %v1490 = vsub.s32 0, %v1489
        %v1491 = vrot.slane %v1487, %v1490
        %1493 = vbcast.lane.b32.xlu0 %v1491, 256
        %v1494 = vpop.permute.xlu0 %1493
        %s1496 = sor.u32 256, 8
        %1497 = vbcast.lane.b32.xlu0 %v1491, %s1496
        %v1498 = vpop.permute.xlu0 %1497
        %v1499 = vlaneseq
        %v1500 = vshrl.u32 %v1499, 7
        %v1501 = vsub.s32 1, %v1500
        %v1502 = vrot.slane %v1487, %v1501
        %1504 = vbcast.lane.b32.xlu0 %v1502, 256
        %v1505 = vpop.permute.xlu0 %1504
        %s1507 = sor.u32 256, 8
        %1508 = vbcast.lane.b32.xlu0 %v1502, %s1507
        %v1509 = vpop.permute.xlu0 %1508
        %v1510 = vlaneseq
        %v1511 = vshrl.u32 %v1510, 7
        %v1512 = vsub.s32 2, %v1511
        %v1513 = vrot.slane %v1487, %v1512
        %1515 = vbcast.lane.b32.xlu0 %v1513, 256
        %v1516 = vpop.permute.xlu0 %1515
        %s1518 = sor.u32 256, 8
        %1519 = vbcast.lane.b32.xlu0 %v1513, %s1518
        %v1520 = vpop.permute.xlu0 %1519
        %v1521 = vlaneseq
        %v1522 = vshrl.u32 %v1521, 7
        %v1523 = vsub.s32 3, %v1522
        %v1524 = vrot.slane %v1487, %v1523
        %1526 = vbcast.lane.b32.xlu0 %v1524, 256
        %v1527 = vpop.permute.xlu0 %1526
        %s1529 = sor.u32 256, 8
        %1530 = vbcast.lane.b32.xlu0 %v1524, %s1529
        %v1531 = vpop.permute.xlu0 %1530
        %v1532 = vlaneseq
        %v1533 = vshrl.u32 %v1532, 7
        %v1534 = vsub.s32 4, %v1533
        %v1535 = vrot.slane %v1487, %v1534
        %1537 = vbcast.lane.b32.xlu0 %v1535, 256
        %v1538 = vpop.permute.xlu0 %1537
        %s1540 = sor.u32 256, 8
        %1541 = vbcast.lane.b32.xlu0 %v1535, %s1540
        %v1542 = vpop.permute.xlu0 %1541
        %v1543 = vlaneseq
        %v1544 = vshrl.u32 %v1543, 7
        %v1545 = vsub.s32 5, %v1544
        %v1546 = vrot.slane %v1487, %v1545
        %1548 = vbcast.lane.b32.xlu0 %v1546, 256
        %v1549 = vpop.permute.xlu0 %1548
        %s1551 = sor.u32 256, 8
        %1552 = vbcast.lane.b32.xlu0 %v1546, %s1551
        %v1553 = vpop.permute.xlu0 %1552
        %v1554 = vlaneseq
        %v1555 = vshrl.u32 %v1554, 7
        %v1556 = vsub.s32 6, %v1555
        %v1557 = vrot.slane %v1487, %v1556
        %1559 = vbcast.lane.b32.xlu0 %v1557, 256
        %v1560 = vpop.permute.xlu0 %1559
        %s1562 = sor.u32 256, 8
        %1563 = vbcast.lane.b32.xlu0 %v1557, %s1562
        %v1564 = vpop.permute.xlu0 %1563
        %v1565 = vlaneseq
        %v1566 = vshrl.u32 %v1565, 7
        %v1567 = vsub.s32 7, %v1566
        %v1568 = vrot.slane %v1487, %v1567
        %1570 = vbcast.lane.b32.xlu0 %v1568, 256
        %v1571 = vpop.permute.xlu0 %1570
        %s1573 = sor.u32 256, 8
        %1574 = vbcast.lane.b32.xlu0 %v1568, %s1573
        %v1575 = vpop.permute.xlu0 %1574
        %v1576 = vld [vmem:[%s778] sm:$0xff]
        %v1577 = vlaneseq
        %v1578 = vshrl.u32 %v1577, 7
        %v1579 = vsub.s32 0, %v1578
        %v1580 = vrot.slane %v1576, %v1579
        %1582 = vbcast.lane.b32.xlu0 %v1580, 256
        %v1583 = vpop.permute.xlu0 %1582
        %s1585 = sor.u32 256, 8
        %1586 = vbcast.lane.b32.xlu0 %v1580, %s1585
        %v1587 = vpop.permute.xlu0 %1586
        %v1588 = vlaneseq
        %v1589 = vshrl.u32 %v1588, 7
        %v1590 = vsub.s32 1, %v1589
        %v1591 = vrot.slane %v1576, %v1590
        %1593 = vbcast.lane.b32.xlu0 %v1591, 256
        %v1594 = vpop.permute.xlu0 %1593
        %s1596 = sor.u32 256, 8
        %1597 = vbcast.lane.b32.xlu0 %v1591, %s1596
        %v1598 = vpop.permute.xlu0 %1597
        %v1599 = vlaneseq
        %v1600 = vshrl.u32 %v1599, 7
        %v1601 = vsub.s32 2, %v1600
        %v1602 = vrot.slane %v1576, %v1601
        %1604 = vbcast.lane.b32.xlu0 %v1602, 256
        %v1605 = vpop.permute.xlu0 %1604
        %s1607 = sor.u32 256, 8
        %1608 = vbcast.lane.b32.xlu0 %v1602, %s1607
        %v1609 = vpop.permute.xlu0 %1608
        %v1610 = vlaneseq
        %v1611 = vshrl.u32 %v1610, 7
        %v1612 = vsub.s32 3, %v1611
        %v1613 = vrot.slane %v1576, %v1612
        %1615 = vbcast.lane.b32.xlu0 %v1613, 256
        %v1616 = vpop.permute.xlu0 %1615
        %s1618 = sor.u32 256, 8
        %1619 = vbcast.lane.b32.xlu0 %v1613, %s1618
        %v1620 = vpop.permute.xlu0 %1619
        %v1621 = vlaneseq
        %v1622 = vshrl.u32 %v1621, 7
        %v1623 = vsub.s32 4, %v1622
        %v1624 = vrot.slane %v1576, %v1623
        %1626 = vbcast.lane.b32.xlu0 %v1624, 256
        %v1627 = vpop.permute.xlu0 %1626
        %s1629 = sor.u32 256, 8
        %1630 = vbcast.lane.b32.xlu0 %v1624, %s1629
        %v1631 = vpop.permute.xlu0 %1630
        %v1632 = vlaneseq
        %v1633 = vshrl.u32 %v1632, 7
        %v1634 = vsub.s32 5, %v1633
        %v1635 = vrot.slane %v1576, %v1634
        %1637 = vbcast.lane.b32.xlu0 %v1635, 256
        %v1638 = vpop.permute.xlu0 %1637
        %s1640 = sor.u32 256, 8
        %1641 = vbcast.lane.b32.xlu0 %v1635, %s1640
        %v1642 = vpop.permute.xlu0 %1641
        %v1643 = vlaneseq
        %v1644 = vshrl.u32 %v1643, 7
        %v1645 = vsub.s32 6, %v1644
        %v1646 = vrot.slane %v1576, %v1645
        %1648 = vbcast.lane.b32.xlu0 %v1646, 256
        %v1649 = vpop.permute.xlu0 %1648
        %s1651 = sor.u32 256, 8
        %1652 = vbcast.lane.b32.xlu0 %v1646, %s1651
        %v1653 = vpop.permute.xlu0 %1652
        %v1654 = vlaneseq
        %v1655 = vshrl.u32 %v1654, 7
        %v1656 = vsub.s32 7, %v1655
        %v1657 = vrot.slane %v1576, %v1656
        %1659 = vbcast.lane.b32.xlu0 %v1657, 256
        %v1660 = vpop.permute.xlu0 %1659
        %s1662 = sor.u32 256, 8
        %1663 = vbcast.lane.b32.xlu0 %v1657, %s1662
        %v1664 = vpop.permute.xlu0 %1663
        %v1665 = vmul.f32 %v1425, 0.5
        %v1666 = vmul.f32 %v1428, 0.5
        %v1667 = vmul.f32 %v1433, 0.5
        %v1668 = vmul.f32 %v1436, 0.5
        %v1669 = vmul.f32 %v1441, 0.5
        %v1670 = vmul.f32 %v1444, 0.5
        %v1671 = vmul.f32 %v1449, 0.5
        %v1672 = vmul.f32 %v1452, 0.5
        %v1673 = vmul.f32 %v1457, 0.5
        %v1674 = vmul.f32 %v1460, 0.5
        %v1675 = vmul.f32 %v1465, 0.5
        %v1676 = vmul.f32 %v1468, 0.5
        %v1677 = vmul.f32 %v1473, 0.5
        %v1678 = vmul.f32 %v1476, 0.5
        %v1679 = vmul.f32 %v1481, 0.5
        %v1680 = vmul.f32 %v1484, 0.5
        %v1681 = vmul.f32 %v1425, 0.044715
        %v1682 = vmul.f32 %v1428, 0.044715
        %v1683 = vmul.f32 %v1433, 0.044715
        %v1684 = vmul.f32 %v1436, 0.044715
        %v1685 = vmul.f32 %v1441, 0.044715
        %v1686 = vmul.f32 %v1444, 0.044715
        %v1687 = vmul.f32 %v1449, 0.044715
        %v1688 = vmul.f32 %v1452, 0.044715
        %v1689 = vmul.f32 %v1457, 0.044715
        %v1690 = vmul.f32 %v1460, 0.044715
        %v1691 = vmul.f32 %v1465, 0.044715
        %v1692 = vmul.f32 %v1468, 0.044715
        %v1693 = vmul.f32 %v1473, 0.044715
        %v1694 = vmul.f32 %v1476, 0.044715
        %v1695 = vmul.f32 %v1481, 0.044715
        %v1696 = vmul.f32 %v1484, 0.044715
        %v1697 = vmul.f32 %v1681, %v1425
        %v1698 = vmul.f32 %v1682, %v1428
        %v1699 = vmul.f32 %v1683, %v1433
        %v1700 = vmul.f32 %v1684, %v1436
        %v1701 = vmul.f32 %v1685, %v1441
        %v1702 = vmul.f32 %v1686, %v1444
        %v1703 = vmul.f32 %v1687, %v1449
        %v1704 = vmul.f32 %v1688, %v1452
        %v1705 = vmul.f32 %v1689, %v1457
        %v1706 = vmul.f32 %v1690, %v1460
        %v1707 = vmul.f32 %v1691, %v1465
        %v1708 = vmul.f32 %v1692, %v1468
        %v1709 = vmul.f32 %v1693, %v1473
        %v1710 = vmul.f32 %v1694, %v1476
        %v1711 = vmul.f32 %v1695, %v1481
        %v1712 = vmul.f32 %v1696, %v1484
        %v1713 = vmul.f32 %v1697, %v1425
        %v1714 = vmul.f32 %v1698, %v1428
        %v1715 = vmul.f32 %v1699, %v1433
        %v1716 = vmul.f32 %v1700, %v1436
        %v1717 = vmul.f32 %v1701, %v1441
        %v1718 = vmul.f32 %v1702, %v1444
        %v1719 = vmul.f32 %v1703, %v1449
        %v1720 = vmul.f32 %v1704, %v1452
        %v1721 = vmul.f32 %v1705, %v1457
        %v1722 = vmul.f32 %v1706, %v1460
        %v1723 = vmul.f32 %v1707, %v1465
        %v1724 = vmul.f32 %v1708, %v1468
        %v1725 = vmul.f32 %v1709, %v1473
        %v1726 = vmul.f32 %v1710, %v1476
        %v1727 = vmul.f32 %v1711, %v1481
        %v1728 = vmul.f32 %v1712, %v1484
        %v1729 = vadd.f32 %v1425, %v1713
        %v1730 = vadd.f32 %v1428, %v1714
        %v1731 = vadd.f32 %v1433, %v1715
        %v1732 = vadd.f32 %v1436, %v1716
        %v1733 = vadd.f32 %v1441, %v1717
        %v1734 = vadd.f32 %v1444, %v1718
        %v1735 = vadd.f32 %v1449, %v1719
        %v1736 = vadd.f32 %v1452, %v1720
        %v1737 = vadd.f32 %v1457, %v1721
        %v1738 = vadd.f32 %v1460, %v1722
        %v1739 = vadd.f32 %v1465, %v1723
        %v1740 = vadd.f32 %v1468, %v1724
        %v1741 = vadd.f32 %v1473, %v1725
        %v1742 = vadd.f32 %v1476, %v1726
        %v1743 = vadd.f32 %v1481, %v1727
        %v1744 = vadd.f32 %v1484, %v1728
        %v1745 = vmul.f32 %v1729, 0.7978846
        %v1746 = vmul.f32 %v1730, 0.7978846
        %v1747 = vmul.f32 %v1731, 0.7978846
        %v1748 = vmul.f32 %v1732, 0.7978846
        %v1749 = vmul.f32 %v1733, 0.7978846
        %v1750 = vmul.f32 %v1734, 0.7978846
        %v1751 = vmul.f32 %v1735, 0.7978846
        %v1752 = vmul.f32 %v1736, 0.7978846
        %v1753 = vmul.f32 %v1737, 0.7978846
        %v1754 = vmul.f32 %v1738, 0.7978846
        %v1755 = vmul.f32 %v1739, 0.7978846
        %v1756 = vmul.f32 %v1740, 0.7978846
        %v1757 = vmul.f32 %v1741, 0.7978846
        %v1758 = vmul.f32 %v1742, 0.7978846
        %v1759 = vmul.f32 %v1743, 0.7978846
        %v1760 = vmul.f32 %v1744, 0.7978846
        %v1761 = vtanh.pop %v1745
        %v1762 = vtanh.pop %v1746
        %v1763 = vtanh.pop %v1747
        %v1764 = vtanh.pop %v1748
        %v1765 = vtanh.pop %v1749
        %v1766 = vtanh.pop %v1750
        %v1767 = vtanh.pop %v1751
        %v1768 = vtanh.pop %v1752
        %v1769 = vtanh.pop %v1753
        %v1770 = vtanh.pop %v1754
        %v1771 = vtanh.pop %v1755
        %v1772 = vtanh.pop %v1756
        %v1773 = vtanh.pop %v1757
        %v1774 = vtanh.pop %v1758
        %v1775 = vtanh.pop %v1759
        %v1776 = vtanh.pop %v1760
        %v1777 = vadd.f32 %v1761, 1.0
        %v1778 = vadd.f32 %v1762, 1.0
        %v1779 = vadd.f32 %v1763, 1.0
        %v1780 = vadd.f32 %v1764, 1.0
        %v1781 = vadd.f32 %v1765, 1.0
        %v1782 = vadd.f32 %v1766, 1.0
        %v1783 = vadd.f32 %v1767, 1.0
        %v1784 = vadd.f32 %v1768, 1.0
        %v1785 = vadd.f32 %v1769, 1.0
        %v1786 = vadd.f32 %v1770, 1.0
        %v1787 = vadd.f32 %v1771, 1.0
        %v1788 = vadd.f32 %v1772, 1.0
        %v1789 = vadd.f32 %v1773, 1.0
        %v1790 = vadd.f32 %v1774, 1.0
        %v1791 = vadd.f32 %v1775, 1.0
        %v1792 = vadd.f32 %v1776, 1.0
        %v1793 = vmul.f32 %v1665, %v1777
        %v1794 = vmul.f32 %v1666, %v1778
        %v1795 = vmul.f32 %v1667, %v1779
        %v1796 = vmul.f32 %v1668, %v1780
        %v1797 = vmul.f32 %v1669, %v1781
        %v1798 = vmul.f32 %v1670, %v1782
        %v1799 = vmul.f32 %v1671, %v1783
        %v1800 = vmul.f32 %v1672, %v1784
        %v1801 = vmul.f32 %v1673, %v1785
        %v1802 = vmul.f32 %v1674, %v1786
        %v1803 = vmul.f32 %v1675, %v1787
        %v1804 = vmul.f32 %v1676, %v1788
        %v1805 = vmul.f32 %v1677, %v1789
        %v1806 = vmul.f32 %v1678, %v1790
        %v1807 = vmul.f32 %v1679, %v1791
        %v1808 = vmul.f32 %v1680, %v1792
        %v1809 = vmul.f32 %v1793, %v1494
        %v1810 = vmul.f32 %v1794, %v1498
        %v1811 = vmul.f32 %v1795, %v1505
        %v1812 = vmul.f32 %v1796, %v1509
        %v1813 = vmul.f32 %v1797, %v1516
        %v1814 = vmul.f32 %v1798, %v1520
        %v1815 = vmul.f32 %v1799, %v1527
        %v1816 = vmul.f32 %v1800, %v1531
        %v1817 = vmul.f32 %v1801, %v1538
        %v1818 = vmul.f32 %v1802, %v1542
        %v1819 = vmul.f32 %v1803, %v1549
        %v1820 = vmul.f32 %v1804, %v1553
        %v1821 = vmul.f32 %v1805, %v1560
        %v1822 = vmul.f32 %v1806, %v1564
        %v1823 = vmul.f32 %v1807, %v1571
        %v1824 = vmul.f32 %v1808, %v1575
        %v1825 = vmul.f32 %v1809, %v905
        %v1826 = vmul.f32 %v1810, %v906
        %v1827 = vmul.f32 %v1811, %v905
        %v1828 = vmul.f32 %v1812, %v906
        %v1829 = vmul.f32 %v1813, %v905
        %v1830 = vmul.f32 %v1814, %v906
        %v1831 = vmul.f32 %v1815, %v905
        %v1832 = vmul.f32 %v1816, %v906
        %v1833 = vmul.f32 %v1817, %v905
        %v1834 = vmul.f32 %v1818, %v906
        %v1835 = vmul.f32 %v1819, %v905
        %v1836 = vmul.f32 %v1820, %v906
        %v1837 = vmul.f32 %v1821, %v905
        %v1838 = vmul.f32 %v1822, %v906
        %v1839 = vmul.f32 %v1823, %v905
        %v1840 = vmul.f32 %v1824, %v906
        %v1841 = vld [vmem:[%s873] sm:$0xff]
        %v1842 = vsel %vm954, %v1825, 0.0
        %v1843 = vsel %vm954, %v1826, 0.0
        %v1844 = vadd.f32 %v1842, %v1843
        %v1845 = vrot.slane %v1844, 4
        %v1846 = vadd.f32 %v1844, %v1845
        %v1847 = vrot.slane %v1846, 2
        %v1848 = vadd.f32 %v1846, %v1847
        %v1849 = vrot.slane %v1848, 1
        %v1850 = vadd.f32 %v1848, %v1849
        %v1851 = vsel %vm954, %v1827, 0.0
        %v1852 = vsel %vm954, %v1828, 0.0
        %v1853 = vadd.f32 %v1851, %v1852
        %v1854 = vrot.slane %v1853, 4
        %v1855 = vadd.f32 %v1853, %v1854
        %v1856 = vrot.slane %v1855, 2
        %v1857 = vadd.f32 %v1855, %v1856
        %v1858 = vrot.slane %v1857, 1
        %v1859 = vadd.f32 %v1857, %v1858
        %v1860 = vsel %vm954, %v1829, 0.0
        %v1861 = vsel %vm954, %v1830, 0.0
        %v1862 = vadd.f32 %v1860, %v1861
        %v1863 = vrot.slane %v1862, 4
        %v1864 = vadd.f32 %v1862, %v1863
        %v1865 = vrot.slane %v1864, 2
        %v1866 = vadd.f32 %v1864, %v1865
        %v1867 = vrot.slane %v1866, 1
        %v1868 = vadd.f32 %v1866, %v1867
        %v1869 = vsel %vm954, %v1831, 0.0
        %v1870 = vsel %vm954, %v1832, 0.0
        %v1871 = vadd.f32 %v1869, %v1870
        %v1872 = vrot.slane %v1871, 4
        %v1873 = vadd.f32 %v1871, %v1872
        %v1874 = vrot.slane %v1873, 2
        %v1875 = vadd.f32 %v1873, %v1874
        %v1876 = vrot.slane %v1875, 1
        %v1877 = vadd.f32 %v1875, %v1876
        %v1878 = vsel %vm954, %v1833, 0.0
        %v1879 = vsel %vm954, %v1834, 0.0
        %v1880 = vadd.f32 %v1878, %v1879
        %v1881 = vrot.slane %v1880, 4
        %v1882 = vadd.f32 %v1880, %v1881
        %v1883 = vrot.slane %v1882, 2
        %v1884 = vadd.f32 %v1882, %v1883
        %v1885 = vrot.slane %v1884, 1
        %v1886 = vadd.f32 %v1884, %v1885
        %v1887 = vsel %vm954, %v1835, 0.0
        %v1888 = vsel %vm954, %v1836, 0.0
        %v1889 = vadd.f32 %v1887, %v1888
        %v1890 = vrot.slane %v1889, 4
        %v1891 = vadd.f32 %v1889, %v1890
        %v1892 = vrot.slane %v1891, 2
        %v1893 = vadd.f32 %v1891, %v1892
        %v1894 = vrot.slane %v1893, 1
        %v1895 = vadd.f32 %v1893, %v1894
        %v1896 = vsel %vm954, %v1837, 0.0
        %v1897 = vsel %vm954, %v1838, 0.0
        %v1898 = vadd.f32 %v1896, %v1897
        %v1899 = vrot.slane %v1898, 4
        %v1900 = vadd.f32 %v1898, %v1899
        %v1901 = vrot.slane %v1900, 2
        %v1902 = vadd.f32 %v1900, %v1901
        %v1903 = vrot.slane %v1902, 1
        %v1904 = vadd.f32 %v1902, %v1903
        %v1905 = vsel %vm954, %v1839, 0.0
        %v1906 = vsel %vm954, %v1840, 0.0
        %v1907 = vadd.f32 %v1905, %v1906
        %v1908 = vrot.slane %v1907, 4
        %v1909 = vadd.f32 %v1907, %v1908
        %v1910 = vrot.slane %v1909, 2
        %v1911 = vadd.f32 %v1909, %v1910
        %v1912 = vrot.slane %v1911, 1
        %v1913 = vadd.f32 %v1911, %v1912
        %vm1922 = vcmask 1041409
        %v1923 = vsel %vm1922, %v1859, %v1850
        %vm1924 = vcmask 1042434
        %v1925 = vsel %vm1924, %v1868, %v1923
        %vm1926 = vcmask 1043459
        %v1927 = vsel %vm1926, %v1877, %v1925
        %vm1928 = vcmask 1044484
        %v1929 = vsel %vm1928, %v1886, %v1927
        %vm1930 = vcmask 1045509
        %v1931 = vsel %vm1930, %v1895, %v1929
        %vm1932 = vcmask 1046534
        %v1933 = vsel %vm1932, %v1904, %v1931
        %vm1934 = vcmask 1047559
        %v1935 = vsel %vm1934, %v1913, %v1933
        %v1937 = vadd.f32 %v1841, %v1935
        %1938 = vst.msk [vmem:[%s873] sm:$0xff] %vm954, %v1937
        %v1939 = vpack.c.bf16 %v1826, %v1825
        %v1940 = vpack.c.bf16 %v1828, %v1827
        %v1941 = vpack.c.bf16 %v1830, %v1829
        %v1942 = vpack.c.bf16 %v1832, %v1831
        %v1943 = vpack.c.bf16 %v1834, %v1833
        %v1944 = vpack.c.bf16 %v1836, %v1835
        %v1945 = vpack.c.bf16 %v1838, %v1837
        %v1946 = vpack.c.bf16 %v1840, %v1839
        %v1947 = vld [vmem:[%s9] sm:$0xf]
        %v1948 = vld [vmem:[%s9 + $0x4] sm:$0xf]
        %v1949 = vld [vmem:[%s9 + $0x8] sm:$0xf]
        %v1950 = vld [vmem:[%s9 + $0xc] sm:$0xf]
        %v1951 = vld [vmem:[#allocation15] sm:$0x1]
        %v1953 = vlaneseq
        %v1954 = vshrl.u32 %v1953, 7
        %v1955 = vsub.s32 0, %v1954
        %v1956 = vrot.slane %v1951, %v1955
        %v1962 = vunpack.c.l.b16 %v1947
        %v1963 = vunpack.c.l.b16 %v1948
        %v1964 = vunpack.c.l.b16 %v1949
        %v1965 = vunpack.c.l.b16 %v1950
        %v1966 = vpack.c.b16 %v1963, %v1962
        %v1967 = vpack.c.b16 %v1965, %v1964
        %v1971 = vsel %vm954, %v1939, 0
        %v1974 = vsel %vm954, %v1940, 0
        %v1977 = vsel %vm954, %v1941, 0
        %v1980 = vsel %vm954, %v1942, 0
        %v1983 = vsel %vm954, %v1943, 0
        %v1986 = vsel %vm954, %v1944, 0
        %v1989 = vsel %vm954, %v1945, 0
        %v1992 = vsel %vm954, %v1946, 0
        %1994 = vmatprep.subr.bf16.mxu0 0
        %1995 = vmatpush1.bf16.msra.mxu0 %v1966
        %1996 = vmatprep.subr.bf16.mxu0 0
        %1997 = vmatpush1.bf16.msra.mxu0 %v1967
        %1998 = vmatprep.subr.bf16.mxu0 0
        %1999 = vmatpush1.bf16.msra.mxu0 0
        %2000 = vmatprep.subr.bf16.mxu0 0
        %2001 = vmatpush1.bf16.msra.mxu0 0
        %2002 = vmatprep.subr.bf16.mxu0 0
        %2003 = vmatpush1.bf16.msra.mxu0 0
        %2004 = vmatprep.subr.bf16.mxu0 0
        %2005 = vmatpush1.bf16.msra.mxu0 0
        %2006 = vmatprep.subr.bf16.mxu0 0
        %2007 = vmatpush1.bf16.msra.mxu0 0
        %2008 = vmatprep.subr.bf16.mxu0 0
        %2009 = vmatpush1.bf16.msra.mxu0 0
        %2010 = vmatprep.subr.bf16.mxu0 0
        %2011 = vmatpush1.bf16.msra.mxu0 0
        %2012 = vmatprep.subr.bf16.mxu0 0
        %2013 = vmatpush1.bf16.msra.mxu0 0
        %2014 = vmatprep.subr.bf16.mxu0 0
        %2015 = vmatpush1.bf16.msra.mxu0 0
        %2016 = vmatprep.subr.bf16.mxu0 0
        %2017 = vmatpush1.bf16.msra.mxu0 0
        %2018 = vmatprep.subr.bf16.mxu0 0
        %2019 = vmatpush1.bf16.msra.mxu0 0
        %2020 = vmatprep.subr.bf16.mxu0 0
        %2021 = vmatpush1.bf16.msra.mxu0 0
        %2022 = vmatprep.subr.bf16.mxu0 0
        %2023 = vmatpush1.bf16.msra.mxu0 0
        %2024 = vmatprep.subr.bf16.mxu0 0
        %2025 = vmatpush1.bf16.msra.mxu0 0
        %2026 = vmatprep.mubr.bf16.mxu0 0
        %2027 = vmatmul.mubr.bf16.gmra.mrb[0].mxu0 %v1971
        %v2028 = vpop.f32.mrb[0].mxu0
        %v2029 = vadd.f32 %v1956, %v2028
        %v2030 = vpop.f32.mrb[0].mxu0
        %v2031 = vpop.f32.mrb[0].mxu0
        %v2032 = vadd.f32 %v1956, %v2031
        %v2033 = vpop.f32.mrb[0].mxu0
        %2034 = vmatprep.mubr.bf16.mxu0 0
        %2035 = vmatmul.mubr.bf16.gmra.mrb[0].mxu0 %v1974
        %v2036 = vpop.f32.mrb[0].mxu0
        %v2037 = vadd.f32 %v1956, %v2036
        %v2038 = vpop.f32.mrb[0].mxu0
        %v2039 = vpop.f32.mrb[0].mxu0
        %v2040 = vadd.f32 %v1956, %v2039
        %v2041 = vpop.f32.mrb[0].mxu0
        %2042 = vmatprep.mubr.bf16.mxu0 0
        %2043 = vmatmul.mubr.bf16.gmra.mrb[0].mxu0 %v1977
        %v2044 = vpop.f32.mrb[0].mxu0
        %v2045 = vadd.f32 %v1956, %v2044
        %v2046 = vpop.f32.mrb[0].mxu0
        %v2047 = vpop.f32.mrb[0].mxu0
        %v2048 = vadd.f32 %v1956, %v2047
        %v2049 = vpop.f32.mrb[0].mxu0
        %2050 = vmatprep.mubr.bf16.mxu0 0
        %2051 = vmatmul.mubr.bf16.gmra.mrb[0].mxu0 %v1980
        %v2052 = vpop.f32.mrb[0].mxu0
        %v2053 = vadd.f32 %v1956, %v2052
        %v2054 = vpop.f32.mrb[0].mxu0
        %v2055 = vpop.f32.mrb[0].mxu0
        %v2056 = vadd.f32 %v1956, %v2055
        %v2057 = vpop.f32.mrb[0].mxu0
        %2058 = vmatprep.mubr.bf16.mxu0 0
        %2059 = vmatmul.mubr.bf16.gmra.mrb[0].mxu0 %v1983
        %v2060 = vpop.f32.mrb[0].mxu0
        %v2061 = vadd.f32 %v1956, %v2060
        %v2062 = vpop.f32.mrb[0].mxu0
        %v2063 = vpop.f32.mrb[0].mxu0
        %v2064 = vadd.f32 %v1956, %v2063
        %v2065 = vpop.f32.mrb[0].mxu0
        %2066 = vmatprep.mubr.bf16.mxu0 0
        %2067 = vmatmul.mubr.bf16.gmra.mrb[0].mxu0 %v1986
        %v2068 = vpop.f32.mrb[0].mxu0
        %v2069 = vadd.f32 %v1956, %v2068
        %v2070 = vpop.f32.mrb[0].mxu0
        %v2071 = vpop.f32.mrb[0].mxu0
        %v2072 = vadd.f32 %v1956, %v2071
        %v2073 = vpop.f32.mrb[0].mxu0
        %2074 = vmatprep.mubr.bf16.mxu0 0
        %2075 = vmatmul.mubr.bf16.gmra.mrb[0].mxu0 %v1989
        %v2076 = vpop.f32.mrb[0].mxu0
        %v2077 = vadd.f32 %v1956, %v2076
        %v2078 = vpop.f32.mrb[0].mxu0
        %v2079 = vpop.f32.mrb[0].mxu0
        %v2080 = vadd.f32 %v1956, %v2079
        %v2081 = vpop.f32.mrb[0].mxu0
        %2082 = vmatprep.mubr.bf16.mxu0 0
        %2083 = vmatmul.mubr.bf16.gmra.mrb[0].mxu0 %v1992
        %v2084 = vpop.f32.mrb[0].mxu0
        %v2085 = vadd.f32 %v1956, %v2084
        %v2086 = vpop.f32.mrb[0].mxu0
        %v2087 = vpop.f32.mrb[0].mxu0
        %v2088 = vadd.f32 %v1956, %v2087
        %v2089 = vpop.f32.mrb[0].mxu0
        %2090 = vdwg.mxu0
        %v2091 = vmul.f32 %v2029, %v1583
        %v2092 = vmul.f32 %v2032, %v1587
        %v2093 = vmul.f32 %v2037, %v1594
        %v2094 = vmul.f32 %v2040, %v1598
        %v2095 = vmul.f32 %v2045, %v1605
        %v2096 = vmul.f32 %v2048, %v1609
        %v2097 = vmul.f32 %v2053, %v1616
        %v2098 = vmul.f32 %v2056, %v1620
        %v2099 = vmul.f32 %v2061, %v1627
        %v2100 = vmul.f32 %v2064, %v1631
        %v2101 = vmul.f32 %v2069, %v1638
        %v2102 = vmul.f32 %v2072, %v1642
        %v2103 = vmul.f32 %v2077, %v1649
        %v2104 = vmul.f32 %v2080, %v1653
        %v2105 = vmul.f32 %v2085, %v1660
        %v2106 = vmul.f32 %v2088, %v1664
        %v2107 = vld [vmem:[#allocation2] sm:$0xff]
        %v2108 = vld [vmem:[%s787] sm:$0xff]
        %v2109 = vlaneseq
        %v2110 = vshrl.u32 %v2109, 7
        %v2111 = vsub.s32 0, %v2110
        %v2112 = vrot.slane %v2108, %v2111
        %2114 = vbcast.lane.b32.xlu0 %v2112, 256
        %v2115 = vpop.permute.xlu0 %2114
        %s2117 = sor.u32 256, 8
        %2118 = vbcast.lane.b32.xlu0 %v2112, %s2117
        %v2119 = vpop.permute.xlu0 %2118
        %v2120 = vlaneseq
        %v2121 = vshrl.u32 %v2120, 7
        %v2122 = vsub.s32 1, %v2121
        %v2123 = vrot.slane %v2108, %v2122
        %2125 = vbcast.lane.b32.xlu0 %v2123, 256
        %v2126 = vpop.permute.xlu0 %2125
        %s2128 = sor.u32 256, 8
        %2129 = vbcast.lane.b32.xlu0 %v2123, %s2128
        %v2130 = vpop.permute.xlu0 %2129
        %v2131 = vlaneseq
        %v2132 = vshrl.u32 %v2131, 7
        %v2133 = vsub.s32 2, %v2132
        %v2134 = vrot.slane %v2108, %v2133
        %2136 = vbcast.lane.b32.xlu0 %v2134, 256
        %v2137 = vpop.permute.xlu0 %2136
        %s2139 = sor.u32 256, 8
        %2140 = vbcast.lane.b32.xlu0 %v2134, %s2139
        %v2141 = vpop.permute.xlu0 %2140
        %v2142 = vlaneseq
        %v2143 = vshrl.u32 %v2142, 7
        %v2144 = vsub.s32 3, %v2143
        %v2145 = vrot.slane %v2108, %v2144
        %2147 = vbcast.lane.b32.xlu0 %v2145, 256
        %v2148 = vpop.permute.xlu0 %2147
        %s2150 = sor.u32 256, 8
        %2151 = vbcast.lane.b32.xlu0 %v2145, %s2150
        %v2152 = vpop.permute.xlu0 %2151
        %v2153 = vlaneseq
        %v2154 = vshrl.u32 %v2153, 7
        %v2155 = vsub.s32 4, %v2154
        %v2156 = vrot.slane %v2108, %v2155
        %2158 = vbcast.lane.b32.xlu0 %v2156, 256
        %v2159 = vpop.permute.xlu0 %2158
        %s2161 = sor.u32 256, 8
        %2162 = vbcast.lane.b32.xlu0 %v2156, %s2161
        %v2163 = vpop.permute.xlu0 %2162
        %v2164 = vlaneseq
        %v2165 = vshrl.u32 %v2164, 7
        %v2166 = vsub.s32 5, %v2165
        %v2167 = vrot.slane %v2108, %v2166
        %2169 = vbcast.lane.b32.xlu0 %v2167, 256
        %v2170 = vpop.permute.xlu0 %2169
        %s2172 = sor.u32 256, 8
        %2173 = vbcast.lane.b32.xlu0 %v2167, %s2172
        %v2174 = vpop.permute.xlu0 %2173
        %v2175 = vlaneseq
        %v2176 = vshrl.u32 %v2175, 7
        %v2177 = vsub.s32 6, %v2176
        %v2178 = vrot.slane %v2108, %v2177
        %2180 = vbcast.lane.b32.xlu0 %v2178, 256
        %v2181 = vpop.permute.xlu0 %2180
        %s2183 = sor.u32 256, 8
        %2184 = vbcast.lane.b32.xlu0 %v2178, %s2183
        %v2185 = vpop.permute.xlu0 %2184
        %v2186 = vlaneseq
        %v2187 = vshrl.u32 %v2186, 7
        %v2188 = vsub.s32 7, %v2187
        %v2189 = vrot.slane %v2108, %v2188
        %2191 = vbcast.lane.b32.xlu0 %v2189, 256
        %v2192 = vpop.permute.xlu0 %2191
        %s2194 = sor.u32 256, 8
        %2195 = vbcast.lane.b32.xlu0 %v2189, %s2194
        %v2196 = vpop.permute.xlu0 %2195
        %v2197 = vmul.f32 %v2115, %v2091
        %v2198 = vmul.f32 %v2119, %v2092
        %v2199 = vmul.f32 %v2126, %v2093
        %v2200 = vmul.f32 %v2130, %v2094
        %v2201 = vmul.f32 %v2137, %v2095
        %v2202 = vmul.f32 %v2141, %v2096
        %v2203 = vmul.f32 %v2148, %v2097
        %v2204 = vmul.f32 %v2152, %v2098
        %v2205 = vmul.f32 %v2159, %v2099
        %v2206 = vmul.f32 %v2163, %v2100
        %v2207 = vmul.f32 %v2170, %v2101
        %v2208 = vmul.f32 %v2174, %v2102
        %v2209 = vmul.f32 %v2181, %v2103
        %v2210 = vmul.f32 %v2185, %v2104
        %v2211 = vmul.f32 %v2192, %v2105
        %v2212 = vmul.f32 %v2196, %v2106
        %v2213 = vsel %vm954, %v2197, 0.0
        %v2214 = vsel %vm954, %v2198, 0.0
        %v2215 = vadd.f32 %v2213, %v2214
        %v2216 = vrot.slane %v2215, 4
        %v2217 = vadd.f32 %v2215, %v2216
        %v2218 = vrot.slane %v2217, 2
        %v2219 = vadd.f32 %v2217, %v2218
        %v2220 = vrot.slane %v2219, 1
        %v2221 = vadd.f32 %v2219, %v2220
        %v2222 = vsel %vm954, %v2199, 0.0
        %v2223 = vsel %vm954, %v2200, 0.0
        %v2224 = vadd.f32 %v2222, %v2223
        %v2225 = vrot.slane %v2224, 4
        %v2226 = vadd.f32 %v2224, %v2225
        %v2227 = vrot.slane %v2226, 2
        %v2228 = vadd.f32 %v2226, %v2227
        %v2229 = vrot.slane %v2228, 1
        %v2230 = vadd.f32 %v2228, %v2229
        %v2231 = vsel %vm954, %v2201, 0.0
        %v2232 = vsel %vm954, %v2202, 0.0
        %v2233 = vadd.f32 %v2231, %v2232
        %v2234 = vrot.slane %v2233, 4
        %v2235 = vadd.f32 %v2233, %v2234
        %v2236 = vrot.slane %v2235, 2
        %v2237 = vadd.f32 %v2235, %v2236
        %v2238 = vrot.slane %v2237, 1
        %v2239 = vadd.f32 %v2237, %v2238
        %v2240 = vsel %vm954, %v2203, 0.0
        %v2241 = vsel %vm954, %v2204, 0.0
        %v2242 = vadd.f32 %v2240, %v2241
        %v2243 = vrot.slane %v2242, 4
        %v2244 = vadd.f32 %v2242, %v2243
        %v2245 = vrot.slane %v2244, 2
        %v2246 = vadd.f32 %v2244, %v2245
        %v2247 = vrot.slane %v2246, 1
        %v2248 = vadd.f32 %v2246, %v2247
        %v2249 = vsel %vm954, %v2205, 0.0
        %v2250 = vsel %vm954, %v2206, 0.0
        %v2251 = vadd.f32 %v2249, %v2250
        %v2252 = vrot.slane %v2251, 4
        %v2253 = vadd.f32 %v2251, %v2252
        %v2254 = vrot.slane %v2253, 2
        %v2255 = vadd.f32 %v2253, %v2254
        %v2256 = vrot.slane %v2255, 1
        %v2257 = vadd.f32 %v2255, %v2256
        %v2258 = vsel %vm954, %v2207, 0.0
        %v2259 = vsel %vm954, %v2208, 0.0
        %v2260 = vadd.f32 %v2258, %v2259
        %v2261 = vrot.slane %v2260, 4
        %v2262 = vadd.f32 %v2260, %v2261
        %v2263 = vrot.slane %v2262, 2
        %v2264 = vadd.f32 %v2262, %v2263
        %v2265 = vrot.slane %v2264, 1
        %v2266 = vadd.f32 %v2264, %v2265
        %v2267 = vsel %vm954, %v2209, 0.0
        %v2268 = vsel %vm954, %v2210, 0.0
        %v2269 = vadd.f32 %v2267, %v2268
        %v2270 = vrot.slane %v2269, 4
        %v2271 = vadd.f32 %v2269, %v2270
        %v2272 = vrot.slane %v2271, 2
        %v2273 = vadd.f32 %v2271, %v2272
        %v2274 = vrot.slane %v2273, 1
        %v2275 = vadd.f32 %v2273, %v2274
        %v2276 = vsel %vm954, %v2211, 0.0
        %v2277 = vsel %vm954, %v2212, 0.0
        %v2278 = vadd.f32 %v2276, %v2277
        %v2279 = vrot.slane %v2278, 4
        %v2280 = vadd.f32 %v2278, %v2279
        %v2281 = vrot.slane %v2280, 2
        %v2282 = vadd.f32 %v2280, %v2281
        %v2283 = vrot.slane %v2282, 1
        %v2284 = vadd.f32 %v2282, %v2283
        %v2293 = vsel %vm1922, %v2230, %v2221
        %v2294 = vsel %vm1924, %v2239, %v2293
        %v2295 = vsel %vm1926, %v2248, %v2294
        %v2296 = vsel %vm1928, %v2257, %v2295
        %v2297 = vsel %vm1930, %v2266, %v2296
        %v2298 = vsel %vm1932, %v2275, %v2297
        %v2299 = vsel %vm1934, %v2284, %v2298
        %v2301 = vadd.f32 %v2107, %v2299
        %2302 = vst.msk [vmem:[#allocation2] sm:$0xff] %vm954, %v2301
        %s2303 = scalar_lea.vmem [#allocation2], 8
        %v2304 = vld [vmem:[%s2303] sm:$0xff]
        %s2305 = scalar_lea.vmem %s787, 8 [#allocation14]
        %v2306 = vld [vmem:[%s2305] sm:$0xff]
        %v2307 = vlaneseq
        %v2308 = vshrl.u32 %v2307, 7
        %v2309 = vsub.s32 0, %v2308
        %v2310 = vrot.slane %v2306, %v2309
        %2312 = vbcast.lane.b32.xlu0 %v2310, 256
        %v2313 = vpop.permute.xlu0 %2312
        %s2315 = sor.u32 256, 8
        %2316 = vbcast.lane.b32.xlu0 %v2310, %s2315
        %v2317 = vpop.permute.xlu0 %2316
        %v2318 = vlaneseq
        %v2319 = vshrl.u32 %v2318, 7
        %v2320 = vsub.s32 1, %v2319
        %v2321 = vrot.slane %v2306, %v2320
        %2323 = vbcast.lane.b32.xlu0 %v2321, 256
        %v2324 = vpop.permute.xlu0 %2323
        %s2326 = sor.u32 256, 8
        %2327 = vbcast.lane.b32.xlu0 %v2321, %s2326
        %v2328 = vpop.permute.xlu0 %2327
        %v2329 = vlaneseq
        %v2330 = vshrl.u32 %v2329, 7
        %v2331 = vsub.s32 2, %v2330
        %v2332 = vrot.slane %v2306, %v2331
        %2334 = vbcast.lane.b32.xlu0 %v2332, 256
        %v2335 = vpop.permute.xlu0 %2334
        %s2337 = sor.u32 256, 8
        %2338 = vbcast.lane.b32.xlu0 %v2332, %s2337
        %v2339 = vpop.permute.xlu0 %2338
        %v2340 = vlaneseq
        %v2341 = vshrl.u32 %v2340, 7
        %v2342 = vsub.s32 3, %v2341
        %v2343 = vrot.slane %v2306, %v2342
        %2345 = vbcast.lane.b32.xlu0 %v2343, 256
        %v2346 = vpop.permute.xlu0 %2345
        %s2348 = sor.u32 256, 8
        %2349 = vbcast.lane.b32.xlu0 %v2343, %s2348
        %v2350 = vpop.permute.xlu0 %2349
        %v2351 = vlaneseq
        %v2352 = vshrl.u32 %v2351, 7
        %v2353 = vsub.s32 4, %v2352
        %v2354 = vrot.slane %v2306, %v2353
        %2356 = vbcast.lane.b32.xlu0 %v2354, 256
        %v2357 = vpop.permute.xlu0 %2356
        %s2359 = sor.u32 256, 8
        %2360 = vbcast.lane.b32.xlu0 %v2354, %s2359
        %v2361 = vpop.permute.xlu0 %2360
        %v2362 = vlaneseq
        %v2363 = vshrl.u32 %v2362, 7
        %v2364 = vsub.s32 5, %v2363
        %v2365 = vrot.slane %v2306, %v2364
        %2367 = vbcast.lane.b32.xlu0 %v2365, 256
        %v2368 = vpop.permute.xlu0 %2367
        %s2370 = sor.u32 256, 8
        %2371 = vbcast.lane.b32.xlu0 %v2365, %s2370
        %v2372 = vpop.permute.xlu0 %2371
        %v2373 = vlaneseq
        %v2374 = vshrl.u32 %v2373, 7
        %v2375 = vsub.s32 6, %v2374
        %v2376 = vrot.slane %v2306, %v2375
        %2378 = vbcast.lane.b32.xlu0 %v2376, 256
        %v2379 = vpop.permute.xlu0 %2378
        %s2381 = sor.u32 256, 8
        %2382 = vbcast.lane.b32.xlu0 %v2376, %s2381
        %v2383 = vpop.permute.xlu0 %2382
        %v2384 = vlaneseq
        %v2385 = vshrl.u32 %v2384, 7
        %v2386 = vsub.s32 7, %v2385
        %v2387 = vrot.slane %v2306, %v2386
        %2389 = vbcast.lane.b32.xlu0 %v2387, 256
        %v2390 = vpop.permute.xlu0 %2389
        %s2392 = sor.u32 256, 8
        %2393 = vbcast.lane.b32.xlu0 %v2387, %s2392
        %v2394 = vpop.permute.xlu0 %2393
        %v2395 = vmul.f32 %v2313, %v2091
        %v2396 = vmul.f32 %v2317, %v2092
        %v2397 = vmul.f32 %v2324, %v2093
        %v2398 = vmul.f32 %v2328, %v2094
        %v2399 = vmul.f32 %v2335, %v2095
        %v2400 = vmul.f32 %v2339, %v2096
        %v2401 = vmul.f32 %v2346, %v2097
        %v2402 = vmul.f32 %v2350, %v2098
        %v2403 = vmul.f32 %v2357, %v2099
        %v2404 = vmul.f32 %v2361, %v2100
        %v2405 = vmul.f32 %v2368, %v2101
        %v2406 = vmul.f32 %v2372, %v2102
        %v2407 = vmul.f32 %v2379, %v2103
        %v2408 = vmul.f32 %v2383, %v2104
        %v2409 = vmul.f32 %v2390, %v2105
        %v2410 = vmul.f32 %v2394, %v2106
        %v2411 = vsel %vm954, %v2395, 0.0
        %v2412 = vsel %vm954, %v2396, 0.0
        %v2413 = vadd.f32 %v2411, %v2412
        %v2414 = vrot.slane %v2413, 4
        %v2415 = vadd.f32 %v2413, %v2414
        %v2416 = vrot.slane %v2415, 2
        %v2417 = vadd.f32 %v2415, %v2416
        %v2418 = vrot.slane %v2417, 1
        %v2419 = vadd.f32 %v2417, %v2418
        %v2420 = vsel %vm954, %v2397, 0.0
        %v2421 = vsel %vm954, %v2398, 0.0
        %v2422 = vadd.f32 %v2420, %v2421
        %v2423 = vrot.slane %v2422, 4
        %v2424 = vadd.f32 %v2422, %v2423
        %v2425 = vrot.slane %v2424, 2
        %v2426 = vadd.f32 %v2424, %v2425
        %v2427 = vrot.slane %v2426, 1
        %v2428 = vadd.f32 %v2426, %v2427
        %v2429 = vsel %vm954, %v2399, 0.0
        %v2430 = vsel %vm954, %v2400, 0.0
        %v2431 = vadd.f32 %v2429, %v2430
        %v2432 = vrot.slane %v2431, 4
        %v2433 = vadd.f32 %v2431, %v2432
        %v2434 = vrot.slane %v2433, 2
        %v2435 = vadd.f32 %v2433, %v2434
        %v2436 = vrot.slane %v2435, 1
        %v2437 = vadd.f32 %v2435, %v2436
        %v2438 = vsel %vm954, %v2401, 0.0
        %v2439 = vsel %vm954, %v2402, 0.0
        %v2440 = vadd.f32 %v2438, %v2439
        %v2441 = vrot.slane %v2440, 4
        %v2442 = vadd.f32 %v2440, %v2441
        %v2443 = vrot.slane %v2442, 2
        %v2444 = vadd.f32 %v2442, %v2443
        %v2445 = vrot.slane %v2444, 1
        %v2446 = vadd.f32 %v2444, %v2445
        %v2447 = vsel %vm954, %v2403, 0.0
        %v2448 = vsel %vm954, %v2404, 0.0
        %v2449 = vadd.f32 %v2447, %v2448
        %v2450 = vrot.slane %v2449, 4
        %v2451 = vadd.f32 %v2449, %v2450
        %v2452 = vrot.slane %v2451, 2
        %v2453 = vadd.f32 %v2451, %v2452
        %v2454 = vrot.slane %v2453, 1
        %v2455 = vadd.f32 %v2453, %v2454
        %v2456 = vsel %vm954, %v2405, 0.0
        %v2457 = vsel %vm954, %v2406, 0.0
        %v2458 = vadd.f32 %v2456, %v2457
        %v2459 = vrot.slane %v2458, 4
        %v2460 = vadd.f32 %v2458, %v2459
        %v2461 = vrot.slane %v2460, 2
        %v2462 = vadd.f32 %v2460, %v2461
        %v2463 = vrot.slane %v2462, 1
        %v2464 = vadd.f32 %v2462, %v2463
        %v2465 = vsel %vm954, %v2407, 0.0
        %v2466 = vsel %vm954, %v2408, 0.0
        %v2467 = vadd.f32 %v2465, %v2466
        %v2468 = vrot.slane %v2467, 4
        %v2469 = vadd.f32 %v2467, %v2468
        %v2470 = vrot.slane %v2469, 2
        %v2471 = vadd.f32 %v2469, %v2470
        %v2472 = vrot.slane %v2471, 1
        %v2473 = vadd.f32 %v2471, %v2472
        %v2474 = vsel %vm954, %v2409, 0.0
        %v2475 = vsel %vm954, %v2410, 0.0
        %v2476 = vadd.f32 %v2474, %v2475
        %v2477 = vrot.slane %v2476, 4
        %v2478 = vadd.f32 %v2476, %v2477
        %v2479 = vrot.slane %v2478, 2
        %v2480 = vadd.f32 %v2478, %v2479
        %v2481 = vrot.slane %v2480, 1
        %v2482 = vadd.f32 %v2480, %v2481
        %v2491 = vsel %vm1922, %v2428, %v2419
        %v2492 = vsel %vm1924, %v2437, %v2491
        %v2493 = vsel %vm1926, %v2446, %v2492
        %v2494 = vsel %vm1928, %v2455, %v2493
        %v2495 = vsel %vm1930, %v2464, %v2494
        %v2496 = vsel %vm1932, %v2473, %v2495
        %v2497 = vsel %vm1934, %v2482, %v2496
        %v2499 = vadd.f32 %v2304, %v2497
        %2500 = vst.msk [vmem:[%s2303] sm:$0xff] %vm954, %v2499
        %s2501 = scalar_lea.vmem [#allocation2], 16
        %v2502 = vld [vmem:[%s2501] sm:$0xff]
        %s2503 = scalar_lea.vmem %s787, 16 [#allocation14]
        %v2504 = vld [vmem:[%s2503] sm:$0xff]
        %v2505 = vlaneseq
        %v2506 = vshrl.u32 %v2505, 7
        %v2507 = vsub.s32 0, %v2506
        %v2508 = vrot.slane %v2504, %v2507
        %2510 = vbcast.lane.b32.xlu0 %v2508, 256
        %v2511 = vpop.permute.xlu0 %2510
        %s2513 = sor.u32 256, 8
        %2514 = vbcast.lane.b32.xlu0 %v2508, %s2513
        %v2515 = vpop.permute.xlu0 %2514
        %v2516 = vlaneseq
        %v2517 = vshrl.u32 %v2516, 7
        %v2518 = vsub.s32 1, %v2517
        %v2519 = vrot.slane %v2504, %v2518
        %2521 = vbcast.lane.b32.xlu0 %v2519, 256
        %v2522 = vpop.permute.xlu0 %2521
        %s2524 = sor.u32 256, 8
        %2525 = vbcast.lane.b32.xlu0 %v2519, %s2524
        %v2526 = vpop.permute.xlu0 %2525
        %v2527 = vlaneseq
        %v2528 = vshrl.u32 %v2527, 7
        %v2529 = vsub.s32 2, %v2528
        %v2530 = vrot.slane %v2504, %v2529
        %2532 = vbcast.lane.b32.xlu0 %v2530, 256
        %v2533 = vpop.permute.xlu0 %2532
        %s2535 = sor.u32 256, 8
        %2536 = vbcast.lane.b32.xlu0 %v2530, %s2535
        %v2537 = vpop.permute.xlu0 %2536
        %v2538 = vlaneseq
        %v2539 = vshrl.u32 %v2538, 7
        %v2540 = vsub.s32 3, %v2539
        %v2541 = vrot.slane %v2504, %v2540
        %2543 = vbcast.lane.b32.xlu0 %v2541, 256
        %v2544 = vpop.permute.xlu0 %2543
        %s2546 = sor.u32 256, 8
        %2547 = vbcast.lane.b32.xlu0 %v2541, %s2546
        %v2548 = vpop.permute.xlu0 %2547
        %v2549 = vlaneseq
        %v2550 = vshrl.u32 %v2549, 7
        %v2551 = vsub.s32 4, %v2550
        %v2552 = vrot.slane %v2504, %v2551
        %2554 = vbcast.lane.b32.xlu0 %v2552, 256
        %v2555 = vpop.permute.xlu0 %2554
        %s2557 = sor.u32 256, 8
        %2558 = vbcast.lane.b32.xlu0 %v2552, %s2557
        %v2559 = vpop.permute.xlu0 %2558
        %v2560 = vlaneseq
        %v2561 = vshrl.u32 %v2560, 7
        %v2562 = vsub.s32 5, %v2561
        %v2563 = vrot.slane %v2504, %v2562
        %2565 = vbcast.lane.b32.xlu0 %v2563, 256
        %v2566 = vpop.permute.xlu0 %2565
        %s2568 = sor.u32 256, 8
        %2569 = vbcast.lane.b32.xlu0 %v2563, %s2568
        %v2570 = vpop.permute.xlu0 %2569
        %v2571 = vlaneseq
        %v2572 = vshrl.u32 %v2571, 7
        %v2573 = vsub.s32 6, %v2572
        %v2574 = vrot.slane %v2504, %v2573
        %2576 = vbcast.lane.b32.xlu0 %v2574, 256
        %v2577 = vpop.permute.xlu0 %2576
        %s2579 = sor.u32 256, 8
        %2580 = vbcast.lane.b32.xlu0 %v2574, %s2579
        %v2581 = vpop.permute.xlu0 %2580
        %v2582 = vlaneseq
        %v2583 = vshrl.u32 %v2582, 7
        %v2584 = vsub.s32 7, %v2583
        %v2585 = vrot.slane %v2504, %v2584
        %2587 = vbcast.lane.b32.xlu0 %v2585, 256
        %v2588 = vpop.permute.xlu0 %2587
        %s2590 = sor.u32 256, 8
        %2591 = vbcast.lane.b32.xlu0 %v2585, %s2590
        %v2592 = vpop.permute.xlu0 %2591
        %v2593 = vmul.f32 %v2511, %v2091
        %v2594 = vmul.f32 %v2515, %v2092
        %v2595 = vmul.f32 %v2522, %v2093
        %v2596 = vmul.f32 %v2526, %v2094
        %v2597 = vmul.f32 %v2533, %v2095
        %v2598 = vmul.f32 %v2537, %v2096
        %v2599 = vmul.f32 %v2544, %v2097
        %v2600 = vmul.f32 %v2548, %v2098
        %v2601 = vmul.f32 %v2555, %v2099
        %v2602 = vmul.f32 %v2559, %v2100
        %v2603 = vmul.f32 %v2566, %v2101
        %v2604 = vmul.f32 %v2570, %v2102
        %v2605 = vmul.f32 %v2577, %v2103
        %v2606 = vmul.f32 %v2581, %v2104
        %v2607 = vmul.f32 %v2588, %v2105
        %v2608 = vmul.f32 %v2592, %v2106
        %v2609 = vsel %vm954, %v2593, 0.0
        %v2610 = vsel %vm954, %v2594, 0.0
        %v2611 = vadd.f32 %v2609, %v2610
        %v2612 = vrot.slane %v2611, 4
        %v2613 = vadd.f32 %v2611, %v2612
        %v2614 = vrot.slane %v2613, 2
        %v2615 = vadd.f32 %v2613, %v2614
        %v2616 = vrot.slane %v2615, 1
        %v2617 = vadd.f32 %v2615, %v2616
        %v2618 = vsel %vm954, %v2595, 0.0
        %v2619 = vsel %vm954, %v2596, 0.0
        %v2620 = vadd.f32 %v2618, %v2619
        %v2621 = vrot.slane %v2620, 4
        %v2622 = vadd.f32 %v2620, %v2621
        %v2623 = vrot.slane %v2622, 2
        %v2624 = vadd.f32 %v2622, %v2623
        %v2625 = vrot.slane %v2624, 1
        %v2626 = vadd.f32 %v2624, %v2625
        %v2627 = vsel %vm954, %v2597, 0.0
        %v2628 = vsel %vm954, %v2598, 0.0
        %v2629 = vadd.f32 %v2627, %v2628
        %v2630 = vrot.slane %v2629, 4
        %v2631 = vadd.f32 %v2629, %v2630
        %v2632 = vrot.slane %v2631, 2
        %v2633 = vadd.f32 %v2631, %v2632
        %v2634 = vrot.slane %v2633, 1
        %v2635 = vadd.f32 %v2633, %v2634
        %v2636 = vsel %vm954, %v2599, 0.0
        %v2637 = vsel %vm954, %v2600, 0.0
        %v2638 = vadd.f32 %v2636, %v2637
        %v2639 = vrot.slane %v2638, 4
        %v2640 = vadd.f32 %v2638, %v2639
        %v2641 = vrot.slane %v2640, 2
        %v2642 = vadd.f32 %v2640, %v2641
        %v2643 = vrot.slane %v2642, 1
        %v2644 = vadd.f32 %v2642, %v2643
        %v2645 = vsel %vm954, %v2601, 0.0
        %v2646 = vsel %vm954, %v2602, 0.0
        %v2647 = vadd.f32 %v2645, %v2646
        %v2648 = vrot.slane %v2647, 4
        %v2649 = vadd.f32 %v2647, %v2648
        %v2650 = vrot.slane %v2649, 2
        %v2651 = vadd.f32 %v2649, %v2650
        %v2652 = vrot.slane %v2651, 1
        %v2653 = vadd.f32 %v2651, %v2652
        %v2654 = vsel %vm954, %v2603, 0.0
        %v2655 = vsel %vm954, %v2604, 0.0
        %v2656 = vadd.f32 %v2654, %v2655
        %v2657 = vrot.slane %v2656, 4
        %v2658 = vadd.f32 %v2656, %v2657
        %v2659 = vrot.slane %v2658, 2
        %v2660 = vadd.f32 %v2658, %v2659
        %v2661 = vrot.slane %v2660, 1
        %v2662 = vadd.f32 %v2660, %v2661
        %v2663 = vsel %vm954, %v2605, 0.0
        %v2664 = vsel %vm954, %v2606, 0.0
        %v2665 = vadd.f32 %v2663, %v2664
        %v2666 = vrot.slane %v2665, 4
        %v2667 = vadd.f32 %v2665, %v2666
        %v2668 = vrot.slane %v2667, 2
        %v2669 = vadd.f32 %v2667, %v2668
        %v2670 = vrot.slane %v2669, 1
        %v2671 = vadd.f32 %v2669, %v2670
        %v2672 = vsel %vm954, %v2607, 0.0
        %v2673 = vsel %vm954, %v2608, 0.0
        %v2674 = vadd.f32 %v2672, %v2673
        %v2675 = vrot.slane %v2674, 4
        %v2676 = vadd.f32 %v2674, %v2675
        %v2677 = vrot.slane %v2676, 2
        %v2678 = vadd.f32 %v2676, %v2677
        %v2679 = vrot.slane %v2678, 1
        %v2680 = vadd.f32 %v2678, %v2679
        %v2689 = vsel %vm1922, %v2626, %v2617
        %v2690 = vsel %vm1924, %v2635, %v2689
        %v2691 = vsel %vm1926, %v2644, %v2690
        %v2692 = vsel %vm1928, %v2653, %v2691
        %v2693 = vsel %vm1930, %v2662, %v2692
        %v2694 = vsel %vm1932, %v2671, %v2693
        %v2695 = vsel %vm1934, %v2680, %v2694
        %v2697 = vadd.f32 %v2502, %v2695
        %2698 = vst.msk [vmem:[%s2501] sm:$0xff] %vm954, %v2697
        // Predicated region
        $region121: #{tpu_custom_call.1} parent=75 // pred_check
          %p2699 = pneg %p893
        $region122: #{tpu_custom_call.1} parent=75 // pred_check_branch
          %2701 = sbr.rel (%p2699) target = $region124
        $region123: #{tpu_custom_call.1} parent=75 // pred_region
          %v2702 = vld [vmem:[#allocation2] sm:$0xff]
          %v2703 = vld [vmem:[%s2303] sm:$0xff]
          %v2704 = vld [vmem:[%s2501] sm:$0xff]
          %v2705 = vmul.f32 %v2702, %v2702
          %v2706 = vmul.f32 %v2703, %v2703
          %v2707 = vadd.f32 %v2705, %v2706
          %v2708 = vmul.f32 %v2704, %v2704
          %v2709 = vadd.f32 %v2707, %v2708
          %v2710 = vrsqrt.pop %v2709
          %v2711 = vmul.f32 %v2709, %v2710
          %vm2712 = vcmp.eq.f32.partialorder %v2709, inf
          %v2713 = vsel %vm2712, %v2709, %v2711
          %vm2714 = vcmp.eq.f32.partialorder %v2709, 0.0
          %v2715 = vand.u32 %v2709, 2147483648
          %v2716 = vsel %vm2714, %v2715, %v2713
          %v2717 = vmax.f32 %v2716, 1e-12
          %v2718 = vsel %vm954, %v2717, -inf
          %2719 = vmax.xlane.f32.xlu0 %v2718
          %v2720 = vpop.xlane.xlu0 %2719
          %v2721 = vsel %vm954, %v2717, inf
          %2722 = vmin.xlane.f32.xlu0 %v2721
          %v2723 = vpop.xlane.xlu0 %2722
          %v2724 = vsub.f32 %v2720, %v2723
          %vm2725 = vcmp.eq.f32.partialorder %v2724, 0.0
          %v2726 = vsel %vm2725, 1.0, %v2724
          %v2727 = vsub.f32 %v2717, %v2723
          %v2728 = vrcp.pop %v2726
          %v2729 = vmul.f32 %v2727, %v2728
          %v2730 = vmax.f32 %v2729, 0.0
          %v2731 = vrcp.pop %v2717
          %v2732 = vmul.f32 %v2730, %v2731
          %v2733 = vmul.f32 %v2702, %v2732
          %v2734 = vpack.c.bf16 %v2733, %v2733
          %v2735 = vld [vmem:[#allocation18] sm:$0xf]
          %v2736 = vld [vmem:[#allocation18 + $0x4] sm:$0xf]
          %v2737 = vld [vmem:[#allocation18 + $0x8] sm:$0xf]
          %v2738 = vld [vmem:[#allocation18 + $0xc] sm:$0xf]
          %v2743 = vunpack.c.l.b16 %v2735
          %v2744 = vunpack.c.l.b16 %v2736
          %v2745 = vunpack.c.l.b16 %v2737
          %v2746 = vunpack.c.l.b16 %v2738
          %v2747 = vpack.c.b16 %v2744, %v2743
          %v2748 = vpack.c.b16 %v2746, %v2745
          %v2752 = vsel %vm954, %v2734, 0
          %2754 = vmatprep.subr.bf16.mxu0 0
          %2755 = vmatpush1.bf16.msra.mxu0 %v2747
          %2756 = vmatprep.subr.bf16.mxu0 0
          %2757 = vmatpush1.bf16.msra.mxu0 %v2748
          %2758 = vmatprep.subr.bf16.mxu0 0
          %2759 = vmatpush1.bf16.msra.mxu0 0
          %2760 = vmatprep.subr.bf16.mxu0 0
          %2761 = vmatpush1.bf16.msra.mxu0 0
          %2762 = vmatprep.subr.bf16.mxu0 0
          %2763 = vmatpush1.bf16.msra.mxu0 0
          %2764 = vmatprep.subr.bf16.mxu0 0
          %2765 = vmatpush1.bf16.msra.mxu0 0
          %2766 = vmatprep.subr.bf16.mxu0 0
          %2767 = vmatpush1.bf16.msra.mxu0 0
          %2768 = vmatprep.subr.bf16.mxu0 0
          %2769 = vmatpush1.bf16.msra.mxu0 0
          %2770 = vmatprep.subr.bf16.mxu0 0
          %2771 = vmatpush1.bf16.msra.mxu0 0
          %2772 = vmatprep.subr.bf16.mxu0 0
          %2773 = vmatpush1.bf16.msra.mxu0 0
          %2774 = vmatprep.subr.bf16.mxu0 0
          %2775 = vmatpush1.bf16.msra.mxu0 0
          %2776 = vmatprep.subr.bf16.mxu0 0
          %2777 = vmatpush1.bf16.msra.mxu0 0
          %2778 = vmatprep.subr.bf16.mxu0 0
          %2779 = vmatpush1.bf16.msra.mxu0 0
          %2780 = vmatprep.subr.bf16.mxu0 0
          %2781 = vmatpush1.bf16.msra.mxu0 0
          %2782 = vmatprep.subr.bf16.mxu0 0
          %2783 = vmatpush1.bf16.msra.mxu0 0
          %2784 = vmatprep.subr.bf16.mxu0 0
          %2785 = vmatpush1.bf16.msra.mxu0 0
          %2786 = vmatprep.mubr.bf16.mxu0 0
          %2787 = vmatmul.mubr.bf16.gmra.mrb[0].mxu0 %v2752
          %v2788 = vpop.f32.mrb[0].mxu0
          %v2789 = vadd.f32 0.0, %v2788
          %v2790 = vpop.f32.mrb[0].mxu0
          %v2791 = vpop.f32.mrb[0].mxu0
          %v2792 = vpop.f32.mrb[0].mxu0
          %2793 = vdwg.mxu0
          %2794 = vst.msk [vmem:[%s880] sm:$0xff] %vm954, %v2789
          %v2795 = vld [vmem:[%s13] sm:$0xf]
          %v2796 = vld [vmem:[%s13 + $0x4] sm:$0xf]
          %v2797 = vld [vmem:[%s13 + $0x8] sm:$0xf]
          %v2798 = vld [vmem:[%s13 + $0xc] sm:$0xf]
          %v2803 = vunpack.c.l.b16 %v2795
          %v2804 = vunpack.c.l.b16 %v2796
          %v2805 = vunpack.c.l.b16 %v2797
          %v2806 = vunpack.c.l.b16 %v2798
          %v2807 = vpack.c.b16 %v2804, %v2803
          %v2808 = vpack.c.b16 %v2806, %v2805
          %2811 = vmatprep.subr.bf16.mxu0 0
          %2812 = vmatpush1.bf16.msra.mxu0 %v2807
          %2813 = vmatprep.subr.bf16.mxu0 0
          %2814 = vmatpush1.bf16.msra.mxu0 %v2808
          %2815 = vmatprep.subr.bf16.mxu0 0
          %2816 = vmatpush1.bf16.msra.mxu0 0
          %2817 = vmatprep.subr.bf16.mxu0 0
          %2818 = vmatpush1.bf16.msra.mxu0 0
          %2819 = vmatprep.subr.bf16.mxu0 0
          %2820 = vmatpush1.bf16.msra.mxu0 0
          %2821 = vmatprep.subr.bf16.mxu0 0
          %2822 = vmatpush1.bf16.msra.mxu0 0
          %2823 = vmatprep.subr.bf16.mxu0 0
          %2824 = vmatpush1.bf16.msra.mxu0 0
          %2825 = vmatprep.subr.bf16.mxu0 0
          %2826 = vmatpush1.bf16.msra.mxu0 0
          %2827 = vmatprep.subr.bf16.mxu0 0
          %2828 = vmatpush1.bf16.msra.mxu0 0
          %2829 = vmatprep.subr.bf16.mxu0 0
          %2830 = vmatpush1.bf16.msra.mxu0 0
          %2831 = vmatprep.subr.bf16.mxu0 0
          %2832 = vmatpush1.bf16.msra.mxu0 0
          %2833 = vmatprep.subr.bf16.mxu0 0
          %2834 = vmatpush1.bf16.msra.mxu0 0
          %2835 = vmatprep.subr.bf16.mxu0 0
          %2836 = vmatpush1.bf16.msra.mxu0 0
          %2837 = vmatprep.subr.bf16.mxu0 0
          %2838 = vmatpush1.bf16.msra.mxu0 0
          %2839 = vmatprep.subr.bf16.mxu0 0
          %2840 = vmatpush1.bf16.msra.mxu0 0
          %2841 = vmatprep.subr.bf16.mxu0 0
          %2842 = vmatpush1.bf16.msra.mxu0 0
          %2843 = vmatprep.mubr.bf16.mxu0 0
          %2844 = vmatmul.mubr.bf16.gmra.mrb[0].mxu0 %v2752
          %v2845 = vpop.f32.mrb[0].mxu0
          %v2846 = vadd.f32 0.0, %v2845
          %v2847 = vpop.f32.mrb[0].mxu0
          %v2848 = vpop.f32.mrb[0].mxu0
          %v2849 = vpop.f32.mrb[0].mxu0
          %2850 = vdwg.mxu0
          %2851 = vst.msk [vmem:[%s887] sm:$0xff] %vm954, %v2846
          %v2852 = vmul.f32 %v2703, %v2732
          %v2853 = vpack.c.bf16 %v2852, %v2852
          %v2854 = vld [vmem:[#allocation18] sm:$0xf]
          %v2855 = vld [vmem:[#allocation18 + $0x4] sm:$0xf]
          %v2856 = vld [vmem:[#allocation18 + $0x8] sm:$0xf]
          %v2857 = vld [vmem:[#allocation18 + $0xc] sm:$0xf]
          %v2862 = vunpack.c.l.b16 %v2854
          %v2863 = vunpack.c.l.b16 %v2855
          %v2864 = vunpack.c.l.b16 %v2856
          %v2865 = vunpack.c.l.b16 %v2857
          %v2866 = vpack.c.b16 %v2863, %v2862
          %v2867 = vpack.c.b16 %v2865, %v2864
          %v2871 = vsel %vm954, %v2853, 0
          %2873 = vmatprep.subr.bf16.mxu0 0
          %2874 = vmatpush1.bf16.msra.mxu0 %v2866
          %2875 = vmatprep.subr.bf16.mxu0 0
          %2876 = vmatpush1.bf16.msra.mxu0 %v2867
          %2877 = vmatprep.subr.bf16.mxu0 0
          %2878 = vmatpush1.bf16.msra.mxu0 0
          %2879 = vmatprep.subr.bf16.mxu0 0
          %2880 = vmatpush1.bf16.msra.mxu0 0
          %2881 = vmatprep.subr.bf16.mxu0 0
          %2882 = vmatpush1.bf16.msra.mxu0 0
          %2883 = vmatprep.subr.bf16.mxu0 0
          %2884 = vmatpush1.bf16.msra.mxu0 0
          %2885 = vmatprep.subr.bf16.mxu0 0
          %2886 = vmatpush1.bf16.msra.mxu0 0
          %2887 = vmatprep.subr.bf16.mxu0 0
          %2888 = vmatpush1.bf16.msra.mxu0 0
          %2889 = vmatprep.subr.bf16.mxu0 0
          %2890 = vmatpush1.bf16.msra.mxu0 0
          %2891 = vmatprep.subr.bf16.mxu0 0
          %2892 = vmatpush1.bf16.msra.mxu0 0
          %2893 = vmatprep.subr.bf16.mxu0 0
          %2894 = vmatpush1.bf16.msra.mxu0 0
          %2895 = vmatprep.subr.bf16.mxu0 0
          %2896 = vmatpush1.bf16.msra.mxu0 0
          %2897 = vmatprep.subr.bf16.mxu0 0
          %2898 = vmatpush1.bf16.msra.mxu0 0
          %2899 = vmatprep.subr.bf16.mxu0 0
          %2900 = vmatpush1.bf16.msra.mxu0 0
          %2901 = vmatprep.subr.bf16.mxu0 0
          %2902 = vmatpush1.bf16.msra.mxu0 0
          %2903 = vmatprep.subr.bf16.mxu0 0
          %2904 = vmatpush1.bf16.msra.mxu0 0
          %2905 = vmatprep.mubr.bf16.mxu0 0
          %2906 = vmatmul.mubr.bf16.gmra.mrb[0].mxu0 %v2871
          %v2907 = vpop.f32.mrb[0].mxu0
          %v2908 = vadd.f32 0.0, %v2907
          %v2909 = vpop.f32.mrb[0].mxu0
          %v2910 = vpop.f32.mrb[0].mxu0
          %v2911 = vpop.f32.mrb[0].mxu0
          %2912 = vdwg.mxu0
          %s2913 = scalar_lea.vmem %s880, 8 [#allocation21]
          %2914 = vst.msk [vmem:[%s2913] sm:$0xff] %vm954, %v2908
          %v2915 = vld [vmem:[%s13] sm:$0xf]
          %v2916 = vld [vmem:[%s13 + $0x4] sm:$0xf]
          %v2917 = vld [vmem:[%s13 + $0x8] sm:$0xf]
          %v2918 = vld [vmem:[%s13 + $0xc] sm:$0xf]
          %v2923 = vunpack.c.l.b16 %v2915
          %v2924 = vunpack.c.l.b16 %v2916
          %v2925 = vunpack.c.l.b16 %v2917
          %v2926 = vunpack.c.l.b16 %v2918
          %v2927 = vpack.c.b16 %v2924, %v2923
          %v2928 = vpack.c.b16 %v2926, %v2925
          %2931 = vmatprep.subr.bf16.mxu0 0
          %2932 = vmatpush1.bf16.msra.mxu0 %v2927
          %2933 = vmatprep.subr.bf16.mxu0 0
          %2934 = vmatpush1.bf16.msra.mxu0 %v2928
          %2935 = vmatprep.subr.bf16.mxu0 0
          %2936 = vmatpush1.bf16.msra.mxu0 0
          %2937 = vmatprep.subr.bf16.mxu0 0
          %2938 = vmatpush1.bf16.msra.mxu0 0
          %2939 = vmatprep.subr.bf16.mxu0 0
          %2940 = vmatpush1.bf16.msra.mxu0 0
          %2941 = vmatprep.subr.bf16.mxu0 0
          %2942 = vmatpush1.bf16.msra.mxu0 0
          %2943 = vmatprep.subr.bf16.mxu0 0
          %2944 = vmatpush1.bf16.msra.mxu0 0
          %2945 = vmatprep.subr.bf16.mxu0 0
          %2946 = vmatpush1.bf16.msra.mxu0 0
          %2947 = vmatprep.subr.bf16.mxu0 0
          %2948 = vmatpush1.bf16.msra.mxu0 0
          %2949 = vmatprep.subr.bf16.mxu0 0
          %2950 = vmatpush1.bf16.msra.mxu0 0
          %2951 = vmatprep.subr.bf16.mxu0 0
          %2952 = vmatpush1.bf16.msra.mxu0 0
          %2953 = vmatprep.subr.bf16.mxu0 0
          %2954 = vmatpush1.bf16.msra.mxu0 0
          %2955 = vmatprep.subr.bf16.mxu0 0
          %2956 = vmatpush1.bf16.msra.mxu0 0
          %2957 = vmatprep.subr.bf16.mxu0 0
          %2958 = vmatpush1.bf16.msra.mxu0 0
          %2959 = vmatprep.subr.bf16.mxu0 0
          %2960 = vmatpush1.bf16.msra.mxu0 0
          %2961 = vmatprep.subr.bf16.mxu0 0
          %2962 = vmatpush1.bf16.msra.mxu0 0
          %2963 = vmatprep.mubr.bf16.mxu0 0
          %2964 = vmatmul.mubr.bf16.gmra.mrb[0].mxu0 %v2871
          %v2965 = vpop.f32.mrb[0].mxu0
          %v2966 = vadd.f32 0.0, %v2965
          %v2967 = vpop.f32.mrb[0].mxu0
          %v2968 = vpop.f32.mrb[0].mxu0
          %v2969 = vpop.f32.mrb[0].mxu0
          %2970 = vdwg.mxu0
          %s2971 = scalar_lea.vmem %s887, 8 [#allocation23]
          %2972 = vst.msk [vmem:[%s2971] sm:$0xff] %vm954, %v2966
          %v2973 = vmul.f32 %v2704, %v2732
          %v2974 = vpack.c.bf16 %v2973, %v2973
          %v2975 = vld [vmem:[#allocation18] sm:$0xf]
          %v2976 = vld [vmem:[#allocation18 + $0x4] sm:$0xf]
          %v2977 = vld [vmem:[#allocation18 + $0x8] sm:$0xf]
          %v2978 = vld [vmem:[#allocation18 + $0xc] sm:$0xf]
          %v2983 = vunpack.c.l.b16 %v2975
          %v2984 = vunpack.c.l.b16 %v2976
          %v2985 = vunpack.c.l.b16 %v2977
          %v2986 = vunpack.c.l.b16 %v2978
          %v2987 = vpack.c.b16 %v2984, %v2983
          %v2988 = vpack.c.b16 %v2986, %v2985
          %v2992 = vsel %vm954, %v2974, 0
          %2994 = vmatprep.subr.bf16.mxu0 0
          %2995 = vmatpush1.bf16.msra.mxu0 %v2987
          %2996 = vmatprep.subr.bf16.mxu0 0
          %2997 = vmatpush1.bf16.msra.mxu0 %v2988
          %2998 = vmatprep.subr.bf16.mxu0 0
          %2999 = vmatpush1.bf16.msra.mxu0 0
          %3000 = vmatprep.subr.bf16.mxu0 0
          %3001 = vmatpush1.bf16.msra.mxu0 0
          %3002 = vmatprep.subr.bf16.mxu0 0
          %3003 = vmatpush1.bf16.msra.mxu0 0
          %3004 = vmatprep.subr.bf16.mxu0 0
          %3005 = vmatpush1.bf16.msra.mxu0 0
          %3006 = vmatprep.subr.bf16.mxu0 0
          %3007 = vmatpush1.bf16.msra.mxu0 0
          %3008 = vmatprep.subr.bf16.mxu0 0
          %3009 = vmatpush1.bf16.msra.mxu0 0
          %3010 = vmatprep.subr.bf16.mxu0 0
          %3011 = vmatpush1.bf16.msra.mxu0 0
          %3012 = vmatprep.subr.bf16.mxu0 0
          %3013 = vmatpush1.bf16.msra.mxu0 0
          %3014 = vmatprep.subr.bf16.mxu0 0
          %3015 = vmatpush1.bf16.msra.mxu0 0
          %3016 = vmatprep.subr.bf16.mxu0 0
          %3017 = vmatpush1.bf16.msra.mxu0 0
          %3018 = vmatprep.subr.bf16.mxu0 0
          %3019 = vmatpush1.bf16.msra.mxu0 0
          %3020 = vmatprep.subr.bf16.mxu0 0
          %3021 = vmatpush1.bf16.msra.mxu0 0
          %3022 = vmatprep.subr.bf16.mxu0 0
          %3023 = vmatpush1.bf16.msra.mxu0 0
          %3024 = vmatprep.subr.bf16.mxu0 0
          %3025 = vmatpush1.bf16.msra.mxu0 0
          %3026 = vmatprep.mubr.bf16.mxu0 0
          %3027 = vmatmul.mubr.bf16.gmra.mrb[0].mxu0 %v2992
          %v3028 = vpop.f32.mrb[0].mxu0
          %v3029 = vadd.f32 0.0, %v3028
          %v3030 = vpop.f32.mrb[0].mxu0
          %v3031 = vpop.f32.mrb[0].mxu0
          %v3032 = vpop.f32.mrb[0].mxu0
          %3033 = vdwg.mxu0
          %s3034 = scalar_lea.vmem %s880, 16 [#allocation21]
          %3035 = vst.msk [vmem:[%s3034] sm:$0xff] %vm954, %v3029
          %v3036 = vld [vmem:[%s13] sm:$0xf]
          %v3037 = vld [vmem:[%s13 + $0x4] sm:$0xf]
          %v3038 = vld [vmem:[%s13 + $0x8] sm:$0xf]
          %v3039 = vld [vmem:[%s13 + $0xc] sm:$0xf]
          %v3044 = vunpack.c.l.b16 %v3036
          %v3045 = vunpack.c.l.b16 %v3037
          %v3046 = vunpack.c.l.b16 %v3038
          %v3047 = vunpack.c.l.b16 %v3039
          %v3048 = vpack.c.b16 %v3045, %v3044
          %v3049 = vpack.c.b16 %v3047, %v3046
          %3052 = vmatprep.subr.bf16.mxu0 0
          %3053 = vmatpush1.bf16.msra.mxu0 %v3048
          %3054 = vmatprep.subr.bf16.mxu0 0
          %3055 = vmatpush1.bf16.msra.mxu0 %v3049
          %3056 = vmatprep.subr.bf16.mxu0 0
          %3057 = vmatpush1.bf16.msra.mxu0 0
          %3058 = vmatprep.subr.bf16.mxu0 0
          %3059 = vmatpush1.bf16.msra.mxu0 0
          %3060 = vmatprep.subr.bf16.mxu0 0
          %3061 = vmatpush1.bf16.msra.mxu0 0
          %3062 = vmatprep.subr.bf16.mxu0 0
          %3063 = vmatpush1.bf16.msra.mxu0 0
          %3064 = vmatprep.subr.bf16.mxu0 0
          %3065 = vmatpush1.bf16.msra.mxu0 0
          %3066 = vmatprep.subr.bf16.mxu0 0
          %3067 = vmatpush1.bf16.msra.mxu0 0
          %3068 = vmatprep.subr.bf16.mxu0 0
          %3069 = vmatpush1.bf16.msra.mxu0 0
          %3070 = vmatprep.subr.bf16.mxu0 0
          %3071 = vmatpush1.bf16.msra.mxu0 0
          %3072 = vmatprep.subr.bf16.mxu0 0
          %3073 = vmatpush1.bf16.msra.mxu0 0
          %3074 = vmatprep.subr.bf16.mxu0 0
          %3075 = vmatpush1.bf16.msra.mxu0 0
          %3076 = vmatprep.subr.bf16.mxu0 0
          %3077 = vmatpush1.bf16.msra.mxu0 0
          %3078 = vmatprep.subr.bf16.mxu0 0
          %3079 = vmatpush1.bf16.msra.mxu0 0
          %3080 = vmatprep.subr.bf16.mxu0 0
          %3081 = vmatpush1.bf16.msra.mxu0 0
          %3082 = vmatprep.subr.bf16.mxu0 0
          %3083 = vmatpush1.bf16.msra.mxu0 0
          %3084 = vmatprep.mubr.bf16.mxu0 0
          %3085 = vmatmul.mubr.bf16.gmra.mrb[0].mxu0 %v2992
          %v3086 = vpop.f32.mrb[0].mxu0
          %v3087 = vadd.f32 0.0, %v3086
          %v3088 = vpop.f32.mrb[0].mxu0
          %v3089 = vpop.f32.mrb[0].mxu0
          %v3090 = vpop.f32.mrb[0].mxu0
          %3091 = vdwg.mxu0
          %s3092 = scalar_lea.vmem %s887, 16 [#allocation23]
          %3093 = vst.msk [vmem:[%s3092] sm:$0xff] %vm954, %v3087
        $region124: #{tpu_custom_call.1} parent=75 // pred_fallthru
          _
        %s3094 = sand.u32 %s428, 1
        %s3095 = scalar_lea.sflag [#allocation5], %s3094
        %s3096 = sand.u32 %s428, 1
        %s3097 = smul.addr %s3096, 8
        %s3098 = scalar_lea.vmem [#allocation20], %s3097
        %s3099 = sand.u32 %s48, 1
        %s3100 = scalar_lea.sflag [#allocation22], %s3099
        %s3101 = sand.u32 %s456, 1
        %s3102 = smul.addr %s3101, 24
        %s3103 = scalar_lea.vmem [#allocation21], %s3102
        %s3104 = sand.u32 %s48, 1
        %s3105 = scalar_lea.sflag [#allocation22], %s3104
        %s3106 = sand.u32 %s484, 1
        %s3107 = smul.addr %s3106, 24
        %s3108 = scalar_lea.vmem [#allocation23], %s3107
        // Predicated region
        $region125: #{tpu_custom_call.1} parent=75 // pred_check
          %p3109 = pneg %p438
        $region126: #{tpu_custom_call.1} parent=75 // pred_check_branch
          %3111 = sbr.rel (%p3109) target = $region128
        $region127: #{tpu_custom_call.1} parent=75 // pred_region
          %s3113 = ssub.s32 128, 128
          %3114 = vsyncadd %s3095, %s3113
          %s3115 = smul.addr %s53, 2
          %s3116 = sadd.s32 %s54, %s3115
          %s3117 = smul.addr %s3116, 128
          %s3118 = scalar_lea.hbm %s14, %s3117
          %s3120 = sshll.u32 %s3098, 4
          %s3121 = int_to_ptr.vmem [resolvable:$true] %s3120
          %3123 = dma.vmem_to_hbm [thread:$0]  %s3121, 128, %s3118, %s3095
        $region128: #{tpu_custom_call.1} parent=75 // pred_fallthru
          _
        // Predicated region
        $region129: #{tpu_custom_call.1} parent=75 // pred_check
          %p3124 = pneg %p466
        $region130: #{tpu_custom_call.1} parent=75 // pred_check_branch
          %3126 = sbr.rel (%p3124) target = $region132
        $region131: #{tpu_custom_call.1} parent=75 // pred_region
          %s3128 = ssub.s32 384, 384
          %3129 = vsyncadd %s3100, %s3128
          %s3130 = smul.addr %s53, 6
          %s3131 = sadd.s32 %s54, %s3130
          %s3132 = smul.addr %s3131, 128
          %s3133 = scalar_lea.hbm %s15, %s3132
          %s3134 = sshll.u32 %s3103, 4
          %s3135 = int_to_ptr.vmem [resolvable:$true] %s3134
          %3140 = dma.vmem_to_hbm [thread:$0]  %s3135, 384, %s3133, %s3100, 128, 256, 8
        $region132: #{tpu_custom_call.1} parent=75 // pred_fallthru
          _
        // Predicated region
        $region133: #{tpu_custom_call.1} parent=75 // pred_check
          %p3141 = pneg %p494
        $region134: #{tpu_custom_call.1} parent=75 // pred_check_branch
          %3143 = sbr.rel (%p3141) target = $region136
        $region135: #{tpu_custom_call.1} parent=75 // pred_region
          %s3145 = ssub.s32 384, 384
          %3146 = vsyncadd %s3105, %s3145
          %s3147 = smul.addr %s53, 6
          %s3148 = sadd.s32 %s54, %s3147
          %s3149 = smul.addr %s3148, 128
          %s3150 = scalar_lea.hbm %s16, %s3149
          %s3151 = sshll.u32 %s3108, 4
          %s3152 = int_to_ptr.vmem [resolvable:$true] %s3151
          %3157 = dma.vmem_to_hbm [thread:$0]  %s3152, 384, %s3150, %s3105, 128, 256, 8
        $region136: #{tpu_custom_call.1} parent=75 // pred_fallthru
          _
      $region76: #{tpu_custom_call.1} parent=5 // pred_fallthru
        _
      %p3158 = scmp.le.s32.totalorder 2, %s43
      // Predicated region
      $region137: #{tpu_custom_call.1} parent=5 // pred_check
        %p3159 = pneg %p3158
      $region138: #{tpu_custom_call.1} parent=5 // pred_check_branch
        %3161 = sbr.rel (%p3159) target = $region140
      $region139: #{tpu_custom_call.1} parent=5 // pred_region
        %s3162 = ssub.s32 %s43, 2
        // Predicated region
        $region141: #{tpu_custom_call.1} parent=139 // pred_check
          %p3163 = pneg %p444
        $region142: #{tpu_custom_call.1} parent=139 // pred_check_branch
          %3165 = sbr.rel (%p3163) target = $region144
        $region143: #{tpu_custom_call.1} parent=139 // pred_region
          %s3166 = sand.u32 %s429, 1
          %s3167 = scalar_lea.sflag [#allocation5], %s3166
          %s3168 = sand.u32 %s429, 1
          %s3169 = smul.addr %s3168, 8
          %s3170 = scalar_lea.vmem [#allocation20], %s3169
          %3171 = dma.done %s3167, 128
        $region144: #{tpu_custom_call.1} parent=139 // pred_fallthru
          _
        // Predicated region
        $region145: #{tpu_custom_call.1} parent=139 // pred_check
          %p3172 = pneg %p472
        $region146: #{tpu_custom_call.1} parent=139 // pred_check_branch
          %3174 = sbr.rel (%p3172) target = $region148
        $region147: #{tpu_custom_call.1} parent=139 // pred_region
          %s3175 = sand.u32 %s49, 1
          %s3176 = scalar_lea.sflag [#allocation22], %s3175
          %s3177 = sand.u32 %s457, 1
          %s3178 = smul.addr %s3177, 24
          %s3179 = scalar_lea.vmem [#allocation21], %s3178
          %3180 = dma.done %s3176, 384
        $region148: #{tpu_custom_call.1} parent=139 // pred_fallthru
          _
        // Predicated region
        $region149: #{tpu_custom_call.1} parent=139 // pred_check
          %p3181 = pneg %p500
        $region150: #{tpu_custom_call.1} parent=139 // pred_check_branch
          %3183 = sbr.rel (%p3181) target = $region152
        $region151: #{tpu_custom_call.1} parent=139 // pred_region
          %s3184 = sand.u32 %s49, 1
          %s3185 = scalar_lea.sflag [#allocation22], %s3184
          %s3186 = sand.u32 %s485, 1
          %s3187 = smul.addr %s3186, 24
          %s3188 = scalar_lea.vmem [#allocation23], %s3187
          %3189 = dma.done %s3185, 384
        $region152: #{tpu_custom_call.1} parent=139 // pred_fallthru
          _
      $region140: #{tpu_custom_call.1} parent=5 // pred_fallthru
        _
    $region6: #{tpu_custom_call.1} parent=1 // loop_footer
      %s47 = sadd.s32 1, %s43
    $region7: #{tpu_custom_call.1} parent=1 // loop_footer_branch
      %42 = sbr.rel target = $region3
    $region8: #{tpu_custom_call.1} parent=1 // loop_exit
      _
    %3190 = vsyncpa [#allocation4], 1
    %s3191 = scalar_lea.sflag [#allocation4], 1
    %3192 = vsyncpa %s3191, 1
    %3193 = vsyncpa [#allocation7], 1
    %s3194 = scalar_lea.sflag [#allocation7], 1
    %3195 = vsyncpa %s3194, 1
    %3196 = vsyncpa [#allocation10], 1
    %s3197 = scalar_lea.sflag [#allocation10], 1
    %3198 = vsyncpa %s3197, 1
    %3199 = vsyncpa [#allocation13], 1
    %s3200 = scalar_lea.sflag [#allocation13], 1
    %3201 = vsyncpa %s3200, 1
    %3202 = vsyncpa [#allocation16], 1
    %3203 = vsyncpa [#allocation19], 1
    %3204 = vsyncpa [#allocation5], 1
    %s3205 = scalar_lea.sflag [#allocation5], 1
    %3206 = vsyncpa %s3205, 1
    %3207 = vsyncpa [#allocation22], 1
    %s3208 = scalar_lea.sflag [#allocation22], 1
    %3209 = vsyncpa %s3208, 1

</llo_original>
